<compile_context>
chip_gen: v7x
topology: tpu7x:2x2x1
jax: 0.10.0
libtpu: 0.0.40
codegen_flags: <defaults>
</compile_context>

<pallas_src>
import jax
import jax.numpy as jnp
from jax import lax
from jax.experimental import pallas as pl
from jax.experimental.pallas import tpu as pltpu

INPUT_DIM = 100                 # forced by the 52-wide conv output feeding Ws
TWO_D = 2 * INPUT_DIM
CONV_OUT = 52                   # floor((100 + 2*4 - 5)/2) + 1
N_CLASS = 6

GATE_PAD = 128                  # each LSTM gate (i, f, g, o) gets a 128-lane slot
FUSED_W = 5 * GATE_PAD          # 4 gate slots (512) + conv (52) + zero pad -> 640
K_FULL = TWO_D * TWO_D          # 40_000-long bilinear contraction
K_BLK = 4096                    # contraction block streamed per grid step
K_PAD = ((K_FULL + K_BLK - 1) // K_BLK) * K_BLK    # 40_960


# --------------------------------------------------------------------------
# Pallas kernels
# --------------------------------------------------------------------------
def bilinear_fused_kernel(outer_ref, vT_ref, vcat_ref, wwt_ref, wb_ref,
                          wfused_ref, bfused_ref, out_ref, acc_ref):
    """Stage 1: quad = outer @ V^T accumulated over K blocks (V streamed from
    HBM exactly once); at the last block: sigmoid(quad + W v_cat + b) and the
    fused [Wih^T | conv] matmul, written as one lane-dense (M, 640) block."""
    k = pl.program_id(0)

    @pl.when(k == 0)
    def _init():
        acc_ref[...] = jnp.zeros_like(acc_ref)

    acc_ref[...] += jnp.dot(outer_ref[...], vT_ref[...],
                            preferred_element_type=jnp.float32)

    @pl.when(k == pl.num_programs(0) - 1)
    def _finalize():
        lin = jnp.dot(vcat_ref[...], wwt_ref[...],
                      preferred_element_type=jnp.float32) + wb_ref[...]
        p = jax.nn.sigmoid(acc_ref[...] + lin)                 # (M, D)
        # dropout(0.8) -> identity (eval mode)
        out_ref[...] = (jnp.dot(p, wfused_ref[...],
                                preferred_element_type=jnp.float32)
                        + bfused_ref[...])                     # (M, 640)


def lstm_scan_kernel(fused_ref, whht_ref, h_out_ref):
    """Stage 2: sequential LSTMCell over 2*seq precomputed gate inputs.
    Gate layout is 4 x 128-lane slots (i, f, g, o); the padded lanes (>= D)
    are zero in the weights/biases and provably stay zero in (h, c)."""
    n_steps = fused_ref.shape[0]

    def step(t, carry):
        h, c = carry                                           # (1, 128) each
        gates = (fused_ref[pl.ds(t, 1), 0:4 * GATE_PAD]
                 + jnp.dot(h, whht_ref[...],
                           preferred_element_type=jnp.float32))  # (1, 512)
        i_g = jax.nn.sigmoid(gates[:, 0:GATE_PAD])
        f_g = jax.nn.sigmoid(gates[:, GATE_PAD:2 * GATE_PAD])
        g_g = jnp.tanh(gates[:, 2 * GATE_PAD:3 * GATE_PAD])
        o_g = jax.nn.sigmoid(gates[:, 3 * GATE_PAD:4 * GATE_PAD])
        c_new = f_g * c + i_g * g_g
        h_new = o_g * jnp.tanh(c_new)
        h_out_ref[pl.ds(t, 1), :] = h_new
        return h_new, c_new

    zero = jnp.zeros((1, GATE_PAD), jnp.float32)
    lax.fori_loop(0, n_steps, step, (zero, zero), unroll=True)


# --------------------------------------------------------------------------
# Glue (parameter prep, sequence reversal, reshapes)
# --------------------------------------------------------------------------
def _reverse_seq(X, mask):
    """X: (T, B, F); mask: (B, T).  JAX version of RNTN._reverse_seq."""
    T = X.shape[0]
    lens = jnp.sum(mask, axis=1).astype(jnp.int32)            # (B,)
    t = jnp.arange(T)
    src = lens[None, :] - 1 - t[:, None]                      # (T, B)
    valid = t[:, None] < lens[None, :]
    idx = jnp.broadcast_to(jnp.clip(src, 0, T - 1)[:, :, None], X.shape)
    out = jnp.take_along_axis(X, idx, axis=0)
    # TODO(synk): pad_sequence trims to max(lens); static length T kept here
    #             (identical when the mask is full, as in the demo).
    return jnp.where(valid[:, :, None], out, 0.0)


def _build_vcat(X):
    """Per step i: concat(X[i-1] if i>0 else X[i], X[i]) along features."""
    prev = jnp.concatenate([X[:1], X[:-1]], axis=0)
    return jnp.concatenate([prev, X], axis=-1)                # (T, B, 2D)


def _conv_matrix(conv_w, D, out_len, k=5, pad=4, stride=2):
    """Conv1d(1, 1, k, padding=pad, stride=stride) as a (D, out_len) matmul."""
    w = conv_w[0, 0]                                          # (k,)
    Wc = jnp.zeros((D, out_len), jnp.float32)
    l = jnp.arange(out_len)
    for kk in range(k):
        j = stride * l + kk - pad
        valid = (j >= 0) & (j < D)
        Wc = Wc.at[jnp.clip(j, 0, D - 1), l].add(jnp.where(valid, w[kk], 0.0))
    return Wc


def rntn_forward(U, mask, params, v_mask_key=None):
    seq, B, D = U.shape
    assert D == INPUT_DIM and B == 1, "module semantics require batch==1, dim==100"
    M = 2 * seq
    GP = GATE_PAD

    # ---- per-forward random mask on V (torch.rand(V.size()) > 0.15) ----
    V4 = params['V']                                          # (D, 1, 2D, 2D)
    if v_mask_key is not None:
        keep = (jax.random.uniform(v_mask_key, V4.shape) > 0.15).astype(V4.dtype)
        V4 = V4 * keep
    V3 = V4[:, 0]                                             # (D, 2D, 2D)

    # V reshaped once so the bilinear term is a single streamed (M,K)@(K,D).
    vT = jnp.transpose(V3, (1, 2, 0)).reshape(K_FULL, D)      # [(i*2D+j), d]
    vT = jnp.pad(vT, ((0, K_PAD - K_FULL), (0, 0)))

    # ---- weights prepped for the kernels (done once per call, plain XLA) ----
    wwt = params['W_w'].T                                     # (2D, D)
    wb = params['W_b'][None, :]                               # (1, D)
    Wc = _conv_matrix(params['conv_w'], D, CONV_OUT)          # (D, 52)

    Wih, Whh = params['lstm_Wih'], params['lstm_Whh']         # (4D, D) each
    blstm = params['lstm_bih'] + params['lstm_bhh']           # (4D,)
    wfused = jnp.zeros((D, FUSED_W), jnp.float32)             # [i|f|g|o|conv]
    bfused = jnp.zeros((1, FUSED_W), jnp.float32)
    whht_pad = jnp.zeros((GP, 4 * GP), jnp.float32)
    for g in range(4):                                        # gate order i,f,g,o
        wfused = wfused.at[:, g * GP:g * GP + D].set(Wih[g * D:(g + 1) * D, :].T)
        bfused = bfused.at[0, g * GP:g * GP + D].set(blstm[g * D:(g + 1) * D])
        whht_pad = whht_pad.at[:D, g * GP:g * GP + D].set(
            Whh[g * D:(g + 1) * D, :].T)
    wfused = wfused.at[:, 4 * GP:4 * GP + CONV_OUT].set(Wc)
    bfused = bfused.at[0, 4 * GP:4 * GP + CONV_OUT].set(params['conv_b'][0])

    # ---- v_cat for ALL 2*seq steps (forward pass then reversed pass) ----
    rever_U = _reverse_seq(U, mask)
    vcat = jnp.concatenate([_build_vcat(U), _build_vcat(rever_U)], axis=0)
    vcat = vcat.reshape(M, TWO_D)                             # B == 1
    outer = (vcat[:, :, None] * vcat[:, None, :]).reshape(M, K_FULL)
    outer = jnp.pad(outer, ((0, 0), (0, K_PAD - K_FULL)))     # (M, 40960)

    # ---- stage 1: batched bilinear + linear + sigmoid + fused Wih/conv ----
    fused = pl.pallas_call(
        bilinear_fused_kernel,
        out_shape=jax.ShapeDtypeStruct((M, FUSED_W), jnp.float32),
        grid=(K_PAD // K_BLK,),
        in_specs=[
            pl.BlockSpec((M, K_BLK), lambda k: (0, k)),       # outer products
            pl.BlockSpec((K_BLK, D), lambda k: (k, 0)),       # V, streamed once
            pl.BlockSpec((M, TWO_D), lambda k: (0, 0)),       # v_cat (all steps)
            pl.BlockSpec((TWO_D, D), lambda k: (0, 0)),       # W^T
            pl.BlockSpec((1, D), lambda k: (0, 0)),           # W bias
            pl.BlockSpec((D, FUSED_W), lambda k: (0, 0)),     # [Wih^T | conv]
            pl.BlockSpec((1, FUSED_W), lambda k: (0, 0)),     # fused bias
        ],
        out_specs=pl.BlockSpec((M, FUSED_W), lambda k: (0, 0)),
        scratch_shapes=[pltpu.VMEM((M, D), jnp.float32)],     # quad accumulator
        compiler_params=pltpu.CompilerParams(
            dimension_semantics=("arbitrary",)),              # K is a reduction
    )(outer, vT, vcat, wwt, wb, wfused, bfused)

    # ---- stage 2: sequential LSTMCell recurrence, one kernel invocation ----
    h_all = pl.pallas_call(
        lstm_scan_kernel,
        out_shape=jax.ShapeDtypeStruct((M, GP), jnp.float32),
    )(fused, whht_pad)

    # ---- classifier in plain XLA (tiny; a pallas_call here is pure overhead)
    h3_all = fused[:, 4 * GP:4 * GP + CONV_OUT]               # (M, 52)
    h_cat = jnp.concatenate([h_all[:, :D], h3_all], axis=1)   # (M, D + 52)
    results1 = h_cat[:seq]
    results2 = _reverse_seq(h_cat[seq:].reshape(seq, B, D + CONV_OUT), mask)
    results2 = results2.reshape(seq, D + CONV_OUT)
    feats = jnp.concatenate([results1, results2], axis=1)     # (seq, 2*(52+D))
    logits = feats @ params['Ws_w'].T + params['Ws_b'][None, :]
    return jax.nn.log_softmax(logits, axis=1)


def init_params(key, input_dim=INPUT_DIM, n_class=N_CLASS):
    D = input_dim
    ks = jax.random.split(key, 12)

    def u(k, shape, fan_in):
        bound = 1.0 / float(fan_in) ** 0.5
        return jax.random.uniform(k, shape, jnp.float32, -bound, bound)

    # TODO(synk): PyTorch inits V to zeros; small random values are used here
    #             so the bilinear MXU path is actually exercised.
    V = 0.02 * jax.random.normal(ks[0], (D, 1, 2 * D, 2 * D), jnp.float32)
    return {
        'V': V,
        'W_w': u(ks[2], (D, 2 * D), 2 * D),        'W_b': u(ks[3], (D,), 2 * D),
        'lstm_Wih': u(ks[4], (4 * D, D), D),       'lstm_Whh': u(ks[5], (4 * D, D), D),
        'lstm_bih': u(ks[6], (4 * D,), D),         'lstm_bhh': u(ks[7], (4 * D,), D),
        'conv_w': u(ks[8], (1, 1, 5), 5),          'conv_b': u(ks[9], (1,), 5),
        'Ws_w': u(ks[10], (n_class, 2 * (52 + D)), 2 * (52 + D)),
        'Ws_b': u(ks[11], (n_class,), 2 * (52 + D)),
    }


if __name__ == "__main__":
    key = jax.random.PRNGKey(0)
    k_param, k_u, k_mask = jax.random.split(key, 3)
    params = init_params(k_param)

    seq, B = 8, 1                       # batch must be 1 (see notes at top)
    U = jax.random.normal(k_u, (seq, B, INPUT_DIM), jnp.float32)
    mask = jnp.ones((B, seq), jnp.float32)

    out = jax.jit(rntn_forward)(U, mask, params, k_mask)
    out = jax.block_until_ready(out)
    assert out.shape == (seq * B, N_CLASS)
    assert bool(jnp.all(jnp.isfinite(out)))
    print("KERNEL_OK")
</pallas_src>

<mosaic_0001>
module attributes {stable_mosaic.version = 11 : i64} {
  func.func private @main(%arg0: i32) attributes {dimension_semantics = [#tpu.dimension_semantics<core_parallel>], iteration_bounds = array<i64: 2>, tpu.core_type = #tpu.core_type<sc_scalar_subcore>, window_params = []} {
    return
  }
}

module attributes {stable_mosaic.version = 11 : i64} {
  func.func private @main(%arg0: i32) attributes {dimension_semantics = [#tpu.dimension_semantics<core_parallel>], iteration_bounds = array<i64: 2>, tpu.core_type = #tpu.core_type<sc_scalar_subcore>, window_params = []} {
    return
  }
}

module attributes {stable_mosaic.version = 11 : i64} {
  func.func @bilinear_fused_kernel(%arg0: i32, %arg1: memref<16x4096xf32, #tpu.memory_space<vmem>>, %arg2: memref<4096x100xf32, #tpu.memory_space<vmem>>, %arg3: memref<16x200xf32, #tpu.memory_space<vmem>>, %arg4: memref<200x100xf32, #tpu.memory_space<vmem>>, %arg5: memref<1x100xf32, #tpu.memory_space<vmem>>, %arg6: memref<100x640xf32, #tpu.memory_space<vmem>>, %arg7: memref<1x640xf32, #tpu.memory_space<vmem>>, %arg8: memref<16x640xf32, #tpu.memory_space<vmem>>, %arg9: memref<16x100xf32, #tpu.memory_space<vmem>>) attributes {dimension_semantics = [#tpu.dimension_semantics<arbitrary>], iteration_bounds = array<i64: 10>, scalar_prefetch = 0 : i64, scratch_operands = 1 : i64, tpu.core_type = #tpu.core_type<tc>, window_params = [{transform_indices = @transform_0, window_bounds = array<i64: 16, 4096>}, {transform_indices = @transform_1, window_bounds = array<i64: 4096, 100>}, {pipeline_mode = #tpu.pipeline_mode<synchronous>, transform_indices = @transform_2, window_bounds = array<i64: 16, 200>}, {pipeline_mode = #tpu.pipeline_mode<synchronous>, transform_indices = @transform_3, window_bounds = array<i64: 200, 100>}, {pipeline_mode = #tpu.pipeline_mode<synchronous>, transform_indices = @transform_4, window_bounds = array<i64: 1, 100>}, {pipeline_mode = #tpu.pipeline_mode<synchronous>, transform_indices = @transform_5, window_bounds = array<i64: 100, 640>}, {pipeline_mode = #tpu.pipeline_mode<synchronous>, transform_indices = @transform_6, window_bounds = array<i64: 1, 640>}, {pipeline_mode = #tpu.pipeline_mode<synchronous>, transform_indices = @transform_7, window_bounds = array<i64: 16, 640>}]} {
    %c0_i32 = arith.constant 0 : i32
    %0 = arith.cmpi eq, %arg0, %c0_i32 : i32
    %1 = arith.extui %0 : i1 to i32
    %c0_i32_0 = arith.constant 0 : i32
    %2 = arith.cmpi ne, %1, %c0_i32_0 : i32
    scf.if %2 {
      %cst_9 = arith.constant 0.000000e+00 : f32
      %12 = vector.broadcast %cst_9 : f32 to vector<16x100xf32>
      %c0_10 = arith.constant 0 : index
      %c0_11 = arith.constant 0 : index
      %13 = vector.load %arg9[%c0_10, %c0_11] : memref<16x100xf32, #tpu.memory_space<vmem>>, vector<16x100xf32>
      tpu.vector_store %arg9[%c0_10, %c0_11], %12 {strides = array<i32>} : memref<16x100xf32, #tpu.memory_space<vmem>>, vector<16x100xf32>,
    } else {
    }
    %c0 = arith.constant 0 : index
    %c0_1 = arith.constant 0 : index
    %3 = vector.load %arg9[%c0, %c0_1] : memref<16x100xf32, #tpu.memory_space<vmem>>, vector<16x100xf32>
    %c0_2 = arith.constant 0 : index
    %c0_3 = arith.constant 0 : index
    %4 = vector.load %arg1[%c0_2, %c0_3] : memref<16x4096xf32, #tpu.memory_space<vmem>>, vector<16x4096xf32>
    %c0_4 = arith.constant 0 : index
    %c0_5 = arith.constant 0 : index
    %5 = vector.load %arg2[%c0_4, %c0_5] : memref<4096x100xf32, #tpu.memory_space<vmem>>, vector<4096x100xf32>
    %cst = arith.constant dense<0.000000e+00> : vector<16x100xf32>
    %6 = tpu.matmul %4, %5, %cst {dimension_numbers = #tpu.dot_dimension_numbers<[1], [0], [0], [1], [0, 0, 1, 1], [], []>} : vector<16x4096xf32>, vector<4096x100xf32>, vector<16x100xf32> -> vector<16x100xf32>
    %7 = arith.addf %3, %6 : vector<16x100xf32>
    %c0_6 = arith.constant 0 : index
    %c0_7 = arith.constant 0 : index
    %8 = vector.load %arg9[%c0_6, %c0_7] : memref<16x100xf32, #tpu.memory_space<vmem>>, vector<16x100xf32>
    tpu.vector_store %arg9[%c0_6, %c0_7], %7 {strides = array<i32>} : memref<16x100xf32, #tpu.memory_space<vmem>>, vector<16x100xf32>,
    %c9_i32 = arith.constant 9 : i32
    %9 = arith.cmpi eq, %arg0, %c9_i32 : i32
    %10 = arith.extui %9 : i1 to i32
    %c0_i32_8 = arith.constant 0 : i32
    %11 = arith.cmpi ne, %10, %c0_i32_8 : i32
    scf.if %11 {
      %c0_9 = arith.constant 0 : index
      %c0_10 = arith.constant 0 : index
      %12 = vector.load %arg3[%c0_9, %c0_10] : memref<16x200xf32, #tpu.memory_space<vmem>>, vector<16x200xf32>
      %c0_11 = arith.constant 0 : index
      %c0_12 = arith.constant 0 : index
      %13 = vector.load %arg4[%c0_11, %c0_12] : memref<200x100xf32, #tpu.memory_space<vmem>>, vector<200x100xf32>
      %cst_13 = arith.constant dense<0.000000e+00> : vector<16x100xf32>
      %14 = tpu.matmul %12, %13, %cst_13 {dimension_numbers = #tpu.dot_dimension_numbers<[1], [0], [0], [1], [0, 0, 1, 1], [], []>} : vector<16x200xf32>, vector<200x100xf32>, vector<16x100xf32> -> vector<16x100xf32>
      %c0_14 = arith.constant 0 : index
      %c0_15 = arith.constant 0 : index
      %15 = vector.load %arg5[%c0_14, %c0_15] : memref<1x100xf32, #tpu.memory_space<vmem>>, vector<1x100xf32>
      %16 = vector.broadcast %15 : vector<1x100xf32> to vector<16x100xf32>
      %17 = arith.addf %14, %16 : vector<16x100xf32>
      %c0_16 = arith.constant 0 : index
      %c0_17 = arith.constant 0 : index
      %18 = vector.load %arg9[%c0_16, %c0_17] : memref<16x100xf32, #tpu.memory_space<vmem>>, vector<16x100xf32>
      %19 = arith.addf %18, %17 : vector<16x100xf32>
      %20 = arith.negf %19 : vector<16x100xf32>
      %21 = math.exp %20 : vector<16x100xf32>
      %cst_18 = arith.constant 1.000000e+00 : f32
      %22 = vector.broadcast %cst_18 : f32 to vector<16x100xf32>
      %23 = arith.addf %22, %21 : vector<16x100xf32>
      %24 = arith.divf %22, %23 : vector<16x100xf32>
      %c0_19 = arith.constant 0 : index
      %c0_20 = arith.constant 0 : index
      %25 = vector.load %arg6[%c0_19, %c0_20] : memref<100x640xf32, #tpu.memory_space<vmem>>, vector<100x640xf32>
      %cst_21 = arith.constant dense<0.000000e+00> : vector<16x640xf32>
      %26 = tpu.matmul %24, %25, %cst_21 {dimension_numbers = #tpu.dot_dimension_numbers<[1], [0], [0], [1], [0, 0, 1, 1], [], []>} : vector<16x100xf32>, vector<100x640xf32>, vector<16x640xf32> -> vector<16x640xf32>
      %c0_22 = arith.constant 0 : index
      %c0_23 = arith.constant 0 : index
      %27 = vector.load %arg7[%c0_22, %c0_23] : memref<1x640xf32, #tpu.memory_space<vmem>>, vector<1x640xf32>
      %28 = vector.broadcast %27 : vector<1x640xf32> to vector<16x640xf32>
      %29 = arith.addf %26, %28 : vector<16x640xf32>
      %c0_24 = arith.constant 0 : index
      %c0_25 = arith.constant 0 : index
      %30 = vector.load %arg8[%c0_24, %c0_25] : memref<16x640xf32, #tpu.memory_space<vmem>>, vector<16x640xf32>
      tpu.vector_store %arg8[%c0_24, %c0_25], %29 {strides = array<i32>} : memref<16x640xf32, #tpu.memory_space<vmem>>, vector<16x640xf32>,
    } else {
    }
    return
  }
  func.func @transform_0(%arg0: i32) -> (i32, i32) {
    %c0_i32 = arith.constant 0 : i32
    %c0_i32_0 = arith.constant 0 : i32
    return %c0_i32, %arg0 : i32, i32
  }
  func.func @transform_1(%arg0: i32) -> (i32, i32) {
    %c0_i32 = arith.constant 0 : i32
    %c0_i32_0 = arith.constant 0 : i32
    return %arg0, %c0_i32 : i32, i32
  }
  func.func @transform_2(%arg0: i32) -> (i32, i32) {
    %c0_i32 = arith.constant 0 : i32
    %c0_i32_0 = arith.constant 0 : i32
    %c0_i32_1 = arith.constant 0 : i32
    return %c0_i32, %c0_i32_0 : i32, i32
  }
  func.func @transform_3(%arg0: i32) -> (i32, i32) {
    %c0_i32 = arith.constant 0 : i32
    %c0_i32_0 = arith.constant 0 : i32
    %c0_i32_1 = arith.constant 0 : i32
    return %c0_i32, %c0_i32_0 : i32, i32
  }
  func.func @transform_4(%arg0: i32) -> (i32, i32) {
    %c0_i32 = arith.constant 0 : i32
    %c0_i32_0 = arith.constant 0 : i32
    %c0_i32_1 = arith.constant 0 : i32
    return %c0_i32, %c0_i32_0 : i32, i32
  }
  func.func @transform_5(%arg0: i32) -> (i32, i32) {
    %c0_i32 = arith.constant 0 : i32
    %c0_i32_0 = arith.constant 0 : i32
    %c0_i32_1 = arith.constant 0 : i32
    return %c0_i32, %c0_i32_0 : i32, i32
  }
  func.func @transform_6(%arg0: i32) -> (i32, i32) {
    %c0_i32 = arith.constant 0 : i32
    %c0_i32_0 = arith.constant 0 : i32
    %c0_i32_1 = arith.constant 0 : i32
    return %c0_i32, %c0_i32_0 : i32, i32
  }
  func.func @transform_7(%arg0: i32) -> (i32, i32) {
    %c0_i32 = arith.constant 0 : i32
    %c0_i32_0 = arith.constant 0 : i32
    %c0_i32_1 = arith.constant 0 : i32
    return %c0_i32, %c0_i32_0 : i32, i32
  }
}

module attributes {stable_mosaic.version = 11 : i64} {
  func.func @lstm_scan_kernel(%arg0: memref<16x640xf32, #tpu.memory_space<vmem>>, %arg1: memref<128x512xf32, #tpu.memory_space<vmem>>, %arg2: memref<16x128xf32, #tpu.memory_space<vmem>>) attributes {dimension_semantics = [], scalar_prefetch = 0 : i64, scratch_operands = 0 : i64, tpu.core_type = #tpu.core_type<tc>} {
    %cst = arith.constant 0.000000e+00 : f32
    %0 = vector.broadcast %cst : f32 to vector<1x128xf32>
    %c0_i32 = arith.constant 0 : i32
    %1 = arith.index_cast %c0_i32 : i32 to index
    %c0 = arith.constant 0 : index
    %2 = vector.load %arg0[%1, %c0] : memref<16x640xf32, #tpu.memory_space<vmem>>, vector<1x512xf32>
    %c0_0 = arith.constant 0 : index
    %c0_1 = arith.constant 0 : index
    %3 = vector.load %arg1[%c0_0, %c0_1] : memref<128x512xf32, #tpu.memory_space<vmem>>, vector<128x512xf32>
    %cst_2 = arith.constant dense<0.000000e+00> : vector<1x512xf32>
    %4 = tpu.matmul %0, %3, %cst_2 {dimension_numbers = #tpu.dot_dimension_numbers<[1], [0], [0], [1], [0, 0, 1, 1], [], []>} : vector<1x128xf32>, vector<128x512xf32>, vector<1x512xf32> -> vector<1x512xf32>
    %5 = arith.addf %2, %4 : vector<1x512xf32>
    %6 = vector.extract_strided_slice %5 {offsets = [0, 0], sizes = [1, 128], strides = [1, 1]} : vector<1x512xf32> to vector<1x128xf32>
    %7 = arith.negf %6 : vector<1x128xf32>
    %8 = math.exp %7 : vector<1x128xf32>
    %cst_3 = arith.constant 1.000000e+00 : f32
    %9 = vector.broadcast %cst_3 : f32 to vector<1x128xf32>
    %10 = arith.addf %9, %8 : vector<1x128xf32>
    %11 = arith.divf %9, %10 : vector<1x128xf32>
    %12 = vector.extract_strided_slice %5 {offsets = [0, 128], sizes = [1, 128], strides = [1, 1]} : vector<1x512xf32> to vector<1x128xf32>
    %13 = arith.negf %12 : vector<1x128xf32>
    %14 = math.exp %13 : vector<1x128xf32>
    %cst_4 = arith.constant 1.000000e+00 : f32
    %15 = vector.broadcast %cst_4 : f32 to vector<1x128xf32>
    %16 = arith.addf %15, %14 : vector<1x128xf32>
    %17 = arith.divf %15, %16 : vector<1x128xf32>
    %18 = vector.extract_strided_slice %5 {offsets = [0, 256], sizes = [1, 128], strides = [1, 1]} : vector<1x512xf32> to vector<1x128xf32>
    %19 = math.tanh %18 : vector<1x128xf32>
    %20 = vector.extract_strided_slice %5 {offsets = [0, 384], sizes = [1, 128], strides = [1, 1]} : vector<1x512xf32> to vector<1x128xf32>
    %21 = arith.negf %20 : vector<1x128xf32>
    %22 = math.exp %21 : vector<1x128xf32>
    %cst_5 = arith.constant 1.000000e+00 : f32
    %23 = vector.broadcast %cst_5 : f32 to vector<1x128xf32>
    %24 = arith.addf %23, %22 : vector<1x128xf32>
    %25 = arith.divf %23, %24 : vector<1x128xf32>
    %26 = arith.mulf %17, %0 : vector<1x128xf32>
    %27 = arith.mulf %11, %19 : vector<1x128xf32>
    %28 = arith.addf %26, %27 : vector<1x128xf32>
    %29 = math.tanh %28 : vector<1x128xf32>
    %30 = arith.mulf %25, %29 : vector<1x128xf32>
    %31 = arith.index_cast %c0_i32 : i32 to index
    %c0_6 = arith.constant 0 : index
    %32 = vector.load %arg2[%31, %c0_6] : memref<16x128xf32, #tpu.memory_space<vmem>>, vector<1x128xf32>
    tpu.vector_store %arg2[%31, %c0_6], %30 {strides = array<i32>} : memref<16x128xf32, #tpu.memory_space<vmem>>, vector<1x128xf32>,
    %c1_i32 = arith.constant 1 : i32
    %33 = arith.index_cast %c1_i32 : i32 to index
    %c0_7 = arith.constant 0 : index
    %34 = vector.load %arg0[%33, %c0_7] : memref<16x640xf32, #tpu.memory_space<vmem>>, vector<1x512xf32>
    %c0_8 = arith.constant 0 : index
    %c0_9 = arith.constant 0 : index
    %35 = vector.load %arg1[%c0_8, %c0_9] : memref<128x512xf32, #tpu.memory_space<vmem>>, vector<128x512xf32>
    %cst_10 = arith.constant dense<0.000000e+00> : vector<1x512xf32>
    %36 = tpu.matmul %30, %35, %cst_10 {dimension_numbers = #tpu.dot_dimension_numbers<[1], [0], [0], [1], [0, 0, 1, 1], [], []>} : vector<1x128xf32>, vector<128x512xf32>, vector<1x512xf32> -> vector<1x512xf32>
    %37 = arith.addf %34, %36 : vector<1x512xf32>
    %38 = vector.extract_strided_slice %37 {offsets = [0, 0], sizes = [1, 128], strides = [1, 1]} : vector<1x512xf32> to vector<1x128xf32>
    %39 = arith.negf %38 : vector<1x128xf32>
    %40 = math.exp %39 : vector<1x128xf32>
    %cst_11 = arith.constant 1.000000e+00 : f32
    %41 = vector.broadcast %cst_11 : f32 to vector<1x128xf32>
    %42 = arith.addf %41, %40 : vector<1x128xf32>
    %43 = arith.divf %41, %42 : vector<1x128xf32>
    %44 = vector.extract_strided_slice %37 {offsets = [0, 128], sizes = [1, 128], strides = [1, 1]} : vector<1x512xf32> to vector<1x128xf32>
    %45 = arith.negf %44 : vector<1x128xf32>
    %46 = math.exp %45 : vector<1x128xf32>
    %cst_12 = arith.constant 1.000000e+00 : f32
    %47 = vector.broadcast %cst_12 : f32 to vector<1x128xf32>
    %48 = arith.addf %47, %46 : vector<1x128xf32>
    %49 = arith.divf %47, %48 : vector<1x128xf32>
    %50 = vector.extract_strided_slice %37 {offsets = [0, 256], sizes = [1, 128], strides = [1, 1]} : vector<1x512xf32> to vector<1x128xf32>
    %51 = math.tanh %50 : vector<1x128xf32>
    %52 = vector.extract_strided_slice %37 {offsets = [0, 384], sizes = [1, 128], strides = [1, 1]} : vector<1x512xf32> to vector<1x128xf32>
    %53 = arith.negf %52 : vector<1x128xf32>
    %54 = math.exp %53 : vector<1x128xf32>
    %cst_13 = arith.constant 1.000000e+00 : f32
    %55 = vector.broadcast %cst_13 : f32 to vector<1x128xf32>
    %56 = arith.addf %55, %54 : vector<1x128xf32>
    %57 = arith.divf %55, %56 : vector<1x128xf32>
    %58 = arith.mulf %49, %28 : vector<1x128xf32>
    %59 = arith.mulf %43, %51 : vector<1x128xf32>
    %60 = arith.addf %58, %59 : vector<1x128xf32>
    %61 = math.tanh %60 : vector<1x128xf32>
    %62 = arith.mulf %57, %61 : vector<1x128xf32>
    %63 = arith.index_cast %c1_i32 : i32 to index
    %c0_14 = arith.constant 0 : index
    %64 = vector.load %arg2[%63, %c0_14] : memref<16x128xf32, #tpu.memory_space<vmem>>, vector<1x128xf32>
    tpu.vector_store %arg2[%63, %c0_14], %62 {strides = array<i32>} : memref<16x128xf32, #tpu.memory_space<vmem>>, vector<1x128xf32>,
    %c2_i32 = arith.constant 2 : i32
    %65 = arith.index_cast %c2_i32 : i32 to index
    %c0_15 = arith.constant 0 : index
    %66 = vector.load %arg0[%65, %c0_15] : memref<16x640xf32, #tpu.memory_space<vmem>>, vector<1x512xf32>
    %c0_16 = arith.constant 0 : index
    %c0_17 = arith.constant 0 : index
    %67 = vector.load %arg1[%c0_16, %c0_17] : memref<128x512xf32, #tpu.memory_space<vmem>>, vector<128x512xf32>
    %cst_18 = arith.constant dense<0.000000e+00> : vector<1x512xf32>
    %68 = tpu.matmul %62, %67, %cst_18 {dimension_numbers = #tpu.dot_dimension_numbers<[1], [0], [0], [1], [0, 0, 1, 1], [], []>} : vector<1x128xf32>, vector<128x512xf32>, vector<1x512xf32> -> vector<1x512xf32>
    %69 = arith.addf %66, %68 : vector<1x512xf32>
    %70 = vector.extract_strided_slice %69 {offsets = [0, 0], sizes = [1, 128], strides = [1, 1]} : vector<1x512xf32> to vector<1x128xf32>
    %71 = arith.negf %70 : vector<1x128xf32>
    %72 = math.exp %71 : vector<1x128xf32>
    %cst_19 = arith.constant 1.000000e+00 : f32
    %73 = vector.broadcast %cst_19 : f32 to vector<1x128xf32>
    %74 = arith.addf %73, %72 : vector<1x128xf32>
    %75 = arith.divf %73, %74 : vector<1x128xf32>
    %76 = vector.extract_strided_slice %69 {offsets = [0, 128], sizes = [1, 128], strides = [1, 1]} : vector<1x512xf32> to vector<1x128xf32>
    %77 = arith.negf %76 : vector<1x128xf32>
    %78 = math.exp %77 : vector<1x128xf32>
    %cst_20 = arith.constant 1.000000e+00 : f32
    %79 = vector.broadcast %cst_20 : f32 to vector<1x128xf32>
    %80 = arith.addf %79, %78 : vector<1x128xf32>
    %81 = arith.divf %79, %80 : vector<1x128xf32>
    %82 = vector.extract_strided_slice %69 {offsets = [0, 256], sizes = [1, 128], strides = [1, 1]} : vector<1x512xf32> to vector<1x128xf32>
    %83 = math.tanh %82 : vector<1x128xf32>
    %84 = vector.extract_strided_slice %69 {offsets = [0, 384], sizes = [1, 128], strides = [1, 1]} : vector<1x512xf32> to vector<1x128xf32>
    %85 = arith.negf %84 : vector<1x128xf32>
    %86 = math.exp %85 : vector<1x128xf32>
    %cst_21 = arith.constant 1.000000e+00 : f32
    %87 = vector.broadcast %cst_21 : f32 to vector<1x128xf32>
    %88 = arith.addf %87, %86 : vector<1x128xf32>
    %89 = arith.divf %87, %88 : vector<1x128xf32>
    %90 = arith.mulf %81, %60 : vector<1x128xf32>
    %91 = arith.mulf %75, %83 : vector<1x128xf32>
    %92 = arith.addf %90, %91 : vector<1x128xf32>
    %93 = math.tanh %92 : vector<1x128xf32>
    %94 = arith.mulf %89, %93 : vector<1x128xf32>
    %95 = arith.index_cast %c2_i32 : i32 to index
    %c0_22 = arith.constant 0 : index
    %96 = vector.load %arg2[%95, %c0_22] : memref<16x128xf32, #tpu.memory_space<vmem>>, vector<1x128xf32>
    tpu.vector_store %arg2[%95, %c0_22], %94 {strides = array<i32>} : memref<16x128xf32, #tpu.memory_space<vmem>>, vector<1x128xf32>,
    %c3_i32 = arith.constant 3 : i32
    %97 = arith.index_cast %c3_i32 : i32 to index
    %c0_23 = arith.constant 0 : index
    %98 = vector.load %arg0[%97, %c0_23] : memref<16x640xf32, #tpu.memory_space<vmem>>, vector<1x512xf32>
    %c0_24 = arith.constant 0 : index
    %c0_25 = arith.constant 0 : index
    %99 = vector.load %arg1[%c0_24, %c0_25] : memref<128x512xf32, #tpu.memory_space<vmem>>, vector<128x512xf32>
    %cst_26 = arith.constant dense<0.000000e+00> : vector<1x512xf32>
    %100 = tpu.matmul %94, %99, %cst_26 {dimension_numbers = #tpu.dot_dimension_numbers<[1], [0], [0], [1], [0, 0, 1, 1], [], []>} : vector<1x128xf32>, vector<128x512xf32>, vector<1x512xf32> -> vector<1x512xf32>
    %101 = arith.addf %98, %100 : vector<1x512xf32>
    %102 = vector.extract_strided_slice %101 {offsets = [0, 0], sizes = [1, 128], strides = [1, 1]} : vector<1x512xf32> to vector<1x128xf32>
    %103 = arith.negf %102 : vector<1x128xf32>
    %104 = math.exp %103 : vector<1x128xf32>
    %cst_27 = arith.constant 1.000000e+00 : f32
    %105 = vector.broadcast %cst_27 : f32 to vector<1x128xf32>
    %106 = arith.addf %105, %104 : vector<1x128xf32>
    %107 = arith.divf %105, %106 : vector<1x128xf32>
    %108 = vector.extract_strided_slice %101 {offsets = [0, 128], sizes = [1, 128], strides = [1, 1]} : vector<1x512xf32> to vector<1x128xf32>
    %109 = arith.negf %108 : vector<1x128xf32>
    %110 = math.exp %109 : vector<1x128xf32>
    %cst_28 = arith.constant 1.000000e+00 : f32
    %111 = vector.broadcast %cst_28 : f32 to vector<1x128xf32>
    %112 = arith.addf %111, %110 : vector<1x128xf32>
    %113 = arith.divf %111, %112 : vector<1x128xf32>
    %114 = vector.extract_strided_slice %101 {offsets = [0, 256], sizes = [1, 128], strides = [1, 1]} : vector<1x512xf32> to vector<1x128xf32>
    %115 = math.tanh %114 : vector<1x128xf32>
    %116 = vector.extract_strided_slice %101 {offsets = [0, 384], sizes = [1, 128], strides = [1, 1]} : vector<1x512xf32> to vector<1x128xf32>
    %117 = arith.negf %116 : vector<1x128xf32>
    %118 = math.exp %117 : vector<1x128xf32>
    %cst_29 = arith.constant 1.000000e+00 : f32
    %119 = vector.broadcast %cst_29 : f32 to vector<1x128xf32>
    %120 = arith.addf %119, %118 : vector<1x128xf32>
    %121 = arith.divf %119, %120 : vector<1x128xf32>
    %122 = arith.mulf %113, %92 : vector<1x128xf32>
    %123 = arith.mulf %107, %115 : vector<1x128xf32>
    %124 = arith.addf %122, %123 : vector<1x128xf32>
    %125 = math.tanh %124 : vector<1x128xf32>
    %126 = arith.mulf %121, %125 : vector<1x128xf32>
    %127 = arith.index_cast %c3_i32 : i32 to index
    %c0_30 = arith.constant 0 : index
    %128 = vector.load %arg2[%127, %c0_30] : memref<16x128xf32, #tpu.memory_space<vmem>>, vector<1x128xf32>
    tpu.vector_store %arg2[%127, %c0_30], %126 {strides = array<i32>} : memref<16x128xf32, #tpu.memory_space<vmem>>, vector<1x128xf32>,
    %c4_i32 = arith.constant 4 : i32
    %129 = arith.index_cast %c4_i32 : i32 to index
    %c0_31 = arith.constant 0 : index
    %130 = vector.load %arg0[%129, %c0_31] : memref<16x640xf32, #tpu.memory_space<vmem>>, vector<1x512xf32>
    %c0_32 = arith.constant 0 : index
    %c0_33 = arith.constant 0 : index
    %131 = vector.load %arg1[%c0_32, %c0_33] : memref<128x512xf32, #tpu.memory_space<vmem>>, vector<128x512xf32>
    %cst_34 = arith.constant dense<0.000000e+00> : vector<1x512xf32>
    %132 = tpu.matmul %126, %131, %cst_34 {dimension_numbers = #tpu.dot_dimension_numbers<[1], [0], [0], [1], [0, 0, 1, 1], [], []>} : vector<1x128xf32>, vector<128x512xf32>, vector<1x512xf32> -> vector<1x512xf32>
    %133 = arith.addf %130, %132 : vector<1x512xf32>
    %134 = vector.extract_strided_slice %133 {offsets = [0, 0], sizes = [1, 128], strides = [1, 1]} : vector<1x512xf32> to vector<1x128xf32>
    %135 = arith.negf %134 : vector<1x128xf32>
    %136 = math.exp %135 : vector<1x128xf32>
    %cst_35 = arith.constant 1.000000e+00 : f32
    %137 = vector.broadcast %cst_35 : f32 to vector<1x128xf32>
    %138 = arith.addf %137, %136 : vector<1x128xf32>
    %139 = arith.divf %137, %138 : vector<1x128xf32>
    %140 = vector.extract_strided_slice %133 {offsets = [0, 128], sizes = [1, 128], strides = [1, 1]} : vector<1x512xf32> to vector<1x128xf32>
    %141 = arith.negf %140 : vector<1x128xf32>
    %142 = math.exp %141 : vector<1x128xf32>
    %cst_36 = arith.constant 1.000000e+00 : f32
    %143 = vector.broadcast %cst_36 : f32 to vector<1x128xf32>
    %144 = arith.addf %143, %142 : vector<1x128xf32>
    %145 = arith.divf %143, %144 : vector<1x128xf32>
    %146 = vector.extract_strided_slice %133 {offsets = [0, 256], sizes = [1, 128], strides = [1, 1]} : vector<1x512xf32> to vector<1x128xf32>
    %147 = math.tanh %146 : vector<1x128xf32>
    %148 = vector.extract_strided_slice %133 {offsets = [0, 384], sizes = [1, 128], strides = [1, 1]} : vector<1x512xf32> to vector<1x128xf32>
    %149 = arith.negf %148 : vector<1x128xf32>
    %150 = math.exp %149 : vector<1x128xf32>
    %cst_37 = arith.constant 1.000000e+00 : f32
    %151 = vector.broadcast %cst_37 : f32 to vector<1x128xf32>
    %152 = arith.addf %151, %150 : vector<1x128xf32>
    %153 = arith.divf %151, %152 : vector<1x128xf32>
    %154 = arith.mulf %145, %124 : vector<1x128xf32>
    %155 = arith.mulf %139, %147 : vector<1x128xf32>
    %156 = arith.addf %154, %155 : vector<1x128xf32>
    %157 = math.tanh %156 : vector<1x128xf32>
    %158 = arith.mulf %153, %157 : vector<1x128xf32>
    %159 = arith.index_cast %c4_i32 : i32 to index
    %c0_38 = arith.constant 0 : index
    %160 = vector.load %arg2[%159, %c0_38] : memref<16x128xf32, #tpu.memory_space<vmem>>, vector<1x128xf32>
    tpu.vector_store %arg2[%159, %c0_38], %158 {strides = array<i32>} : memref<16x128xf32, #tpu.memory_space<vmem>>, vector<1x128xf32>,
    %c5_i32 = arith.constant 5 : i32
    %161 = arith.index_cast %c5_i32 : i32 to index
    %c0_39 = arith.constant 0 : index
    %162 = vector.load %arg0[%161, %c0_39] : memref<16x640xf32, #tpu.memory_space<vmem>>, vector<1x512xf32>
    %c0_40 = arith.constant 0 : index
    %c0_41 = arith.constant 0 : index
    %163 = vector.load %arg1[%c0_40, %c0_41] : memref<128x512xf32, #tpu.memory_space<vmem>>, vector<128x512xf32>
    %cst_42 = arith.constant dense<0.000000e+00> : vector<1x512xf32>
    %164 = tpu.matmul %158, %163, %cst_42 {dimension_numbers = #tpu.dot_dimension_numbers<[1], [0], [0], [1], [0, 0, 1, 1], [], []>} : vector<1x128xf32>, vector<128x512xf32>, vector<1x512xf32> -> vector<1x512xf32>
    %165 = arith.addf %162, %164 : vector<1x512xf32>
    %166 = vector.extract_strided_slice %165 {offsets = [0, 0], sizes = [1, 128], strides = [1, 1]} : vector<1x512xf32> to vector<1x128xf32>
    %167 = arith.negf %166 : vector<1x128xf32>
    %168 = math.exp %167 : vector<1x128xf32>
    %cst_43 = arith.constant 1.000000e+00 : f32
    %169 = vector.broadcast %cst_43 : f32 to vector<1x128xf32>
    %170 = arith.addf %169, %168 : vector<1x128xf32>
    %171 = arith.divf %169, %170 : vector<1x128xf32>
    %172 = vector.extract_strided_slice %165 {offsets = [0, 128], sizes = [1, 128], strides = [1, 1]} : vector<1x512xf32> to vector<1x128xf32>
    %173 = arith.negf %172 : vector<1x128xf32>
    %174 = math.exp %173 : vector<1x128xf32>
    %cst_44 = arith.constant 1.000000e+00 : f32
    %175 = vector.broadcast %cst_44 : f32 to vector<1x128xf32>
    %176 = arith.addf %175, %174 : vector<1x128xf32>
    %177 = arith.divf %175, %176 : vector<1x128xf32>
    %178 = vector.extract_strided_slice %165 {offsets = [0, 256], sizes = [1, 128], strides = [1, 1]} : vector<1x512xf32> to vector<1x128xf32>
    %179 = math.tanh %178 : vector<1x128xf32>
    %180 = vector.extract_strided_slice %165 {offsets = [0, 384], sizes = [1, 128], strides = [1, 1]} : vector<1x512xf32> to vector<1x128xf32>
    %181 = arith.negf %180 : vector<1x128xf32>
    %182 = math.exp %181 : vector<1x128xf32>
    %cst_45 = arith.constant 1.000000e+00 : f32
    %183 = vector.broadcast %cst_45 : f32 to vector<1x128xf32>
    %184 = arith.addf %183, %182 : vector<1x128xf32>
    %185 = arith.divf %183, %184 : vector<1x128xf32>
    %186 = arith.mulf %177, %156 : vector<1x128xf32>
    %187 = arith.mulf %171, %179 : vector<1x128xf32>
    %188 = arith.addf %186, %187 : vector<1x128xf32>
    %189 = math.tanh %188 : vector<1x128xf32>
    %190 = arith.mulf %185, %189 : vector<1x128xf32>
    %191 = arith.index_cast %c5_i32 : i32 to index
    %c0_46 = arith.constant 0 : index
    %192 = vector.load %arg2[%191, %c0_46] : memref<16x128xf32, #tpu.memory_space<vmem>>, vector<1x128xf32>
    tpu.vector_store %arg2[%191, %c0_46], %190 {strides = array<i32>} : memref<16x128xf32, #tpu.memory_space<vmem>>, vector<1x128xf32>,
    %c6_i32 = arith.constant 6 : i32
    %193 = arith.index_cast %c6_i32 : i32 to index
    %c0_47 = arith.constant 0 : index
    %194 = vector.load %arg0[%193, %c0_47] : memref<16x640xf32, #tpu.memory_space<vmem>>, vector<1x512xf32>
    %c0_48 = arith.constant 0 : index
    %c0_49 = arith.constant 0 : index
    %195 = vector.load %arg1[%c0_48, %c0_49] : memref<128x512xf32, #tpu.memory_space<vmem>>, vector<128x512xf32>
    %cst_50 = arith.constant dense<0.000000e+00> : vector<1x512xf32>
    %196 = tpu.matmul %190, %195, %cst_50 {dimension_numbers = #tpu.dot_dimension_numbers<[1], [0], [0], [1], [0, 0, 1, 1], [], []>} : vector<1x128xf32>, vector<128x512xf32>, vector<1x512xf32> -> vector<1x512xf32>
    %197 = arith.addf %194, %196 : vector<1x512xf32>
    %198 = vector.extract_strided_slice %197 {offsets = [0, 0], sizes = [1, 128], strides = [1, 1]} : vector<1x512xf32> to vector<1x128xf32>
    %199 = arith.negf %198 : vector<1x128xf32>
    %200 = math.exp %199 : vector<1x128xf32>
    %cst_51 = arith.constant 1.000000e+00 : f32
    %201 = vector.broadcast %cst_51 : f32 to vector<1x128xf32>
    %202 = arith.addf %201, %200 : vector<1x128xf32>
    %203 = arith.divf %201, %202 : vector<1x128xf32>
    %204 = vector.extract_strided_slice %197 {offsets = [0, 128], sizes = [1, 128], strides = [1, 1]} : vector<1x512xf32> to vector<1x128xf32>
    %205 = arith.negf %204 : vector<1x128xf32>
    %206 = math.exp %205 : vector<1x128xf32>
    %cst_52 = arith.constant 1.000000e+00 : f32
    %207 = vector.broadcast %cst_52 : f32 to vector<1x128xf32>
    %208 = arith.addf %207, %206 : vector<1x128xf32>
    %209 = arith.divf %207, %208 : vector<1x128xf32>
    %210 = vector.extract_strided_slice %197 {offsets = [0, 256], sizes = [1, 128], strides = [1, 1]} : vector<1x512xf32> to vector<1x128xf32>
    %211 = math.tanh %210 : vector<1x128xf32>
    %212 = vector.extract_strided_slice %197 {offsets = [0, 384], sizes = [1, 128], strides = [1, 1]} : vector<1x512xf32> to vector<1x128xf32>
    %213 = arith.negf %212 : vector<1x128xf32>
    %214 = math.exp %213 : vector<1x128xf32>
    %cst_53 = arith.constant 1.000000e+00 : f32
    %215 = vector.broadcast %cst_53 : f32 to vector<1x128xf32>
    %216 = arith.addf %215, %214 : vector<1x128xf32>
    %217 = arith.divf %215, %216 : vector<1x128xf32>
    %218 = arith.mulf %209, %188 : vector<1x128xf32>
    %219 = arith.mulf %203, %211 : vector<1x128xf32>
    %220 = arith.addf %218, %219 : vector<1x128xf32>
    %221 = math.tanh %220 : vector<1x128xf32>
    %222 = arith.mulf %217, %221 : vector<1x128xf32>
    %223 = arith.index_cast %c6_i32 : i32 to index
    %c0_54 = arith.constant 0 : index
    %224 = vector.load %arg2[%223, %c0_54] : memref<16x128xf32, #tpu.memory_space<vmem>>, vector<1x128xf32>
    tpu.vector_store %arg2[%223, %c0_54], %222 {strides = array<i32>} : memref<16x128xf32, #tpu.memory_space<vmem>>, vector<1x128xf32>,
    %c7_i32 = arith.constant 7 : i32
    %225 = arith.index_cast %c7_i32 : i32 to index
    %c0_55 = arith.constant 0 : index
    %226 = vector.load %arg0[%225, %c0_55] : memref<16x640xf32, #tpu.memory_space<vmem>>, vector<1x512xf32>
    %c0_56 = arith.constant 0 : index
    %c0_57 = arith.constant 0 : index
    %227 = vector.load %arg1[%c0_56, %c0_57] : memref<128x512xf32, #tpu.memory_space<vmem>>, vector<128x512xf32>
    %cst_58 = arith.constant dense<0.000000e+00> : vector<1x512xf32>
    %228 = tpu.matmul %222, %227, %cst_58 {dimension_numbers = #tpu.dot_dimension_numbers<[1], [0], [0], [1], [0, 0, 1, 1], [], []>} : vector<1x128xf32>, vector<128x512xf32>, vector<1x512xf32> -> vector<1x512xf32>
    %229 = arith.addf %226, %228 : vector<1x512xf32>
    %230 = vector.extract_strided_slice %229 {offsets = [0, 0], sizes = [1, 128], strides = [1, 1]} : vector<1x512xf32> to vector<1x128xf32>
    %231 = arith.negf %230 : vector<1x128xf32>
    %232 = math.exp %231 : vector<1x128xf32>
    %cst_59 = arith.constant 1.000000e+00 : f32
    %233 = vector.broadcast %cst_59 : f32 to vector<1x128xf32>
    %234 = arith.addf %233, %232 : vector<1x128xf32>
    %235 = arith.divf %233, %234 : vector<1x128xf32>
    %236 = vector.extract_strided_slice %229 {offsets = [0, 128], sizes = [1, 128], strides = [1, 1]} : vector<1x512xf32> to vector<1x128xf32>
    %237 = arith.negf %236 : vector<1x128xf32>
    %238 = math.exp %237 : vector<1x128xf32>
    %cst_60 = arith.constant 1.000000e+00 : f32
    %239 = vector.broadcast %cst_60 : f32 to vector<1x128xf32>
    %240 = arith.addf %239, %238 : vector<1x128xf32>
    %241 = arith.divf %239, %240 : vector<1x128xf32>
    %242 = vector.extract_strided_slice %229 {offsets = [0, 256], sizes = [1, 128], strides = [1, 1]} : vector<1x512xf32> to vector<1x128xf32>
    %243 = math.tanh %242 : vector<1x128xf32>
    %244 = vector.extract_strided_slice %229 {offsets = [0, 384], sizes = [1, 128], strides = [1, 1]} : vector<1x512xf32> to vector<1x128xf32>
    %245 = arith.negf %244 : vector<1x128xf32>
    %246 = math.exp %245 : vector<1x128xf32>
    %cst_61 = arith.constant 1.000000e+00 : f32
    %247 = vector.broadcast %cst_61 : f32 to vector<1x128xf32>
    %248 = arith.addf %247, %246 : vector<1x128xf32>
    %249 = arith.divf %247, %248 : vector<1x128xf32>
    %250 = arith.mulf %241, %220 : vector<1x128xf32>
    %251 = arith.mulf %235, %243 : vector<1x128xf32>
    %252 = arith.addf %250, %251 : vector<1x128xf32>
    %253 = math.tanh %252 : vector<1x128xf32>
    %254 = arith.mulf %249, %253 : vector<1x128xf32>
    %255 = arith.index_cast %c7_i32 : i32 to index
    %c0_62 = arith.constant 0 : index
    %256 = vector.load %arg2[%255, %c0_62] : memref<16x128xf32, #tpu.memory_space<vmem>>, vector<1x128xf32>
    tpu.vector_store %arg2[%255, %c0_62], %254 {strides = array<i32>} : memref<16x128xf32, #tpu.memory_space<vmem>>, vector<1x128xf32>,
    %c8_i32 = arith.constant 8 : i32
    %257 = arith.index_cast %c8_i32 : i32 to index
    %c0_63 = arith.constant 0 : index
    %258 = vector.load %arg0[%257, %c0_63] : memref<16x640xf32, #tpu.memory_space<vmem>>, vector<1x512xf32>
    %c0_64 = arith.constant 0 : index
    %c0_65 = arith.constant 0 : index
    %259 = vector.load %arg1[%c0_64, %c0_65] : memref<128x512xf32, #tpu.memory_space<vmem>>, vector<128x512xf32>
    %cst_66 = arith.constant dense<0.000000e+00> : vector<1x512xf32>
    %260 = tpu.matmul %254, %259, %cst_66 {dimension_numbers = #tpu.dot_dimension_numbers<[1], [0], [0], [1], [0, 0, 1, 1], [], []>} : vector<1x128xf32>, vector<128x512xf32>, vector<1x512xf32> -> vector<1x512xf32>
    %261 = arith.addf %258, %260 : vector<1x512xf32>
    %262 = vector.extract_strided_slice %261 {offsets = [0, 0], sizes = [1, 128], strides = [1, 1]} : vector<1x512xf32> to vector<1x128xf32>
    %263 = arith.negf %262 : vector<1x128xf32>
    %264 = math.exp %263 : vector<1x128xf32>
    %cst_67 = arith.constant 1.000000e+00 : f32
    %265 = vector.broadcast %cst_67 : f32 to vector<1x128xf32>
    %266 = arith.addf %265, %264 : vector<1x128xf32>
    %267 = arith.divf %265, %266 : vector<1x128xf32>
    %268 = vector.extract_strided_slice %261 {offsets = [0, 128], sizes = [1, 128], strides = [1, 1]} : vector<1x512xf32> to vector<1x128xf32>
    %269 = arith.negf %268 : vector<1x128xf32>
    %270 = math.exp %269 : vector<1x128xf32>
    %cst_68 = arith.constant 1.000000e+00 : f32
    %271 = vector.broadcast %cst_68 : f32 to vector<1x128xf32>
    %272 = arith.addf %271, %270 : vector<1x128xf32>
    %273 = arith.divf %271, %272 : vector<1x128xf32>
    %274 = vector.extract_strided_slice %261 {offsets = [0, 256], sizes = [1, 128], strides = [1, 1]} : vector<1x512xf32> to vector<1x128xf32>
    %275 = math.tanh %274 : vector<1x128xf32>
    %276 = vector.extract_strided_slice %261 {offsets = [0, 384], sizes = [1, 128], strides = [1, 1]} : vector<1x512xf32> to vector<1x128xf32>
    %277 = arith.negf %276 : vector<1x128xf32>
    %278 = math.exp %277 : vector<1x128xf32>
    %cst_69 = arith.constant 1.000000e+00 : f32
    %279 = vector.broadcast %cst_69 : f32 to vector<1x128xf32>
    %280 = arith.addf %279, %278 : vector<1x128xf32>
    %281 = arith.divf %279, %280 : vector<1x128xf32>
    %282 = arith.mulf %273, %252 : vector<1x128xf32>
    %283 = arith.mulf %267, %275 : vector<1x128xf32>
    %284 = arith.addf %282, %283 : vector<1x128xf32>
    %285 = math.tanh %284 : vector<1x128xf32>
    %286 = arith.mulf %281, %285 : vector<1x128xf32>
    %287 = arith.index_cast %c8_i32 : i32 to index
    %c0_70 = arith.constant 0 : index
    %288 = vector.load %arg2[%287, %c0_70] : memref<16x128xf32, #tpu.memory_space<vmem>>, vector<1x128xf32>
    tpu.vector_store %arg2[%287, %c0_70], %286 {strides = array<i32>} : memref<16x128xf32, #tpu.memory_space<vmem>>, vector<1x128xf32>,
    %c9_i32 = arith.constant 9 : i32
    %289 = arith.index_cast %c9_i32 : i32 to index
    %c0_71 = arith.constant 0 : index
    %290 = vector.load %arg0[%289, %c0_71] : memref<16x640xf32, #tpu.memory_space<vmem>>, vector<1x512xf32>
    %c0_72 = arith.constant 0 : index
    %c0_73 = arith.constant 0 : index
    %291 = vector.load %arg1[%c0_72, %c0_73] : memref<128x512xf32, #tpu.memory_space<vmem>>, vector<128x512xf32>
    %cst_74 = arith.constant dense<0.000000e+00> : vector<1x512xf32>
    %292 = tpu.matmul %286, %291, %cst_74 {dimension_numbers = #tpu.dot_dimension_numbers<[1], [0], [0], [1], [0, 0, 1, 1], [], []>} : vector<1x128xf32>, vector<128x512xf32>, vector<1x512xf32> -> vector<1x512xf32>
    %293 = arith.addf %290, %292 : vector<1x512xf32>
    %294 = vector.extract_strided_slice %293 {offsets = [0, 0], sizes = [1, 128], strides = [1, 1]} : vector<1x512xf32> to vector<1x128xf32>
    %295 = arith.negf %294 : vector<1x128xf32>
    %296 = math.exp %295 : vector<1x128xf32>
    %cst_75 = arith.constant 1.000000e+00 : f32
    %297 = vector.broadcast %cst_75 : f32 to vector<1x128xf32>
    %298 = arith.addf %297, %296 : vector<1x128xf32>
    %299 = arith.divf %297, %298 : vector<1x128xf32>
    %300 = vector.extract_strided_slice %293 {offsets = [0, 128], sizes = [1, 128], strides = [1, 1]} : vector<1x512xf32> to vector<1x128xf32>
    %301 = arith.negf %300 : vector<1x128xf32>
    %302 = math.exp %301 : vector<1x128xf32>
    %cst_76 = arith.constant 1.000000e+00 : f32
    %303 = vector.broadcast %cst_76 : f32 to vector<1x128xf32>
    %304 = arith.addf %303, %302 : vector<1x128xf32>
    %305 = arith.divf %303, %304 : vector<1x128xf32>
    %306 = vector.extract_strided_slice %293 {offsets = [0, 256], sizes = [1, 128], strides = [1, 1]} : vector<1x512xf32> to vector<1x128xf32>
    %307 = math.tanh %306 : vector<1x128xf32>
    %308 = vector.extract_strided_slice %293 {offsets = [0, 384], sizes = [1, 128], strides = [1, 1]} : vector<1x512xf32> to vector<1x128xf32>
    %309 = arith.negf %308 : vector<1x128xf32>
    %310 = math.exp %309 : vector<1x128xf32>
    %cst_77 = arith.constant 1.000000e+00 : f32
    %311 = vector.broadcast %cst_77 : f32 to vector<1x128xf32>
    %312 = arith.addf %311, %310 : vector<1x128xf32>
    %313 = arith.divf %311, %312 : vector<1x128xf32>
    %314 = arith.mulf %305, %284 : vector<1x128xf32>
    %315 = arith.mulf %299, %307 : vector<1x128xf32>
    %316 = arith.addf %314, %315 : vector<1x128xf32>
    %317 = math.tanh %316 : vector<1x128xf32>
    %318 = arith.mulf %313, %317 : vector<1x128xf32>
    %319 = arith.index_cast %c9_i32 : i32 to index
    %c0_78 = arith.constant 0 : index
    %320 = vector.load %arg2[%319, %c0_78] : memref<16x128xf32, #tpu.memory_space<vmem>>, vector<1x128xf32>
    tpu.vector_store %arg2[%319, %c0_78], %318 {strides = array<i32>} : memref<16x128xf32, #tpu.memory_space<vmem>>, vector<1x128xf32>,
    %c10_i32 = arith.constant 10 : i32
    %321 = arith.index_cast %c10_i32 : i32 to index
    %c0_79 = arith.constant 0 : index
    %322 = vector.load %arg0[%321, %c0_79] : memref<16x640xf32, #tpu.memory_space<vmem>>, vector<1x512xf32>
    %c0_80 = arith.constant 0 : index
    %c0_81 = arith.constant 0 : index
    %323 = vector.load %arg1[%c0_80, %c0_81] : memref<128x512xf32, #tpu.memory_space<vmem>>, vector<128x512xf32>
    %cst_82 = arith.constant dense<0.000000e+00> : vector<1x512xf32>
    %324 = tpu.matmul %318, %323, %cst_82 {dimension_numbers = #tpu.dot_dimension_numbers<[1], [0], [0], [1], [0, 0, 1, 1], [], []>} : vector<1x128xf32>, vector<128x512xf32>, vector<1x512xf32> -> vector<1x512xf32>
    %325 = arith.addf %322, %324 : vector<1x512xf32>
    %326 = vector.extract_strided_slice %325 {offsets = [0, 0], sizes = [1, 128], strides = [1, 1]} : vector<1x512xf32> to vector<1x128xf32>
    %327 = arith.negf %326 : vector<1x128xf32>
    %328 = math.exp %327 : vector<1x128xf32>
    %cst_83 = arith.constant 1.000000e+00 : f32
    %329 = vector.broadcast %cst_83 : f32 to vector<1x128xf32>
    %330 = arith.addf %329, %328 : vector<1x128xf32>
    %331 = arith.divf %329, %330 : vector<1x128xf32>
    %332 = vector.extract_strided_slice %325 {offsets = [0, 128], sizes = [1, 128], strides = [1, 1]} : vector<1x512xf32> to vector<1x128xf32>
    %333 = arith.negf %332 : vector<1x128xf32>
    %334 = math.exp %333 : vector<1x128xf32>
    %cst_84 = arith.constant 1.000000e+00 : f32
    %335 = vector.broadcast %cst_84 : f32 to vector<1x128xf32>
    %336 = arith.addf %335, %334 : vector<1x128xf32>
    %337 = arith.divf %335, %336 : vector<1x128xf32>
    %338 = vector.extract_strided_slice %325 {offsets = [0, 256], sizes = [1, 128], strides = [1, 1]} : vector<1x512xf32> to vector<1x128xf32>
    %339 = math.tanh %338 : vector<1x128xf32>
    %340 = vector.extract_strided_slice %325 {offsets = [0, 384], sizes = [1, 128], strides = [1, 1]} : vector<1x512xf32> to vector<1x128xf32>
    %341 = arith.negf %340 : vector<1x128xf32>
    %342 = math.exp %341 : vector<1x128xf32>
    %cst_85 = arith.constant 1.000000e+00 : f32
    %343 = vector.broadcast %cst_85 : f32 to vector<1x128xf32>
    %344 = arith.addf %343, %342 : vector<1x128xf32>
    %345 = arith.divf %343, %344 : vector<1x128xf32>
    %346 = arith.mulf %337, %316 : vector<1x128xf32>
    %347 = arith.mulf %331, %339 : vector<1x128xf32>
    %348 = arith.addf %346, %347 : vector<1x128xf32>
    %349 = math.tanh %348 : vector<1x128xf32>
    %350 = arith.mulf %345, %349 : vector<1x128xf32>
    %351 = arith.index_cast %c10_i32 : i32 to index
    %c0_86 = arith.constant 0 : index
    %352 = vector.load %arg2[%351, %c0_86] : memref<16x128xf32, #tpu.memory_space<vmem>>, vector<1x128xf32>
    tpu.vector_store %arg2[%351, %c0_86], %350 {strides = array<i32>} : memref<16x128xf32, #tpu.memory_space<vmem>>, vector<1x128xf32>,
    %c11_i32 = arith.constant 11 : i32
    %353 = arith.index_cast %c11_i32 : i32 to index
    %c0_87 = arith.constant 0 : index
    %354 = vector.load %arg0[%353, %c0_87] : memref<16x640xf32, #tpu.memory_space<vmem>>, vector<1x512xf32>
    %c0_88 = arith.constant 0 : index
    %c0_89 = arith.constant 0 : index
    %355 = vector.load %arg1[%c0_88, %c0_89] : memref<128x512xf32, #tpu.memory_space<vmem>>, vector<128x512xf32>
    %cst_90 = arith.constant dense<0.000000e+00> : vector<1x512xf32>
    %356 = tpu.matmul %350, %355, %cst_90 {dimension_numbers = #tpu.dot_dimension_numbers<[1], [0], [0], [1], [0, 0, 1, 1], [], []>} : vector<1x128xf32>, vector<128x512xf32>, vector<1x512xf32> -> vector<1x512xf32>
    %357 = arith.addf %354, %356 : vector<1x512xf32>
    %358 = vector.extract_strided_slice %357 {offsets = [0, 0], sizes = [1, 128], strides = [1, 1]} : vector<1x512xf32> to vector<1x128xf32>
    %359 = arith.negf %358 : vector<1x128xf32>
    %360 = math.exp %359 : vector<1x128xf32>
    %cst_91 = arith.constant 1.000000e+00 : f32
    %361 = vector.broadcast %cst_91 : f32 to vector<1x128xf32>
    %362 = arith.addf %361, %360 : vector<1x128xf32>
    %363 = arith.divf %361, %362 : vector<1x128xf32>
    %364 = vector.extract_strided_slice %357 {offsets = [0, 128], sizes = [1, 128], strides = [1, 1]} : vector<1x512xf32> to vector<1x128xf32>
    %365 = arith.negf %364 : vector<1x128xf32>
    %366 = math.exp %365 : vector<1x128xf32>
    %cst_92 = arith.constant 1.000000e+00 : f32
    %367 = vector.broadcast %cst_92 : f32 to vector<1x128xf32>
    %368 = arith.addf %367, %366 : vector<1x128xf32>
    %369 = arith.divf %367, %368 : vector<1x128xf32>
    %370 = vector.extract_strided_slice %357 {offsets = [0, 256], sizes = [1, 128], strides = [1, 1]} : vector<1x512xf32> to vector<1x128xf32>
    %371 = math.tanh %370 : vector<1x128xf32>
    %372 = vector.extract_strided_slice %357 {offsets = [0, 384], sizes = [1, 128], strides = [1, 1]} : vector<1x512xf32> to vector<1x128xf32>
    %373 = arith.negf %372 : vector<1x128xf32>
    %374 = math.exp %373 : vector<1x128xf32>
    %cst_93 = arith.constant 1.000000e+00 : f32
    %375 = vector.broadcast %cst_93 : f32 to vector<1x128xf32>
    %376 = arith.addf %375, %374 : vector<1x128xf32>
    %377 = arith.divf %375, %376 : vector<1x128xf32>
    %378 = arith.mulf %369, %348 : vector<1x128xf32>
    %379 = arith.mulf %363, %371 : vector<1x128xf32>
    %380 = arith.addf %378, %379 : vector<1x128xf32>
    %381 = math.tanh %380 : vector<1x128xf32>
    %382 = arith.mulf %377, %381 : vector<1x128xf32>
    %383 = arith.index_cast %c11_i32 : i32 to index
    %c0_94 = arith.constant 0 : index
    %384 = vector.load %arg2[%383, %c0_94] : memref<16x128xf32, #tpu.memory_space<vmem>>, vector<1x128xf32>
    tpu.vector_store %arg2[%383, %c0_94], %382 {strides = array<i32>} : memref<16x128xf32, #tpu.memory_space<vmem>>, vector<1x128xf32>,
    %c12_i32 = arith.constant 12 : i32
    %385 = arith.index_cast %c12_i32 : i32 to index
    %c0_95 = arith.constant 0 : index
    %386 = vector.load %arg0[%385, %c0_95] : memref<16x640xf32, #tpu.memory_space<vmem>>, vector<1x512xf32>
    %c0_96 = arith.constant 0 : index
    %c0_97 = arith.constant 0 : index
    %387 = vector.load %arg1[%c0_96, %c0_97] : memref<128x512xf32, #tpu.memory_space<vmem>>, vector<128x512xf32>
    %cst_98 = arith.constant dense<0.000000e+00> : vector<1x512xf32>
    %388 = tpu.matmul %382, %387, %cst_98 {dimension_numbers = #tpu.dot_dimension_numbers<[1], [0], [0], [1], [0, 0, 1, 1], [], []>} : vector<1x128xf32>, vector<128x512xf32>, vector<1x512xf32> -> vector<1x512xf32>
    %389 = arith.addf %386, %388 : vector<1x512xf32>
    %390 = vector.extract_strided_slice %389 {offsets = [0, 0], sizes = [1, 128], strides = [1, 1]} : vector<1x512xf32> to vector<1x128xf32>
    %391 = arith.negf %390 : vector<1x128xf32>
    %392 = math.exp %391 : vector<1x128xf32>
    %cst_99 = arith.constant 1.000000e+00 : f32
    %393 = vector.broadcast %cst_99 : f32 to vector<1x128xf32>
    %394 = arith.addf %393, %392 : vector<1x128xf32>
    %395 = arith.divf %393, %394 : vector<1x128xf32>
    %396 = vector.extract_strided_slice %389 {offsets = [0, 128], sizes = [1, 128], strides = [1, 1]} : vector<1x512xf32> to vector<1x128xf32>
    %397 = arith.negf %396 : vector<1x128xf32>
    %398 = math.exp %397 : vector<1x128xf32>
    %cst_100 = arith.constant 1.000000e+00 : f32
    %399 = vector.broadcast %cst_100 : f32 to vector<1x128xf32>
    %400 = arith.addf %399, %398 : vector<1x128xf32>
    %401 = arith.divf %399, %400 : vector<1x128xf32>
    %402 = vector.extract_strided_slice %389 {offsets = [0, 256], sizes = [1, 128], strides = [1, 1]} : vector<1x512xf32> to vector<1x128xf32>
    %403 = math.tanh %402 : vector<1x128xf32>
    %404 = vector.extract_strided_slice %389 {offsets = [0, 384], sizes = [1, 128], strides = [1, 1]} : vector<1x512xf32> to vector<1x128xf32>
    %405 = arith.negf %404 : vector<1x128xf32>
    %406 = math.exp %405 : vector<1x128xf32>
    %cst_101 = arith.constant 1.000000e+00 : f32
    %407 = vector.broadcast %cst_101 : f32 to vector<1x128xf32>
    %408 = arith.addf %407, %406 : vector<1x128xf32>
    %409 = arith.divf %407, %408 : vector<1x128xf32>
    %410 = arith.mulf %401, %380 : vector<1x128xf32>
    %411 = arith.mulf %395, %403 : vector<1x128xf32>
    %412 = arith.addf %410, %411 : vector<1x128xf32>
    %413 = math.tanh %412 : vector<1x128xf32>
    %414 = arith.mulf %409, %413 : vector<1x128xf32>
    %415 = arith.index_cast %c12_i32 : i32 to index
    %c0_102 = arith.constant 0 : index
    %416 = vector.load %arg2[%415, %c0_102] : memref<16x128xf32, #tpu.memory_space<vmem>>, vector<1x128xf32>
    tpu.vector_store %arg2[%415, %c0_102], %414 {strides = array<i32>} : memref<16x128xf32, #tpu.memory_space<vmem>>, vector<1x128xf32>,
    %c13_i32 = arith.constant 13 : i32
    %417 = arith.index_cast %c13_i32 : i32 to index
    %c0_103 = arith.constant 0 : index
    %418 = vector.load %arg0[%417, %c0_103] : memref<16x640xf32, #tpu.memory_space<vmem>>, vector<1x512xf32>
    %c0_104 = arith.constant 0 : index
    %c0_105 = arith.constant 0 : index
    %419 = vector.load %arg1[%c0_104, %c0_105] : memref<128x512xf32, #tpu.memory_space<vmem>>, vector<128x512xf32>
    %cst_106 = arith.constant dense<0.000000e+00> : vector<1x512xf32>
    %420 = tpu.matmul %414, %419, %cst_106 {dimension_numbers = #tpu.dot_dimension_numbers<[1], [0], [0], [1], [0, 0, 1, 1], [], []>} : vector<1x128xf32>, vector<128x512xf32>, vector<1x512xf32> -> vector<1x512xf32>
    %421 = arith.addf %418, %420 : vector<1x512xf32>
    %422 = vector.extract_strided_slice %421 {offsets = [0, 0], sizes = [1, 128], strides = [1, 1]} : vector<1x512xf32> to vector<1x128xf32>
    %423 = arith.negf %422 : vector<1x128xf32>
    %424 = math.exp %423 : vector<1x128xf32>
    %cst_107 = arith.constant 1.000000e+00 : f32
    %425 = vector.broadcast %cst_107 : f32 to vector<1x128xf32>
    %426 = arith.addf %425, %424 : vector<1x128xf32>
    %427 = arith.divf %425, %426 : vector<1x128xf32>
    %428 = vector.extract_strided_slice %421 {offsets = [0, 128], sizes = [1, 128], strides = [1, 1]} : vector<1x512xf32> to vector<1x128xf32>
    %429 = arith.negf %428 : vector<1x128xf32>
    %430 = math.exp %429 : vector<1x128xf32>
    %cst_108 = arith.constant 1.000000e+00 : f32
    %431 = vector.broadcast %cst_108 : f32 to vector<1x128xf32>
    %432 = arith.addf %431, %430 : vector<1x128xf32>
    %433 = arith.divf %431, %432 : vector<1x128xf32>
    %434 = vector.extract_strided_slice %421 {offsets = [0, 256], sizes = [1, 128], strides = [1, 1]} : vector<1x512xf32> to vector<1x128xf32>
    %435 = math.tanh %434 : vector<1x128xf32>
    %436 = vector.extract_strided_slice %421 {offsets = [0, 384], sizes = [1, 128], strides = [1, 1]} : vector<1x512xf32> to vector<1x128xf32>
    %437 = arith.negf %436 : vector<1x128xf32>
    %438 = math.exp %437 : vector<1x128xf32>
    %cst_109 = arith.constant 1.000000e+00 : f32
    %439 = vector.broadcast %cst_109 : f32 to vector<1x128xf32>
    %440 = arith.addf %439, %438 : vector<1x128xf32>
    %441 = arith.divf %439, %440 : vector<1x128xf32>
    %442 = arith.mulf %433, %412 : vector<1x128xf32>
    %443 = arith.mulf %427, %435 : vector<1x128xf32>
    %444 = arith.addf %442, %443 : vector<1x128xf32>
    %445 = math.tanh %444 : vector<1x128xf32>
    %446 = arith.mulf %441, %445 : vector<1x128xf32>
    %447 = arith.index_cast %c13_i32 : i32 to index
    %c0_110 = arith.constant 0 : index
    %448 = vector.load %arg2[%447, %c0_110] : memref<16x128xf32, #tpu.memory_space<vmem>>, vector<1x128xf32>
    tpu.vector_store %arg2[%447, %c0_110], %446 {strides = array<i32>} : memref<16x128xf32, #tpu.memory_space<vmem>>, vector<1x128xf32>,
    %c14_i32 = arith.constant 14 : i32
    %449 = arith.index_cast %c14_i32 : i32 to index
    %c0_111 = arith.constant 0 : index
    %450 = vector.load %arg0[%449, %c0_111] : memref<16x640xf32, #tpu.memory_space<vmem>>, vector<1x512xf32>
    %c0_112 = arith.constant 0 : index
    %c0_113 = arith.constant 0 : index
    %451 = vector.load %arg1[%c0_112, %c0_113] : memref<128x512xf32, #tpu.memory_space<vmem>>, vector<128x512xf32>
    %cst_114 = arith.constant dense<0.000000e+00> : vector<1x512xf32>
    %452 = tpu.matmul %446, %451, %cst_114 {dimension_numbers = #tpu.dot_dimension_numbers<[1], [0], [0], [1], [0, 0, 1, 1], [], []>} : vector<1x128xf32>, vector<128x512xf32>, vector<1x512xf32> -> vector<1x512xf32>
    %453 = arith.addf %450, %452 : vector<1x512xf32>
    %454 = vector.extract_strided_slice %453 {offsets = [0, 0], sizes = [1, 128], strides = [1, 1]} : vector<1x512xf32> to vector<1x128xf32>
    %455 = arith.negf %454 : vector<1x128xf32>
    %456 = math.exp %455 : vector<1x128xf32>
    %cst_115 = arith.constant 1.000000e+00 : f32
    %457 = vector.broadcast %cst_115 : f32 to vector<1x128xf32>
    %458 = arith.addf %457, %456 : vector<1x128xf32>
    %459 = arith.divf %457, %458 : vector<1x128xf32>
    %460 = vector.extract_strided_slice %453 {offsets = [0, 128], sizes = [1, 128], strides = [1, 1]} : vector<1x512xf32> to vector<1x128xf32>
    %461 = arith.negf %460 : vector<1x128xf32>
    %462 = math.exp %461 : vector<1x128xf32>
    %cst_116 = arith.constant 1.000000e+00 : f32
    %463 = vector.broadcast %cst_116 : f32 to vector<1x128xf32>
    %464 = arith.addf %463, %462 : vector<1x128xf32>
    %465 = arith.divf %463, %464 : vector<1x128xf32>
    %466 = vector.extract_strided_slice %453 {offsets = [0, 256], sizes = [1, 128], strides = [1, 1]} : vector<1x512xf32> to vector<1x128xf32>
    %467 = math.tanh %466 : vector<1x128xf32>
    %468 = vector.extract_strided_slice %453 {offsets = [0, 384], sizes = [1, 128], strides = [1, 1]} : vector<1x512xf32> to vector<1x128xf32>
    %469 = arith.negf %468 : vector<1x128xf32>
    %470 = math.exp %469 : vector<1x128xf32>
    %cst_117 = arith.constant 1.000000e+00 : f32
    %471 = vector.broadcast %cst_117 : f32 to vector<1x128xf32>
    %472 = arith.addf %471, %470 : vector<1x128xf32>
    %473 = arith.divf %471, %472 : vector<1x128xf32>
    %474 = arith.mulf %465, %444 : vector<1x128xf32>
    %475 = arith.mulf %459, %467 : vector<1x128xf32>
    %476 = arith.addf %474, %475 : vector<1x128xf32>
    %477 = math.tanh %476 : vector<1x128xf32>
    %478 = arith.mulf %473, %477 : vector<1x128xf32>
    %479 = arith.index_cast %c14_i32 : i32 to index
    %c0_118 = arith.constant 0 : index
    %480 = vector.load %arg2[%479, %c0_118] : memref<16x128xf32, #tpu.memory_space<vmem>>, vector<1x128xf32>
    tpu.vector_store %arg2[%479, %c0_118], %478 {strides = array<i32>} : memref<16x128xf32, #tpu.memory_space<vmem>>, vector<1x128xf32>,
    %c15_i32 = arith.constant 15 : i32
    %481 = arith.index_cast %c15_i32 : i32 to index
    %c0_119 = arith.constant 0 : index
    %482 = vector.load %arg0[%481, %c0_119] : memref<16x640xf32, #tpu.memory_space<vmem>>, vector<1x512xf32>
    %c0_120 = arith.constant 0 : index
    %c0_121 = arith.constant 0 : index
    %483 = vector.load %arg1[%c0_120, %c0_121] : memref<128x512xf32, #tpu.memory_space<vmem>>, vector<128x512xf32>
    %cst_122 = arith.constant dense<0.000000e+00> : vector<1x512xf32>
    %484 = tpu.matmul %478, %483, %cst_122 {dimension_numbers = #tpu.dot_dimension_numbers<[1], [0], [0], [1], [0, 0, 1, 1], [], []>} : vector<1x128xf32>, vector<128x512xf32>, vector<1x512xf32> -> vector<1x512xf32>
    %485 = arith.addf %482, %484 : vector<1x512xf32>
    %486 = vector.extract_strided_slice %485 {offsets = [0, 0], sizes = [1, 128], strides = [1, 1]} : vector<1x512xf32> to vector<1x128xf32>
    %487 = arith.negf %486 : vector<1x128xf32>
    %488 = math.exp %487 : vector<1x128xf32>
    %cst_123 = arith.constant 1.000000e+00 : f32
    %489 = vector.broadcast %cst_123 : f32 to vector<1x128xf32>
    %490 = arith.addf %489, %488 : vector<1x128xf32>
    %491 = arith.divf %489, %490 : vector<1x128xf32>
    %492 = vector.extract_strided_slice %485 {offsets = [0, 128], sizes = [1, 128], strides = [1, 1]} : vector<1x512xf32> to vector<1x128xf32>
    %493 = arith.negf %492 : vector<1x128xf32>
    %494 = math.exp %493 : vector<1x128xf32>
    %cst_124 = arith.constant 1.000000e+00 : f32
    %495 = vector.broadcast %cst_124 : f32 to vector<1x128xf32>
    %496 = arith.addf %495, %494 : vector<1x128xf32>
    %497 = arith.divf %495, %496 : vector<1x128xf32>
    %498 = vector.extract_strided_slice %485 {offsets = [0, 256], sizes = [1, 128], strides = [1, 1]} : vector<1x512xf32> to vector<1x128xf32>
    %499 = math.tanh %498 : vector<1x128xf32>
    %500 = vector.extract_strided_slice %485 {offsets = [0, 384], sizes = [1, 128], strides = [1, 1]} : vector<1x512xf32> to vector<1x128xf32>
    %501 = arith.negf %500 : vector<1x128xf32>
    %502 = math.exp %501 : vector<1x128xf32>
    %cst_125 = arith.constant 1.000000e+00 : f32
    %503 = vector.broadcast %cst_125 : f32 to vector<1x128xf32>
    %504 = arith.addf %503, %502 : vector<1x128xf32>
    %505 = arith.divf %503, %504 : vector<1x128xf32>
    %506 = arith.mulf %497, %476 : vector<1x128xf32>
    %507 = arith.mulf %491, %499 : vector<1x128xf32>
    %508 = arith.addf %506, %507 : vector<1x128xf32>
    %509 = math.tanh %508 : vector<1x128xf32>
    %510 = arith.mulf %505, %509 : vector<1x128xf32>
    %511 = arith.index_cast %c15_i32 : i32 to index
    %c0_126 = arith.constant 0 : index
    %512 = vector.load %arg2[%511, %c0_126] : memref<16x128xf32, #tpu.memory_space<vmem>>, vector<1x128xf32>
    tpu.vector_store %arg2[%511, %c0_126], %510 {strides = array<i32>} : memref<16x128xf32, #tpu.memory_space<vmem>>, vector<1x128xf32>,
    %c16_i32 = arith.constant 16 : i32
    return
  }
}

</mosaic_0001>

<llo_original>
// kernel: rntn_forward.2
$region0: #{rntn_forward.2}
  #allocation0 [shape = 'u32[]', space=smem, size = 0x4, offset = 0x4, fixed_abs, tag = 'smem constant byte address 0x4 - core index']
  #allocation1 [shape = 'u32[144,128]{1,0:T(1,128)}', space=vmem, size = 0x12000, scoped, tag = 'internal scratch']
  #allocation2 [shape = 'f32[16,100]{1,0:T(8,128)}', space=vmem, size = 0x2000, scoped, tag = 'scratch operand']
  %s0 = inlined_call_operand.vmem [shape: f32[16,40960], index: 0, kind: input, shape index: {}]
  %s1 = inlined_call_operand.vmem [shape: f32[40960,100], index: 1, kind: input, shape index: {}]
  %s2 = inlined_call_operand.vmem [shape: f32[16,200], index: 2, kind: input, shape index: {}]
  %s3 = inlined_call_operand.vmem [shape: f32[200,100], index: 3, kind: input, shape index: {}]
  %s4 = inlined_call_operand.vmem [shape: f32[1,100], index: 4, kind: input, shape index: {}]
  %s5 = inlined_call_operand.vmem [shape: f32[100,640], index: 5, kind: input, shape index: {}]
  %s6 = inlined_call_operand.vmem [shape: f32[1,640], index: 6, kind: input, shape index: {}]
  %s7 = inlined_call_operand.vmem [shape: f32[16,640], index: 7, kind: output, shape index: {}]
  %s8 = sld [smem:[#allocation0]]
  $region92: #{rntn_forward.2} parent=0
    _
  %s10 = ssub.s32 1, %s8
  %s11 = scalar_select 0, %s10, %s8
  $region1: #{rntn_forward.2} parent=0
    #allocation3 [shape = 'u8[524288]{0}', space=vmem, size = 0x80000, scoped, tag = 'input window, operand 0']
    loop: start=0, step=1, limit=12
    $region2: #{rntn_forward.2} parent=1 // loop_pre_header
      _
    $region3: #{rntn_forward.2} parent=1 // loop_header
      %s13 = sphi 0, %s17
      %p14 = scmp.ge.s32.totalorder %s13, 12
      %s23 = sphi 0, %s25
      %s26 = sphi 0, %s23
      %s27 = sphi 0, %s26
      %s43 = sphi 0, %s27
      %s49 = sphi 0, %s51
      %s52 = sphi 0, %s49
      %s53 = sphi 0, %s52
      %s69 = sphi 0, %s53
      %s73 = sphi 0, %s73
      %s75 = sphi 0, %s73
      %s76 = sphi 0, %s75
      %s90 = sphi 0, %s76
      %s94 = sphi 0, %s94
      %s96 = sphi 0, %s94
      %s97 = sphi 0, %s96
      %s111 = sphi 0, %s97
      %s115 = sphi 0, %s115
      %s117 = sphi 0, %s115
      %s118 = sphi 0, %s117
      %s132 = sphi 0, %s118
      %s136 = sphi 0, %s136
      %s138 = sphi 0, %s136
      %s139 = sphi 0, %s138
      %s153 = sphi 0, %s139
      %s157 = sphi 0, %s157
      %s159 = sphi 0, %s157
      %s160 = sphi 0, %s159
      %s174 = sphi 0, %s160
      %s178 = sphi 0, %s178
      %s180 = sphi 0, %s178
      %s181 = sphi 0, %s180
      %s195 = sphi 0, %s181
    $region4: #{rntn_forward.2} parent=1 // loop_header_branch
      %16 = sbr.rel (%p14) target = $region8
    $region5: #{rntn_forward.2} parent=1 // loop_body
      %s18 = ssub.s32 %s13, 1
      %s19 = ssub.s32 %s13, 2
      %s20 = sadd.s32 %s13, 1
      %s21 = ssub.s32 %s13, %s20
      %p22 = scmp.eq.s32.totalorder %s21, 0
      %s24 = sadd.s32 %s23, 1
      %s25 = scalar_select %p22, %s23, %s24
      %p28 = pneg %p22
      %p29 = scmp.eq.s32.totalorder %s13, 9
      %p30 = por %p28, %p29
      %p31 = scmp.ne.s32.totalorder %s23, %s26
      %p32 = scmp.eq.s32.totalorder %s13, 0
      %p33 = por %p31, %p32
      %p34 = scmp.ne.s32.totalorder %s23, %s26
      %p35 = scmp.eq.s32.totalorder %s18, 9
      %p36 = por %p34, %p35
      %p37 = scmp.ne.s32.totalorder %s26, %s27
      %p38 = scmp.eq.s32.totalorder %s18, 0
      %p39 = por %p37, %p38
      %p40 = scmp.ne.s32.totalorder %s26, %s27
      %p41 = scmp.eq.s32.totalorder %s19, 9
      %p42 = por %p40, %p41
      %p44 = scmp.ne.s32.totalorder %s27, %s43
      %p45 = scmp.eq.s32.totalorder %s19, 0
      %p46 = por %p44, %p45
      %s47 = ssub.s32 %s13, %s20
      %p48 = scmp.eq.s32.totalorder %s47, 0
      %s50 = sadd.s32 %s49, 1
      %s51 = scalar_select %p48, %s49, %s50
      %p54 = pneg %p48
      %p55 = scmp.eq.s32.totalorder %s13, 9
      %p56 = por %p54, %p55
      %p57 = scmp.ne.s32.totalorder %s49, %s52
      %p58 = scmp.eq.s32.totalorder %s13, 0
      %p59 = por %p57, %p58
      %p60 = scmp.ne.s32.totalorder %s49, %s52
      %p61 = scmp.eq.s32.totalorder %s18, 9
      %p62 = por %p60, %p61
      %p63 = scmp.ne.s32.totalorder %s52, %s53
      %p64 = scmp.eq.s32.totalorder %s18, 0
      %p65 = por %p63, %p64
      %p66 = scmp.ne.s32.totalorder %s52, %s53
      %p67 = scmp.eq.s32.totalorder %s19, 9
      %p68 = por %p66, %p67
      %p70 = scmp.ne.s32.totalorder %s53, %s69
      %p71 = scmp.eq.s32.totalorder %s19, 0
      %p72 = por %p70, %p71
      %s74 = sadd.s32 %s73, 1
      %p77 = scmp.eq.s32.totalorder %s13, 9
      %p78 = scmp.ne.s32.totalorder %s73, %s75
      %p79 = scmp.eq.s32.totalorder %s13, 0
      %p80 = por %p78, %p79
      %p81 = scmp.ne.s32.totalorder %s73, %s75
      %p82 = scmp.eq.s32.totalorder %s18, 9
      %p83 = por %p81, %p82
      %p84 = scmp.ne.s32.totalorder %s75, %s76
      %p85 = scmp.eq.s32.totalorder %s18, 0
      %p86 = por %p84, %p85
      %p87 = scmp.ne.s32.totalorder %s75, %s76
      %p88 = scmp.eq.s32.totalorder %s19, 9
      %p89 = por %p87, %p88
      %p91 = scmp.ne.s32.totalorder %s76, %s90
      %p92 = scmp.eq.s32.totalorder %s19, 0
      %p93 = por %p91, %p92
      %s95 = sadd.s32 %s94, 1
      %p98 = scmp.eq.s32.totalorder %s13, 9
      %p99 = scmp.ne.s32.totalorder %s94, %s96
      %p100 = scmp.eq.s32.totalorder %s13, 0
      %p101 = por %p99, %p100
      %p102 = scmp.ne.s32.totalorder %s94, %s96
      %p103 = scmp.eq.s32.totalorder %s18, 9
      %p104 = por %p102, %p103
      %p105 = scmp.ne.s32.totalorder %s96, %s97
      %p106 = scmp.eq.s32.totalorder %s18, 0
      %p107 = por %p105, %p106
      %p108 = scmp.ne.s32.totalorder %s96, %s97
      %p109 = scmp.eq.s32.totalorder %s19, 9
      %p110 = por %p108, %p109
      %p112 = scmp.ne.s32.totalorder %s97, %s111
      %p113 = scmp.eq.s32.totalorder %s19, 0
      %p114 = por %p112, %p113
      %s116 = sadd.s32 %s115, 1
      %p119 = scmp.eq.s32.totalorder %s13, 9
      %p120 = scmp.ne.s32.totalorder %s115, %s117
      %p121 = scmp.eq.s32.totalorder %s13, 0
      %p122 = por %p120, %p121
      %p123 = scmp.ne.s32.totalorder %s115, %s117
      %p124 = scmp.eq.s32.totalorder %s18, 9
      %p125 = por %p123, %p124
      %p126 = scmp.ne.s32.totalorder %s117, %s118
      %p127 = scmp.eq.s32.totalorder %s18, 0
      %p128 = por %p126, %p127
      %p129 = scmp.ne.s32.totalorder %s117, %s118
      %p130 = scmp.eq.s32.totalorder %s19, 9
      %p131 = por %p129, %p130
      %p133 = scmp.ne.s32.totalorder %s118, %s132
      %p134 = scmp.eq.s32.totalorder %s19, 0
      %p135 = por %p133, %p134
      %s137 = sadd.s32 %s136, 1
      %p140 = scmp.eq.s32.totalorder %s13, 9
      %p141 = scmp.ne.s32.totalorder %s136, %s138
      %p142 = scmp.eq.s32.totalorder %s13, 0
      %p143 = por %p141, %p142
      %p144 = scmp.ne.s32.totalorder %s136, %s138
      %p145 = scmp.eq.s32.totalorder %s18, 9
      %p146 = por %p144, %p145
      %p147 = scmp.ne.s32.totalorder %s138, %s139
      %p148 = scmp.eq.s32.totalorder %s18, 0
      %p149 = por %p147, %p148
      %p150 = scmp.ne.s32.totalorder %s138, %s139
      %p151 = scmp.eq.s32.totalorder %s19, 9
      %p152 = por %p150, %p151
      %p154 = scmp.ne.s32.totalorder %s139, %s153
      %p155 = scmp.eq.s32.totalorder %s19, 0
      %p156 = por %p154, %p155
      %s158 = sadd.s32 %s157, 1
      %p161 = scmp.eq.s32.totalorder %s13, 9
      %p162 = scmp.ne.s32.totalorder %s157, %s159
      %p163 = scmp.eq.s32.totalorder %s13, 0
      %p164 = por %p162, %p163
      %p165 = scmp.ne.s32.totalorder %s157, %s159
      %p166 = scmp.eq.s32.totalorder %s18, 9
      %p167 = por %p165, %p166
      %p168 = scmp.ne.s32.totalorder %s159, %s160
      %p169 = scmp.eq.s32.totalorder %s18, 0
      %p170 = por %p168, %p169
      %p171 = scmp.ne.s32.totalorder %s159, %s160
      %p172 = scmp.eq.s32.totalorder %s19, 9
      %p173 = por %p171, %p172
      %p175 = scmp.ne.s32.totalorder %s160, %s174
      %p176 = scmp.eq.s32.totalorder %s19, 0
      %p177 = por %p175, %p176
      %s179 = sadd.s32 %s178, 1
      %p182 = scmp.eq.s32.totalorder %s13, 9
      %p183 = scmp.ne.s32.totalorder %s178, %s180
      %p184 = scmp.eq.s32.totalorder %s13, 0
      %p185 = por %p183, %p184
      %p186 = scmp.ne.s32.totalorder %s178, %s180
      %p187 = scmp.eq.s32.totalorder %s18, 9
      %p188 = por %p186, %p187
      %p189 = scmp.ne.s32.totalorder %s180, %s181
      %p190 = scmp.eq.s32.totalorder %s18, 0
      %p191 = por %p189, %p190
      %p192 = scmp.ne.s32.totalorder %s180, %s181
      %p193 = scmp.eq.s32.totalorder %s19, 9
      %p194 = por %p192, %p193
      %p196 = scmp.ne.s32.totalorder %s181, %s195
      %p197 = scmp.eq.s32.totalorder %s19, 0
      %p198 = por %p196, %p197
      %p199 = scmp.le.s32.totalorder 1, %s13
      %p200 = scmp.lt.s32.totalorder %s13, 11
      %p201 = pnand %p199, %p200
      %p202 = pneg %p201
      // Predicated region
      $region9: #{rntn_forward.2} parent=5 // pred_check
        _
      $region10: #{rntn_forward.2} parent=5 // pred_check_branch
        %204 = sbr.rel (%p201) target = $region12
      $region11: #{rntn_forward.2} parent=5 // pred_region
        %s205 = ssub.s32 %s13, 1
        // Predicated region
        $region13: #{rntn_forward.2} parent=11 // pred_check
          %p206 = pneg %p86
        $region14: #{rntn_forward.2} parent=11 // pred_check_branch
          %208 = sbr.rel (%p206) target = $region16
        $region15: #{rntn_forward.2} parent=11 // pred_region
          _
        $region16: #{rntn_forward.2} parent=11 // pred_fallthru
          _
        // Predicated region
        $region17: #{rntn_forward.2} parent=11 // pred_check
          %p209 = pneg %p107
        $region18: #{rntn_forward.2} parent=11 // pred_check_branch
          %211 = sbr.rel (%p209) target = $region20
        $region19: #{rntn_forward.2} parent=11 // pred_region
          _
        $region20: #{rntn_forward.2} parent=11 // pred_fallthru
          _
        // Predicated region
        $region21: #{rntn_forward.2} parent=11 // pred_check
          %p212 = pneg %p128
        $region22: #{rntn_forward.2} parent=11 // pred_check_branch
          %214 = sbr.rel (%p212) target = $region24
        $region23: #{rntn_forward.2} parent=11 // pred_region
          _
        $region24: #{rntn_forward.2} parent=11 // pred_fallthru
          _
        // Predicated region
        $region25: #{rntn_forward.2} parent=11 // pred_check
          %p215 = pneg %p149
        $region26: #{rntn_forward.2} parent=11 // pred_check_branch
          %217 = sbr.rel (%p215) target = $region28
        $region27: #{rntn_forward.2} parent=11 // pred_region
          _
        $region28: #{rntn_forward.2} parent=11 // pred_fallthru
          _
        // Predicated region
        $region29: #{rntn_forward.2} parent=11 // pred_check
          %p218 = pneg %p170
        $region30: #{rntn_forward.2} parent=11 // pred_check_branch
          %220 = sbr.rel (%p218) target = $region32
        $region31: #{rntn_forward.2} parent=11 // pred_region
          _
        $region32: #{rntn_forward.2} parent=11 // pred_fallthru
          _
      $region12: #{rntn_forward.2} parent=5 // pred_fallthru
        _
      %p221 = scmp.lt.s32.totalorder %s13, 10
      // Predicated region
      $region33: #{rntn_forward.2} parent=5 // pred_check
        %p222 = pneg %p221
      $region34: #{rntn_forward.2} parent=5 // pred_check_branch
        %224 = sbr.rel (%p222) target = $region36
      $region35: #{rntn_forward.2} parent=5 // pred_region
        // Predicated region
        $region37: #{rntn_forward.2} parent=35 // pred_check
          %p225 = pneg %p33
        $region38: #{rntn_forward.2} parent=35 // pred_check_branch
          %227 = sbr.rel (%p225) target = $region40
        $region39: #{rntn_forward.2} parent=35 // pred_region
          %s228 = sand.u32 %s23, 1
          %s229 = sand.u32 %s23, 1
          %s230 = smul.addr %s229, 512
          %s231 = scalar_lea.vmem [#allocation3], %s230
          %s232 = smul.u32 32, %s13
          %s233 = smul.addr %s232, 8
          %s234 = scalar_lea.vmem %s0, %s233
          // Predicated region
          $region41: #{rntn_forward.2} parent=39 // pred_check
            _
          $region42: #{rntn_forward.2} parent=39 // pred_check_branch
            %236 = sbr.rel (0) target = $region44
          $region43: #{rntn_forward.2} parent=39 // pred_region
            // Predicated region
            $region45: #{rntn_forward.2} parent=43 // pred_check
              _
            $region46: #{rntn_forward.2} parent=43 // pred_check_branch
              %238 = sbr.rel (0) target = $region48
            $region47: #{rntn_forward.2} parent=43 // pred_region
              loop: start=0, step=1, limit=1
              $region49: #{rntn_forward.2} parent=47 // loop_pre_header
                _
              $region50: #{rntn_forward.2} parent=47 // loop_header
                %s240 = sphi 0, %s244
                %p241 = scmp.ge.s32.totalorder %s240, 1
                %s245 = sphi %s234, %s234
                %s246 = sphi %s231, %s231
              $region51: #{rntn_forward.2} parent=47 // loop_header_branch
                %243 = sbr.rel (%p241) target = $region55
              $region52: #{rntn_forward.2} parent=47 // loop_body
                %v247 = vld [vmem:[%s245] sm:$0xff]
                %248 = vst [vmem:[%s246] sm:$0xff] %v247
                %v249 = vld [vmem:[%s245 + $0x8] sm:$0xff]
                %250 = vst [vmem:[%s246 + $0x8] sm:$0xff] %v249
                %v251 = vld [vmem:[%s245 + $0x10] sm:$0xff]
                %252 = vst [vmem:[%s246 + $0x10] sm:$0xff] %v251
                %v253 = vld [vmem:[%s245 + $0x18] sm:$0xff]
                %254 = vst [vmem:[%s246 + $0x18] sm:$0xff] %v253
                %v255 = vld [vmem:[%s245 + $0x20] sm:$0xff]
                %256 = vst [vmem:[%s246 + $0x20] sm:$0xff] %v255
                %v257 = vld [vmem:[%s245 + $0x28] sm:$0xff]
                %258 = vst [vmem:[%s246 + $0x28] sm:$0xff] %v257
                %v259 = vld [vmem:[%s245 + $0x30] sm:$0xff]
                %260 = vst [vmem:[%s246 + $0x30] sm:$0xff] %v259
                %v261 = vld [vmem:[%s245 + $0x38] sm:$0xff]
                %262 = vst [vmem:[%s246 + $0x38] sm:$0xff] %v261
                %v263 = vld [vmem:[%s245 + $0x40] sm:$0xff]
                %264 = vst [vmem:[%s246 + $0x40] sm:$0xff] %v263
                %v265 = vld [vmem:[%s245 + $0x48] sm:$0xff]
                %266 = vst [vmem:[%s246 + $0x48] sm:$0xff] %v265
                %v267 = vld [vmem:[%s245 + $0x50] sm:$0xff]
                %268 = vst [vmem:[%s246 + $0x50] sm:$0xff] %v267
                %v269 = vld [vmem:[%s245 + $0x58] sm:$0xff]
                %270 = vst [vmem:[%s246 + $0x58] sm:$0xff] %v269
                %v271 = vld [vmem:[%s245 + $0x60] sm:$0xff]
                %272 = vst [vmem:[%s246 + $0x60] sm:$0xff] %v271
                %v273 = vld [vmem:[%s245 + $0x68] sm:$0xff]
                %274 = vst [vmem:[%s246 + $0x68] sm:$0xff] %v273
                %v275 = vld [vmem:[%s245 + $0x70] sm:$0xff]
                %276 = vst [vmem:[%s246 + $0x70] sm:$0xff] %v275
                %v277 = vld [vmem:[%s245 + $0x78] sm:$0xff]
                %278 = vst [vmem:[%s246 + $0x78] sm:$0xff] %v277
                %v279 = vld [vmem:[%s245 + $0x80] sm:$0xff]
                %280 = vst [vmem:[%s246 + $0x80] sm:$0xff] %v279
                %v281 = vld [vmem:[%s245 + $0x88] sm:$0xff]
                %282 = vst [vmem:[%s246 + $0x88] sm:$0xff] %v281
                %v283 = vld [vmem:[%s245 + $0x90] sm:$0xff]
                %284 = vst [vmem:[%s246 + $0x90] sm:$0xff] %v283
                %v285 = vld [vmem:[%s245 + $0x98] sm:$0xff]
                %286 = vst [vmem:[%s246 + $0x98] sm:$0xff] %v285
                %v287 = vld [vmem:[%s245 + $0xa0] sm:$0xff]
                %288 = vst [vmem:[%s246 + $0xa0] sm:$0xff] %v287
                %v289 = vld [vmem:[%s245 + $0xa8] sm:$0xff]
                %290 = vst [vmem:[%s246 + $0xa8] sm:$0xff] %v289
                %v291 = vld [vmem:[%s245 + $0xb0] sm:$0xff]
                %292 = vst [vmem:[%s246 + $0xb0] sm:$0xff] %v291
                %v293 = vld [vmem:[%s245 + $0xb8] sm:$0xff]
                %294 = vst [vmem:[%s246 + $0xb8] sm:$0xff] %v293
                %v295 = vld [vmem:[%s245 + $0xc0] sm:$0xff]
                %296 = vst [vmem:[%s246 + $0xc0] sm:$0xff] %v295
                %v297 = vld [vmem:[%s245 + $0xc8] sm:$0xff]
                %298 = vst [vmem:[%s246 + $0xc8] sm:$0xff] %v297
                %v299 = vld [vmem:[%s245 + $0xd0] sm:$0xff]
                %300 = vst [vmem:[%s246 + $0xd0] sm:$0xff] %v299
                %v301 = vld [vmem:[%s245 + $0xd8] sm:$0xff]
                %302 = vst [vmem:[%s246 + $0xd8] sm:$0xff] %v301
                %v303 = vld [vmem:[%s245 + $0xe0] sm:$0xff]
                %304 = vst [vmem:[%s246 + $0xe0] sm:$0xff] %v303
                %v305 = vld [vmem:[%s245 + $0xe8] sm:$0xff]
                %306 = vst [vmem:[%s246 + $0xe8] sm:$0xff] %v305
                %v307 = vld [vmem:[%s245 + $0xf0] sm:$0xff]
                %308 = vst [vmem:[%s246 + $0xf0] sm:$0xff] %v307
                %v309 = vld [vmem:[%s245 + $0xf8] sm:$0xff]
                %310 = vst [vmem:[%s246 + $0xf8] sm:$0xff] %v309
                %v311 = vld [vmem:[%s245 + $0xa00] sm:$0xff]
                %312 = vst [vmem:[%s246 + $0x100] sm:$0xff] %v311
                %v313 = vld [vmem:[%s245 + $0xa08] sm:$0xff]
                %314 = vst [vmem:[%s246 + $0x108] sm:$0xff] %v313
                %v315 = vld [vmem:[%s245 + $0xa10] sm:$0xff]
                %316 = vst [vmem:[%s246 + $0x110] sm:$0xff] %v315
                %v317 = vld [vmem:[%s245 + $0xa18] sm:$0xff]
                %318 = vst [vmem:[%s246 + $0x118] sm:$0xff] %v317
                %v319 = vld [vmem:[%s245 + $0xa20] sm:$0xff]
                %320 = vst [vmem:[%s246 + $0x120] sm:$0xff] %v319
                %v321 = vld [vmem:[%s245 + $0xa28] sm:$0xff]
                %322 = vst [vmem:[%s246 + $0x128] sm:$0xff] %v321
                %v323 = vld [vmem:[%s245 + $0xa30] sm:$0xff]
                %324 = vst [vmem:[%s246 + $0x130] sm:$0xff] %v323
                %v325 = vld [vmem:[%s245 + $0xa38] sm:$0xff]
                %326 = vst [vmem:[%s246 + $0x138] sm:$0xff] %v325
                %v327 = vld [vmem:[%s245 + $0xa40] sm:$0xff]
                %328 = vst [vmem:[%s246 + $0x140] sm:$0xff] %v327
                %v329 = vld [vmem:[%s245 + $0xa48] sm:$0xff]
                %330 = vst [vmem:[%s246 + $0x148] sm:$0xff] %v329
                %v331 = vld [vmem:[%s245 + $0xa50] sm:$0xff]
                %332 = vst [vmem:[%s246 + $0x150] sm:$0xff] %v331
                %v333 = vld [vmem:[%s245 + $0xa58] sm:$0xff]
                %334 = vst [vmem:[%s246 + $0x158] sm:$0xff] %v333
                %v335 = vld [vmem:[%s245 + $0xa60] sm:$0xff]
                %336 = vst [vmem:[%s246 + $0x160] sm:$0xff] %v335
                %v337 = vld [vmem:[%s245 + $0xa68] sm:$0xff]
                %338 = vst [vmem:[%s246 + $0x168] sm:$0xff] %v337
                %v339 = vld [vmem:[%s245 + $0xa70] sm:$0xff]
                %340 = vst [vmem:[%s246 + $0x170] sm:$0xff] %v339
                %v341 = vld [vmem:[%s245 + $0xa78] sm:$0xff]
                %342 = vst [vmem:[%s246 + $0x178] sm:$0xff] %v341
                %v343 = vld [vmem:[%s245 + $0xa80] sm:$0xff]
                %344 = vst [vmem:[%s246 + $0x180] sm:$0xff] %v343
                %v345 = vld [vmem:[%s245 + $0xa88] sm:$0xff]
                %346 = vst [vmem:[%s246 + $0x188] sm:$0xff] %v345
                %v347 = vld [vmem:[%s245 + $0xa90] sm:$0xff]
                %348 = vst [vmem:[%s246 + $0x190] sm:$0xff] %v347
                %v349 = vld [vmem:[%s245 + $0xa98] sm:$0xff]
                %350 = vst [vmem:[%s246 + $0x198] sm:$0xff] %v349
                %v351 = vld [vmem:[%s245 + $0xaa0] sm:$0xff]
                %352 = vst [vmem:[%s246 + $0x1a0] sm:$0xff] %v351
                %v353 = vld [vmem:[%s245 + $0xaa8] sm:$0xff]
                %354 = vst [vmem:[%s246 + $0x1a8] sm:$0xff] %v353
                %v355 = vld [vmem:[%s245 + $0xab0] sm:$0xff]
                %356 = vst [vmem:[%s246 + $0x1b0] sm:$0xff] %v355
                %v357 = vld [vmem:[%s245 + $0xab8] sm:$0xff]
                %358 = vst [vmem:[%s246 + $0x1b8] sm:$0xff] %v357
                %v359 = vld [vmem:[%s245 + $0xac0] sm:$0xff]
                %360 = vst [vmem:[%s246 + $0x1c0] sm:$0xff] %v359
                %v361 = vld [vmem:[%s245 + $0xac8] sm:$0xff]
                %362 = vst [vmem:[%s246 + $0x1c8] sm:$0xff] %v361
                %v363 = vld [vmem:[%s245 + $0xad0] sm:$0xff]
                %364 = vst [vmem:[%s246 + $0x1d0] sm:$0xff] %v363
                %v365 = vld [vmem:[%s245 + $0xad8] sm:$0xff]
                %366 = vst [vmem:[%s246 + $0x1d8] sm:$0xff] %v365
                %v367 = vld [vmem:[%s245 + $0xae0] sm:$0xff]
                %368 = vst [vmem:[%s246 + $0x1e0] sm:$0xff] %v367
                %v369 = vld [vmem:[%s245 + $0xae8] sm:$0xff]
                %370 = vst [vmem:[%s246 + $0x1e8] sm:$0xff] %v369
                %v371 = vld [vmem:[%s245 + $0xaf0] sm:$0xff]
                %372 = vst [vmem:[%s246 + $0x1f0] sm:$0xff] %v371
                %v373 = vld [vmem:[%s245 + $0xaf8] sm:$0xff]
                %374 = vst [vmem:[%s246 + $0x1f8] sm:$0xff] %v373
              $region53: #{rntn_forward.2} parent=47 // loop_footer
                %s244 = sadd.s32 1, %s240
              $region54: #{rntn_forward.2} parent=47 // loop_footer_branch
                %239 = sbr.rel target = $region50
              $region55: #{rntn_forward.2} parent=47 // loop_exit
                _
            $region48: #{rntn_forward.2} parent=43 // pred_fallthru
              _
            // Predicated region
            $region56: #{rntn_forward.2} parent=43 // pred_check
              _
            $region57: #{rntn_forward.2} parent=43 // pred_check_branch
              %376 = sbr.rel target = $region59
            $region58: #{rntn_forward.2} parent=43 // pred_region
              _
            $region59: #{rntn_forward.2} parent=43 // pred_fallthru
              _
          $region44: #{rntn_forward.2} parent=39 // pred_fallthru
            _
          %377 = vnop
        $region40: #{rntn_forward.2} parent=35 // pred_fallthru
          _
        // Predicated region
        $region60: #{rntn_forward.2} parent=35 // pred_check
          %p378 = pneg %p59
        $region61: #{rntn_forward.2} parent=35 // pred_check_branch
          %380 = sbr.rel (%p378) target = $region63
        $region62: #{rntn_forward.2} parent=35 // pred_region
          %s381 = smul.u32 512, %s13
          %p382 = scmp.lt.s32.totalorder %s381, 5119
          %s383 = scalar_select %p382, %s381, 5119
          %s384 = smul.addr %s383, 8
          %s385 = scalar_lea.vmem %s1, %s384
          %s386 = smul.u32 512, %s13
        $region63: #{rntn_forward.2} parent=35 // pred_fallthru
          _
      $region36: #{rntn_forward.2} parent=5 // pred_fallthru
        _
      %p387 = scmp.le.s32.totalorder 1, %s13
      %p388 = scmp.lt.s32.totalorder %s13, 11
      %p389 = pnand %p387, %p388
      %p390 = pneg %p389
      // Predicated region
      $region64: #{rntn_forward.2} parent=5 // pred_check
        _
      $region65: #{rntn_forward.2} parent=5 // pred_check_branch
        %392 = sbr.rel (%p389) target = $region67
      $region66: #{rntn_forward.2} parent=5 // pred_region
        %s393 = ssub.s32 %s13, 1
        %s394 = sand.u32 %s26, 1
        %s395 = sand.u32 %s26, 1
        %s396 = smul.addr %s395, 512
        %s397 = scalar_lea.vmem [#allocation3], %s396
        // Predicated region
        $region68: #{rntn_forward.2} parent=66 // pred_check
          %p398 = pneg %p39
        $region69: #{rntn_forward.2} parent=66 // pred_check_branch
          %400 = sbr.rel (%p398) target = $region71
        $region70: #{rntn_forward.2} parent=66 // pred_region
          _
        $region71: #{rntn_forward.2} parent=66 // pred_fallthru
          _
        %s401 = sand.u32 %s26, 1
        %s402 = sand.u32 %s26, 1
        %s403 = smul.addr %s402, 512
        %s404 = scalar_lea.vmem [#allocation3], %s403
        %p405 = pneg %p39
        %p406 = pneg %p36
        %s407 = smul.u32 512, %s18
        %p408 = scmp.lt.s32.totalorder %s407, 5119
        %s409 = scalar_select %p408, %s407, 5119
        %s410 = smul.addr %s409, 8
        %s411 = scalar_lea.vmem %s1, %s410
        %p412 = pneg %p65
        %p413 = pneg %p62
        %p414 = pneg %p86
        %p415 = pneg %p83
        %p416 = pneg %p107
        %p417 = pneg %p104
        %p418 = pneg %p128
        %p419 = pneg %p125
        %p420 = pneg %p149
        %p421 = pneg %p146
        %p422 = pneg %p170
        %p423 = pneg %p167
        %p424 = pneg %p191
        %p425 = pneg %p188
        %s426 = smul.u32 32, %s18
        %s427 = smul.u32 512, %s18
        %p428 = scmp.lt.s32.totalorder %s427, 5119
        %s429 = scalar_select %p428, %s427, 5119
        %s430 = smul.addr %s429, 8
        %s431 = scalar_lea.vmem %s1, %s430
        %s432 = smul.u32 512, %s18
        %p433 = scmp.eq.s32.totalorder %s18, 0
        // Predicated region
        $region72: #{rntn_forward.2} parent=66 // pred_check
          %p434 = pneg %p433
        $region73: #{rntn_forward.2} parent=66 // pred_check_branch
          %436 = sbr.rel (%p434) target = $region75
        $region74: #{rntn_forward.2} parent=66 // pred_region
          %vm437 = vcmask 818176
          %438 = vst.msk [vmem:[#allocation2] sm:$0xff] %vm437, 0.0
          %439 = vst.msk [vmem:[#allocation2 + $0x8] sm:$0xff] %vm437, 0.0
        $region75: #{rntn_forward.2} parent=66 // pred_fallthru
          _
        %v440 = vld [vmem:[#allocation2] sm:$0xff]
        %v441 = vld [vmem:[#allocation2 + $0x8] sm:$0xff]
        %v442 = vld [vmem:[%s397] sm:$0xff]
        %v443 = vld [vmem:[%s397 + $0x8] sm:$0xff]
        %v444 = vld [vmem:[%s397 + $0x10] sm:$0xff]
        %v445 = vld [vmem:[%s397 + $0x18] sm:$0xff]
        %v446 = vld [vmem:[%s397 + $0x20] sm:$0xff]
        %v447 = vld [vmem:[%s397 + $0x28] sm:$0xff]
        %v448 = vld [vmem:[%s397 + $0x30] sm:$0xff]
        %v449 = vld [vmem:[%s397 + $0x38] sm:$0xff]
        %v450 = vld [vmem:[%s397 + $0x40] sm:$0xff]
        %v451 = vld [vmem:[%s397 + $0x48] sm:$0xff]
        %v452 = vld [vmem:[%s397 + $0x50] sm:$0xff]
        %v453 = vld [vmem:[%s397 + $0x58] sm:$0xff]
        %v454 = vld [vmem:[%s397 + $0x60] sm:$0xff]
        %v455 = vld [vmem:[%s397 + $0x68] sm:$0xff]
        %v456 = vld [vmem:[%s397 + $0x70] sm:$0xff]
        %v457 = vld [vmem:[%s397 + $0x78] sm:$0xff]
        %v458 = vld [vmem:[%s397 + $0x80] sm:$0xff]
        %v459 = vld [vmem:[%s397 + $0x88] sm:$0xff]
        %v460 = vld [vmem:[%s397 + $0x90] sm:$0xff]
        %v461 = vld [vmem:[%s397 + $0x98] sm:$0xff]
        %v462 = vld [vmem:[%s397 + $0xa0] sm:$0xff]
        %v463 = vld [vmem:[%s397 + $0xa8] sm:$0xff]
        %v464 = vld [vmem:[%s397 + $0xb0] sm:$0xff]
        %v465 = vld [vmem:[%s397 + $0xb8] sm:$0xff]
        %v466 = vld [vmem:[%s397 + $0xc0] sm:$0xff]
        %v467 = vld [vmem:[%s397 + $0xc8] sm:$0xff]
        %v468 = vld [vmem:[%s397 + $0xd0] sm:$0xff]
        %v469 = vld [vmem:[%s397 + $0xd8] sm:$0xff]
        %v470 = vld [vmem:[%s397 + $0xe0] sm:$0xff]
        %v471 = vld [vmem:[%s397 + $0xe8] sm:$0xff]
        %v472 = vld [vmem:[%s397 + $0xf0] sm:$0xff]
        %v473 = vld [vmem:[%s397 + $0xf8] sm:$0xff]
        %v474 = vld [vmem:[%s397 + $0x100] sm:$0xff]
        %v475 = vld [vmem:[%s397 + $0x108] sm:$0xff]
        %v476 = vld [vmem:[%s397 + $0x110] sm:$0xff]
        %v477 = vld [vmem:[%s397 + $0x118] sm:$0xff]
        %v478 = vld [vmem:[%s397 + $0x120] sm:$0xff]
        %v479 = vld [vmem:[%s397 + $0x128] sm:$0xff]
        %v480 = vld [vmem:[%s397 + $0x130] sm:$0xff]
        %v481 = vld [vmem:[%s397 + $0x138] sm:$0xff]
        %v482 = vld [vmem:[%s397 + $0x140] sm:$0xff]
        %v483 = vld [vmem:[%s397 + $0x148] sm:$0xff]
        %v484 = vld [vmem:[%s397 + $0x150] sm:$0xff]
        %v485 = vld [vmem:[%s397 + $0x158] sm:$0xff]
        %v486 = vld [vmem:[%s397 + $0x160] sm:$0xff]
        %v487 = vld [vmem:[%s397 + $0x168] sm:$0xff]
        %v488 = vld [vmem:[%s397 + $0x170] sm:$0xff]
        %v489 = vld [vmem:[%s397 + $0x178] sm:$0xff]
        %v490 = vld [vmem:[%s397 + $0x180] sm:$0xff]
        %v491 = vld [vmem:[%s397 + $0x188] sm:$0xff]
        %v492 = vld [vmem:[%s397 + $0x190] sm:$0xff]
        %v493 = vld [vmem:[%s397 + $0x198] sm:$0xff]
        %v494 = vld [vmem:[%s397 + $0x1a0] sm:$0xff]
        %v495 = vld [vmem:[%s397 + $0x1a8] sm:$0xff]
        %v496 = vld [vmem:[%s397 + $0x1b0] sm:$0xff]
        %v497 = vld [vmem:[%s397 + $0x1b8] sm:$0xff]
        %v498 = vld [vmem:[%s397 + $0x1c0] sm:$0xff]
        %v499 = vld [vmem:[%s397 + $0x1c8] sm:$0xff]
        %v500 = vld [vmem:[%s397 + $0x1d0] sm:$0xff]
        %v501 = vld [vmem:[%s397 + $0x1d8] sm:$0xff]
        %v502 = vld [vmem:[%s397 + $0x1e0] sm:$0xff]
        %v503 = vld [vmem:[%s397 + $0x1e8] sm:$0xff]
        %v504 = vld [vmem:[%s397 + $0x1f0] sm:$0xff]
        %v505 = vld [vmem:[%s397 + $0x1f8] sm:$0xff]
        %v506 = vld [vmem:[%s431] sm:$0xff]
        %v507 = vld [vmem:[%s431 + $0x8] sm:$0xff]
        %v508 = vld [vmem:[%s431 + $0x10] sm:$0xff]
        %v509 = vld [vmem:[%s431 + $0x18] sm:$0xff]
        %v510 = vld [vmem:[%s431 + $0x20] sm:$0xff]
        %v511 = vld [vmem:[%s431 + $0x28] sm:$0xff]
        %v512 = vld [vmem:[%s431 + $0x30] sm:$0xff]
        %v513 = vld [vmem:[%s431 + $0x38] sm:$0xff]
        %v514 = vld [vmem:[%s431 + $0x40] sm:$0xff]
        %v515 = vld [vmem:[%s431 + $0x48] sm:$0xff]
        %v516 = vld [vmem:[%s431 + $0x50] sm:$0xff]
        %v517 = vld [vmem:[%s431 + $0x58] sm:$0xff]
        %v518 = vld [vmem:[%s431 + $0x60] sm:$0xff]
        %v519 = vld [vmem:[%s431 + $0x68] sm:$0xff]
        %v520 = vld [vmem:[%s431 + $0x70] sm:$0xff]
        %v521 = vld [vmem:[%s431 + $0x78] sm:$0xff]
        %v522 = vld [vmem:[%s431 + $0x80] sm:$0xff]
        %v523 = vld [vmem:[%s431 + $0x88] sm:$0xff]
        %v524 = vld [vmem:[%s431 + $0x90] sm:$0xff]
        %v525 = vld [vmem:[%s431 + $0x98] sm:$0xff]
        %v526 = vld [vmem:[%s431 + $0xa0] sm:$0xff]
        %v527 = vld [vmem:[%s431 + $0xa8] sm:$0xff]
        %v528 = vld [vmem:[%s431 + $0xb0] sm:$0xff]
        %v529 = vld [vmem:[%s431 + $0xb8] sm:$0xff]
        %v530 = vld [vmem:[%s431 + $0xc0] sm:$0xff]
        %v531 = vld [vmem:[%s431 + $0xc8] sm:$0xff]
        %v532 = vld [vmem:[%s431 + $0xd0] sm:$0xff]
        %v533 = vld [vmem:[%s431 + $0xd8] sm:$0xff]
        %v534 = vld [vmem:[%s431 + $0xe0] sm:$0xff]
        %v535 = vld [vmem:[%s431 + $0xe8] sm:$0xff]
        %v536 = vld [vmem:[%s431 + $0xf0] sm:$0xff]
        %v537 = vld [vmem:[%s431 + $0xf8] sm:$0xff]
        %v538 = vld [vmem:[%s431 + $0x100] sm:$0xff]
        %v539 = vld [vmem:[%s431 + $0x108] sm:$0xff]
        %v540 = vld [vmem:[%s431 + $0x110] sm:$0xff]
        %v541 = vld [vmem:[%s431 + $0x118] sm:$0xff]
        %v542 = vld [vmem:[%s431 + $0x120] sm:$0xff]
        %v543 = vld [vmem:[%s431 + $0x128] sm:$0xff]
        %v544 = vld [vmem:[%s431 + $0x130] sm:$0xff]
        %v545 = vld [vmem:[%s431 + $0x138] sm:$0xff]
        %v546 = vld [vmem:[%s431 + $0x140] sm:$0xff]
        %v547 = vld [vmem:[%s431 + $0x148] sm:$0xff]
        %v548 = vld [vmem:[%s431 + $0x150] sm:$0xff]
        %v549 = vld [vmem:[%s431 + $0x158] sm:$0xff]
        %v550 = vld [vmem:[%s431 + $0x160] sm:$0xff]
        %v551 = vld [vmem:[%s431 + $0x168] sm:$0xff]
        %v552 = vld [vmem:[%s431 + $0x170] sm:$0xff]
        %v553 = vld [vmem:[%s431 + $0x178] sm:$0xff]
        %v554 = vld [vmem:[%s431 + $0x180] sm:$0xff]
        %v555 = vld [vmem:[%s431 + $0x188] sm:$0xff]
        %v556 = vld [vmem:[%s431 + $0x190] sm:$0xff]
        %v557 = vld [vmem:[%s431 + $0x198] sm:$0xff]
        %v558 = vld [vmem:[%s431 + $0x1a0] sm:$0xff]
        %v559 = vld [vmem:[%s431 + $0x1a8] sm:$0xff]
        %v560 = vld [vmem:[%s431 + $0x1b0] sm:$0xff]
        %v561 = vld [vmem:[%s431 + $0x1b8] sm:$0xff]
        %v562 = vld [vmem:[%s431 + $0x1c0] sm:$0xff]
        %v563 = vld [vmem:[%s431 + $0x1c8] sm:$0xff]
        %v564 = vld [vmem:[%s431 + $0x1d0] sm:$0xff]
        %v565 = vld [vmem:[%s431 + $0x1d8] sm:$0xff]
        %v566 = vld [vmem:[%s431 + $0x1e0] sm:$0xff]
        %v567 = vld [vmem:[%s431 + $0x1e8] sm:$0xff]
        %v568 = vld [vmem:[%s431 + $0x1f0] sm:$0xff]
        %v569 = vld [vmem:[%s431 + $0x1f8] sm:$0xff]
        %v570 = vld [vmem:[%s431 + $0x200] sm:$0xff]
        %v571 = vld [vmem:[%s431 + $0x208] sm:$0xff]
        %v572 = vld [vmem:[%s431 + $0x210] sm:$0xff]
        %v573 = vld [vmem:[%s431 + $0x218] sm:$0xff]
        %v574 = vld [vmem:[%s431 + $0x220] sm:$0xff]
        %v575 = vld [vmem:[%s431 + $0x228] sm:$0xff]
        %v576 = vld [vmem:[%s431 + $0x230] sm:$0xff]
        %v577 = vld [vmem:[%s431 + $0x238] sm:$0xff]
        %v578 = vld [vmem:[%s431 + $0x240] sm:$0xff]
        %v579 = vld [vmem:[%s431 + $0x248] sm:$0xff]
        %v580 = vld [vmem:[%s431 + $0x250] sm:$0xff]
        %v581 = vld [vmem:[%s431 + $0x258] sm:$0xff]
        %v582 = vld [vmem:[%s431 + $0x260] sm:$0xff]
        %v583 = vld [vmem:[%s431 + $0x268] sm:$0xff]
        %v584 = vld [vmem:[%s431 + $0x270] sm:$0xff]
        %v585 = vld [vmem:[%s431 + $0x278] sm:$0xff]
        %v586 = vld [vmem:[%s431 + $0x280] sm:$0xff]
        %v587 = vld [vmem:[%s431 + $0x288] sm:$0xff]
        %v588 = vld [vmem:[%s431 + $0x290] sm:$0xff]
        %v589 = vld [vmem:[%s431 + $0x298] sm:$0xff]
        %v590 = vld [vmem:[%s431 + $0x2a0] sm:$0xff]
        %v591 = vld [vmem:[%s431 + $0x2a8] sm:$0xff]
        %v592 = vld [vmem:[%s431 + $0x2b0] sm:$0xff]
        %v593 = vld [vmem:[%s431 + $0x2b8] sm:$0xff]
        %v594 = vld [vmem:[%s431 + $0x2c0] sm:$0xff]
        %v595 = vld [vmem:[%s431 + $0x2c8] sm:$0xff]
        %v596 = vld [vmem:[%s431 + $0x2d0] sm:$0xff]
        %v597 = vld [vmem:[%s431 + $0x2d8] sm:$0xff]
        %v598 = vld [vmem:[%s431 + $0x2e0] sm:$0xff]
        %v599 = vld [vmem:[%s431 + $0x2e8] sm:$0xff]
        %v600 = vld [vmem:[%s431 + $0x2f0] sm:$0xff]
        %v601 = vld [vmem:[%s431 + $0x2f8] sm:$0xff]
        %v602 = vld [vmem:[%s431 + $0x300] sm:$0xff]
        %v603 = vld [vmem:[%s431 + $0x308] sm:$0xff]
        %v604 = vld [vmem:[%s431 + $0x310] sm:$0xff]
        %v605 = vld [vmem:[%s431 + $0x318] sm:$0xff]
        %v606 = vld [vmem:[%s431 + $0x320] sm:$0xff]
        %v607 = vld [vmem:[%s431 + $0x328] sm:$0xff]
        %v608 = vld [vmem:[%s431 + $0x330] sm:$0xff]
        %v609 = vld [vmem:[%s431 + $0x338] sm:$0xff]
        %v610 = vld [vmem:[%s431 + $0x340] sm:$0xff]
        %v611 = vld [vmem:[%s431 + $0x348] sm:$0xff]
        %v612 = vld [vmem:[%s431 + $0x350] sm:$0xff]
        %v613 = vld [vmem:[%s431 + $0x358] sm:$0xff]
        %v614 = vld [vmem:[%s431 + $0x360] sm:$0xff]
        %v615 = vld [vmem:[%s431 + $0x368] sm:$0xff]
        %v616 = vld [vmem:[%s431 + $0x370] sm:$0xff]
        %v617 = vld [vmem:[%s431 + $0x378] sm:$0xff]
        %v618 = vld [vmem:[%s431 + $0x380] sm:$0xff]
        %v619 = vld [vmem:[%s431 + $0x388] sm:$0xff]
        %v620 = vld [vmem:[%s431 + $0x390] sm:$0xff]
        %v621 = vld [vmem:[%s431 + $0x398] sm:$0xff]
        %v622 = vld [vmem:[%s431 + $0x3a0] sm:$0xff]
        %v623 = vld [vmem:[%s431 + $0x3a8] sm:$0xff]
        %v624 = vld [vmem:[%s431 + $0x3b0] sm:$0xff]
        %v625 = vld [vmem:[%s431 + $0x3b8] sm:$0xff]
        %v626 = vld [vmem:[%s431 + $0x3c0] sm:$0xff]
        %v627 = vld [vmem:[%s431 + $0x3c8] sm:$0xff]
        %v628 = vld [vmem:[%s431 + $0x3d0] sm:$0xff]
        %v629 = vld [vmem:[%s431 + $0x3d8] sm:$0xff]
        %v630 = vld [vmem:[%s431 + $0x3e0] sm:$0xff]
        %v631 = vld [vmem:[%s431 + $0x3e8] sm:$0xff]
        %v632 = vld [vmem:[%s431 + $0x3f0] sm:$0xff]
        %v633 = vld [vmem:[%s431 + $0x3f8] sm:$0xff]
        %v634 = vld [vmem:[%s431 + $0x400] sm:$0xff]
        %v635 = vld [vmem:[%s431 + $0x408] sm:$0xff]
        %v636 = vld [vmem:[%s431 + $0x410] sm:$0xff]
        %v637 = vld [vmem:[%s431 + $0x418] sm:$0xff]
        %v638 = vld [vmem:[%s431 + $0x420] sm:$0xff]
        %v639 = vld [vmem:[%s431 + $0x428] sm:$0xff]
        %v640 = vld [vmem:[%s431 + $0x430] sm:$0xff]
        %v641 = vld [vmem:[%s431 + $0x438] sm:$0xff]
        %v642 = vld [vmem:[%s431 + $0x440] sm:$0xff]
        %v643 = vld [vmem:[%s431 + $0x448] sm:$0xff]
        %v644 = vld [vmem:[%s431 + $0x450] sm:$0xff]
        %v645 = vld [vmem:[%s431 + $0x458] sm:$0xff]
        %v646 = vld [vmem:[%s431 + $0x460] sm:$0xff]
        %v647 = vld [vmem:[%s431 + $0x468] sm:$0xff]
        %v648 = vld [vmem:[%s431 + $0x470] sm:$0xff]
        %v649 = vld [vmem:[%s431 + $0x478] sm:$0xff]
        %v650 = vld [vmem:[%s431 + $0x480] sm:$0xff]
        %v651 = vld [vmem:[%s431 + $0x488] sm:$0xff]
        %v652 = vld [vmem:[%s431 + $0x490] sm:$0xff]
        %v653 = vld [vmem:[%s431 + $0x498] sm:$0xff]
        %v654 = vld [vmem:[%s431 + $0x4a0] sm:$0xff]
        %v655 = vld [vmem:[%s431 + $0x4a8] sm:$0xff]
        %v656 = vld [vmem:[%s431 + $0x4b0] sm:$0xff]
        %v657 = vld [vmem:[%s431 + $0x4b8] sm:$0xff]
        %v658 = vld [vmem:[%s431 + $0x4c0] sm:$0xff]
        %v659 = vld [vmem:[%s431 + $0x4c8] sm:$0xff]
        %v660 = vld [vmem:[%s431 + $0x4d0] sm:$0xff]
        %v661 = vld [vmem:[%s431 + $0x4d8] sm:$0xff]
        %v662 = vld [vmem:[%s431 + $0x4e0] sm:$0xff]
        %v663 = vld [vmem:[%s431 + $0x4e8] sm:$0xff]
        %v664 = vld [vmem:[%s431 + $0x4f0] sm:$0xff]
        %v665 = vld [vmem:[%s431 + $0x4f8] sm:$0xff]
        %v666 = vld [vmem:[%s431 + $0x500] sm:$0xff]
        %v667 = vld [vmem:[%s431 + $0x508] sm:$0xff]
        %v668 = vld [vmem:[%s431 + $0x510] sm:$0xff]
        %v669 = vld [vmem:[%s431 + $0x518] sm:$0xff]
        %v670 = vld [vmem:[%s431 + $0x520] sm:$0xff]
        %v671 = vld [vmem:[%s431 + $0x528] sm:$0xff]
        %v672 = vld [vmem:[%s431 + $0x530] sm:$0xff]
        %v673 = vld [vmem:[%s431 + $0x538] sm:$0xff]
        %v674 = vld [vmem:[%s431 + $0x540] sm:$0xff]
        %v675 = vld [vmem:[%s431 + $0x548] sm:$0xff]
        %v676 = vld [vmem:[%s431 + $0x550] sm:$0xff]
        %v677 = vld [vmem:[%s431 + $0x558] sm:$0xff]
        %v678 = vld [vmem:[%s431 + $0x560] sm:$0xff]
        %v679 = vld [vmem:[%s431 + $0x568] sm:$0xff]
        %v680 = vld [vmem:[%s431 + $0x570] sm:$0xff]
        %v681 = vld [vmem:[%s431 + $0x578] sm:$0xff]
        %v682 = vld [vmem:[%s431 + $0x580] sm:$0xff]
        %v683 = vld [vmem:[%s431 + $0x588] sm:$0xff]
        %v684 = vld [vmem:[%s431 + $0x590] sm:$0xff]
        %v685 = vld [vmem:[%s431 + $0x598] sm:$0xff]
        %v686 = vld [vmem:[%s431 + $0x5a0] sm:$0xff]
        %v687 = vld [vmem:[%s431 + $0x5a8] sm:$0xff]
        %v688 = vld [vmem:[%s431 + $0x5b0] sm:$0xff]
        %v689 = vld [vmem:[%s431 + $0x5b8] sm:$0xff]
        %v690 = vld [vmem:[%s431 + $0x5c0] sm:$0xff]
        %v691 = vld [vmem:[%s431 + $0x5c8] sm:$0xff]
        %v692 = vld [vmem:[%s431 + $0x5d0] sm:$0xff]
        %v693 = vld [vmem:[%s431 + $0x5d8] sm:$0xff]
        %v694 = vld [vmem:[%s431 + $0x5e0] sm:$0xff]
        %v695 = vld [vmem:[%s431 + $0x5e8] sm:$0xff]
        %v696 = vld [vmem:[%s431 + $0x5f0] sm:$0xff]
        %v697 = vld [vmem:[%s431 + $0x5f8] sm:$0xff]
        %v698 = vld [vmem:[%s431 + $0x600] sm:$0xff]
        %v699 = vld [vmem:[%s431 + $0x608] sm:$0xff]
        %v700 = vld [vmem:[%s431 + $0x610] sm:$0xff]
        %v701 = vld [vmem:[%s431 + $0x618] sm:$0xff]
        %v702 = vld [vmem:[%s431 + $0x620] sm:$0xff]
        %v703 = vld [vmem:[%s431 + $0x628] sm:$0xff]
        %v704 = vld [vmem:[%s431 + $0x630] sm:$0xff]
        %v705 = vld [vmem:[%s431 + $0x638] sm:$0xff]
        %v706 = vld [vmem:[%s431 + $0x640] sm:$0xff]
        %v707 = vld [vmem:[%s431 + $0x648] sm:$0xff]
        %v708 = vld [vmem:[%s431 + $0x650] sm:$0xff]
        %v709 = vld [vmem:[%s431 + $0x658] sm:$0xff]
        %v710 = vld [vmem:[%s431 + $0x660] sm:$0xff]
        %v711 = vld [vmem:[%s431 + $0x668] sm:$0xff]
        %v712 = vld [vmem:[%s431 + $0x670] sm:$0xff]
        %v713 = vld [vmem:[%s431 + $0x678] sm:$0xff]
        %v714 = vld [vmem:[%s431 + $0x680] sm:$0xff]
        %v715 = vld [vmem:[%s431 + $0x688] sm:$0xff]
        %v716 = vld [vmem:[%s431 + $0x690] sm:$0xff]
        %v717 = vld [vmem:[%s431 + $0x698] sm:$0xff]
        %v718 = vld [vmem:[%s431 + $0x6a0] sm:$0xff]
        %v719 = vld [vmem:[%s431 + $0x6a8] sm:$0xff]
        %v720 = vld [vmem:[%s431 + $0x6b0] sm:$0xff]
        %v721 = vld [vmem:[%s431 + $0x6b8] sm:$0xff]
        %v722 = vld [vmem:[%s431 + $0x6c0] sm:$0xff]
        %v723 = vld [vmem:[%s431 + $0x6c8] sm:$0xff]
        %v724 = vld [vmem:[%s431 + $0x6d0] sm:$0xff]
        %v725 = vld [vmem:[%s431 + $0x6d8] sm:$0xff]
        %v726 = vld [vmem:[%s431 + $0x6e0] sm:$0xff]
        %v727 = vld [vmem:[%s431 + $0x6e8] sm:$0xff]
        %v728 = vld [vmem:[%s431 + $0x6f0] sm:$0xff]
        %v729 = vld [vmem:[%s431 + $0x6f8] sm:$0xff]
        %v730 = vld [vmem:[%s431 + $0x700] sm:$0xff]
        %v731 = vld [vmem:[%s431 + $0x708] sm:$0xff]
        %v732 = vld [vmem:[%s431 + $0x710] sm:$0xff]
        %v733 = vld [vmem:[%s431 + $0x718] sm:$0xff]
        %v734 = vld [vmem:[%s431 + $0x720] sm:$0xff]
        %v735 = vld [vmem:[%s431 + $0x728] sm:$0xff]
        %v736 = vld [vmem:[%s431 + $0x730] sm:$0xff]
        %v737 = vld [vmem:[%s431 + $0x738] sm:$0xff]
        %v738 = vld [vmem:[%s431 + $0x740] sm:$0xff]
        %v739 = vld [vmem:[%s431 + $0x748] sm:$0xff]
        %v740 = vld [vmem:[%s431 + $0x750] sm:$0xff]
        %v741 = vld [vmem:[%s431 + $0x758] sm:$0xff]
        %v742 = vld [vmem:[%s431 + $0x760] sm:$0xff]
        %v743 = vld [vmem:[%s431 + $0x768] sm:$0xff]
        %v744 = vld [vmem:[%s431 + $0x770] sm:$0xff]
        %v745 = vld [vmem:[%s431 + $0x778] sm:$0xff]
        %v746 = vld [vmem:[%s431 + $0x780] sm:$0xff]
        %v747 = vld [vmem:[%s431 + $0x788] sm:$0xff]
        %v748 = vld [vmem:[%s431 + $0x790] sm:$0xff]
        %v749 = vld [vmem:[%s431 + $0x798] sm:$0xff]
        %v750 = vld [vmem:[%s431 + $0x7a0] sm:$0xff]
        %v751 = vld [vmem:[%s431 + $0x7a8] sm:$0xff]
        %v752 = vld [vmem:[%s431 + $0x7b0] sm:$0xff]
        %v753 = vld [vmem:[%s431 + $0x7b8] sm:$0xff]
        %v754 = vld [vmem:[%s431 + $0x7c0] sm:$0xff]
        %v755 = vld [vmem:[%s431 + $0x7c8] sm:$0xff]
        %v756 = vld [vmem:[%s431 + $0x7d0] sm:$0xff]
        %v757 = vld [vmem:[%s431 + $0x7d8] sm:$0xff]
        %v758 = vld [vmem:[%s431 + $0x7e0] sm:$0xff]
        %v759 = vld [vmem:[%s431 + $0x7e8] sm:$0xff]
        %v760 = vld [vmem:[%s431 + $0x7f0] sm:$0xff]
        %v761 = vld [vmem:[%s431 + $0x7f8] sm:$0xff]
        %v762 = vld [vmem:[%s431 + $0x800] sm:$0xff]
        %v763 = vld [vmem:[%s431 + $0x808] sm:$0xff]
        %v764 = vld [vmem:[%s431 + $0x810] sm:$0xff]
        %v765 = vld [vmem:[%s431 + $0x818] sm:$0xff]
        %v766 = vld [vmem:[%s431 + $0x820] sm:$0xff]
        %v767 = vld [vmem:[%s431 + $0x828] sm:$0xff]
        %v768 = vld [vmem:[%s431 + $0x830] sm:$0xff]
        %v769 = vld [vmem:[%s431 + $0x838] sm:$0xff]
        %v770 = vld [vmem:[%s431 + $0x840] sm:$0xff]
        %v771 = vld [vmem:[%s431 + $0x848] sm:$0xff]
        %v772 = vld [vmem:[%s431 + $0x850] sm:$0xff]
        %v773 = vld [vmem:[%s431 + $0x858] sm:$0xff]
        %v774 = vld [vmem:[%s431 + $0x860] sm:$0xff]
        %v775 = vld [vmem:[%s431 + $0x868] sm:$0xff]
        %v776 = vld [vmem:[%s431 + $0x870] sm:$0xff]
        %v777 = vld [vmem:[%s431 + $0x878] sm:$0xff]
        %v778 = vld [vmem:[%s431 + $0x880] sm:$0xff]
        %v779 = vld [vmem:[%s431 + $0x888] sm:$0xff]
        %v780 = vld [vmem:[%s431 + $0x890] sm:$0xff]
        %v781 = vld [vmem:[%s431 + $0x898] sm:$0xff]
        %v782 = vld [vmem:[%s431 + $0x8a0] sm:$0xff]
        %v783 = vld [vmem:[%s431 + $0x8a8] sm:$0xff]
        %v784 = vld [vmem:[%s431 + $0x8b0] sm:$0xff]
        %v785 = vld [vmem:[%s431 + $0x8b8] sm:$0xff]
        %v786 = vld [vmem:[%s431 + $0x8c0] sm:$0xff]
        %v787 = vld [vmem:[%s431 + $0x8c8] sm:$0xff]
        %v788 = vld [vmem:[%s431 + $0x8d0] sm:$0xff]
        %v789 = vld [vmem:[%s431 + $0x8d8] sm:$0xff]
        %v790 = vld [vmem:[%s431 + $0x8e0] sm:$0xff]
        %v791 = vld [vmem:[%s431 + $0x8e8] sm:$0xff]
        %v792 = vld [vmem:[%s431 + $0x8f0] sm:$0xff]
        %v793 = vld [vmem:[%s431 + $0x8f8] sm:$0xff]
        %v794 = vld [vmem:[%s431 + $0x900] sm:$0xff]
        %v795 = vld [vmem:[%s431 + $0x908] sm:$0xff]
        %v796 = vld [vmem:[%s431 + $0x910] sm:$0xff]
        %v797 = vld [vmem:[%s431 + $0x918] sm:$0xff]
        %v798 = vld [vmem:[%s431 + $0x920] sm:$0xff]
        %v799 = vld [vmem:[%s431 + $0x928] sm:$0xff]
        %v800 = vld [vmem:[%s431 + $0x930] sm:$0xff]
        %v801 = vld [vmem:[%s431 + $0x938] sm:$0xff]
        %v802 = vld [vmem:[%s431 + $0x940] sm:$0xff]
        %v803 = vld [vmem:[%s431 + $0x948] sm:$0xff]
        %v804 = vld [vmem:[%s431 + $0x950] sm:$0xff]
        %v805 = vld [vmem:[%s431 + $0x958] sm:$0xff]
        %v806 = vld [vmem:[%s431 + $0x960] sm:$0xff]
        %v807 = vld [vmem:[%s431 + $0x968] sm:$0xff]
        %v808 = vld [vmem:[%s431 + $0x970] sm:$0xff]
        %v809 = vld [vmem:[%s431 + $0x978] sm:$0xff]
        %v810 = vld [vmem:[%s431 + $0x980] sm:$0xff]
        %v811 = vld [vmem:[%s431 + $0x988] sm:$0xff]
        %v812 = vld [vmem:[%s431 + $0x990] sm:$0xff]
        %v813 = vld [vmem:[%s431 + $0x998] sm:$0xff]
        %v814 = vld [vmem:[%s431 + $0x9a0] sm:$0xff]
        %v815 = vld [vmem:[%s431 + $0x9a8] sm:$0xff]
        %v816 = vld [vmem:[%s431 + $0x9b0] sm:$0xff]
        %v817 = vld [vmem:[%s431 + $0x9b8] sm:$0xff]
        %v818 = vld [vmem:[%s431 + $0x9c0] sm:$0xff]
        %v819 = vld [vmem:[%s431 + $0x9c8] sm:$0xff]
        %v820 = vld [vmem:[%s431 + $0x9d0] sm:$0xff]
        %v821 = vld [vmem:[%s431 + $0x9d8] sm:$0xff]
        %v822 = vld [vmem:[%s431 + $0x9e0] sm:$0xff]
        %v823 = vld [vmem:[%s431 + $0x9e8] sm:$0xff]
        %v824 = vld [vmem:[%s431 + $0x9f0] sm:$0xff]
        %v825 = vld [vmem:[%s431 + $0x9f8] sm:$0xff]
        %v826 = vld [vmem:[%s431 + $0xa00] sm:$0xff]
        %v827 = vld [vmem:[%s431 + $0xa08] sm:$0xff]
        %v828 = vld [vmem:[%s431 + $0xa10] sm:$0xff]
        %v829 = vld [vmem:[%s431 + $0xa18] sm:$0xff]
        %v830 = vld [vmem:[%s431 + $0xa20] sm:$0xff]
        %v831 = vld [vmem:[%s431 + $0xa28] sm:$0xff]
        %v832 = vld [vmem:[%s431 + $0xa30] sm:$0xff]
        %v833 = vld [vmem:[%s431 + $0xa38] sm:$0xff]
        %v834 = vld [vmem:[%s431 + $0xa40] sm:$0xff]
        %v835 = vld [vmem:[%s431 + $0xa48] sm:$0xff]
        %v836 = vld [vmem:[%s431 + $0xa50] sm:$0xff]
        %v837 = vld [vmem:[%s431 + $0xa58] sm:$0xff]
        %v838 = vld [vmem:[%s431 + $0xa60] sm:$0xff]
        %v839 = vld [vmem:[%s431 + $0xa68] sm:$0xff]
        %v840 = vld [vmem:[%s431 + $0xa70] sm:$0xff]
        %v841 = vld [vmem:[%s431 + $0xa78] sm:$0xff]
        %v842 = vld [vmem:[%s431 + $0xa80] sm:$0xff]
        %v843 = vld [vmem:[%s431 + $0xa88] sm:$0xff]
        %v844 = vld [vmem:[%s431 + $0xa90] sm:$0xff]
        %v845 = vld [vmem:[%s431 + $0xa98] sm:$0xff]
        %v846 = vld [vmem:[%s431 + $0xaa0] sm:$0xff]
        %v847 = vld [vmem:[%s431 + $0xaa8] sm:$0xff]
        %v848 = vld [vmem:[%s431 + $0xab0] sm:$0xff]
        %v849 = vld [vmem:[%s431 + $0xab8] sm:$0xff]
        %v850 = vld [vmem:[%s431 + $0xac0] sm:$0xff]
        %v851 = vld [vmem:[%s431 + $0xac8] sm:$0xff]
        %v852 = vld [vmem:[%s431 + $0xad0] sm:$0xff]
        %v853 = vld [vmem:[%s431 + $0xad8] sm:$0xff]
        %v854 = vld [vmem:[%s431 + $0xae0] sm:$0xff]
        %v855 = vld [vmem:[%s431 + $0xae8] sm:$0xff]
        %v856 = vld [vmem:[%s431 + $0xaf0] sm:$0xff]
        %v857 = vld [vmem:[%s431 + $0xaf8] sm:$0xff]
        %v858 = vld [vmem:[%s431 + $0xb00] sm:$0xff]
        %v859 = vld [vmem:[%s431 + $0xb08] sm:$0xff]
        %v860 = vld [vmem:[%s431 + $0xb10] sm:$0xff]
        %v861 = vld [vmem:[%s431 + $0xb18] sm:$0xff]
        %v862 = vld [vmem:[%s431 + $0xb20] sm:$0xff]
        %v863 = vld [vmem:[%s431 + $0xb28] sm:$0xff]
        %v864 = vld [vmem:[%s431 + $0xb30] sm:$0xff]
        %v865 = vld [vmem:[%s431 + $0xb38] sm:$0xff]
        %v866 = vld [vmem:[%s431 + $0xb40] sm:$0xff]
        %v867 = vld [vmem:[%s431 + $0xb48] sm:$0xff]
        %v868 = vld [vmem:[%s431 + $0xb50] sm:$0xff]
        %v869 = vld [vmem:[%s431 + $0xb58] sm:$0xff]
        %v870 = vld [vmem:[%s431 + $0xb60] sm:$0xff]
        %v871 = vld [vmem:[%s431 + $0xb68] sm:$0xff]
        %v872 = vld [vmem:[%s431 + $0xb70] sm:$0xff]
        %v873 = vld [vmem:[%s431 + $0xb78] sm:$0xff]
        %v874 = vld [vmem:[%s431 + $0xb80] sm:$0xff]
        %v875 = vld [vmem:[%s431 + $0xb88] sm:$0xff]
        %v876 = vld [vmem:[%s431 + $0xb90] sm:$0xff]
        %v877 = vld [vmem:[%s431 + $0xb98] sm:$0xff]
        %v878 = vld [vmem:[%s431 + $0xba0] sm:$0xff]
        %v879 = vld [vmem:[%s431 + $0xba8] sm:$0xff]
        %v880 = vld [vmem:[%s431 + $0xbb0] sm:$0xff]
        %v881 = vld [vmem:[%s431 + $0xbb8] sm:$0xff]
        %v882 = vld [vmem:[%s431 + $0xbc0] sm:$0xff]
        %v883 = vld [vmem:[%s431 + $0xbc8] sm:$0xff]
        %v884 = vld [vmem:[%s431 + $0xbd0] sm:$0xff]
        %v885 = vld [vmem:[%s431 + $0xbd8] sm:$0xff]
        %v886 = vld [vmem:[%s431 + $0xbe0] sm:$0xff]
        %v887 = vld [vmem:[%s431 + $0xbe8] sm:$0xff]
        %v888 = vld [vmem:[%s431 + $0xbf0] sm:$0xff]
        %v889 = vld [vmem:[%s431 + $0xbf8] sm:$0xff]
        %v890 = vld [vmem:[%s431 + $0xc00] sm:$0xff]
        %v891 = vld [vmem:[%s431 + $0xc08] sm:$0xff]
        %v892 = vld [vmem:[%s431 + $0xc10] sm:$0xff]
        %v893 = vld [vmem:[%s431 + $0xc18] sm:$0xff]
        %v894 = vld [vmem:[%s431 + $0xc20] sm:$0xff]
        %v895 = vld [vmem:[%s431 + $0xc28] sm:$0xff]
        %v896 = vld [vmem:[%s431 + $0xc30] sm:$0xff]
        %v897 = vld [vmem:[%s431 + $0xc38] sm:$0xff]
        %v898 = vld [vmem:[%s431 + $0xc40] sm:$0xff]
        %v899 = vld [vmem:[%s431 + $0xc48] sm:$0xff]
        %v900 = vld [vmem:[%s431 + $0xc50] sm:$0xff]
        %v901 = vld [vmem:[%s431 + $0xc58] sm:$0xff]
        %v902 = vld [vmem:[%s431 + $0xc60] sm:$0xff]
        %v903 = vld [vmem:[%s431 + $0xc68] sm:$0xff]
        %v904 = vld [vmem:[%s431 + $0xc70] sm:$0xff]
        %v905 = vld [vmem:[%s431 + $0xc78] sm:$0xff]
        %v906 = vld [vmem:[%s431 + $0xc80] sm:$0xff]
        %v907 = vld [vmem:[%s431 + $0xc88] sm:$0xff]
        %v908 = vld [vmem:[%s431 + $0xc90] sm:$0xff]
        %v909 = vld [vmem:[%s431 + $0xc98] sm:$0xff]
        %v910 = vld [vmem:[%s431 + $0xca0] sm:$0xff]
        %v911 = vld [vmem:[%s431 + $0xca8] sm:$0xff]
        %v912 = vld [vmem:[%s431 + $0xcb0] sm:$0xff]
        %v913 = vld [vmem:[%s431 + $0xcb8] sm:$0xff]
        %v914 = vld [vmem:[%s431 + $0xcc0] sm:$0xff]
        %v915 = vld [vmem:[%s431 + $0xcc8] sm:$0xff]
        %v916 = vld [vmem:[%s431 + $0xcd0] sm:$0xff]
        %v917 = vld [vmem:[%s431 + $0xcd8] sm:$0xff]
        %v918 = vld [vmem:[%s431 + $0xce0] sm:$0xff]
        %v919 = vld [vmem:[%s431 + $0xce8] sm:$0xff]
        %v920 = vld [vmem:[%s431 + $0xcf0] sm:$0xff]
        %v921 = vld [vmem:[%s431 + $0xcf8] sm:$0xff]
        %v922 = vld [vmem:[%s431 + $0xd00] sm:$0xff]
        %v923 = vld [vmem:[%s431 + $0xd08] sm:$0xff]
        %v924 = vld [vmem:[%s431 + $0xd10] sm:$0xff]
        %v925 = vld [vmem:[%s431 + $0xd18] sm:$0xff]
        %v926 = vld [vmem:[%s431 + $0xd20] sm:$0xff]
        %v927 = vld [vmem:[%s431 + $0xd28] sm:$0xff]
        %v928 = vld [vmem:[%s431 + $0xd30] sm:$0xff]
        %v929 = vld [vmem:[%s431 + $0xd38] sm:$0xff]
        %v930 = vld [vmem:[%s431 + $0xd40] sm:$0xff]
        %v931 = vld [vmem:[%s431 + $0xd48] sm:$0xff]
        %v932 = vld [vmem:[%s431 + $0xd50] sm:$0xff]
        %v933 = vld [vmem:[%s431 + $0xd58] sm:$0xff]
        %v934 = vld [vmem:[%s431 + $0xd60] sm:$0xff]
        %v935 = vld [vmem:[%s431 + $0xd68] sm:$0xff]
        %v936 = vld [vmem:[%s431 + $0xd70] sm:$0xff]
        %v937 = vld [vmem:[%s431 + $0xd78] sm:$0xff]
        %v938 = vld [vmem:[%s431 + $0xd80] sm:$0xff]
        %v939 = vld [vmem:[%s431 + $0xd88] sm:$0xff]
        %v940 = vld [vmem:[%s431 + $0xd90] sm:$0xff]
        %v941 = vld [vmem:[%s431 + $0xd98] sm:$0xff]
        %v942 = vld [vmem:[%s431 + $0xda0] sm:$0xff]
        %v943 = vld [vmem:[%s431 + $0xda8] sm:$0xff]
        %v944 = vld [vmem:[%s431 + $0xdb0] sm:$0xff]
        %v945 = vld [vmem:[%s431 + $0xdb8] sm:$0xff]
        %v946 = vld [vmem:[%s431 + $0xdc0] sm:$0xff]
        %v947 = vld [vmem:[%s431 + $0xdc8] sm:$0xff]
        %v948 = vld [vmem:[%s431 + $0xdd0] sm:$0xff]
        %v949 = vld [vmem:[%s431 + $0xdd8] sm:$0xff]
        %v950 = vld [vmem:[%s431 + $0xde0] sm:$0xff]
        %v951 = vld [vmem:[%s431 + $0xde8] sm:$0xff]
        %v952 = vld [vmem:[%s431 + $0xdf0] sm:$0xff]
        %v953 = vld [vmem:[%s431 + $0xdf8] sm:$0xff]
        %v954 = vld [vmem:[%s431 + $0xe00] sm:$0xff]
        %v955 = vld [vmem:[%s431 + $0xe08] sm:$0xff]
        %v956 = vld [vmem:[%s431 + $0xe10] sm:$0xff]
        %v957 = vld [vmem:[%s431 + $0xe18] sm:$0xff]
        %v958 = vld [vmem:[%s431 + $0xe20] sm:$0xff]
        %v959 = vld [vmem:[%s431 + $0xe28] sm:$0xff]
        %v960 = vld [vmem:[%s431 + $0xe30] sm:$0xff]
        %v961 = vld [vmem:[%s431 + $0xe38] sm:$0xff]
        %v962 = vld [vmem:[%s431 + $0xe40] sm:$0xff]
        %v963 = vld [vmem:[%s431 + $0xe48] sm:$0xff]
        %v964 = vld [vmem:[%s431 + $0xe50] sm:$0xff]
        %v965 = vld [vmem:[%s431 + $0xe58] sm:$0xff]
        %v966 = vld [vmem:[%s431 + $0xe60] sm:$0xff]
        %v967 = vld [vmem:[%s431 + $0xe68] sm:$0xff]
        %v968 = vld [vmem:[%s431 + $0xe70] sm:$0xff]
        %v969 = vld [vmem:[%s431 + $0xe78] sm:$0xff]
        %v970 = vld [vmem:[%s431 + $0xe80] sm:$0xff]
        %v971 = vld [vmem:[%s431 + $0xe88] sm:$0xff]
        %v972 = vld [vmem:[%s431 + $0xe90] sm:$0xff]
        %v973 = vld [vmem:[%s431 + $0xe98] sm:$0xff]
        %v974 = vld [vmem:[%s431 + $0xea0] sm:$0xff]
        %v975 = vld [vmem:[%s431 + $0xea8] sm:$0xff]
        %v976 = vld [vmem:[%s431 + $0xeb0] sm:$0xff]
        %v977 = vld [vmem:[%s431 + $0xeb8] sm:$0xff]
        %v978 = vld [vmem:[%s431 + $0xec0] sm:$0xff]
        %v979 = vld [vmem:[%s431 + $0xec8] sm:$0xff]
        %v980 = vld [vmem:[%s431 + $0xed0] sm:$0xff]
        %v981 = vld [vmem:[%s431 + $0xed8] sm:$0xff]
        %v982 = vld [vmem:[%s431 + $0xee0] sm:$0xff]
        %v983 = vld [vmem:[%s431 + $0xee8] sm:$0xff]
        %v984 = vld [vmem:[%s431 + $0xef0] sm:$0xff]
        %v985 = vld [vmem:[%s431 + $0xef8] sm:$0xff]
        %v986 = vld [vmem:[%s431 + $0xf00] sm:$0xff]
        %v987 = vld [vmem:[%s431 + $0xf08] sm:$0xff]
        %v988 = vld [vmem:[%s431 + $0xf10] sm:$0xff]
        %v989 = vld [vmem:[%s431 + $0xf18] sm:$0xff]
        %v990 = vld [vmem:[%s431 + $0xf20] sm:$0xff]
        %v991 = vld [vmem:[%s431 + $0xf28] sm:$0xff]
        %v992 = vld [vmem:[%s431 + $0xf30] sm:$0xff]
        %v993 = vld [vmem:[%s431 + $0xf38] sm:$0xff]
        %v994 = vld [vmem:[%s431 + $0xf40] sm:$0xff]
        %v995 = vld [vmem:[%s431 + $0xf48] sm:$0xff]
        %v996 = vld [vmem:[%s431 + $0xf50] sm:$0xff]
        %v997 = vld [vmem:[%s431 + $0xf58] sm:$0xff]
        %v998 = vld [vmem:[%s431 + $0xf60] sm:$0xff]
        %v999 = vld [vmem:[%s431 + $0xf68] sm:$0xff]
        %v1000 = vld [vmem:[%s431 + $0xf70] sm:$0xff]
        %v1001 = vld [vmem:[%s431 + $0xf78] sm:$0xff]
        %v1002 = vld [vmem:[%s431 + $0xf80] sm:$0xff]
        %v1003 = vld [vmem:[%s431 + $0xf88] sm:$0xff]
        %v1004 = vld [vmem:[%s431 + $0xf90] sm:$0xff]
        %v1005 = vld [vmem:[%s431 + $0xf98] sm:$0xff]
        %v1006 = vld [vmem:[%s431 + $0xfa0] sm:$0xff]
        %v1007 = vld [vmem:[%s431 + $0xfa8] sm:$0xff]
        %v1008 = vld [vmem:[%s431 + $0xfb0] sm:$0xff]
        %v1009 = vld [vmem:[%s431 + $0xfb8] sm:$0xff]
        %v1010 = vld [vmem:[%s431 + $0xfc0] sm:$0xff]
        %v1011 = vld [vmem:[%s431 + $0xfc8] sm:$0xff]
        %v1012 = vld [vmem:[%s431 + $0xfd0] sm:$0xff]
        %v1013 = vld [vmem:[%s431 + $0xfd8] sm:$0xff]
        %v1014 = vld [vmem:[%s431 + $0xfe0] sm:$0xff]
        %v1015 = vld [vmem:[%s431 + $0xfe8] sm:$0xff]
        %v1016 = vld [vmem:[%s431 + $0xff0] sm:$0xff]
        %v1017 = vld [vmem:[%s431 + $0xff8] sm:$0xff]
        %1018 = vmatprep.subr.mxu0 0.0
        %1019 = vmatpush1.msra.mxu0 %v506
        %1020 = vmatprep.subr.mxu0 0.0
        %1021 = vmatpush1.msra.mxu0 %v507
        %1022 = vmatprep.subr.mxu0 0.0
        %1023 = vmatpush1.msra.mxu0 %v508
        %1024 = vmatprep.subr.mxu0 0.0
        %1025 = vmatpush1.msra.mxu0 %v509
        %1026 = vmatprep.subr.mxu0 0.0
        %1027 = vmatpush1.msra.mxu0 %v510
        %1028 = vmatprep.subr.mxu0 0.0
        %1029 = vmatpush1.msra.mxu0 %v511
        %1030 = vmatprep.subr.mxu0 0.0
        %1031 = vmatpush1.msra.mxu0 %v512
        %1032 = vmatprep.subr.mxu0 0.0
        %1033 = vmatpush1.msra.mxu0 %v513
        %1034 = vmatprep.subr.mxu0 0.0
        %1035 = vmatpush1.msra.mxu0 %v514
        %1036 = vmatprep.subr.mxu0 0.0
        %1037 = vmatpush1.msra.mxu0 %v515
        %1038 = vmatprep.subr.mxu0 0.0
        %1039 = vmatpush1.msra.mxu0 %v516
        %1040 = vmatprep.subr.mxu0 0.0
        %1041 = vmatpush1.msra.mxu0 %v517
        %1042 = vmatprep.subr.mxu0 0.0
        %1043 = vmatpush1.msra.mxu0 %v518
        %1044 = vmatprep.subr.mxu0 0.0
        %1045 = vmatpush1.msra.mxu0 %v519
        %1046 = vmatprep.subr.mxu0 0.0
        %1047 = vmatpush1.msra.mxu0 %v520
        %1048 = vmatprep.subr.mxu0 0.0
        %1049 = vmatpush1.msra.mxu0 %v521
        %1050 = vmatprep.subr.mxu0 0.0
        %1051 = vmatpush1.msra.mxu0 %v522
        %1052 = vmatprep.subr.mxu0 0.0
        %1053 = vmatpush1.msra.mxu0 %v523
        %1054 = vmatprep.subr.mxu0 0.0
        %1055 = vmatpush1.msra.mxu0 %v524
        %1056 = vmatprep.subr.mxu0 0.0
        %1057 = vmatpush1.msra.mxu0 %v525
        %1058 = vmatprep.subr.mxu0 0.0
        %1059 = vmatpush1.msra.mxu0 %v526
        %1060 = vmatprep.subr.mxu0 0.0
        %1061 = vmatpush1.msra.mxu0 %v527
        %1062 = vmatprep.subr.mxu0 0.0
        %1063 = vmatpush1.msra.mxu0 %v528
        %1064 = vmatprep.subr.mxu0 0.0
        %1065 = vmatpush1.msra.mxu0 %v529
        %1066 = vmatprep.subr.mxu0 0.0
        %1067 = vmatpush1.msra.mxu0 %v530
        %1068 = vmatprep.subr.mxu0 0.0
        %1069 = vmatpush1.msra.mxu0 %v531
        %1070 = vmatprep.subr.mxu0 0.0
        %1071 = vmatpush1.msra.mxu0 %v532
        %1072 = vmatprep.subr.mxu0 0.0
        %1073 = vmatpush1.msra.mxu0 %v533
        %1074 = vmatprep.subr.mxu0 0.0
        %1075 = vmatpush1.msra.mxu0 %v534
        %1076 = vmatprep.subr.mxu0 0.0
        %1077 = vmatpush1.msra.mxu0 %v535
        %1078 = vmatprep.subr.mxu0 0.0
        %1079 = vmatpush1.msra.mxu0 %v536
        %1080 = vmatprep.subr.mxu0 0.0
        %1081 = vmatpush1.msra.mxu0 %v537
        %1082 = vmatprep.mubr.f32.mxu0 %v443
        %1083 = vmatmul.mubr.f32.gmra.mrb[0].mxu0 %v442
        %v1084 = vpop.f32.mrb[0].mxu0
        %v1085 = vadd.f32 0.0, %v1084
        %v1086 = vpop.f32.mrb[0].mxu0
        %1087 = vmatprep.mubr.f32.mxu0 %v475
        %1088 = vmatmul.mubr.f32.gmra.mrb[0].mxu0 %v474
        %v1089 = vpop.f32.mrb[0].mxu0
        %v1090 = vadd.f32 0.0, %v1089
        %v1091 = vpop.f32.mrb[0].mxu0
        %1092 = vdwg.mxu0
        %1093 = vmatprep.subr.mxu0 0.0
        %1094 = vmatpush1.msra.mxu0 %v538
        %1095 = vmatprep.subr.mxu0 0.0
        %1096 = vmatpush1.msra.mxu0 %v539
        %1097 = vmatprep.subr.mxu0 0.0
        %1098 = vmatpush1.msra.mxu0 %v540
        %1099 = vmatprep.subr.mxu0 0.0
        %1100 = vmatpush1.msra.mxu0 %v541
        %1101 = vmatprep.subr.mxu0 0.0
        %1102 = vmatpush1.msra.mxu0 %v542
        %1103 = vmatprep.subr.mxu0 0.0
        %1104 = vmatpush1.msra.mxu0 %v543
        %1105 = vmatprep.subr.mxu0 0.0
        %1106 = vmatpush1.msra.mxu0 %v544
        %1107 = vmatprep.subr.mxu0 0.0
        %1108 = vmatpush1.msra.mxu0 %v545
        %1109 = vmatprep.subr.mxu0 0.0
        %1110 = vmatpush1.msra.mxu0 %v546
        %1111 = vmatprep.subr.mxu0 0.0
        %1112 = vmatpush1.msra.mxu0 %v547
        %1113 = vmatprep.subr.mxu0 0.0
        %1114 = vmatpush1.msra.mxu0 %v548
        %1115 = vmatprep.subr.mxu0 0.0
        %1116 = vmatpush1.msra.mxu0 %v549
        %1117 = vmatprep.subr.mxu0 0.0
        %1118 = vmatpush1.msra.mxu0 %v550
        %1119 = vmatprep.subr.mxu0 0.0
        %1120 = vmatpush1.msra.mxu0 %v551
        %1121 = vmatprep.subr.mxu0 0.0
        %1122 = vmatpush1.msra.mxu0 %v552
        %1123 = vmatprep.subr.mxu0 0.0
        %1124 = vmatpush1.msra.mxu0 %v553
        %1125 = vmatprep.subr.mxu0 0.0
        %1126 = vmatpush1.msra.mxu0 %v554
        %1127 = vmatprep.subr.mxu0 0.0
        %1128 = vmatpush1.msra.mxu0 %v555
        %1129 = vmatprep.subr.mxu0 0.0
        %1130 = vmatpush1.msra.mxu0 %v556
        %1131 = vmatprep.subr.mxu0 0.0
        %1132 = vmatpush1.msra.mxu0 %v557
        %1133 = vmatprep.subr.mxu0 0.0
        %1134 = vmatpush1.msra.mxu0 %v558
        %1135 = vmatprep.subr.mxu0 0.0
        %1136 = vmatpush1.msra.mxu0 %v559
        %1137 = vmatprep.subr.mxu0 0.0
        %1138 = vmatpush1.msra.mxu0 %v560
        %1139 = vmatprep.subr.mxu0 0.0
        %1140 = vmatpush1.msra.mxu0 %v561
        %1141 = vmatprep.subr.mxu0 0.0
        %1142 = vmatpush1.msra.mxu0 %v562
        %1143 = vmatprep.subr.mxu0 0.0
        %1144 = vmatpush1.msra.mxu0 %v563
        %1145 = vmatprep.subr.mxu0 0.0
        %1146 = vmatpush1.msra.mxu0 %v564
        %1147 = vmatprep.subr.mxu0 0.0
        %1148 = vmatpush1.msra.mxu0 %v565
        %1149 = vmatprep.subr.mxu0 0.0
        %1150 = vmatpush1.msra.mxu0 %v566
        %1151 = vmatprep.subr.mxu0 0.0
        %1152 = vmatpush1.msra.mxu0 %v567
        %1153 = vmatprep.subr.mxu0 0.0
        %1154 = vmatpush1.msra.mxu0 %v568
        %1155 = vmatprep.subr.mxu0 0.0
        %1156 = vmatpush1.msra.mxu0 %v569
        %1157 = vmatprep.mubr.f32.mxu0 %v445
        %1158 = vmatmul.mubr.f32.gmra.mrb[0].mxu0 %v444
        %v1159 = vpop.f32.mrb[0].mxu0
        %v1160 = vadd.f32 %v1085, %v1159
        %v1161 = vpop.f32.mrb[0].mxu0
        %1162 = vmatprep.mubr.f32.mxu0 %v477
        %1163 = vmatmul.mubr.f32.gmra.mrb[0].mxu0 %v476
        %v1164 = vpop.f32.mrb[0].mxu0
        %v1165 = vadd.f32 %v1090, %v1164
        %v1166 = vpop.f32.mrb[0].mxu0
        %1167 = vdwg.mxu0
        %1168 = vmatprep.subr.mxu0 0.0
        %1169 = vmatpush1.msra.mxu0 %v570
        %1170 = vmatprep.subr.mxu0 0.0
        %1171 = vmatpush1.msra.mxu0 %v571
        %1172 = vmatprep.subr.mxu0 0.0
        %1173 = vmatpush1.msra.mxu0 %v572
        %1174 = vmatprep.subr.mxu0 0.0
        %1175 = vmatpush1.msra.mxu0 %v573
        %1176 = vmatprep.subr.mxu0 0.0
        %1177 = vmatpush1.msra.mxu0 %v574
        %1178 = vmatprep.subr.mxu0 0.0
        %1179 = vmatpush1.msra.mxu0 %v575
        %1180 = vmatprep.subr.mxu0 0.0
        %1181 = vmatpush1.msra.mxu0 %v576
        %1182 = vmatprep.subr.mxu0 0.0
        %1183 = vmatpush1.msra.mxu0 %v577
        %1184 = vmatprep.subr.mxu0 0.0
        %1185 = vmatpush1.msra.mxu0 %v578
        %1186 = vmatprep.subr.mxu0 0.0
        %1187 = vmatpush1.msra.mxu0 %v579
        %1188 = vmatprep.subr.mxu0 0.0
        %1189 = vmatpush1.msra.mxu0 %v580
        %1190 = vmatprep.subr.mxu0 0.0
        %1191 = vmatpush1.msra.mxu0 %v581
        %1192 = vmatprep.subr.mxu0 0.0
        %1193 = vmatpush1.msra.mxu0 %v582
        %1194 = vmatprep.subr.mxu0 0.0
        %1195 = vmatpush1.msra.mxu0 %v583
        %1196 = vmatprep.subr.mxu0 0.0
        %1197 = vmatpush1.msra.mxu0 %v584
        %1198 = vmatprep.subr.mxu0 0.0
        %1199 = vmatpush1.msra.mxu0 %v585
        %1200 = vmatprep.subr.mxu0 0.0
        %1201 = vmatpush1.msra.mxu0 %v586
        %1202 = vmatprep.subr.mxu0 0.0
        %1203 = vmatpush1.msra.mxu0 %v587
        %1204 = vmatprep.subr.mxu0 0.0
        %1205 = vmatpush1.msra.mxu0 %v588
        %1206 = vmatprep.subr.mxu0 0.0
        %1207 = vmatpush1.msra.mxu0 %v589
        %1208 = vmatprep.subr.mxu0 0.0
        %1209 = vmatpush1.msra.mxu0 %v590
        %1210 = vmatprep.subr.mxu0 0.0
        %1211 = vmatpush1.msra.mxu0 %v591
        %1212 = vmatprep.subr.mxu0 0.0
        %1213 = vmatpush1.msra.mxu0 %v592
        %1214 = vmatprep.subr.mxu0 0.0
        %1215 = vmatpush1.msra.mxu0 %v593
        %1216 = vmatprep.subr.mxu0 0.0
        %1217 = vmatpush1.msra.mxu0 %v594
        %1218 = vmatprep.subr.mxu0 0.0
        %1219 = vmatpush1.msra.mxu0 %v595
        %1220 = vmatprep.subr.mxu0 0.0
        %1221 = vmatpush1.msra.mxu0 %v596
        %1222 = vmatprep.subr.mxu0 0.0
        %1223 = vmatpush1.msra.mxu0 %v597
        %1224 = vmatprep.subr.mxu0 0.0
        %1225 = vmatpush1.msra.mxu0 %v598
        %1226 = vmatprep.subr.mxu0 0.0
        %1227 = vmatpush1.msra.mxu0 %v599
        %1228 = vmatprep.subr.mxu0 0.0
        %1229 = vmatpush1.msra.mxu0 %v600
        %1230 = vmatprep.subr.mxu0 0.0
        %1231 = vmatpush1.msra.mxu0 %v601
        %1232 = vmatprep.mubr.f32.mxu0 %v447
        %1233 = vmatmul.mubr.f32.gmra.mrb[0].mxu0 %v446
        %v1234 = vpop.f32.mrb[0].mxu0
        %v1235 = vadd.f32 %v1160, %v1234
        %v1236 = vpop.f32.mrb[0].mxu0
        %1237 = vmatprep.mubr.f32.mxu0 %v479
        %1238 = vmatmul.mubr.f32.gmra.mrb[0].mxu0 %v478
        %v1239 = vpop.f32.mrb[0].mxu0
        %v1240 = vadd.f32 %v1165, %v1239
        %v1241 = vpop.f32.mrb[0].mxu0
        %1242 = vdwg.mxu0
        %1243 = vmatprep.subr.mxu0 0.0
        %1244 = vmatpush1.msra.mxu0 %v602
        %1245 = vmatprep.subr.mxu0 0.0
        %1246 = vmatpush1.msra.mxu0 %v603
        %1247 = vmatprep.subr.mxu0 0.0
        %1248 = vmatpush1.msra.mxu0 %v604
        %1249 = vmatprep.subr.mxu0 0.0
        %1250 = vmatpush1.msra.mxu0 %v605
        %1251 = vmatprep.subr.mxu0 0.0
        %1252 = vmatpush1.msra.mxu0 %v606
        %1253 = vmatprep.subr.mxu0 0.0
        %1254 = vmatpush1.msra.mxu0 %v607
        %1255 = vmatprep.subr.mxu0 0.0
        %1256 = vmatpush1.msra.mxu0 %v608
        %1257 = vmatprep.subr.mxu0 0.0
        %1258 = vmatpush1.msra.mxu0 %v609
        %1259 = vmatprep.subr.mxu0 0.0
        %1260 = vmatpush1.msra.mxu0 %v610
        %1261 = vmatprep.subr.mxu0 0.0
        %1262 = vmatpush1.msra.mxu0 %v611
        %1263 = vmatprep.subr.mxu0 0.0
        %1264 = vmatpush1.msra.mxu0 %v612
        %1265 = vmatprep.subr.mxu0 0.0
        %1266 = vmatpush1.msra.mxu0 %v613
        %1267 = vmatprep.subr.mxu0 0.0
        %1268 = vmatpush1.msra.mxu0 %v614
        %1269 = vmatprep.subr.mxu0 0.0
        %1270 = vmatpush1.msra.mxu0 %v615
        %1271 = vmatprep.subr.mxu0 0.0
        %1272 = vmatpush1.msra.mxu0 %v616
        %1273 = vmatprep.subr.mxu0 0.0
        %1274 = vmatpush1.msra.mxu0 %v617
        %1275 = vmatprep.subr.mxu0 0.0
        %1276 = vmatpush1.msra.mxu0 %v618
        %1277 = vmatprep.subr.mxu0 0.0
        %1278 = vmatpush1.msra.mxu0 %v619
        %1279 = vmatprep.subr.mxu0 0.0
        %1280 = vmatpush1.msra.mxu0 %v620
        %1281 = vmatprep.subr.mxu0 0.0
        %1282 = vmatpush1.msra.mxu0 %v621
        %1283 = vmatprep.subr.mxu0 0.0
        %1284 = vmatpush1.msra.mxu0 %v622
        %1285 = vmatprep.subr.mxu0 0.0
        %1286 = vmatpush1.msra.mxu0 %v623
        %1287 = vmatprep.subr.mxu0 0.0
        %1288 = vmatpush1.msra.mxu0 %v624
        %1289 = vmatprep.subr.mxu0 0.0
        %1290 = vmatpush1.msra.mxu0 %v625
        %1291 = vmatprep.subr.mxu0 0.0
        %1292 = vmatpush1.msra.mxu0 %v626
        %1293 = vmatprep.subr.mxu0 0.0
        %1294 = vmatpush1.msra.mxu0 %v627
        %1295 = vmatprep.subr.mxu0 0.0
        %1296 = vmatpush1.msra.mxu0 %v628
        %1297 = vmatprep.subr.mxu0 0.0
        %1298 = vmatpush1.msra.mxu0 %v629
        %1299 = vmatprep.subr.mxu0 0.0
        %1300 = vmatpush1.msra.mxu0 %v630
        %1301 = vmatprep.subr.mxu0 0.0
        %1302 = vmatpush1.msra.mxu0 %v631
        %1303 = vmatprep.subr.mxu0 0.0
        %1304 = vmatpush1.msra.mxu0 %v632
        %1305 = vmatprep.subr.mxu0 0.0
        %1306 = vmatpush1.msra.mxu0 %v633
        %1307 = vmatprep.mubr.f32.mxu0 %v449
        %1308 = vmatmul.mubr.f32.gmra.mrb[0].mxu0 %v448
        %v1309 = vpop.f32.mrb[0].mxu0
        %v1310 = vadd.f32 %v1235, %v1309
        %v1311 = vpop.f32.mrb[0].mxu0
        %1312 = vmatprep.mubr.f32.mxu0 %v481
        %1313 = vmatmul.mubr.f32.gmra.mrb[0].mxu0 %v480
        %v1314 = vpop.f32.mrb[0].mxu0
        %v1315 = vadd.f32 %v1240, %v1314
        %v1316 = vpop.f32.mrb[0].mxu0
        %1317 = vdwg.mxu0
        %1318 = vmatprep.subr.mxu0 0.0
        %1319 = vmatpush1.msra.mxu0 %v634
        %1320 = vmatprep.subr.mxu0 0.0
        %1321 = vmatpush1.msra.mxu0 %v635
        %1322 = vmatprep.subr.mxu0 0.0
        %1323 = vmatpush1.msra.mxu0 %v636
        %1324 = vmatprep.subr.mxu0 0.0
        %1325 = vmatpush1.msra.mxu0 %v637
        %1326 = vmatprep.subr.mxu0 0.0
        %1327 = vmatpush1.msra.mxu0 %v638
        %1328 = vmatprep.subr.mxu0 0.0
        %1329 = vmatpush1.msra.mxu0 %v639
        %1330 = vmatprep.subr.mxu0 0.0
        %1331 = vmatpush1.msra.mxu0 %v640
        %1332 = vmatprep.subr.mxu0 0.0
        %1333 = vmatpush1.msra.mxu0 %v641
        %1334 = vmatprep.subr.mxu0 0.0
        %1335 = vmatpush1.msra.mxu0 %v642
        %1336 = vmatprep.subr.mxu0 0.0
        %1337 = vmatpush1.msra.mxu0 %v643
        %1338 = vmatprep.subr.mxu0 0.0
        %1339 = vmatpush1.msra.mxu0 %v644
        %1340 = vmatprep.subr.mxu0 0.0
        %1341 = vmatpush1.msra.mxu0 %v645
        %1342 = vmatprep.subr.mxu0 0.0
        %1343 = vmatpush1.msra.mxu0 %v646
        %1344 = vmatprep.subr.mxu0 0.0
        %1345 = vmatpush1.msra.mxu0 %v647
        %1346 = vmatprep.subr.mxu0 0.0
        %1347 = vmatpush1.msra.mxu0 %v648
        %1348 = vmatprep.subr.mxu0 0.0
        %1349 = vmatpush1.msra.mxu0 %v649
        %1350 = vmatprep.subr.mxu0 0.0
        %1351 = vmatpush1.msra.mxu0 %v650
        %1352 = vmatprep.subr.mxu0 0.0
        %1353 = vmatpush1.msra.mxu0 %v651
        %1354 = vmatprep.subr.mxu0 0.0
        %1355 = vmatpush1.msra.mxu0 %v652
        %1356 = vmatprep.subr.mxu0 0.0
        %1357 = vmatpush1.msra.mxu0 %v653
        %1358 = vmatprep.subr.mxu0 0.0
        %1359 = vmatpush1.msra.mxu0 %v654
        %1360 = vmatprep.subr.mxu0 0.0
        %1361 = vmatpush1.msra.mxu0 %v655
        %1362 = vmatprep.subr.mxu0 0.0
        %1363 = vmatpush1.msra.mxu0 %v656
        %1364 = vmatprep.subr.mxu0 0.0
        %1365 = vmatpush1.msra.mxu0 %v657
        %1366 = vmatprep.subr.mxu0 0.0
        %1367 = vmatpush1.msra.mxu0 %v658
        %1368 = vmatprep.subr.mxu0 0.0
        %1369 = vmatpush1.msra.mxu0 %v659
        %1370 = vmatprep.subr.mxu0 0.0
        %1371 = vmatpush1.msra.mxu0 %v660
        %1372 = vmatprep.subr.mxu0 0.0
        %1373 = vmatpush1.msra.mxu0 %v661
        %1374 = vmatprep.subr.mxu0 0.0
        %1375 = vmatpush1.msra.mxu0 %v662
        %1376 = vmatprep.subr.mxu0 0.0
        %1377 = vmatpush1.msra.mxu0 %v663
        %1378 = vmatprep.subr.mxu0 0.0
        %1379 = vmatpush1.msra.mxu0 %v664
        %1380 = vmatprep.subr.mxu0 0.0
        %1381 = vmatpush1.msra.mxu0 %v665
        %1382 = vmatprep.mubr.f32.mxu0 %v451
        %1383 = vmatmul.mubr.f32.gmra.mrb[0].mxu0 %v450
        %v1384 = vpop.f32.mrb[0].mxu0
        %v1385 = vadd.f32 %v1310, %v1384
        %v1386 = vpop.f32.mrb[0].mxu0
        %1387 = vmatprep.mubr.f32.mxu0 %v483
        %1388 = vmatmul.mubr.f32.gmra.mrb[0].mxu0 %v482
        %v1389 = vpop.f32.mrb[0].mxu0
        %v1390 = vadd.f32 %v1315, %v1389
        %v1391 = vpop.f32.mrb[0].mxu0
        %1392 = vdwg.mxu0
        %1393 = vmatprep.subr.mxu0 0.0
        %1394 = vmatpush1.msra.mxu0 %v666
        %1395 = vmatprep.subr.mxu0 0.0
        %1396 = vmatpush1.msra.mxu0 %v667
        %1397 = vmatprep.subr.mxu0 0.0
        %1398 = vmatpush1.msra.mxu0 %v668
        %1399 = vmatprep.subr.mxu0 0.0
        %1400 = vmatpush1.msra.mxu0 %v669
        %1401 = vmatprep.subr.mxu0 0.0
        %1402 = vmatpush1.msra.mxu0 %v670
        %1403 = vmatprep.subr.mxu0 0.0
        %1404 = vmatpush1.msra.mxu0 %v671
        %1405 = vmatprep.subr.mxu0 0.0
        %1406 = vmatpush1.msra.mxu0 %v672
        %1407 = vmatprep.subr.mxu0 0.0
        %1408 = vmatpush1.msra.mxu0 %v673
        %1409 = vmatprep.subr.mxu0 0.0
        %1410 = vmatpush1.msra.mxu0 %v674
        %1411 = vmatprep.subr.mxu0 0.0
        %1412 = vmatpush1.msra.mxu0 %v675
        %1413 = vmatprep.subr.mxu0 0.0
        %1414 = vmatpush1.msra.mxu0 %v676
        %1415 = vmatprep.subr.mxu0 0.0
        %1416 = vmatpush1.msra.mxu0 %v677
        %1417 = vmatprep.subr.mxu0 0.0
        %1418 = vmatpush1.msra.mxu0 %v678
        %1419 = vmatprep.subr.mxu0 0.0
        %1420 = vmatpush1.msra.mxu0 %v679
        %1421 = vmatprep.subr.mxu0 0.0
        %1422 = vmatpush1.msra.mxu0 %v680
        %1423 = vmatprep.subr.mxu0 0.0
        %1424 = vmatpush1.msra.mxu0 %v681
        %1425 = vmatprep.subr.mxu0 0.0
        %1426 = vmatpush1.msra.mxu0 %v682
        %1427 = vmatprep.subr.mxu0 0.0
        %1428 = vmatpush1.msra.mxu0 %v683
        %1429 = vmatprep.subr.mxu0 0.0
        %1430 = vmatpush1.msra.mxu0 %v684
        %1431 = vmatprep.subr.mxu0 0.0
        %1432 = vmatpush1.msra.mxu0 %v685
        %1433 = vmatprep.subr.mxu0 0.0
        %1434 = vmatpush1.msra.mxu0 %v686
        %1435 = vmatprep.subr.mxu0 0.0
        %1436 = vmatpush1.msra.mxu0 %v687
        %1437 = vmatprep.subr.mxu0 0.0
        %1438 = vmatpush1.msra.mxu0 %v688
        %1439 = vmatprep.subr.mxu0 0.0
        %1440 = vmatpush1.msra.mxu0 %v689
        %1441 = vmatprep.subr.mxu0 0.0
        %1442 = vmatpush1.msra.mxu0 %v690
        %1443 = vmatprep.subr.mxu0 0.0
        %1444 = vmatpush1.msra.mxu0 %v691
        %1445 = vmatprep.subr.mxu0 0.0
        %1446 = vmatpush1.msra.mxu0 %v692
        %1447 = vmatprep.subr.mxu0 0.0
        %1448 = vmatpush1.msra.mxu0 %v693
        %1449 = vmatprep.subr.mxu0 0.0
        %1450 = vmatpush1.msra.mxu0 %v694
        %1451 = vmatprep.subr.mxu0 0.0
        %1452 = vmatpush1.msra.mxu0 %v695
        %1453 = vmatprep.subr.mxu0 0.0
        %1454 = vmatpush1.msra.mxu0 %v696
        %1455 = vmatprep.subr.mxu0 0.0
        %1456 = vmatpush1.msra.mxu0 %v697
        %1457 = vmatprep.mubr.f32.mxu0 %v453
        %1458 = vmatmul.mubr.f32.gmra.mrb[0].mxu0 %v452
        %v1459 = vpop.f32.mrb[0].mxu0
        %v1460 = vadd.f32 %v1385, %v1459
        %v1461 = vpop.f32.mrb[0].mxu0
        %1462 = vmatprep.mubr.f32.mxu0 %v485
        %1463 = vmatmul.mubr.f32.gmra.mrb[0].mxu0 %v484
        %v1464 = vpop.f32.mrb[0].mxu0
        %v1465 = vadd.f32 %v1390, %v1464
        %v1466 = vpop.f32.mrb[0].mxu0
        %1467 = vdwg.mxu0
        %1468 = vmatprep.subr.mxu0 0.0
        %1469 = vmatpush1.msra.mxu0 %v698
        %1470 = vmatprep.subr.mxu0 0.0
        %1471 = vmatpush1.msra.mxu0 %v699
        %1472 = vmatprep.subr.mxu0 0.0
        %1473 = vmatpush1.msra.mxu0 %v700
        %1474 = vmatprep.subr.mxu0 0.0
        %1475 = vmatpush1.msra.mxu0 %v701
        %1476 = vmatprep.subr.mxu0 0.0
        %1477 = vmatpush1.msra.mxu0 %v702
        %1478 = vmatprep.subr.mxu0 0.0
        %1479 = vmatpush1.msra.mxu0 %v703
        %1480 = vmatprep.subr.mxu0 0.0
        %1481 = vmatpush1.msra.mxu0 %v704
        %1482 = vmatprep.subr.mxu0 0.0
        %1483 = vmatpush1.msra.mxu0 %v705
        %1484 = vmatprep.subr.mxu0 0.0
        %1485 = vmatpush1.msra.mxu0 %v706
        %1486 = vmatprep.subr.mxu0 0.0
        %1487 = vmatpush1.msra.mxu0 %v707
        %1488 = vmatprep.subr.mxu0 0.0
        %1489 = vmatpush1.msra.mxu0 %v708
        %1490 = vmatprep.subr.mxu0 0.0
        %1491 = vmatpush1.msra.mxu0 %v709
        %1492 = vmatprep.subr.mxu0 0.0
        %1493 = vmatpush1.msra.mxu0 %v710
        %1494 = vmatprep.subr.mxu0 0.0
        %1495 = vmatpush1.msra.mxu0 %v711
        %1496 = vmatprep.subr.mxu0 0.0
        %1497 = vmatpush1.msra.mxu0 %v712
        %1498 = vmatprep.subr.mxu0 0.0
        %1499 = vmatpush1.msra.mxu0 %v713
        %1500 = vmatprep.subr.mxu0 0.0
        %1501 = vmatpush1.msra.mxu0 %v714
        %1502 = vmatprep.subr.mxu0 0.0
        %1503 = vmatpush1.msra.mxu0 %v715
        %1504 = vmatprep.subr.mxu0 0.0
        %1505 = vmatpush1.msra.mxu0 %v716
        %1506 = vmatprep.subr.mxu0 0.0
        %1507 = vmatpush1.msra.mxu0 %v717
        %1508 = vmatprep.subr.mxu0 0.0
        %1509 = vmatpush1.msra.mxu0 %v718
        %1510 = vmatprep.subr.mxu0 0.0
        %1511 = vmatpush1.msra.mxu0 %v719
        %1512 = vmatprep.subr.mxu0 0.0
        %1513 = vmatpush1.msra.mxu0 %v720
        %1514 = vmatprep.subr.mxu0 0.0
        %1515 = vmatpush1.msra.mxu0 %v721
        %1516 = vmatprep.subr.mxu0 0.0
        %1517 = vmatpush1.msra.mxu0 %v722
        %1518 = vmatprep.subr.mxu0 0.0
        %1519 = vmatpush1.msra.mxu0 %v723
        %1520 = vmatprep.subr.mxu0 0.0
        %1521 = vmatpush1.msra.mxu0 %v724
        %1522 = vmatprep.subr.mxu0 0.0
        %1523 = vmatpush1.msra.mxu0 %v725
        %1524 = vmatprep.subr.mxu0 0.0
        %1525 = vmatpush1.msra.mxu0 %v726
        %1526 = vmatprep.subr.mxu0 0.0
        %1527 = vmatpush1.msra.mxu0 %v727
        %1528 = vmatprep.subr.mxu0 0.0
        %1529 = vmatpush1.msra.mxu0 %v728
        %1530 = vmatprep.subr.mxu0 0.0
        %1531 = vmatpush1.msra.mxu0 %v729
        %1532 = vmatprep.mubr.f32.mxu0 %v455
        %1533 = vmatmul.mubr.f32.gmra.mrb[0].mxu0 %v454
        %v1534 = vpop.f32.mrb[0].mxu0
        %v1535 = vadd.f32 %v1460, %v1534
        %v1536 = vpop.f32.mrb[0].mxu0
        %1537 = vmatprep.mubr.f32.mxu0 %v487
        %1538 = vmatmul.mubr.f32.gmra.mrb[0].mxu0 %v486
        %v1539 = vpop.f32.mrb[0].mxu0
        %v1540 = vadd.f32 %v1465, %v1539
        %v1541 = vpop.f32.mrb[0].mxu0
        %1542 = vdwg.mxu0
        %1543 = vmatprep.subr.mxu0 0.0
        %1544 = vmatpush1.msra.mxu0 %v730
        %1545 = vmatprep.subr.mxu0 0.0
        %1546 = vmatpush1.msra.mxu0 %v731
        %1547 = vmatprep.subr.mxu0 0.0
        %1548 = vmatpush1.msra.mxu0 %v732
        %1549 = vmatprep.subr.mxu0 0.0
        %1550 = vmatpush1.msra.mxu0 %v733
        %1551 = vmatprep.subr.mxu0 0.0
        %1552 = vmatpush1.msra.mxu0 %v734
        %1553 = vmatprep.subr.mxu0 0.0
        %1554 = vmatpush1.msra.mxu0 %v735
        %1555 = vmatprep.subr.mxu0 0.0
        %1556 = vmatpush1.msra.mxu0 %v736
        %1557 = vmatprep.subr.mxu0 0.0
        %1558 = vmatpush1.msra.mxu0 %v737
        %1559 = vmatprep.subr.mxu0 0.0
        %1560 = vmatpush1.msra.mxu0 %v738
        %1561 = vmatprep.subr.mxu0 0.0
        %1562 = vmatpush1.msra.mxu0 %v739
        %1563 = vmatprep.subr.mxu0 0.0
        %1564 = vmatpush1.msra.mxu0 %v740
        %1565 = vmatprep.subr.mxu0 0.0
        %1566 = vmatpush1.msra.mxu0 %v741
        %1567 = vmatprep.subr.mxu0 0.0
        %1568 = vmatpush1.msra.mxu0 %v742
        %1569 = vmatprep.subr.mxu0 0.0
        %1570 = vmatpush1.msra.mxu0 %v743
        %1571 = vmatprep.subr.mxu0 0.0
        %1572 = vmatpush1.msra.mxu0 %v744
        %1573 = vmatprep.subr.mxu0 0.0
        %1574 = vmatpush1.msra.mxu0 %v745
        %1575 = vmatprep.subr.mxu0 0.0
        %1576 = vmatpush1.msra.mxu0 %v746
        %1577 = vmatprep.subr.mxu0 0.0
        %1578 = vmatpush1.msra.mxu0 %v747
        %1579 = vmatprep.subr.mxu0 0.0
        %1580 = vmatpush1.msra.mxu0 %v748
        %1581 = vmatprep.subr.mxu0 0.0
        %1582 = vmatpush1.msra.mxu0 %v749
        %1583 = vmatprep.subr.mxu0 0.0
        %1584 = vmatpush1.msra.mxu0 %v750
        %1585 = vmatprep.subr.mxu0 0.0
        %1586 = vmatpush1.msra.mxu0 %v751
        %1587 = vmatprep.subr.mxu0 0.0
        %1588 = vmatpush1.msra.mxu0 %v752
        %1589 = vmatprep.subr.mxu0 0.0
        %1590 = vmatpush1.msra.mxu0 %v753
        %1591 = vmatprep.subr.mxu0 0.0
        %1592 = vmatpush1.msra.mxu0 %v754
        %1593 = vmatprep.subr.mxu0 0.0
        %1594 = vmatpush1.msra.mxu0 %v755
        %1595 = vmatprep.subr.mxu0 0.0
        %1596 = vmatpush1.msra.mxu0 %v756
        %1597 = vmatprep.subr.mxu0 0.0
        %1598 = vmatpush1.msra.mxu0 %v757
        %1599 = vmatprep.subr.mxu0 0.0
        %1600 = vmatpush1.msra.mxu0 %v758
        %1601 = vmatprep.subr.mxu0 0.0
        %1602 = vmatpush1.msra.mxu0 %v759
        %1603 = vmatprep.subr.mxu0 0.0
        %1604 = vmatpush1.msra.mxu0 %v760
        %1605 = vmatprep.subr.mxu0 0.0
        %1606 = vmatpush1.msra.mxu0 %v761
        %1607 = vmatprep.mubr.f32.mxu0 %v457
        %1608 = vmatmul.mubr.f32.gmra.mrb[0].mxu0 %v456
        %v1609 = vpop.f32.mrb[0].mxu0
        %v1610 = vadd.f32 %v1535, %v1609
        %v1611 = vpop.f32.mrb[0].mxu0
        %1612 = vmatprep.mubr.f32.mxu0 %v489
        %1613 = vmatmul.mubr.f32.gmra.mrb[0].mxu0 %v488
        %v1614 = vpop.f32.mrb[0].mxu0
        %v1615 = vadd.f32 %v1540, %v1614
        %v1616 = vpop.f32.mrb[0].mxu0
        %1617 = vdwg.mxu0
        %1618 = vmatprep.subr.mxu0 0.0
        %1619 = vmatpush1.msra.mxu0 %v762
        %1620 = vmatprep.subr.mxu0 0.0
        %1621 = vmatpush1.msra.mxu0 %v763
        %1622 = vmatprep.subr.mxu0 0.0
        %1623 = vmatpush1.msra.mxu0 %v764
        %1624 = vmatprep.subr.mxu0 0.0
        %1625 = vmatpush1.msra.mxu0 %v765
        %1626 = vmatprep.subr.mxu0 0.0
        %1627 = vmatpush1.msra.mxu0 %v766
        %1628 = vmatprep.subr.mxu0 0.0
        %1629 = vmatpush1.msra.mxu0 %v767
        %1630 = vmatprep.subr.mxu0 0.0
        %1631 = vmatpush1.msra.mxu0 %v768
        %1632 = vmatprep.subr.mxu0 0.0
        %1633 = vmatpush1.msra.mxu0 %v769
        %1634 = vmatprep.subr.mxu0 0.0
        %1635 = vmatpush1.msra.mxu0 %v770
        %1636 = vmatprep.subr.mxu0 0.0
        %1637 = vmatpush1.msra.mxu0 %v771
        %1638 = vmatprep.subr.mxu0 0.0
        %1639 = vmatpush1.msra.mxu0 %v772
        %1640 = vmatprep.subr.mxu0 0.0
        %1641 = vmatpush1.msra.mxu0 %v773
        %1642 = vmatprep.subr.mxu0 0.0
        %1643 = vmatpush1.msra.mxu0 %v774
        %1644 = vmatprep.subr.mxu0 0.0
        %1645 = vmatpush1.msra.mxu0 %v775
        %1646 = vmatprep.subr.mxu0 0.0
        %1647 = vmatpush1.msra.mxu0 %v776
        %1648 = vmatprep.subr.mxu0 0.0
        %1649 = vmatpush1.msra.mxu0 %v777
        %1650 = vmatprep.subr.mxu0 0.0
        %1651 = vmatpush1.msra.mxu0 %v778
        %1652 = vmatprep.subr.mxu0 0.0
        %1653 = vmatpush1.msra.mxu0 %v779
        %1654 = vmatprep.subr.mxu0 0.0
        %1655 = vmatpush1.msra.mxu0 %v780
        %1656 = vmatprep.subr.mxu0 0.0
        %1657 = vmatpush1.msra.mxu0 %v781
        %1658 = vmatprep.subr.mxu0 0.0
        %1659 = vmatpush1.msra.mxu0 %v782
        %1660 = vmatprep.subr.mxu0 0.0
        %1661 = vmatpush1.msra.mxu0 %v783
        %1662 = vmatprep.subr.mxu0 0.0
        %1663 = vmatpush1.msra.mxu0 %v784
        %1664 = vmatprep.subr.mxu0 0.0
        %1665 = vmatpush1.msra.mxu0 %v785
        %1666 = vmatprep.subr.mxu0 0.0
        %1667 = vmatpush1.msra.mxu0 %v786
        %1668 = vmatprep.subr.mxu0 0.0
        %1669 = vmatpush1.msra.mxu0 %v787
        %1670 = vmatprep.subr.mxu0 0.0
        %1671 = vmatpush1.msra.mxu0 %v788
        %1672 = vmatprep.subr.mxu0 0.0
        %1673 = vmatpush1.msra.mxu0 %v789
        %1674 = vmatprep.subr.mxu0 0.0
        %1675 = vmatpush1.msra.mxu0 %v790
        %1676 = vmatprep.subr.mxu0 0.0
        %1677 = vmatpush1.msra.mxu0 %v791
        %1678 = vmatprep.subr.mxu0 0.0
        %1679 = vmatpush1.msra.mxu0 %v792
        %1680 = vmatprep.subr.mxu0 0.0
        %1681 = vmatpush1.msra.mxu0 %v793
        %1682 = vmatprep.mubr.f32.mxu0 %v459
        %1683 = vmatmul.mubr.f32.gmra.mrb[0].mxu0 %v458
        %v1684 = vpop.f32.mrb[0].mxu0
        %v1685 = vadd.f32 %v1610, %v1684
        %v1686 = vpop.f32.mrb[0].mxu0
        %1687 = vmatprep.mubr.f32.mxu0 %v491
        %1688 = vmatmul.mubr.f32.gmra.mrb[0].mxu0 %v490
        %v1689 = vpop.f32.mrb[0].mxu0
        %v1690 = vadd.f32 %v1615, %v1689
        %v1691 = vpop.f32.mrb[0].mxu0
        %1692 = vdwg.mxu0
        %1693 = vmatprep.subr.mxu0 0.0
        %1694 = vmatpush1.msra.mxu0 %v794
        %1695 = vmatprep.subr.mxu0 0.0
        %1696 = vmatpush1.msra.mxu0 %v795
        %1697 = vmatprep.subr.mxu0 0.0
        %1698 = vmatpush1.msra.mxu0 %v796
        %1699 = vmatprep.subr.mxu0 0.0
        %1700 = vmatpush1.msra.mxu0 %v797
        %1701 = vmatprep.subr.mxu0 0.0
        %1702 = vmatpush1.msra.mxu0 %v798
        %1703 = vmatprep.subr.mxu0 0.0
        %1704 = vmatpush1.msra.mxu0 %v799
        %1705 = vmatprep.subr.mxu0 0.0
        %1706 = vmatpush1.msra.mxu0 %v800
        %1707 = vmatprep.subr.mxu0 0.0
        %1708 = vmatpush1.msra.mxu0 %v801
        %1709 = vmatprep.subr.mxu0 0.0
        %1710 = vmatpush1.msra.mxu0 %v802
        %1711 = vmatprep.subr.mxu0 0.0
        %1712 = vmatpush1.msra.mxu0 %v803
        %1713 = vmatprep.subr.mxu0 0.0
        %1714 = vmatpush1.msra.mxu0 %v804
        %1715 = vmatprep.subr.mxu0 0.0
        %1716 = vmatpush1.msra.mxu0 %v805
        %1717 = vmatprep.subr.mxu0 0.0
        %1718 = vmatpush1.msra.mxu0 %v806
        %1719 = vmatprep.subr.mxu0 0.0
        %1720 = vmatpush1.msra.mxu0 %v807
        %1721 = vmatprep.subr.mxu0 0.0
        %1722 = vmatpush1.msra.mxu0 %v808
        %1723 = vmatprep.subr.mxu0 0.0
        %1724 = vmatpush1.msra.mxu0 %v809
        %1725 = vmatprep.subr.mxu0 0.0
        %1726 = vmatpush1.msra.mxu0 %v810
        %1727 = vmatprep.subr.mxu0 0.0
        %1728 = vmatpush1.msra.mxu0 %v811
        %1729 = vmatprep.subr.mxu0 0.0
        %1730 = vmatpush1.msra.mxu0 %v812
        %1731 = vmatprep.subr.mxu0 0.0
        %1732 = vmatpush1.msra.mxu0 %v813
        %1733 = vmatprep.subr.mxu0 0.0
        %1734 = vmatpush1.msra.mxu0 %v814
        %1735 = vmatprep.subr.mxu0 0.0
        %1736 = vmatpush1.msra.mxu0 %v815
        %1737 = vmatprep.subr.mxu0 0.0
        %1738 = vmatpush1.msra.mxu0 %v816
        %1739 = vmatprep.subr.mxu0 0.0
        %1740 = vmatpush1.msra.mxu0 %v817
        %1741 = vmatprep.subr.mxu0 0.0
        %1742 = vmatpush1.msra.mxu0 %v818
        %1743 = vmatprep.subr.mxu0 0.0
        %1744 = vmatpush1.msra.mxu0 %v819
        %1745 = vmatprep.subr.mxu0 0.0
        %1746 = vmatpush1.msra.mxu0 %v820
        %1747 = vmatprep.subr.mxu0 0.0
        %1748 = vmatpush1.msra.mxu0 %v821
        %1749 = vmatprep.subr.mxu0 0.0
        %1750 = vmatpush1.msra.mxu0 %v822
        %1751 = vmatprep.subr.mxu0 0.0
        %1752 = vmatpush1.msra.mxu0 %v823
        %1753 = vmatprep.subr.mxu0 0.0
        %1754 = vmatpush1.msra.mxu0 %v824
        %1755 = vmatprep.subr.mxu0 0.0
        %1756 = vmatpush1.msra.mxu0 %v825
        %1757 = vmatprep.mubr.f32.mxu0 %v461
        %1758 = vmatmul.mubr.f32.gmra.mrb[0].mxu0 %v460
        %v1759 = vpop.f32.mrb[0].mxu0
        %v1760 = vadd.f32 %v1685, %v1759
        %v1761 = vpop.f32.mrb[0].mxu0
        %1762 = vmatprep.mubr.f32.mxu0 %v493
        %1763 = vmatmul.mubr.f32.gmra.mrb[0].mxu0 %v492
        %v1764 = vpop.f32.mrb[0].mxu0
        %v1765 = vadd.f32 %v1690, %v1764
        %v1766 = vpop.f32.mrb[0].mxu0
        %1767 = vdwg.mxu0
        %1768 = vmatprep.subr.mxu0 0.0
        %1769 = vmatpush1.msra.mxu0 %v826
        %1770 = vmatprep.subr.mxu0 0.0
        %1771 = vmatpush1.msra.mxu0 %v827
        %1772 = vmatprep.subr.mxu0 0.0
        %1773 = vmatpush1.msra.mxu0 %v828
        %1774 = vmatprep.subr.mxu0 0.0
        %1775 = vmatpush1.msra.mxu0 %v829
        %1776 = vmatprep.subr.mxu0 0.0
        %1777 = vmatpush1.msra.mxu0 %v830
        %1778 = vmatprep.subr.mxu0 0.0
        %1779 = vmatpush1.msra.mxu0 %v831
        %1780 = vmatprep.subr.mxu0 0.0
        %1781 = vmatpush1.msra.mxu0 %v832
        %1782 = vmatprep.subr.mxu0 0.0
        %1783 = vmatpush1.msra.mxu0 %v833
        %1784 = vmatprep.subr.mxu0 0.0
        %1785 = vmatpush1.msra.mxu0 %v834
        %1786 = vmatprep.subr.mxu0 0.0
        %1787 = vmatpush1.msra.mxu0 %v835
        %1788 = vmatprep.subr.mxu0 0.0
        %1789 = vmatpush1.msra.mxu0 %v836
        %1790 = vmatprep.subr.mxu0 0.0
        %1791 = vmatpush1.msra.mxu0 %v837
        %1792 = vmatprep.subr.mxu0 0.0
        %1793 = vmatpush1.msra.mxu0 %v838
        %1794 = vmatprep.subr.mxu0 0.0
        %1795 = vmatpush1.msra.mxu0 %v839
        %1796 = vmatprep.subr.mxu0 0.0
        %1797 = vmatpush1.msra.mxu0 %v840
        %1798 = vmatprep.subr.mxu0 0.0
        %1799 = vmatpush1.msra.mxu0 %v841
        %1800 = vmatprep.subr.mxu0 0.0
        %1801 = vmatpush1.msra.mxu0 %v842
        %1802 = vmatprep.subr.mxu0 0.0
        %1803 = vmatpush1.msra.mxu0 %v843
        %1804 = vmatprep.subr.mxu0 0.0
        %1805 = vmatpush1.msra.mxu0 %v844
        %1806 = vmatprep.subr.mxu0 0.0
        %1807 = vmatpush1.msra.mxu0 %v845
        %1808 = vmatprep.subr.mxu0 0.0
        %1809 = vmatpush1.msra.mxu0 %v846
        %1810 = vmatprep.subr.mxu0 0.0
        %1811 = vmatpush1.msra.mxu0 %v847
        %1812 = vmatprep.subr.mxu0 0.0
        %1813 = vmatpush1.msra.mxu0 %v848
        %1814 = vmatprep.subr.mxu0 0.0
        %1815 = vmatpush1.msra.mxu0 %v849
        %1816 = vmatprep.subr.mxu0 0.0
        %1817 = vmatpush1.msra.mxu0 %v850
        %1818 = vmatprep.subr.mxu0 0.0
        %1819 = vmatpush1.msra.mxu0 %v851
        %1820 = vmatprep.subr.mxu0 0.0
        %1821 = vmatpush1.msra.mxu0 %v852
        %1822 = vmatprep.subr.mxu0 0.0
        %1823 = vmatpush1.msra.mxu0 %v853
        %1824 = vmatprep.subr.mxu0 0.0
        %1825 = vmatpush1.msra.mxu0 %v854
        %1826 = vmatprep.subr.mxu0 0.0
        %1827 = vmatpush1.msra.mxu0 %v855
        %1828 = vmatprep.subr.mxu0 0.0
        %1829 = vmatpush1.msra.mxu0 %v856
        %1830 = vmatprep.subr.mxu0 0.0
        %1831 = vmatpush1.msra.mxu0 %v857
        %1832 = vmatprep.mubr.f32.mxu0 %v463
        %1833 = vmatmul.mubr.f32.gmra.mrb[0].mxu0 %v462
        %v1834 = vpop.f32.mrb[0].mxu0
        %v1835 = vadd.f32 %v1760, %v1834
        %v1836 = vpop.f32.mrb[0].mxu0
        %1837 = vmatprep.mubr.f32.mxu0 %v495
        %1838 = vmatmul.mubr.f32.gmra.mrb[0].mxu0 %v494
        %v1839 = vpop.f32.mrb[0].mxu0
        %v1840 = vadd.f32 %v1765, %v1839
        %v1841 = vpop.f32.mrb[0].mxu0
        %1842 = vdwg.mxu0
        %1843 = vmatprep.subr.mxu0 0.0
        %1844 = vmatpush1.msra.mxu0 %v858
        %1845 = vmatprep.subr.mxu0 0.0
        %1846 = vmatpush1.msra.mxu0 %v859
        %1847 = vmatprep.subr.mxu0 0.0
        %1848 = vmatpush1.msra.mxu0 %v860
        %1849 = vmatprep.subr.mxu0 0.0
        %1850 = vmatpush1.msra.mxu0 %v861
        %1851 = vmatprep.subr.mxu0 0.0
        %1852 = vmatpush1.msra.mxu0 %v862
        %1853 = vmatprep.subr.mxu0 0.0
        %1854 = vmatpush1.msra.mxu0 %v863
        %1855 = vmatprep.subr.mxu0 0.0
        %1856 = vmatpush1.msra.mxu0 %v864
        %1857 = vmatprep.subr.mxu0 0.0
        %1858 = vmatpush1.msra.mxu0 %v865
        %1859 = vmatprep.subr.mxu0 0.0
        %1860 = vmatpush1.msra.mxu0 %v866
        %1861 = vmatprep.subr.mxu0 0.0
        %1862 = vmatpush1.msra.mxu0 %v867
        %1863 = vmatprep.subr.mxu0 0.0
        %1864 = vmatpush1.msra.mxu0 %v868
        %1865 = vmatprep.subr.mxu0 0.0
        %1866 = vmatpush1.msra.mxu0 %v869
        %1867 = vmatprep.subr.mxu0 0.0
        %1868 = vmatpush1.msra.mxu0 %v870
        %1869 = vmatprep.subr.mxu0 0.0
        %1870 = vmatpush1.msra.mxu0 %v871
        %1871 = vmatprep.subr.mxu0 0.0
        %1872 = vmatpush1.msra.mxu0 %v872
        %1873 = vmatprep.subr.mxu0 0.0
        %1874 = vmatpush1.msra.mxu0 %v873
        %1875 = vmatprep.subr.mxu0 0.0
        %1876 = vmatpush1.msra.mxu0 %v874
        %1877 = vmatprep.subr.mxu0 0.0
        %1878 = vmatpush1.msra.mxu0 %v875
        %1879 = vmatprep.subr.mxu0 0.0
        %1880 = vmatpush1.msra.mxu0 %v876
        %1881 = vmatprep.subr.mxu0 0.0
        %1882 = vmatpush1.msra.mxu0 %v877
        %1883 = vmatprep.subr.mxu0 0.0
        %1884 = vmatpush1.msra.mxu0 %v878
        %1885 = vmatprep.subr.mxu0 0.0
        %1886 = vmatpush1.msra.mxu0 %v879
        %1887 = vmatprep.subr.mxu0 0.0
        %1888 = vmatpush1.msra.mxu0 %v880
        %1889 = vmatprep.subr.mxu0 0.0
        %1890 = vmatpush1.msra.mxu0 %v881
        %1891 = vmatprep.subr.mxu0 0.0
        %1892 = vmatpush1.msra.mxu0 %v882
        %1893 = vmatprep.subr.mxu0 0.0
        %1894 = vmatpush1.msra.mxu0 %v883
        %1895 = vmatprep.subr.mxu0 0.0
        %1896 = vmatpush1.msra.mxu0 %v884
        %1897 = vmatprep.subr.mxu0 0.0
        %1898 = vmatpush1.msra.mxu0 %v885
        %1899 = vmatprep.subr.mxu0 0.0
        %1900 = vmatpush1.msra.mxu0 %v886
        %1901 = vmatprep.subr.mxu0 0.0
        %1902 = vmatpush1.msra.mxu0 %v887
        %1903 = vmatprep.subr.mxu0 0.0
        %1904 = vmatpush1.msra.mxu0 %v888
        %1905 = vmatprep.subr.mxu0 0.0
        %1906 = vmatpush1.msra.mxu0 %v889
        %1907 = vmatprep.mubr.f32.mxu0 %v465
        %1908 = vmatmul.mubr.f32.gmra.mrb[0].mxu0 %v464
        %v1909 = vpop.f32.mrb[0].mxu0
        %v1910 = vadd.f32 %v1835, %v1909
        %v1911 = vpop.f32.mrb[0].mxu0
        %1912 = vmatprep.mubr.f32.mxu0 %v497
        %1913 = vmatmul.mubr.f32.gmra.mrb[0].mxu0 %v496
        %v1914 = vpop.f32.mrb[0].mxu0
        %v1915 = vadd.f32 %v1840, %v1914
        %v1916 = vpop.f32.mrb[0].mxu0
        %1917 = vdwg.mxu0
        %1918 = vmatprep.subr.mxu0 0.0
        %1919 = vmatpush1.msra.mxu0 %v890
        %1920 = vmatprep.subr.mxu0 0.0
        %1921 = vmatpush1.msra.mxu0 %v891
        %1922 = vmatprep.subr.mxu0 0.0
        %1923 = vmatpush1.msra.mxu0 %v892
        %1924 = vmatprep.subr.mxu0 0.0
        %1925 = vmatpush1.msra.mxu0 %v893
        %1926 = vmatprep.subr.mxu0 0.0
        %1927 = vmatpush1.msra.mxu0 %v894
        %1928 = vmatprep.subr.mxu0 0.0
        %1929 = vmatpush1.msra.mxu0 %v895
        %1930 = vmatprep.subr.mxu0 0.0
        %1931 = vmatpush1.msra.mxu0 %v896
        %1932 = vmatprep.subr.mxu0 0.0
        %1933 = vmatpush1.msra.mxu0 %v897
        %1934 = vmatprep.subr.mxu0 0.0
        %1935 = vmatpush1.msra.mxu0 %v898
        %1936 = vmatprep.subr.mxu0 0.0
        %1937 = vmatpush1.msra.mxu0 %v899
        %1938 = vmatprep.subr.mxu0 0.0
        %1939 = vmatpush1.msra.mxu0 %v900
        %1940 = vmatprep.subr.mxu0 0.0
        %1941 = vmatpush1.msra.mxu0 %v901
        %1942 = vmatprep.subr.mxu0 0.0
        %1943 = vmatpush1.msra.mxu0 %v902
        %1944 = vmatprep.subr.mxu0 0.0
        %1945 = vmatpush1.msra.mxu0 %v903
        %1946 = vmatprep.subr.mxu0 0.0
        %1947 = vmatpush1.msra.mxu0 %v904
        %1948 = vmatprep.subr.mxu0 0.0
        %1949 = vmatpush1.msra.mxu0 %v905
        %1950 = vmatprep.subr.mxu0 0.0
        %1951 = vmatpush1.msra.mxu0 %v906
        %1952 = vmatprep.subr.mxu0 0.0
        %1953 = vmatpush1.msra.mxu0 %v907
        %1954 = vmatprep.subr.mxu0 0.0
        %1955 = vmatpush1.msra.mxu0 %v908
        %1956 = vmatprep.subr.mxu0 0.0
        %1957 = vmatpush1.msra.mxu0 %v909
        %1958 = vmatprep.subr.mxu0 0.0
        %1959 = vmatpush1.msra.mxu0 %v910
        %1960 = vmatprep.subr.mxu0 0.0
        %1961 = vmatpush1.msra.mxu0 %v911
        %1962 = vmatprep.subr.mxu0 0.0
        %1963 = vmatpush1.msra.mxu0 %v912
        %1964 = vmatprep.subr.mxu0 0.0
        %1965 = vmatpush1.msra.mxu0 %v913
        %1966 = vmatprep.subr.mxu0 0.0
        %1967 = vmatpush1.msra.mxu0 %v914
        %1968 = vmatprep.subr.mxu0 0.0
        %1969 = vmatpush1.msra.mxu0 %v915
        %1970 = vmatprep.subr.mxu0 0.0
        %1971 = vmatpush1.msra.mxu0 %v916
        %1972 = vmatprep.subr.mxu0 0.0
        %1973 = vmatpush1.msra.mxu0 %v917
        %1974 = vmatprep.subr.mxu0 0.0
        %1975 = vmatpush1.msra.mxu0 %v918
        %1976 = vmatprep.subr.mxu0 0.0
        %1977 = vmatpush1.msra.mxu0 %v919
        %1978 = vmatprep.subr.mxu0 0.0
        %1979 = vmatpush1.msra.mxu0 %v920
        %1980 = vmatprep.subr.mxu0 0.0
        %1981 = vmatpush1.msra.mxu0 %v921
        %1982 = vmatprep.mubr.f32.mxu0 %v467
        %1983 = vmatmul.mubr.f32.gmra.mrb[0].mxu0 %v466
        %v1984 = vpop.f32.mrb[0].mxu0
        %v1985 = vadd.f32 %v1910, %v1984
        %v1986 = vpop.f32.mrb[0].mxu0
        %1987 = vmatprep.mubr.f32.mxu0 %v499
        %1988 = vmatmul.mubr.f32.gmra.mrb[0].mxu0 %v498
        %v1989 = vpop.f32.mrb[0].mxu0
        %v1990 = vadd.f32 %v1915, %v1989
        %v1991 = vpop.f32.mrb[0].mxu0
        %1992 = vdwg.mxu0
        %1993 = vmatprep.subr.mxu0 0.0
        %1994 = vmatpush1.msra.mxu0 %v922
        %1995 = vmatprep.subr.mxu0 0.0
        %1996 = vmatpush1.msra.mxu0 %v923
        %1997 = vmatprep.subr.mxu0 0.0
        %1998 = vmatpush1.msra.mxu0 %v924
        %1999 = vmatprep.subr.mxu0 0.0
        %2000 = vmatpush1.msra.mxu0 %v925
        %2001 = vmatprep.subr.mxu0 0.0
        %2002 = vmatpush1.msra.mxu0 %v926
        %2003 = vmatprep.subr.mxu0 0.0
        %2004 = vmatpush1.msra.mxu0 %v927
        %2005 = vmatprep.subr.mxu0 0.0
        %2006 = vmatpush1.msra.mxu0 %v928
        %2007 = vmatprep.subr.mxu0 0.0
        %2008 = vmatpush1.msra.mxu0 %v929
        %2009 = vmatprep.subr.mxu0 0.0
        %2010 = vmatpush1.msra.mxu0 %v930
        %2011 = vmatprep.subr.mxu0 0.0
        %2012 = vmatpush1.msra.mxu0 %v931
        %2013 = vmatprep.subr.mxu0 0.0
        %2014 = vmatpush1.msra.mxu0 %v932
        %2015 = vmatprep.subr.mxu0 0.0
        %2016 = vmatpush1.msra.mxu0 %v933
        %2017 = vmatprep.subr.mxu0 0.0
        %2018 = vmatpush1.msra.mxu0 %v934
        %2019 = vmatprep.subr.mxu0 0.0
        %2020 = vmatpush1.msra.mxu0 %v935
        %2021 = vmatprep.subr.mxu0 0.0
        %2022 = vmatpush1.msra.mxu0 %v936
        %2023 = vmatprep.subr.mxu0 0.0
        %2024 = vmatpush1.msra.mxu0 %v937
        %2025 = vmatprep.subr.mxu0 0.0
        %2026 = vmatpush1.msra.mxu0 %v938
        %2027 = vmatprep.subr.mxu0 0.0
        %2028 = vmatpush1.msra.mxu0 %v939
        %2029 = vmatprep.subr.mxu0 0.0
        %2030 = vmatpush1.msra.mxu0 %v940
        %2031 = vmatprep.subr.mxu0 0.0
        %2032 = vmatpush1.msra.mxu0 %v941
        %2033 = vmatprep.subr.mxu0 0.0
        %2034 = vmatpush1.msra.mxu0 %v942
        %2035 = vmatprep.subr.mxu0 0.0
        %2036 = vmatpush1.msra.mxu0 %v943
        %2037 = vmatprep.subr.mxu0 0.0
        %2038 = vmatpush1.msra.mxu0 %v944
        %2039 = vmatprep.subr.mxu0 0.0
        %2040 = vmatpush1.msra.mxu0 %v945
        %2041 = vmatprep.subr.mxu0 0.0
        %2042 = vmatpush1.msra.mxu0 %v946
        %2043 = vmatprep.subr.mxu0 0.0
        %2044 = vmatpush1.msra.mxu0 %v947
        %2045 = vmatprep.subr.mxu0 0.0
        %2046 = vmatpush1.msra.mxu0 %v948
        %2047 = vmatprep.subr.mxu0 0.0
        %2048 = vmatpush1.msra.mxu0 %v949
        %2049 = vmatprep.subr.mxu0 0.0
        %2050 = vmatpush1.msra.mxu0 %v950
        %2051 = vmatprep.subr.mxu0 0.0
        %2052 = vmatpush1.msra.mxu0 %v951
        %2053 = vmatprep.subr.mxu0 0.0
        %2054 = vmatpush1.msra.mxu0 %v952
        %2055 = vmatprep.subr.mxu0 0.0
        %2056 = vmatpush1.msra.mxu0 %v953
        %2057 = vmatprep.mubr.f32.mxu0 %v469
        %2058 = vmatmul.mubr.f32.gmra.mrb[0].mxu0 %v468
        %v2059 = vpop.f32.mrb[0].mxu0
        %v2060 = vadd.f32 %v1985, %v2059
        %v2061 = vpop.f32.mrb[0].mxu0
        %2062 = vmatprep.mubr.f32.mxu0 %v501
        %2063 = vmatmul.mubr.f32.gmra.mrb[0].mxu0 %v500
        %v2064 = vpop.f32.mrb[0].mxu0
        %v2065 = vadd.f32 %v1990, %v2064
        %v2066 = vpop.f32.mrb[0].mxu0
        %2067 = vdwg.mxu0
        %2068 = vmatprep.subr.mxu0 0.0
        %2069 = vmatpush1.msra.mxu0 %v954
        %2070 = vmatprep.subr.mxu0 0.0
        %2071 = vmatpush1.msra.mxu0 %v955
        %2072 = vmatprep.subr.mxu0 0.0
        %2073 = vmatpush1.msra.mxu0 %v956
        %2074 = vmatprep.subr.mxu0 0.0
        %2075 = vmatpush1.msra.mxu0 %v957
        %2076 = vmatprep.subr.mxu0 0.0
        %2077 = vmatpush1.msra.mxu0 %v958
        %2078 = vmatprep.subr.mxu0 0.0
        %2079 = vmatpush1.msra.mxu0 %v959
        %2080 = vmatprep.subr.mxu0 0.0
        %2081 = vmatpush1.msra.mxu0 %v960
        %2082 = vmatprep.subr.mxu0 0.0
        %2083 = vmatpush1.msra.mxu0 %v961
        %2084 = vmatprep.subr.mxu0 0.0
        %2085 = vmatpush1.msra.mxu0 %v962
        %2086 = vmatprep.subr.mxu0 0.0
        %2087 = vmatpush1.msra.mxu0 %v963
        %2088 = vmatprep.subr.mxu0 0.0
        %2089 = vmatpush1.msra.mxu0 %v964
        %2090 = vmatprep.subr.mxu0 0.0
        %2091 = vmatpush1.msra.mxu0 %v965
        %2092 = vmatprep.subr.mxu0 0.0
        %2093 = vmatpush1.msra.mxu0 %v966
        %2094 = vmatprep.subr.mxu0 0.0
        %2095 = vmatpush1.msra.mxu0 %v967
        %2096 = vmatprep.subr.mxu0 0.0
        %2097 = vmatpush1.msra.mxu0 %v968
        %2098 = vmatprep.subr.mxu0 0.0
        %2099 = vmatpush1.msra.mxu0 %v969
        %2100 = vmatprep.subr.mxu0 0.0
        %2101 = vmatpush1.msra.mxu0 %v970
        %2102 = vmatprep.subr.mxu0 0.0
        %2103 = vmatpush1.msra.mxu0 %v971
        %2104 = vmatprep.subr.mxu0 0.0
        %2105 = vmatpush1.msra.mxu0 %v972
        %2106 = vmatprep.subr.mxu0 0.0
        %2107 = vmatpush1.msra.mxu0 %v973
        %2108 = vmatprep.subr.mxu0 0.0
        %2109 = vmatpush1.msra.mxu0 %v974
        %2110 = vmatprep.subr.mxu0 0.0
        %2111 = vmatpush1.msra.mxu0 %v975
        %2112 = vmatprep.subr.mxu0 0.0
        %2113 = vmatpush1.msra.mxu0 %v976
        %2114 = vmatprep.subr.mxu0 0.0
        %2115 = vmatpush1.msra.mxu0 %v977
        %2116 = vmatprep.subr.mxu0 0.0
        %2117 = vmatpush1.msra.mxu0 %v978
        %2118 = vmatprep.subr.mxu0 0.0
        %2119 = vmatpush1.msra.mxu0 %v979
        %2120 = vmatprep.subr.mxu0 0.0
        %2121 = vmatpush1.msra.mxu0 %v980
        %2122 = vmatprep.subr.mxu0 0.0
        %2123 = vmatpush1.msra.mxu0 %v981
        %2124 = vmatprep.subr.mxu0 0.0
        %2125 = vmatpush1.msra.mxu0 %v982
        %2126 = vmatprep.subr.mxu0 0.0
        %2127 = vmatpush1.msra.mxu0 %v983
        %2128 = vmatprep.subr.mxu0 0.0
        %2129 = vmatpush1.msra.mxu0 %v984
        %2130 = vmatprep.subr.mxu0 0.0
        %2131 = vmatpush1.msra.mxu0 %v985
        %2132 = vmatprep.mubr.f32.mxu0 %v471
        %2133 = vmatmul.mubr.f32.gmra.mrb[0].mxu0 %v470
        %v2134 = vpop.f32.mrb[0].mxu0
        %v2135 = vadd.f32 %v2060, %v2134
        %v2136 = vpop.f32.mrb[0].mxu0
        %2137 = vmatprep.mubr.f32.mxu0 %v503
        %2138 = vmatmul.mubr.f32.gmra.mrb[0].mxu0 %v502
        %v2139 = vpop.f32.mrb[0].mxu0
        %v2140 = vadd.f32 %v2065, %v2139
        %v2141 = vpop.f32.mrb[0].mxu0
        %2142 = vdwg.mxu0
        %2143 = vmatprep.subr.mxu0 0.0
        %2144 = vmatpush1.msra.mxu0 %v986
        %2145 = vmatprep.subr.mxu0 0.0
        %2146 = vmatpush1.msra.mxu0 %v987
        %2147 = vmatprep.subr.mxu0 0.0
        %2148 = vmatpush1.msra.mxu0 %v988
        %2149 = vmatprep.subr.mxu0 0.0
        %2150 = vmatpush1.msra.mxu0 %v989
        %2151 = vmatprep.subr.mxu0 0.0
        %2152 = vmatpush1.msra.mxu0 %v990
        %2153 = vmatprep.subr.mxu0 0.0
        %2154 = vmatpush1.msra.mxu0 %v991
        %2155 = vmatprep.subr.mxu0 0.0
        %2156 = vmatpush1.msra.mxu0 %v992
        %2157 = vmatprep.subr.mxu0 0.0
        %2158 = vmatpush1.msra.mxu0 %v993
        %2159 = vmatprep.subr.mxu0 0.0
        %2160 = vmatpush1.msra.mxu0 %v994
        %2161 = vmatprep.subr.mxu0 0.0
        %2162 = vmatpush1.msra.mxu0 %v995
        %2163 = vmatprep.subr.mxu0 0.0
        %2164 = vmatpush1.msra.mxu0 %v996
        %2165 = vmatprep.subr.mxu0 0.0
        %2166 = vmatpush1.msra.mxu0 %v997
        %2167 = vmatprep.subr.mxu0 0.0
        %2168 = vmatpush1.msra.mxu0 %v998
        %2169 = vmatprep.subr.mxu0 0.0
        %2170 = vmatpush1.msra.mxu0 %v999
        %2171 = vmatprep.subr.mxu0 0.0
        %2172 = vmatpush1.msra.mxu0 %v1000
        %2173 = vmatprep.subr.mxu0 0.0
        %2174 = vmatpush1.msra.mxu0 %v1001
        %2175 = vmatprep.subr.mxu0 0.0
        %2176 = vmatpush1.msra.mxu0 %v1002
        %2177 = vmatprep.subr.mxu0 0.0
        %2178 = vmatpush1.msra.mxu0 %v1003
        %2179 = vmatprep.subr.mxu0 0.0
        %2180 = vmatpush1.msra.mxu0 %v1004
        %2181 = vmatprep.subr.mxu0 0.0
        %2182 = vmatpush1.msra.mxu0 %v1005
        %2183 = vmatprep.subr.mxu0 0.0
        %2184 = vmatpush1.msra.mxu0 %v1006
        %2185 = vmatprep.subr.mxu0 0.0
        %2186 = vmatpush1.msra.mxu0 %v1007
        %2187 = vmatprep.subr.mxu0 0.0
        %2188 = vmatpush1.msra.mxu0 %v1008
        %2189 = vmatprep.subr.mxu0 0.0
        %2190 = vmatpush1.msra.mxu0 %v1009
        %2191 = vmatprep.subr.mxu0 0.0
        %2192 = vmatpush1.msra.mxu0 %v1010
        %2193 = vmatprep.subr.mxu0 0.0
        %2194 = vmatpush1.msra.mxu0 %v1011
        %2195 = vmatprep.subr.mxu0 0.0
        %2196 = vmatpush1.msra.mxu0 %v1012
        %2197 = vmatprep.subr.mxu0 0.0
        %2198 = vmatpush1.msra.mxu0 %v1013
        %2199 = vmatprep.subr.mxu0 0.0
        %2200 = vmatpush1.msra.mxu0 %v1014
        %2201 = vmatprep.subr.mxu0 0.0
        %2202 = vmatpush1.msra.mxu0 %v1015
        %2203 = vmatprep.subr.mxu0 0.0
        %2204 = vmatpush1.msra.mxu0 %v1016
        %2205 = vmatprep.subr.mxu0 0.0
        %2206 = vmatpush1.msra.mxu0 %v1017
        %2207 = vmatprep.mubr.f32.mxu0 %v473
        %2208 = vmatmul.mubr.f32.gmra.mrb[0].mxu0 %v472
        %v2209 = vpop.f32.mrb[0].mxu0
        %v2210 = vadd.f32 %v2135, %v2209
        %v2211 = vpop.f32.mrb[0].mxu0
        %2212 = vmatprep.mubr.f32.mxu0 %v505
        %2213 = vmatmul.mubr.f32.gmra.mrb[0].mxu0 %v504
        %v2214 = vpop.f32.mrb[0].mxu0
        %v2215 = vadd.f32 %v2140, %v2214
        %v2216 = vpop.f32.mrb[0].mxu0
        %2217 = vdwg.mxu0
        %v2218 = vadd.f32 %v440, %v2210
        %v2219 = vadd.f32 %v441, %v2215
        %vm2220 = vcmask 818176
        %2221 = vst.msk [vmem:[#allocation2] sm:$0xff] %vm2220, %v2218
        %2222 = vst.msk [vmem:[#allocation2 + $0x8] sm:$0xff] %vm2220, %v2219
        %p2223 = scmp.eq.s32.totalorder %s18, 9
        // Predicated region
        $region76: #{rntn_forward.2} parent=66 // pred_check
          %p2224 = pneg %p2223
        $region77: #{rntn_forward.2} parent=66 // pred_check_branch
          %2226 = sbr.rel (%p2224) target = $region79
        $region78: #{rntn_forward.2} parent=66 // pred_region
          %v2227 = vld [vmem:[%s2] sm:$0xff]
          %v2228 = vld [vmem:[%s2 + $0x8] sm:$0xff]
          %v2229 = vld [vmem:[%s2 + $0x10] sm:$0xff]
          %v2230 = vld [vmem:[%s2 + $0x18] sm:$0xff]
          %v2231 = vld [vmem:[%s3] sm:$0xff]
          %v2232 = vld [vmem:[%s3 + $0x8] sm:$0xff]
          %v2233 = vld [vmem:[%s3 + $0x10] sm:$0xff]
          %v2234 = vld [vmem:[%s3 + $0x18] sm:$0xff]
          %v2235 = vld [vmem:[%s3 + $0x20] sm:$0xff]
          %v2236 = vld [vmem:[%s3 + $0x28] sm:$0xff]
          %v2237 = vld [vmem:[%s3 + $0x30] sm:$0xff]
          %v2238 = vld [vmem:[%s3 + $0x38] sm:$0xff]
          %v2239 = vld [vmem:[%s3 + $0x40] sm:$0xff]
          %v2240 = vld [vmem:[%s3 + $0x48] sm:$0xff]
          %v2241 = vld [vmem:[%s3 + $0x50] sm:$0xff]
          %v2242 = vld [vmem:[%s3 + $0x58] sm:$0xff]
          %v2243 = vld [vmem:[%s3 + $0x60] sm:$0xff]
          %v2244 = vld [vmem:[%s3 + $0x68] sm:$0xff]
          %v2245 = vld [vmem:[%s3 + $0x70] sm:$0xff]
          %v2246 = vld [vmem:[%s3 + $0x78] sm:$0xff]
          %v2247 = vld [vmem:[%s3 + $0x80] sm:$0xff]
          %v2248 = vld [vmem:[%s3 + $0x88] sm:$0xff]
          %v2249 = vld [vmem:[%s3 + $0x90] sm:$0xff]
          %v2250 = vld [vmem:[%s3 + $0x98] sm:$0xff]
          %v2251 = vld [vmem:[%s3 + $0xa0] sm:$0xff]
          %v2252 = vld [vmem:[%s3 + $0xa8] sm:$0xff]
          %v2253 = vld [vmem:[%s3 + $0xb0] sm:$0xff]
          %v2254 = vld [vmem:[%s3 + $0xb8] sm:$0xff]
          %v2255 = vld [vmem:[%s3 + $0xc0] sm:$0xff]
          %v2256 = vld [vmem:[%s4] sm:$0x1]
          %v2258 = vlaneseq
          %v2259 = vshrl.u32 %v2258, 7
          %v2260 = vsub.s32 0, %v2259
          %v2261 = vrot.slane %v2256, %v2260
          %vm2263 = vcmask 588800
          %v2265 = vsel %vm2263, %v2228, 0
          %v2268 = vsel %vm2263, %v2230, 0
          %2270 = vmatprep.subr.mxu0 0.0
          %2271 = vmatpush1.msra.mxu0 %v2231
          %2272 = vmatprep.subr.mxu0 0.0
          %2273 = vmatpush1.msra.mxu0 %v2232
          %2274 = vmatprep.subr.mxu0 0.0
          %2275 = vmatpush1.msra.mxu0 %v2233
          %2276 = vmatprep.subr.mxu0 0.0
          %2277 = vmatpush1.msra.mxu0 %v2234
          %2278 = vmatprep.subr.mxu0 0.0
          %2279 = vmatpush1.msra.mxu0 %v2235
          %2280 = vmatprep.subr.mxu0 0.0
          %2281 = vmatpush1.msra.mxu0 %v2236
          %2282 = vmatprep.subr.mxu0 0.0
          %2283 = vmatpush1.msra.mxu0 %v2237
          %2284 = vmatprep.subr.mxu0 0.0
          %2285 = vmatpush1.msra.mxu0 %v2238
          %2286 = vmatprep.subr.mxu0 0.0
          %2287 = vmatpush1.msra.mxu0 %v2239
          %2288 = vmatprep.subr.mxu0 0.0
          %2289 = vmatpush1.msra.mxu0 %v2240
          %2290 = vmatprep.subr.mxu0 0.0
          %2291 = vmatpush1.msra.mxu0 %v2241
          %2292 = vmatprep.subr.mxu0 0.0
          %2293 = vmatpush1.msra.mxu0 %v2242
          %2294 = vmatprep.subr.mxu0 0.0
          %2295 = vmatpush1.msra.mxu0 %v2243
          %2296 = vmatprep.subr.mxu0 0.0
          %2297 = vmatpush1.msra.mxu0 %v2244
          %2298 = vmatprep.subr.mxu0 0.0
          %2299 = vmatpush1.msra.mxu0 %v2245
          %2300 = vmatprep.subr.mxu0 0.0
          %2301 = vmatpush1.msra.mxu0 %v2246
          %2302 = vmatprep.subr.mxu0 0.0
          %2303 = vmatpush1.msra.mxu0 %v2247
          %2304 = vmatprep.subr.mxu0 0.0
          %2305 = vmatpush1.msra.mxu0 %v2248
          %2306 = vmatprep.subr.mxu0 0.0
          %2307 = vmatpush1.msra.mxu0 %v2249
          %2308 = vmatprep.subr.mxu0 0.0
          %2309 = vmatpush1.msra.mxu0 %v2250
          %2310 = vmatprep.subr.mxu0 0.0
          %2311 = vmatpush1.msra.mxu0 %v2251
          %2312 = vmatprep.subr.mxu0 0.0
          %2313 = vmatpush1.msra.mxu0 %v2252
          %2314 = vmatprep.subr.mxu0 0.0
          %2315 = vmatpush1.msra.mxu0 %v2253
          %2316 = vmatprep.subr.mxu0 0.0
          %2317 = vmatpush1.msra.mxu0 %v2254
          %2318 = vmatprep.subr.mxu0 0.0
          %2319 = vmatpush1.msra.mxu0 %v2255
          %2320 = vmatprep.subr.mxu0 0.0
          %2321 = vmatpush1.msra.mxu0 0.0
          %2322 = vmatprep.subr.mxu0 0.0
          %2323 = vmatpush1.msra.mxu0 0.0
          %2324 = vmatprep.subr.mxu0 0.0
          %2325 = vmatpush1.msra.mxu0 0.0
          %2326 = vmatprep.subr.mxu0 0.0
          %2327 = vmatpush1.msra.mxu0 0.0
          %2328 = vmatprep.subr.mxu0 0.0
          %2329 = vmatpush1.msra.mxu0 0.0
          %2330 = vmatprep.subr.mxu0 0.0
          %2331 = vmatpush1.msra.mxu0 0.0
          %2332 = vmatprep.subr.mxu0 0.0
          %2333 = vmatpush1.msra.mxu0 0.0
          %2334 = vmatprep.mubr.f32.mxu0 %v2265
          %2335 = vmatmul.mubr.f32.gmra.mrb[0].mxu0 %v2227
          %v2336 = vpop.f32.mrb[0].mxu0
          %v2337 = vadd.f32 %v2261, %v2336
          %v2338 = vpop.f32.mrb[0].mxu0
          %2339 = vmatprep.mubr.f32.mxu0 %v2268
          %2340 = vmatmul.mubr.f32.gmra.mrb[0].mxu0 %v2229
          %v2341 = vpop.f32.mrb[0].mxu0
          %v2342 = vadd.f32 %v2261, %v2341
          %v2343 = vpop.f32.mrb[0].mxu0
          %2344 = vdwg.mxu0
          %v2345 = vld [vmem:[#allocation2] sm:$0xff]
          %v2346 = vld [vmem:[#allocation2 + $0x8] sm:$0xff]
          %v2347 = vadd.f32 %v2345, %v2337
          %v2348 = vadd.f32 %v2346, %v2342
          %v2349 = vxor.u32 %v2347, 2147483648
          %v2350 = vxor.u32 %v2348, 2147483648
          %v2351 = vmul.f32 %v2349, 1.442695
          %v2352 = vpow.pop %v2351
          %v2353 = vmul.f32 %v2350, 1.442695
          %v2354 = vpow.pop %v2353
          %v2355 = vadd.f32 %v2352, 1.0
          %v2356 = vadd.f32 %v2354, 1.0
          %v2357 = vrcp.pop %v2355
          %v2358 = vmul.f32 1.0, %v2357
          %v2359 = vrcp.pop %v2356
          %v2360 = vmul.f32 1.0, %v2359
          %v2361 = vld [vmem:[%s5] sm:$0xff]
          %v2362 = vld [vmem:[%s5 + $0x8] sm:$0xff]
          %v2363 = vld [vmem:[%s5 + $0x10] sm:$0xff]
          %v2364 = vld [vmem:[%s5 + $0x18] sm:$0xff]
          %v2365 = vld [vmem:[%s5 + $0x20] sm:$0xff]
          %v2366 = vld [vmem:[%s5 + $0x28] sm:$0xff]
          %v2367 = vld [vmem:[%s5 + $0x30] sm:$0xff]
          %v2368 = vld [vmem:[%s5 + $0x38] sm:$0xff]
          %v2369 = vld [vmem:[%s5 + $0x40] sm:$0xff]
          %v2370 = vld [vmem:[%s5 + $0x48] sm:$0xff]
          %v2371 = vld [vmem:[%s5 + $0x50] sm:$0xff]
          %v2372 = vld [vmem:[%s5 + $0x58] sm:$0xff]
          %v2373 = vld [vmem:[%s5 + $0x60] sm:$0xff]
          %v2374 = vld [vmem:[%s5 + $0x68] sm:$0xff]
          %v2375 = vld [vmem:[%s5 + $0x70] sm:$0xff]
          %v2376 = vld [vmem:[%s5 + $0x78] sm:$0xff]
          %v2377 = vld [vmem:[%s5 + $0x80] sm:$0xff]
          %v2378 = vld [vmem:[%s5 + $0x88] sm:$0xff]
          %v2379 = vld [vmem:[%s5 + $0x90] sm:$0xff]
          %v2380 = vld [vmem:[%s5 + $0x98] sm:$0xff]
          %v2381 = vld [vmem:[%s5 + $0xa0] sm:$0xff]
          %v2382 = vld [vmem:[%s5 + $0xa8] sm:$0xff]
          %v2383 = vld [vmem:[%s5 + $0xb0] sm:$0xff]
          %v2384 = vld [vmem:[%s5 + $0xb8] sm:$0xff]
          %v2385 = vld [vmem:[%s5 + $0xc0] sm:$0xff]
          %v2386 = vld [vmem:[%s5 + $0xc8] sm:$0xff]
          %v2387 = vld [vmem:[%s5 + $0xd0] sm:$0xff]
          %v2388 = vld [vmem:[%s5 + $0xd8] sm:$0xff]
          %v2389 = vld [vmem:[%s5 + $0xe0] sm:$0xff]
          %v2390 = vld [vmem:[%s5 + $0xe8] sm:$0xff]
          %v2391 = vld [vmem:[%s5 + $0xf0] sm:$0xff]
          %v2392 = vld [vmem:[%s5 + $0xf8] sm:$0xff]
          %v2393 = vld [vmem:[%s5 + $0x100] sm:$0xff]
          %v2394 = vld [vmem:[%s5 + $0x108] sm:$0xff]
          %v2395 = vld [vmem:[%s5 + $0x110] sm:$0xff]
          %v2396 = vld [vmem:[%s5 + $0x118] sm:$0xff]
          %v2397 = vld [vmem:[%s5 + $0x120] sm:$0xff]
          %v2398 = vld [vmem:[%s5 + $0x128] sm:$0xff]
          %v2399 = vld [vmem:[%s5 + $0x130] sm:$0xff]
          %v2400 = vld [vmem:[%s5 + $0x138] sm:$0xff]
          %v2401 = vld [vmem:[%s5 + $0x140] sm:$0xff]
          %v2402 = vld [vmem:[%s5 + $0x148] sm:$0xff]
          %v2403 = vld [vmem:[%s5 + $0x150] sm:$0xff]
          %v2404 = vld [vmem:[%s5 + $0x158] sm:$0xff]
          %v2405 = vld [vmem:[%s5 + $0x160] sm:$0xff]
          %v2406 = vld [vmem:[%s5 + $0x168] sm:$0xff]
          %v2407 = vld [vmem:[%s5 + $0x170] sm:$0xff]
          %v2408 = vld [vmem:[%s5 + $0x178] sm:$0xff]
          %v2409 = vld [vmem:[%s5 + $0x180] sm:$0xff]
          %v2410 = vld [vmem:[%s5 + $0x188] sm:$0xff]
          %v2411 = vld [vmem:[%s5 + $0x190] sm:$0xff]
          %v2412 = vld [vmem:[%s5 + $0x198] sm:$0xff]
          %v2413 = vld [vmem:[%s5 + $0x1a0] sm:$0xff]
          %v2414 = vld [vmem:[%s5 + $0x1a8] sm:$0xff]
          %v2415 = vld [vmem:[%s5 + $0x1b0] sm:$0xff]
          %v2416 = vld [vmem:[%s5 + $0x1b8] sm:$0xff]
          %v2417 = vld [vmem:[%s5 + $0x1c0] sm:$0xff]
          %v2418 = vld [vmem:[%s5 + $0x1c8] sm:$0xff]
          %v2419 = vld [vmem:[%s5 + $0x1d0] sm:$0xff]
          %v2420 = vld [vmem:[%s5 + $0x1d8] sm:$0xff]
          %v2421 = vld [vmem:[%s5 + $0x1e0] sm:$0xf]
          %v2422 = vld [vmem:[%s5 + $0x1e8] sm:$0xf]
          %v2423 = vld [vmem:[%s5 + $0x1f0] sm:$0xf]
          %v2424 = vld [vmem:[%s5 + $0x1f8] sm:$0xf]
          %v2425 = vld [vmem:[%s5 + $0x200] sm:$0xf]
          %v2426 = vld [vmem:[%s6] sm:$0x1f]
          %v2428 = vlaneseq
          %v2429 = vshrl.u32 %v2428, 7
          %v2430 = vsub.s32 0, %v2429
          %v2431 = vrot.slane %v2426, %v2430
          %v2432 = vlaneseq
          %v2433 = vshrl.u32 %v2432, 7
          %v2434 = vsub.s32 1, %v2433
          %v2435 = vrot.slane %v2426, %v2434
          %v2436 = vlaneseq
          %v2437 = vshrl.u32 %v2436, 7
          %v2438 = vsub.s32 2, %v2437
          %v2439 = vrot.slane %v2426, %v2438
          %v2440 = vlaneseq
          %v2441 = vshrl.u32 %v2440, 7
          %v2442 = vsub.s32 3, %v2441
          %v2443 = vrot.slane %v2426, %v2442
          %v2444 = vlaneseq
          %v2445 = vshrl.u32 %v2444, 7
          %v2446 = vsub.s32 4, %v2445
          %v2447 = vrot.slane %v2426, %v2446
          %v2454 = vsel %vm2220, %v2358, 0
          %v2457 = vsel %vm2220, %v2360, 0
          %vm2459 = vcmask 1043456
          %v2461 = vsel %vm2459, %v2421, 0
          %v2464 = vsel %vm2459, %v2422, 0
          %v2467 = vsel %vm2459, %v2423, 0
          %v2470 = vsel %vm2459, %v2424, 0
          %v2473 = vsel %vm2459, %v2425, 0
          %2475 = vmatprep.subr.mxu0 %v2362
          %2476 = vmatpush1.msra.mxu0 %v2361
          %2477 = vmatprep.subr.mxu0 %v2367
          %2478 = vmatpush1.msra.mxu0 %v2366
          %2479 = vmatprep.subr.mxu0 %v2372
          %2480 = vmatpush1.msra.mxu0 %v2371
          %2481 = vmatprep.subr.mxu0 %v2377
          %2482 = vmatpush1.msra.mxu0 %v2376
          %2483 = vmatprep.subr.mxu0 %v2382
          %2484 = vmatpush1.msra.mxu0 %v2381
          %2485 = vmatprep.subr.mxu0 %v2387
          %2486 = vmatpush1.msra.mxu0 %v2386
          %2487 = vmatprep.subr.mxu0 %v2392
          %2488 = vmatpush1.msra.mxu0 %v2391
          %2489 = vmatprep.subr.mxu0 %v2397
          %2490 = vmatpush1.msra.mxu0 %v2396
          %2491 = vmatprep.subr.mxu0 %v2402
          %2492 = vmatpush1.msra.mxu0 %v2401
          %2493 = vmatprep.subr.mxu0 %v2407
          %2494 = vmatpush1.msra.mxu0 %v2406
          %2495 = vmatprep.subr.mxu0 %v2412
          %2496 = vmatpush1.msra.mxu0 %v2411
          %2497 = vmatprep.subr.mxu0 %v2417
          %2498 = vmatpush1.msra.mxu0 %v2416
          %2499 = vmatprep.subr.mxu0 %v2464
          %2500 = vmatpush1.msra.mxu0 %v2461
          %2501 = vmatprep.subr.mxu0 0.0
          %2502 = vmatpush1.msra.mxu0 0.0
          %2503 = vmatprep.subr.mxu0 0.0
          %2504 = vmatpush1.msra.mxu0 0.0
          %2505 = vmatprep.subr.mxu0 0.0
          %2506 = vmatpush1.msra.mxu0 0.0
          %2507 = vmatprep.subr.mxu0 0.0
          %2508 = vmatpush1.msra.mxu0 0.0
          %2509 = vmatprep.subr.mxu0 0.0
          %2510 = vmatpush1.msra.mxu0 0.0
          %2511 = vmatprep.subr.mxu0 0.0
          %2512 = vmatpush1.msra.mxu0 0.0
          %2513 = vmatprep.subr.mxu0 0.0
          %2514 = vmatpush1.msra.mxu0 0.0
          %2515 = vmatprep.subr.mxu0 0.0
          %2516 = vmatpush1.msra.mxu0 0.0
          %2517 = vmatprep.subr.mxu0 0.0
          %2518 = vmatpush1.msra.mxu0 0.0
          %2519 = vmatprep.subr.mxu0 0.0
          %2520 = vmatpush1.msra.mxu0 0.0
          %2521 = vmatprep.subr.mxu0 0.0
          %2522 = vmatpush1.msra.mxu0 0.0
          %2523 = vmatprep.subr.mxu0 0.0
          %2524 = vmatpush1.msra.mxu0 0.0
          %2525 = vmatprep.subr.mxu0 0.0
          %2526 = vmatpush1.msra.mxu0 0.0
          %2527 = vmatprep.subr.mxu0 0.0
          %2528 = vmatpush1.msra.mxu0 0.0
          %2529 = vmatprep.subr.mxu0 0.0
          %2530 = vmatpush1.msra.mxu0 0.0
          %2531 = vmatprep.subr.mxu0 0.0
          %2532 = vmatpush1.msra.mxu0 0.0
          %2533 = vmatprep.subr.mxu0 0.0
          %2534 = vmatpush1.msra.mxu0 0.0
          %2535 = vmatprep.subr.mxu0 0.0
          %2536 = vmatpush1.msra.mxu0 0.0
          %2537 = vmatprep.subr.mxu0 0.0
          %2538 = vmatpush1.msra.mxu0 0.0
          %2539 = vmatprep.mubr.f32.mxu0 0.0
          %2540 = vmatmul.mubr.f32.gmra.mrb[0].mxu0 %v2454
          %v2541 = vpop.f32.mrb[0].mxu0
          %v2542 = vadd.f32 %v2431, %v2541
          %v2543 = vpop.f32.mrb[0].mxu0
          %v2544 = vadd.f32 %v2435, %v2543
          %2545 = vmatprep.mubr.f32.mxu0 0.0
          %2546 = vmatmul.mubr.f32.gmra.mrb[0].mxu0 %v2457
          %v2547 = vpop.f32.mrb[0].mxu0
          %v2548 = vadd.f32 %v2431, %v2547
          %v2549 = vpop.f32.mrb[0].mxu0
          %v2550 = vadd.f32 %v2435, %v2549
          %2551 = vdwg.mxu0
          %2552 = vmatprep.subr.mxu0 %v2364
          %2553 = vmatpush1.msra.mxu0 %v2363
          %2554 = vmatprep.subr.mxu0 %v2369
          %2555 = vmatpush1.msra.mxu0 %v2368
          %2556 = vmatprep.subr.mxu0 %v2374
          %2557 = vmatpush1.msra.mxu0 %v2373
          %2558 = vmatprep.subr.mxu0 %v2379
          %2559 = vmatpush1.msra.mxu0 %v2378
          %2560 = vmatprep.subr.mxu0 %v2384
          %2561 = vmatpush1.msra.mxu0 %v2383
          %2562 = vmatprep.subr.mxu0 %v2389
          %2563 = vmatpush1.msra.mxu0 %v2388
          %2564 = vmatprep.subr.mxu0 %v2394
          %2565 = vmatpush1.msra.mxu0 %v2393
          %2566 = vmatprep.subr.mxu0 %v2399
          %2567 = vmatpush1.msra.mxu0 %v2398
          %2568 = vmatprep.subr.mxu0 %v2404
          %2569 = vmatpush1.msra.mxu0 %v2403
          %2570 = vmatprep.subr.mxu0 %v2409
          %2571 = vmatpush1.msra.mxu0 %v2408
          %2572 = vmatprep.subr.mxu0 %v2414
          %2573 = vmatpush1.msra.mxu0 %v2413
          %2574 = vmatprep.subr.mxu0 %v2419
          %2575 = vmatpush1.msra.mxu0 %v2418
          %2576 = vmatprep.subr.mxu0 %v2470
          %2577 = vmatpush1.msra.mxu0 %v2467
          %2578 = vmatprep.subr.mxu0 0.0
          %2579 = vmatpush1.msra.mxu0 0.0
          %2580 = vmatprep.subr.mxu0 0.0
          %2581 = vmatpush1.msra.mxu0 0.0
          %2582 = vmatprep.subr.mxu0 0.0
          %2583 = vmatpush1.msra.mxu0 0.0
          %2584 = vmatprep.subr.mxu0 0.0
          %2585 = vmatpush1.msra.mxu0 0.0
          %2586 = vmatprep.subr.mxu0 0.0
          %2587 = vmatpush1.msra.mxu0 0.0
          %2588 = vmatprep.subr.mxu0 0.0
          %2589 = vmatpush1.msra.mxu0 0.0
          %2590 = vmatprep.subr.mxu0 0.0
          %2591 = vmatpush1.msra.mxu0 0.0
          %2592 = vmatprep.subr.mxu0 0.0
          %2593 = vmatpush1.msra.mxu0 0.0
          %2594 = vmatprep.subr.mxu0 0.0
          %2595 = vmatpush1.msra.mxu0 0.0
          %2596 = vmatprep.subr.mxu0 0.0
          %2597 = vmatpush1.msra.mxu0 0.0
          %2598 = vmatprep.subr.mxu0 0.0
          %2599 = vmatpush1.msra.mxu0 0.0
          %2600 = vmatprep.subr.mxu0 0.0
          %2601 = vmatpush1.msra.mxu0 0.0
          %2602 = vmatprep.subr.mxu0 0.0
          %2603 = vmatpush1.msra.mxu0 0.0
          %2604 = vmatprep.subr.mxu0 0.0
          %2605 = vmatpush1.msra.mxu0 0.0
          %2606 = vmatprep.subr.mxu0 0.0
          %2607 = vmatpush1.msra.mxu0 0.0
          %2608 = vmatprep.subr.mxu0 0.0
          %2609 = vmatpush1.msra.mxu0 0.0
          %2610 = vmatprep.subr.mxu0 0.0
          %2611 = vmatpush1.msra.mxu0 0.0
          %2612 = vmatprep.subr.mxu0 0.0
          %2613 = vmatpush1.msra.mxu0 0.0
          %2614 = vmatprep.subr.mxu0 0.0
          %2615 = vmatpush1.msra.mxu0 0.0
          %2616 = vmatprep.mubr.f32.mxu0 0.0
          %2617 = vmatmul.mubr.f32.gmra.mrb[0].mxu0 %v2454
          %v2618 = vpop.f32.mrb[0].mxu0
          %v2619 = vadd.f32 %v2439, %v2618
          %v2620 = vpop.f32.mrb[0].mxu0
          %v2621 = vadd.f32 %v2443, %v2620
          %2622 = vmatprep.mubr.f32.mxu0 0.0
          %2623 = vmatmul.mubr.f32.gmra.mrb[0].mxu0 %v2457
          %v2624 = vpop.f32.mrb[0].mxu0
          %v2625 = vadd.f32 %v2439, %v2624
          %v2626 = vpop.f32.mrb[0].mxu0
          %v2627 = vadd.f32 %v2443, %v2626
          %2628 = vdwg.mxu0
          %2629 = vmatprep.subr.mxu0 0.0
          %2630 = vmatpush1.msra.mxu0 %v2365
          %2631 = vmatprep.subr.mxu0 0.0
          %2632 = vmatpush1.msra.mxu0 %v2370
          %2633 = vmatprep.subr.mxu0 0.0
          %2634 = vmatpush1.msra.mxu0 %v2375
          %2635 = vmatprep.subr.mxu0 0.0
          %2636 = vmatpush1.msra.mxu0 %v2380
          %2637 = vmatprep.subr.mxu0 0.0
          %2638 = vmatpush1.msra.mxu0 %v2385
          %2639 = vmatprep.subr.mxu0 0.0
          %2640 = vmatpush1.msra.mxu0 %v2390
          %2641 = vmatprep.subr.mxu0 0.0
          %2642 = vmatpush1.msra.mxu0 %v2395
          %2643 = vmatprep.subr.mxu0 0.0
          %2644 = vmatpush1.msra.mxu0 %v2400
          %2645 = vmatprep.subr.mxu0 0.0
          %2646 = vmatpush1.msra.mxu0 %v2405
          %2647 = vmatprep.subr.mxu0 0.0
          %2648 = vmatpush1.msra.mxu0 %v2410
          %2649 = vmatprep.subr.mxu0 0.0
          %2650 = vmatpush1.msra.mxu0 %v2415
          %2651 = vmatprep.subr.mxu0 0.0
          %2652 = vmatpush1.msra.mxu0 %v2420
          %2653 = vmatprep.subr.mxu0 0.0
          %2654 = vmatpush1.msra.mxu0 %v2473
          %2655 = vmatprep.subr.mxu0 0.0
          %2656 = vmatpush1.msra.mxu0 0.0
          %2657 = vmatprep.subr.mxu0 0.0
          %2658 = vmatpush1.msra.mxu0 0.0
          %2659 = vmatprep.subr.mxu0 0.0
          %2660 = vmatpush1.msra.mxu0 0.0
          %2661 = vmatprep.subr.mxu0 0.0
          %2662 = vmatpush1.msra.mxu0 0.0
          %2663 = vmatprep.subr.mxu0 0.0
          %2664 = vmatpush1.msra.mxu0 0.0
          %2665 = vmatprep.subr.mxu0 0.0
          %2666 = vmatpush1.msra.mxu0 0.0
          %2667 = vmatprep.subr.mxu0 0.0
          %2668 = vmatpush1.msra.mxu0 0.0
          %2669 = vmatprep.subr.mxu0 0.0
          %2670 = vmatpush1.msra.mxu0 0.0
          %2671 = vmatprep.subr.mxu0 0.0
          %2672 = vmatpush1.msra.mxu0 0.0
          %2673 = vmatprep.subr.mxu0 0.0
          %2674 = vmatpush1.msra.mxu0 0.0
          %2675 = vmatprep.subr.mxu0 0.0
          %2676 = vmatpush1.msra.mxu0 0.0
          %2677 = vmatprep.subr.mxu0 0.0
          %2678 = vmatpush1.msra.mxu0 0.0
          %2679 = vmatprep.subr.mxu0 0.0
          %2680 = vmatpush1.msra.mxu0 0.0
          %2681 = vmatprep.subr.mxu0 0.0
          %2682 = vmatpush1.msra.mxu0 0.0
          %2683 = vmatprep.subr.mxu0 0.0
          %2684 = vmatpush1.msra.mxu0 0.0
          %2685 = vmatprep.subr.mxu0 0.0
          %2686 = vmatpush1.msra.mxu0 0.0
          %2687 = vmatprep.subr.mxu0 0.0
          %2688 = vmatpush1.msra.mxu0 0.0
          %2689 = vmatprep.subr.mxu0 0.0
          %2690 = vmatpush1.msra.mxu0 0.0
          %2691 = vmatprep.subr.mxu0 0.0
          %2692 = vmatpush1.msra.mxu0 0.0
          %2693 = vmatprep.mubr.f32.mxu0 0.0
          %2694 = vmatmul.mubr.f32.gmra.mrb[0].mxu0 %v2454
          %v2695 = vpop.f32.mrb[0].mxu0
          %v2696 = vadd.f32 %v2447, %v2695
          %v2697 = vpop.f32.mrb[0].mxu0
          %2698 = vmatprep.mubr.f32.mxu0 0.0
          %2699 = vmatmul.mubr.f32.gmra.mrb[0].mxu0 %v2457
          %v2700 = vpop.f32.mrb[0].mxu0
          %v2701 = vadd.f32 %v2447, %v2700
          %v2702 = vpop.f32.mrb[0].mxu0
          %2703 = vdwg.mxu0
          %2704 = vst [vmem:[%s7] sm:$0xff] %v2542
          %2705 = vst [vmem:[%s7 + $0x8] sm:$0xff] %v2544
          %2706 = vst [vmem:[%s7 + $0x10] sm:$0xff] %v2619
          %2707 = vst [vmem:[%s7 + $0x18] sm:$0xff] %v2621
          %2708 = vst [vmem:[%s7 + $0x20] sm:$0xff] %v2696
          %2709 = vst [vmem:[%s7 + $0x28] sm:$0xff] %v2548
          %2710 = vst [vmem:[%s7 + $0x30] sm:$0xff] %v2550
          %2711 = vst [vmem:[%s7 + $0x38] sm:$0xff] %v2625
          %2712 = vst [vmem:[%s7 + $0x40] sm:$0xff] %v2627
          %2713 = vst [vmem:[%s7 + $0x48] sm:$0xff] %v2701
        $region79: #{rntn_forward.2} parent=66 // pred_fallthru
          _
        // Predicated region
        $region80: #{rntn_forward.2} parent=66 // pred_check
          %p2714 = pneg %p188
        $region81: #{rntn_forward.2} parent=66 // pred_check_branch
          %2716 = sbr.rel (%p2714) target = $region83
        $region82: #{rntn_forward.2} parent=66 // pred_region
          _
        $region83: #{rntn_forward.2} parent=66 // pred_fallthru
          _
        // Predicated region
        $region84: #{rntn_forward.2} parent=66 // pred_check
          %p2717 = pneg %p188
        $region85: #{rntn_forward.2} parent=66 // pred_check_branch
          %2719 = sbr.rel (%p2717) target = $region87
        $region86: #{rntn_forward.2} parent=66 // pred_region
          _
        $region87: #{rntn_forward.2} parent=66 // pred_fallthru
          _
      $region67: #{rntn_forward.2} parent=5 // pred_fallthru
        _
      %p2720 = scmp.le.s32.totalorder 2, %s13
      // Predicated region
      $region88: #{rntn_forward.2} parent=5 // pred_check
        %p2721 = pneg %p2720
      $region89: #{rntn_forward.2} parent=5 // pred_check_branch
        %2723 = sbr.rel (%p2721) target = $region91
      $region90: #{rntn_forward.2} parent=5 // pred_region
        %s2724 = ssub.s32 %s13, 2
      $region91: #{rntn_forward.2} parent=5 // pred_fallthru
        _
    $region6: #{rntn_forward.2} parent=1 // loop_footer
      %s17 = sadd.s32 1, %s13
    $region7: #{rntn_forward.2} parent=1 // loop_footer_branch
      %12 = sbr.rel target = $region3
    $region8: #{rntn_forward.2} parent=1 // loop_exit
      _

// kernel: rntn_forward.3
$region0: #{rntn_forward.3}
  #allocation0 [shape = 'u32[]', space=smem, size = 0x4, offset = 0x4, fixed_abs, tag = 'smem constant byte address 0x4 - core index']
  #allocation1 [shape = 'u32[144,128]{1,0:T(1,128)}', space=vmem, size = 0x12000, scoped, tag = 'internal scratch']
  %s0 = inlined_call_operand.vmem [shape: f32[16,640], index: 0, kind: input, shape index: {}]
  %s1 = inlined_call_operand.vmem [shape: f32[128,512], index: 1, kind: input, shape index: {}]
  %s2 = inlined_call_operand.vmem [shape: f32[16,128], index: 2, kind: output, shape index: {}]
  %s3 = sld [smem:[#allocation0]]
  $region18: #{rntn_forward.3} parent=0
    _
  %s5 = ssub.s32 1, %s3
  %s6 = scalar_select 0, %s5, %s3
  // Predicated region
  $region2: #{rntn_forward.3} parent=0 // pred_check
    _
  $region3: #{rntn_forward.3} parent=0 // pred_check_branch
    %8 = sbr.rel (0) target = $region5
  $region4: #{rntn_forward.3} parent=0 // pred_region
    _
  $region5: #{rntn_forward.3} parent=0 // pred_fallthru
    _
  // Predicated region
  $region6: #{rntn_forward.3} parent=0 // pred_check
    _
  $region7: #{rntn_forward.3} parent=0 // pred_check_branch
    %10 = sbr.rel (0) target = $region9
  $region8: #{rntn_forward.3} parent=0 // pred_region
    _
  $region9: #{rntn_forward.3} parent=0 // pred_fallthru
    _
  %v11 = vld [vmem:[%s0] ss:$8 sm:$0xf]
  %v12 = vld [vmem:[%s1] sm:$0xff]
  %v13 = vld [vmem:[%s1 + $0x8] sm:$0xff]
  %v14 = vld [vmem:[%s1 + $0x10] sm:$0xff]
  %v15 = vld [vmem:[%s1 + $0x18] sm:$0xff]
  %v16 = vld [vmem:[%s1 + $0x20] sm:$0xff]
  %v17 = vld [vmem:[%s1 + $0x28] sm:$0xff]
  %v18 = vld [vmem:[%s1 + $0x30] sm:$0xff]
  %v19 = vld [vmem:[%s1 + $0x38] sm:$0xff]
  %v20 = vld [vmem:[%s1 + $0x40] sm:$0xff]
  %v21 = vld [vmem:[%s1 + $0x48] sm:$0xff]
  %v22 = vld [vmem:[%s1 + $0x50] sm:$0xff]
  %v23 = vld [vmem:[%s1 + $0x58] sm:$0xff]
  %v24 = vld [vmem:[%s1 + $0x60] sm:$0xff]
  %v25 = vld [vmem:[%s1 + $0x68] sm:$0xff]
  %v26 = vld [vmem:[%s1 + $0x70] sm:$0xff]
  %v27 = vld [vmem:[%s1 + $0x78] sm:$0xff]
  %v28 = vld [vmem:[%s1 + $0x80] sm:$0xff]
  %v29 = vld [vmem:[%s1 + $0x88] sm:$0xff]
  %v30 = vld [vmem:[%s1 + $0x90] sm:$0xff]
  %v31 = vld [vmem:[%s1 + $0x98] sm:$0xff]
  %v32 = vld [vmem:[%s1 + $0xa0] sm:$0xff]
  %v33 = vld [vmem:[%s1 + $0xa8] sm:$0xff]
  %v34 = vld [vmem:[%s1 + $0xb0] sm:$0xff]
  %v35 = vld [vmem:[%s1 + $0xb8] sm:$0xff]
  %v36 = vld [vmem:[%s1 + $0xc0] sm:$0xff]
  %v37 = vld [vmem:[%s1 + $0xc8] sm:$0xff]
  %v38 = vld [vmem:[%s1 + $0xd0] sm:$0xff]
  %v39 = vld [vmem:[%s1 + $0xd8] sm:$0xff]
  %v40 = vld [vmem:[%s1 + $0xe0] sm:$0xff]
  %v41 = vld [vmem:[%s1 + $0xe8] sm:$0xff]
  %v42 = vld [vmem:[%s1 + $0xf0] sm:$0xff]
  %v43 = vld [vmem:[%s1 + $0xf8] sm:$0xff]
  %v44 = vld [vmem:[%s1 + $0x100] sm:$0xff]
  %v45 = vld [vmem:[%s1 + $0x108] sm:$0xff]
  %v46 = vld [vmem:[%s1 + $0x110] sm:$0xff]
  %v47 = vld [vmem:[%s1 + $0x118] sm:$0xff]
  %v48 = vld [vmem:[%s1 + $0x120] sm:$0xff]
  %v49 = vld [vmem:[%s1 + $0x128] sm:$0xff]
  %v50 = vld [vmem:[%s1 + $0x130] sm:$0xff]
  %v51 = vld [vmem:[%s1 + $0x138] sm:$0xff]
  %v52 = vld [vmem:[%s1 + $0x140] sm:$0xff]
  %v53 = vld [vmem:[%s1 + $0x148] sm:$0xff]
  %v54 = vld [vmem:[%s1 + $0x150] sm:$0xff]
  %v55 = vld [vmem:[%s1 + $0x158] sm:$0xff]
  %v56 = vld [vmem:[%s1 + $0x160] sm:$0xff]
  %v57 = vld [vmem:[%s1 + $0x168] sm:$0xff]
  %v58 = vld [vmem:[%s1 + $0x170] sm:$0xff]
  %v59 = vld [vmem:[%s1 + $0x178] sm:$0xff]
  %v60 = vld [vmem:[%s1 + $0x180] sm:$0xff]
  %v61 = vld [vmem:[%s1 + $0x188] sm:$0xff]
  %v62 = vld [vmem:[%s1 + $0x190] sm:$0xff]
  %v63 = vld [vmem:[%s1 + $0x198] sm:$0xff]
  %v64 = vld [vmem:[%s1 + $0x1a0] sm:$0xff]
  %v65 = vld [vmem:[%s1 + $0x1a8] sm:$0xff]
  %v66 = vld [vmem:[%s1 + $0x1b0] sm:$0xff]
  %v67 = vld [vmem:[%s1 + $0x1b8] sm:$0xff]
  %v68 = vld [vmem:[%s1 + $0x1c0] sm:$0xff]
  %v69 = vld [vmem:[%s1 + $0x1c8] sm:$0xff]
  %v70 = vld [vmem:[%s1 + $0x1d0] sm:$0xff]
  %v71 = vld [vmem:[%s1 + $0x1d8] sm:$0xff]
  %v72 = vld [vmem:[%s1 + $0x1e0] sm:$0xff]
  %v73 = vld [vmem:[%s1 + $0x1e8] sm:$0xff]
  %v74 = vld [vmem:[%s1 + $0x1f0] sm:$0xff]
  %v75 = vld [vmem:[%s1 + $0x1f8] sm:$0xff]
  %76 = vmatprep.subr.mxu0 %v13
  %77 = vmatpush1.msra.mxu0 %v12
  %78 = vmatprep.subr.mxu0 %v17
  %79 = vmatpush1.msra.mxu0 %v16
  %80 = vmatprep.subr.mxu0 %v21
  %81 = vmatpush1.msra.mxu0 %v20
  %82 = vmatprep.subr.mxu0 %v25
  %83 = vmatpush1.msra.mxu0 %v24
  %84 = vmatprep.subr.mxu0 %v29
  %85 = vmatpush1.msra.mxu0 %v28
  %86 = vmatprep.subr.mxu0 %v33
  %87 = vmatpush1.msra.mxu0 %v32
  %88 = vmatprep.subr.mxu0 %v37
  %89 = vmatpush1.msra.mxu0 %v36
  %90 = vmatprep.subr.mxu0 %v41
  %91 = vmatpush1.msra.mxu0 %v40
  %92 = vmatprep.subr.mxu0 %v45
  %93 = vmatpush1.msra.mxu0 %v44
  %94 = vmatprep.subr.mxu0 %v49
  %95 = vmatpush1.msra.mxu0 %v48
  %96 = vmatprep.subr.mxu0 %v53
  %97 = vmatpush1.msra.mxu0 %v52
  %98 = vmatprep.subr.mxu0 %v57
  %99 = vmatpush1.msra.mxu0 %v56
  %100 = vmatprep.subr.mxu0 %v61
  %101 = vmatpush1.msra.mxu0 %v60
  %102 = vmatprep.subr.mxu0 %v65
  %103 = vmatpush1.msra.mxu0 %v64
  %104 = vmatprep.subr.mxu0 %v69
  %105 = vmatpush1.msra.mxu0 %v68
  %106 = vmatprep.subr.mxu0 %v73
  %107 = vmatpush1.msra.mxu0 %v72
  %108 = vmatprep.subr.mxu0 0.0
  %109 = vmatpush1.msra.mxu0 0.0
  %110 = vmatprep.subr.mxu0 0.0
  %111 = vmatpush1.msra.mxu0 0.0
  %112 = vmatprep.subr.mxu0 0.0
  %113 = vmatpush1.msra.mxu0 0.0
  %114 = vmatprep.subr.mxu0 0.0
  %115 = vmatpush1.msra.mxu0 0.0
  %116 = vmatprep.subr.mxu0 0.0
  %117 = vmatpush1.msra.mxu0 0.0
  %118 = vmatprep.subr.mxu0 0.0
  %119 = vmatpush1.msra.mxu0 0.0
  %120 = vmatprep.subr.mxu0 0.0
  %121 = vmatpush1.msra.mxu0 0.0
  %122 = vmatprep.subr.mxu0 0.0
  %123 = vmatpush1.msra.mxu0 0.0
  %124 = vmatprep.subr.mxu0 0.0
  %125 = vmatpush1.msra.mxu0 0.0
  %126 = vmatprep.subr.mxu0 0.0
  %127 = vmatpush1.msra.mxu0 0.0
  %128 = vmatprep.subr.mxu0 0.0
  %129 = vmatpush1.msra.mxu0 0.0
  %130 = vmatprep.subr.mxu0 0.0
  %131 = vmatpush1.msra.mxu0 0.0
  %132 = vmatprep.subr.mxu0 0.0
  %133 = vmatpush1.msra.mxu0 0.0
  %134 = vmatprep.subr.mxu0 0.0
  %135 = vmatpush1.msra.mxu0 0.0
  %136 = vmatprep.subr.mxu0 0.0
  %137 = vmatpush1.msra.mxu0 0.0
  %138 = vmatprep.subr.mxu0 0.0
  %139 = vmatpush1.msra.mxu0 0.0
  %140 = vmatprep.mubr.f32.mxu0 0.0
  %141 = vmatmul.mubr.f32.gmra.mrb[0].mxu0 0.0
  %v142 = vpop.f32.mrb[0].mxu0
  %v143 = vadd.f32 0.0, %v142
  %v144 = vpop.f32.mrb[0].mxu0
  %v145 = vadd.f32 0.0, %v144
  %146 = vdwg.mxu0
  %147 = vmatprep.subr.mxu0 %v15
  %148 = vmatpush1.msra.mxu0 %v14
  %149 = vmatprep.subr.mxu0 %v19
  %150 = vmatpush1.msra.mxu0 %v18
  %151 = vmatprep.subr.mxu0 %v23
  %152 = vmatpush1.msra.mxu0 %v22
  %153 = vmatprep.subr.mxu0 %v27
  %154 = vmatpush1.msra.mxu0 %v26
  %155 = vmatprep.subr.mxu0 %v31
  %156 = vmatpush1.msra.mxu0 %v30
  %157 = vmatprep.subr.mxu0 %v35
  %158 = vmatpush1.msra.mxu0 %v34
  %159 = vmatprep.subr.mxu0 %v39
  %160 = vmatpush1.msra.mxu0 %v38
  %161 = vmatprep.subr.mxu0 %v43
  %162 = vmatpush1.msra.mxu0 %v42
  %163 = vmatprep.subr.mxu0 %v47
  %164 = vmatpush1.msra.mxu0 %v46
  %165 = vmatprep.subr.mxu0 %v51
  %166 = vmatpush1.msra.mxu0 %v50
  %167 = vmatprep.subr.mxu0 %v55
  %168 = vmatpush1.msra.mxu0 %v54
  %169 = vmatprep.subr.mxu0 %v59
  %170 = vmatpush1.msra.mxu0 %v58
  %171 = vmatprep.subr.mxu0 %v63
  %172 = vmatpush1.msra.mxu0 %v62
  %173 = vmatprep.subr.mxu0 %v67
  %174 = vmatpush1.msra.mxu0 %v66
  %175 = vmatprep.subr.mxu0 %v71
  %176 = vmatpush1.msra.mxu0 %v70
  %177 = vmatprep.subr.mxu0 %v75
  %178 = vmatpush1.msra.mxu0 %v74
  %179 = vmatprep.subr.mxu0 0.0
  %180 = vmatpush1.msra.mxu0 0.0
  %181 = vmatprep.subr.mxu0 0.0
  %182 = vmatpush1.msra.mxu0 0.0
  %183 = vmatprep.subr.mxu0 0.0
  %184 = vmatpush1.msra.mxu0 0.0
  %185 = vmatprep.subr.mxu0 0.0
  %186 = vmatpush1.msra.mxu0 0.0
  %187 = vmatprep.subr.mxu0 0.0
  %188 = vmatpush1.msra.mxu0 0.0
  %189 = vmatprep.subr.mxu0 0.0
  %190 = vmatpush1.msra.mxu0 0.0
  %191 = vmatprep.subr.mxu0 0.0
  %192 = vmatpush1.msra.mxu0 0.0
  %193 = vmatprep.subr.mxu0 0.0
  %194 = vmatpush1.msra.mxu0 0.0
  %195 = vmatprep.subr.mxu0 0.0
  %196 = vmatpush1.msra.mxu0 0.0
  %197 = vmatprep.subr.mxu0 0.0
  %198 = vmatpush1.msra.mxu0 0.0
  %199 = vmatprep.subr.mxu0 0.0
  %200 = vmatpush1.msra.mxu0 0.0
  %201 = vmatprep.subr.mxu0 0.0
  %202 = vmatpush1.msra.mxu0 0.0
  %203 = vmatprep.subr.mxu0 0.0
  %204 = vmatpush1.msra.mxu0 0.0
  %205 = vmatprep.subr.mxu0 0.0
  %206 = vmatpush1.msra.mxu0 0.0
  %207 = vmatprep.subr.mxu0 0.0
  %208 = vmatpush1.msra.mxu0 0.0
  %209 = vmatprep.subr.mxu0 0.0
  %210 = vmatpush1.msra.mxu0 0.0
  %211 = vmatprep.mubr.f32.mxu0 0.0
  %212 = vmatmul.mubr.f32.gmra.mrb[0].mxu0 0.0
  %v213 = vpop.f32.mrb[0].mxu0
  %v214 = vadd.f32 0.0, %v213
  %v215 = vpop.f32.mrb[0].mxu0
  %v216 = vadd.f32 0.0, %v215
  %217 = vdwg.mxu0
  %v222 = vcombine.low %v143, %v145
  %v223 = vcombine.low %v214, %v216
  %v225 = vunpack.c.l.s4 1966171168
  %v226 = vunpack.c.0.s8 %v225
  %v227 = vlaneseq
  %v228 = vshrl.u32 %v227, 7
  %v229 = vsub.s32 %v226, %v228
  %v230 = vrot.slane %v222, %v229
  %v232 = vunpack.c.l.s4 1966171168
  %v233 = vunpack.c.0.s8 %v232
  %v234 = vlaneseq
  %v235 = vshrl.u32 %v234, 7
  %v236 = vsub.s32 %v233, %v235
  %v237 = vrot.slane %v223, %v236
  %v238 = vcombine.low %v230, %v237
  %v240 = vunpack.c.l.s4 1966171168
  %v241 = vunpack.c.0.s8 %v240
  %v242 = vlaneseq
  %v243 = vshrl.u32 %v242, 7
  %v244 = vsub.s32 %v241, %v243
  %v245 = vrot.slane %v238, %v244
  %v247 = vadd.f32 %v11, %v245
  %v248 = vxor.u32 %v247, 2147483648
  %v249 = vmul.f32 %v248, 1.442695
  %v250 = vpow.pop %v249
  %v251 = vadd.f32 %v250, 1.0
  %v252 = vrcp.pop %v251
  %v253 = vmul.f32 1.0, %v252
  %v255 = vrot.slane %v247, 1
  %v257 = vxor.u32 %v255, 2147483648
  %v258 = vmul.f32 %v257, 1.442695
  %v259 = vpow.pop %v258
  %v260 = vadd.f32 %v259, 1.0
  %v261 = vrcp.pop %v260
  %v262 = vmul.f32 1.0, %v261
  %v263 = vrot.slane %v247, 2
  %v265 = vtanh.pop %v263
  %v266 = vrot.slane %v247, 3
  %v268 = vxor.u32 %v266, 2147483648
  %v269 = vmul.f32 %v268, 1.442695
  %v270 = vpow.pop %v269
  %v271 = vadd.f32 %v270, 1.0
  %v272 = vrcp.pop %v271
  %v273 = vmul.f32 1.0, %v272
  %v274 = vmul.f32 %v262, 0.0
  %v275 = vmul.f32 %v253, %v265
  %v276 = vadd.f32 %v274, %v275
  %v277 = vtanh.pop %v276
  %v278 = vmul.f32 %v273, %v277
  %279 = vst [vmem:[%s2] sm:$0x1] %v278
  %s280 = scalar_lea.vmem %s0, 1
  %v281 = vld [vmem:[%s280] ss:$8 sm:$0xf]
  %v282 = vld [vmem:[%s1] sm:$0xff]
  %v283 = vld [vmem:[%s1 + $0x8] sm:$0xff]
  %v284 = vld [vmem:[%s1 + $0x10] sm:$0xff]
  %v285 = vld [vmem:[%s1 + $0x18] sm:$0xff]
  %v286 = vld [vmem:[%s1 + $0x20] sm:$0xff]
  %v287 = vld [vmem:[%s1 + $0x28] sm:$0xff]
  %v288 = vld [vmem:[%s1 + $0x30] sm:$0xff]
  %v289 = vld [vmem:[%s1 + $0x38] sm:$0xff]
  %v290 = vld [vmem:[%s1 + $0x40] sm:$0xff]
  %v291 = vld [vmem:[%s1 + $0x48] sm:$0xff]
  %v292 = vld [vmem:[%s1 + $0x50] sm:$0xff]
  %v293 = vld [vmem:[%s1 + $0x58] sm:$0xff]
  %v294 = vld [vmem:[%s1 + $0x60] sm:$0xff]
  %v295 = vld [vmem:[%s1 + $0x68] sm:$0xff]
  %v296 = vld [vmem:[%s1 + $0x70] sm:$0xff]
  %v297 = vld [vmem:[%s1 + $0x78] sm:$0xff]
  %v298 = vld [vmem:[%s1 + $0x80] sm:$0xff]
  %v299 = vld [vmem:[%s1 + $0x88] sm:$0xff]
  %v300 = vld [vmem:[%s1 + $0x90] sm:$0xff]
  %v301 = vld [vmem:[%s1 + $0x98] sm:$0xff]
  %v302 = vld [vmem:[%s1 + $0xa0] sm:$0xff]
  %v303 = vld [vmem:[%s1 + $0xa8] sm:$0xff]
  %v304 = vld [vmem:[%s1 + $0xb0] sm:$0xff]
  %v305 = vld [vmem:[%s1 + $0xb8] sm:$0xff]
  %v306 = vld [vmem:[%s1 + $0xc0] sm:$0xff]
  %v307 = vld [vmem:[%s1 + $0xc8] sm:$0xff]
  %v308 = vld [vmem:[%s1 + $0xd0] sm:$0xff]
  %v309 = vld [vmem:[%s1 + $0xd8] sm:$0xff]
  %v310 = vld [vmem:[%s1 + $0xe0] sm:$0xff]
  %v311 = vld [vmem:[%s1 + $0xe8] sm:$0xff]
  %v312 = vld [vmem:[%s1 + $0xf0] sm:$0xff]
  %v313 = vld [vmem:[%s1 + $0xf8] sm:$0xff]
  %v314 = vld [vmem:[%s1 + $0x100] sm:$0xff]
  %v315 = vld [vmem:[%s1 + $0x108] sm:$0xff]
  %v316 = vld [vmem:[%s1 + $0x110] sm:$0xff]
  %v317 = vld [vmem:[%s1 + $0x118] sm:$0xff]
  %v318 = vld [vmem:[%s1 + $0x120] sm:$0xff]
  %v319 = vld [vmem:[%s1 + $0x128] sm:$0xff]
  %v320 = vld [vmem:[%s1 + $0x130] sm:$0xff]
  %v321 = vld [vmem:[%s1 + $0x138] sm:$0xff]
  %v322 = vld [vmem:[%s1 + $0x140] sm:$0xff]
  %v323 = vld [vmem:[%s1 + $0x148] sm:$0xff]
  %v324 = vld [vmem:[%s1 + $0x150] sm:$0xff]
  %v325 = vld [vmem:[%s1 + $0x158] sm:$0xff]
  %v326 = vld [vmem:[%s1 + $0x160] sm:$0xff]
  %v327 = vld [vmem:[%s1 + $0x168] sm:$0xff]
  %v328 = vld [vmem:[%s1 + $0x170] sm:$0xff]
  %v329 = vld [vmem:[%s1 + $0x178] sm:$0xff]
  %v330 = vld [vmem:[%s1 + $0x180] sm:$0xff]
  %v331 = vld [vmem:[%s1 + $0x188] sm:$0xff]
  %v332 = vld [vmem:[%s1 + $0x190] sm:$0xff]
  %v333 = vld [vmem:[%s1 + $0x198] sm:$0xff]
  %v334 = vld [vmem:[%s1 + $0x1a0] sm:$0xff]
  %v335 = vld [vmem:[%s1 + $0x1a8] sm:$0xff]
  %v336 = vld [vmem:[%s1 + $0x1b0] sm:$0xff]
  %v337 = vld [vmem:[%s1 + $0x1b8] sm:$0xff]
  %v338 = vld [vmem:[%s1 + $0x1c0] sm:$0xff]
  %v339 = vld [vmem:[%s1 + $0x1c8] sm:$0xff]
  %v340 = vld [vmem:[%s1 + $0x1d0] sm:$0xff]
  %v341 = vld [vmem:[%s1 + $0x1d8] sm:$0xff]
  %v342 = vld [vmem:[%s1 + $0x1e0] sm:$0xff]
  %v343 = vld [vmem:[%s1 + $0x1e8] sm:$0xff]
  %v344 = vld [vmem:[%s1 + $0x1f0] sm:$0xff]
  %v345 = vld [vmem:[%s1 + $0x1f8] sm:$0xff]
  %346 = vmatprep.subr.mxu0 %v283
  %347 = vmatpush1.msra.mxu0 %v282
  %348 = vmatprep.subr.mxu0 %v287
  %349 = vmatpush1.msra.mxu0 %v286
  %350 = vmatprep.subr.mxu0 %v291
  %351 = vmatpush1.msra.mxu0 %v290
  %352 = vmatprep.subr.mxu0 %v295
  %353 = vmatpush1.msra.mxu0 %v294
  %354 = vmatprep.subr.mxu0 %v299
  %355 = vmatpush1.msra.mxu0 %v298
  %356 = vmatprep.subr.mxu0 %v303
  %357 = vmatpush1.msra.mxu0 %v302
  %358 = vmatprep.subr.mxu0 %v307
  %359 = vmatpush1.msra.mxu0 %v306
  %360 = vmatprep.subr.mxu0 %v311
  %361 = vmatpush1.msra.mxu0 %v310
  %362 = vmatprep.subr.mxu0 %v315
  %363 = vmatpush1.msra.mxu0 %v314
  %364 = vmatprep.subr.mxu0 %v319
  %365 = vmatpush1.msra.mxu0 %v318
  %366 = vmatprep.subr.mxu0 %v323
  %367 = vmatpush1.msra.mxu0 %v322
  %368 = vmatprep.subr.mxu0 %v327
  %369 = vmatpush1.msra.mxu0 %v326
  %370 = vmatprep.subr.mxu0 %v331
  %371 = vmatpush1.msra.mxu0 %v330
  %372 = vmatprep.subr.mxu0 %v335
  %373 = vmatpush1.msra.mxu0 %v334
  %374 = vmatprep.subr.mxu0 %v339
  %375 = vmatpush1.msra.mxu0 %v338
  %376 = vmatprep.subr.mxu0 %v343
  %377 = vmatpush1.msra.mxu0 %v342
  %378 = vmatprep.subr.mxu0 0.0
  %379 = vmatpush1.msra.mxu0 0.0
  %380 = vmatprep.subr.mxu0 0.0
  %381 = vmatpush1.msra.mxu0 0.0
  %382 = vmatprep.subr.mxu0 0.0
  %383 = vmatpush1.msra.mxu0 0.0
  %384 = vmatprep.subr.mxu0 0.0
  %385 = vmatpush1.msra.mxu0 0.0
  %386 = vmatprep.subr.mxu0 0.0
  %387 = vmatpush1.msra.mxu0 0.0
  %388 = vmatprep.subr.mxu0 0.0
  %389 = vmatpush1.msra.mxu0 0.0
  %390 = vmatprep.subr.mxu0 0.0
  %391 = vmatpush1.msra.mxu0 0.0
  %392 = vmatprep.subr.mxu0 0.0
  %393 = vmatpush1.msra.mxu0 0.0
  %394 = vmatprep.subr.mxu0 0.0
  %395 = vmatpush1.msra.mxu0 0.0
  %396 = vmatprep.subr.mxu0 0.0
  %397 = vmatpush1.msra.mxu0 0.0
  %398 = vmatprep.subr.mxu0 0.0
  %399 = vmatpush1.msra.mxu0 0.0
  %400 = vmatprep.subr.mxu0 0.0
  %401 = vmatpush1.msra.mxu0 0.0
  %402 = vmatprep.subr.mxu0 0.0
  %403 = vmatpush1.msra.mxu0 0.0
  %404 = vmatprep.subr.mxu0 0.0
  %405 = vmatpush1.msra.mxu0 0.0
  %406 = vmatprep.subr.mxu0 0.0
  %407 = vmatpush1.msra.mxu0 0.0
  %408 = vmatprep.subr.mxu0 0.0
  %409 = vmatpush1.msra.mxu0 0.0
  %410 = vmatprep.mubr.f32.mxu0 0.0
  %411 = vmatmul.mubr.f32.gmra.mrb[0].mxu0 %v278
  %v412 = vpop.f32.mrb[0].mxu0
  %v413 = vadd.f32 0.0, %v412
  %v414 = vpop.f32.mrb[0].mxu0
  %v415 = vadd.f32 0.0, %v414
  %416 = vdwg.mxu0
  %417 = vmatprep.subr.mxu0 %v285
  %418 = vmatpush1.msra.mxu0 %v284
  %419 = vmatprep.subr.mxu0 %v289
  %420 = vmatpush1.msra.mxu0 %v288
  %421 = vmatprep.subr.mxu0 %v293
  %422 = vmatpush1.msra.mxu0 %v292
  %423 = vmatprep.subr.mxu0 %v297
  %424 = vmatpush1.msra.mxu0 %v296
  %425 = vmatprep.subr.mxu0 %v301
  %426 = vmatpush1.msra.mxu0 %v300
  %427 = vmatprep.subr.mxu0 %v305
  %428 = vmatpush1.msra.mxu0 %v304
  %429 = vmatprep.subr.mxu0 %v309
  %430 = vmatpush1.msra.mxu0 %v308
  %431 = vmatprep.subr.mxu0 %v313
  %432 = vmatpush1.msra.mxu0 %v312
  %433 = vmatprep.subr.mxu0 %v317
  %434 = vmatpush1.msra.mxu0 %v316
  %435 = vmatprep.subr.mxu0 %v321
  %436 = vmatpush1.msra.mxu0 %v320
  %437 = vmatprep.subr.mxu0 %v325
  %438 = vmatpush1.msra.mxu0 %v324
  %439 = vmatprep.subr.mxu0 %v329
  %440 = vmatpush1.msra.mxu0 %v328
  %441 = vmatprep.subr.mxu0 %v333
  %442 = vmatpush1.msra.mxu0 %v332
  %443 = vmatprep.subr.mxu0 %v337
  %444 = vmatpush1.msra.mxu0 %v336
  %445 = vmatprep.subr.mxu0 %v341
  %446 = vmatpush1.msra.mxu0 %v340
  %447 = vmatprep.subr.mxu0 %v345
  %448 = vmatpush1.msra.mxu0 %v344
  %449 = vmatprep.subr.mxu0 0.0
  %450 = vmatpush1.msra.mxu0 0.0
  %451 = vmatprep.subr.mxu0 0.0
  %452 = vmatpush1.msra.mxu0 0.0
  %453 = vmatprep.subr.mxu0 0.0
  %454 = vmatpush1.msra.mxu0 0.0
  %455 = vmatprep.subr.mxu0 0.0
  %456 = vmatpush1.msra.mxu0 0.0
  %457 = vmatprep.subr.mxu0 0.0
  %458 = vmatpush1.msra.mxu0 0.0
  %459 = vmatprep.subr.mxu0 0.0
  %460 = vmatpush1.msra.mxu0 0.0
  %461 = vmatprep.subr.mxu0 0.0
  %462 = vmatpush1.msra.mxu0 0.0
  %463 = vmatprep.subr.mxu0 0.0
  %464 = vmatpush1.msra.mxu0 0.0
  %465 = vmatprep.subr.mxu0 0.0
  %466 = vmatpush1.msra.mxu0 0.0
  %467 = vmatprep.subr.mxu0 0.0
  %468 = vmatpush1.msra.mxu0 0.0
  %469 = vmatprep.subr.mxu0 0.0
  %470 = vmatpush1.msra.mxu0 0.0
  %471 = vmatprep.subr.mxu0 0.0
  %472 = vmatpush1.msra.mxu0 0.0
  %473 = vmatprep.subr.mxu0 0.0
  %474 = vmatpush1.msra.mxu0 0.0
  %475 = vmatprep.subr.mxu0 0.0
  %476 = vmatpush1.msra.mxu0 0.0
  %477 = vmatprep.subr.mxu0 0.0
  %478 = vmatpush1.msra.mxu0 0.0
  %479 = vmatprep.subr.mxu0 0.0
  %480 = vmatpush1.msra.mxu0 0.0
  %481 = vmatprep.mubr.f32.mxu0 0.0
  %482 = vmatmul.mubr.f32.gmra.mrb[0].mxu0 %v278
  %v483 = vpop.f32.mrb[0].mxu0
  %v484 = vadd.f32 0.0, %v483
  %v485 = vpop.f32.mrb[0].mxu0
  %v486 = vadd.f32 0.0, %v485
  %487 = vdwg.mxu0
  %v492 = vcombine.low %v413, %v415
  %v493 = vcombine.low %v484, %v486
  %v495 = vunpack.c.l.s4 1966171168
  %v496 = vunpack.c.0.s8 %v495
  %v497 = vlaneseq
  %v498 = vshrl.u32 %v497, 7
  %v499 = vsub.s32 %v496, %v498
  %v500 = vrot.slane %v492, %v499
  %v502 = vunpack.c.l.s4 1966171168
  %v503 = vunpack.c.0.s8 %v502
  %v504 = vlaneseq
  %v505 = vshrl.u32 %v504, 7
  %v506 = vsub.s32 %v503, %v505
  %v507 = vrot.slane %v493, %v506
  %v508 = vcombine.low %v500, %v507
  %v510 = vunpack.c.l.s4 1966171168
  %v511 = vunpack.c.0.s8 %v510
  %v512 = vlaneseq
  %v513 = vshrl.u32 %v512, 7
  %v514 = vsub.s32 %v511, %v513
  %v515 = vrot.slane %v508, %v514
  %v517 = vadd.f32 %v281, %v515
  %v518 = vxor.u32 %v517, 2147483648
  %v519 = vmul.f32 %v518, 1.442695
  %v520 = vpow.pop %v519
  %v521 = vadd.f32 %v520, 1.0
  %v522 = vrcp.pop %v521
  %v523 = vmul.f32 1.0, %v522
  %v525 = vrot.slane %v517, 1
  %v527 = vxor.u32 %v525, 2147483648
  %v528 = vmul.f32 %v527, 1.442695
  %v529 = vpow.pop %v528
  %v530 = vadd.f32 %v529, 1.0
  %v531 = vrcp.pop %v530
  %v532 = vmul.f32 1.0, %v531
  %v533 = vrot.slane %v517, 2
  %v535 = vtanh.pop %v533
  %v536 = vrot.slane %v517, 3
  %v538 = vxor.u32 %v536, 2147483648
  %v539 = vmul.f32 %v538, 1.442695
  %v540 = vpow.pop %v539
  %v541 = vadd.f32 %v540, 1.0
  %v542 = vrcp.pop %v541
  %v543 = vmul.f32 1.0, %v542
  %v544 = vmul.f32 %v532, %v276
  %v545 = vmul.f32 %v523, %v535
  %v546 = vadd.f32 %v544, %v545
  %v547 = vtanh.pop %v546
  %v548 = vmul.f32 %v543, %v547
  %549 = vst [vmem:[%s2 + $0x1] sm:$0x1] %v548
  %s550 = scalar_lea.vmem %s0, 2
  %v551 = vld [vmem:[%s550] ss:$8 sm:$0xf]
  %v552 = vld [vmem:[%s1] sm:$0xff]
  %v553 = vld [vmem:[%s1 + $0x8] sm:$0xff]
  %v554 = vld [vmem:[%s1 + $0x10] sm:$0xff]
  %v555 = vld [vmem:[%s1 + $0x18] sm:$0xff]
  %v556 = vld [vmem:[%s1 + $0x20] sm:$0xff]
  %v557 = vld [vmem:[%s1 + $0x28] sm:$0xff]
  %v558 = vld [vmem:[%s1 + $0x30] sm:$0xff]
  %v559 = vld [vmem:[%s1 + $0x38] sm:$0xff]
  %v560 = vld [vmem:[%s1 + $0x40] sm:$0xff]
  %v561 = vld [vmem:[%s1 + $0x48] sm:$0xff]
  %v562 = vld [vmem:[%s1 + $0x50] sm:$0xff]
  %v563 = vld [vmem:[%s1 + $0x58] sm:$0xff]
  %v564 = vld [vmem:[%s1 + $0x60] sm:$0xff]
  %v565 = vld [vmem:[%s1 + $0x68] sm:$0xff]
  %v566 = vld [vmem:[%s1 + $0x70] sm:$0xff]
  %v567 = vld [vmem:[%s1 + $0x78] sm:$0xff]
  %v568 = vld [vmem:[%s1 + $0x80] sm:$0xff]
  %v569 = vld [vmem:[%s1 + $0x88] sm:$0xff]
  %v570 = vld [vmem:[%s1 + $0x90] sm:$0xff]
  %v571 = vld [vmem:[%s1 + $0x98] sm:$0xff]
  %v572 = vld [vmem:[%s1 + $0xa0] sm:$0xff]
  %v573 = vld [vmem:[%s1 + $0xa8] sm:$0xff]
  %v574 = vld [vmem:[%s1 + $0xb0] sm:$0xff]
  %v575 = vld [vmem:[%s1 + $0xb8] sm:$0xff]
  %v576 = vld [vmem:[%s1 + $0xc0] sm:$0xff]
  %v577 = vld [vmem:[%s1 + $0xc8] sm:$0xff]
  %v578 = vld [vmem:[%s1 + $0xd0] sm:$0xff]
  %v579 = vld [vmem:[%s1 + $0xd8] sm:$0xff]
  %v580 = vld [vmem:[%s1 + $0xe0] sm:$0xff]
  %v581 = vld [vmem:[%s1 + $0xe8] sm:$0xff]
  %v582 = vld [vmem:[%s1 + $0xf0] sm:$0xff]
  %v583 = vld [vmem:[%s1 + $0xf8] sm:$0xff]
  %v584 = vld [vmem:[%s1 + $0x100] sm:$0xff]
  %v585 = vld [vmem:[%s1 + $0x108] sm:$0xff]
  %v586 = vld [vmem:[%s1 + $0x110] sm:$0xff]
  %v587 = vld [vmem:[%s1 + $0x118] sm:$0xff]
  %v588 = vld [vmem:[%s1 + $0x120] sm:$0xff]
  %v589 = vld [vmem:[%s1 + $0x128] sm:$0xff]
  %v590 = vld [vmem:[%s1 + $0x130] sm:$0xff]
  %v591 = vld [vmem:[%s1 + $0x138] sm:$0xff]
  %v592 = vld [vmem:[%s1 + $0x140] sm:$0xff]
  %v593 = vld [vmem:[%s1 + $0x148] sm:$0xff]
  %v594 = vld [vmem:[%s1 + $0x150] sm:$0xff]
  %v595 = vld [vmem:[%s1 + $0x158] sm:$0xff]
  %v596 = vld [vmem:[%s1 + $0x160] sm:$0xff]
  %v597 = vld [vmem:[%s1 + $0x168] sm:$0xff]
  %v598 = vld [vmem:[%s1 + $0x170] sm:$0xff]
  %v599 = vld [vmem:[%s1 + $0x178] sm:$0xff]
  %v600 = vld [vmem:[%s1 + $0x180] sm:$0xff]
  %v601 = vld [vmem:[%s1 + $0x188] sm:$0xff]
  %v602 = vld [vmem:[%s1 + $0x190] sm:$0xff]
  %v603 = vld [vmem:[%s1 + $0x198] sm:$0xff]
  %v604 = vld [vmem:[%s1 + $0x1a0] sm:$0xff]
  %v605 = vld [vmem:[%s1 + $0x1a8] sm:$0xff]
  %v606 = vld [vmem:[%s1 + $0x1b0] sm:$0xff]
  %v607 = vld [vmem:[%s1 + $0x1b8] sm:$0xff]
  %v608 = vld [vmem:[%s1 + $0x1c0] sm:$0xff]
  %v609 = vld [vmem:[%s1 + $0x1c8] sm:$0xff]
  %v610 = vld [vmem:[%s1 + $0x1d0] sm:$0xff]
  %v611 = vld [vmem:[%s1 + $0x1d8] sm:$0xff]
  %v612 = vld [vmem:[%s1 + $0x1e0] sm:$0xff]
  %v613 = vld [vmem:[%s1 + $0x1e8] sm:$0xff]
  %v614 = vld [vmem:[%s1 + $0x1f0] sm:$0xff]
  %v615 = vld [vmem:[%s1 + $0x1f8] sm:$0xff]
  %616 = vmatprep.subr.mxu0 %v553
  %617 = vmatpush1.msra.mxu0 %v552
  %618 = vmatprep.subr.mxu0 %v557
  %619 = vmatpush1.msra.mxu0 %v556
  %620 = vmatprep.subr.mxu0 %v561
  %621 = vmatpush1.msra.mxu0 %v560
  %622 = vmatprep.subr.mxu0 %v565
  %623 = vmatpush1.msra.mxu0 %v564
  %624 = vmatprep.subr.mxu0 %v569
  %625 = vmatpush1.msra.mxu0 %v568
  %626 = vmatprep.subr.mxu0 %v573
  %627 = vmatpush1.msra.mxu0 %v572
  %628 = vmatprep.subr.mxu0 %v577
  %629 = vmatpush1.msra.mxu0 %v576
  %630 = vmatprep.subr.mxu0 %v581
  %631 = vmatpush1.msra.mxu0 %v580
  %632 = vmatprep.subr.mxu0 %v585
  %633 = vmatpush1.msra.mxu0 %v584
  %634 = vmatprep.subr.mxu0 %v589
  %635 = vmatpush1.msra.mxu0 %v588
  %636 = vmatprep.subr.mxu0 %v593
  %637 = vmatpush1.msra.mxu0 %v592
  %638 = vmatprep.subr.mxu0 %v597
  %639 = vmatpush1.msra.mxu0 %v596
  %640 = vmatprep.subr.mxu0 %v601
  %641 = vmatpush1.msra.mxu0 %v600
  %642 = vmatprep.subr.mxu0 %v605
  %643 = vmatpush1.msra.mxu0 %v604
  %644 = vmatprep.subr.mxu0 %v609
  %645 = vmatpush1.msra.mxu0 %v608
  %646 = vmatprep.subr.mxu0 %v613
  %647 = vmatpush1.msra.mxu0 %v612
  %648 = vmatprep.subr.mxu0 0.0
  %649 = vmatpush1.msra.mxu0 0.0
  %650 = vmatprep.subr.mxu0 0.0
  %651 = vmatpush1.msra.mxu0 0.0
  %652 = vmatprep.subr.mxu0 0.0
  %653 = vmatpush1.msra.mxu0 0.0
  %654 = vmatprep.subr.mxu0 0.0
  %655 = vmatpush1.msra.mxu0 0.0
  %656 = vmatprep.subr.mxu0 0.0
  %657 = vmatpush1.msra.mxu0 0.0
  %658 = vmatprep.subr.mxu0 0.0
  %659 = vmatpush1.msra.mxu0 0.0
  %660 = vmatprep.subr.mxu0 0.0
  %661 = vmatpush1.msra.mxu0 0.0
  %662 = vmatprep.subr.mxu0 0.0
  %663 = vmatpush1.msra.mxu0 0.0
  %664 = vmatprep.subr.mxu0 0.0
  %665 = vmatpush1.msra.mxu0 0.0
  %666 = vmatprep.subr.mxu0 0.0
  %667 = vmatpush1.msra.mxu0 0.0
  %668 = vmatprep.subr.mxu0 0.0
  %669 = vmatpush1.msra.mxu0 0.0
  %670 = vmatprep.subr.mxu0 0.0
  %671 = vmatpush1.msra.mxu0 0.0
  %672 = vmatprep.subr.mxu0 0.0
  %673 = vmatpush1.msra.mxu0 0.0
  %674 = vmatprep.subr.mxu0 0.0
  %675 = vmatpush1.msra.mxu0 0.0
  %676 = vmatprep.subr.mxu0 0.0
  %677 = vmatpush1.msra.mxu0 0.0
  %678 = vmatprep.subr.mxu0 0.0
  %679 = vmatpush1.msra.mxu0 0.0
  %680 = vmatprep.mubr.f32.mxu0 0.0
  %681 = vmatmul.mubr.f32.gmra.mrb[0].mxu0 %v548
  %v682 = vpop.f32.mrb[0].mxu0
  %v683 = vadd.f32 0.0, %v682
  %v684 = vpop.f32.mrb[0].mxu0
  %v685 = vadd.f32 0.0, %v684
  %686 = vdwg.mxu0
  %687 = vmatprep.subr.mxu0 %v555
  %688 = vmatpush1.msra.mxu0 %v554
  %689 = vmatprep.subr.mxu0 %v559
  %690 = vmatpush1.msra.mxu0 %v558
  %691 = vmatprep.subr.mxu0 %v563
  %692 = vmatpush1.msra.mxu0 %v562
  %693 = vmatprep.subr.mxu0 %v567
  %694 = vmatpush1.msra.mxu0 %v566
  %695 = vmatprep.subr.mxu0 %v571
  %696 = vmatpush1.msra.mxu0 %v570
  %697 = vmatprep.subr.mxu0 %v575
  %698 = vmatpush1.msra.mxu0 %v574
  %699 = vmatprep.subr.mxu0 %v579
  %700 = vmatpush1.msra.mxu0 %v578
  %701 = vmatprep.subr.mxu0 %v583
  %702 = vmatpush1.msra.mxu0 %v582
  %703 = vmatprep.subr.mxu0 %v587
  %704 = vmatpush1.msra.mxu0 %v586
  %705 = vmatprep.subr.mxu0 %v591
  %706 = vmatpush1.msra.mxu0 %v590
  %707 = vmatprep.subr.mxu0 %v595
  %708 = vmatpush1.msra.mxu0 %v594
  %709 = vmatprep.subr.mxu0 %v599
  %710 = vmatpush1.msra.mxu0 %v598
  %711 = vmatprep.subr.mxu0 %v603
  %712 = vmatpush1.msra.mxu0 %v602
  %713 = vmatprep.subr.mxu0 %v607
  %714 = vmatpush1.msra.mxu0 %v606
  %715 = vmatprep.subr.mxu0 %v611
  %716 = vmatpush1.msra.mxu0 %v610
  %717 = vmatprep.subr.mxu0 %v615
  %718 = vmatpush1.msra.mxu0 %v614
  %719 = vmatprep.subr.mxu0 0.0
  %720 = vmatpush1.msra.mxu0 0.0
  %721 = vmatprep.subr.mxu0 0.0
  %722 = vmatpush1.msra.mxu0 0.0
  %723 = vmatprep.subr.mxu0 0.0
  %724 = vmatpush1.msra.mxu0 0.0
  %725 = vmatprep.subr.mxu0 0.0
  %726 = vmatpush1.msra.mxu0 0.0
  %727 = vmatprep.subr.mxu0 0.0
  %728 = vmatpush1.msra.mxu0 0.0
  %729 = vmatprep.subr.mxu0 0.0
  %730 = vmatpush1.msra.mxu0 0.0
  %731 = vmatprep.subr.mxu0 0.0
  %732 = vmatpush1.msra.mxu0 0.0
  %733 = vmatprep.subr.mxu0 0.0
  %734 = vmatpush1.msra.mxu0 0.0
  %735 = vmatprep.subr.mxu0 0.0
  %736 = vmatpush1.msra.mxu0 0.0
  %737 = vmatprep.subr.mxu0 0.0
  %738 = vmatpush1.msra.mxu0 0.0
  %739 = vmatprep.subr.mxu0 0.0
  %740 = vmatpush1.msra.mxu0 0.0
  %741 = vmatprep.subr.mxu0 0.0
  %742 = vmatpush1.msra.mxu0 0.0
  %743 = vmatprep.subr.mxu0 0.0
  %744 = vmatpush1.msra.mxu0 0.0
  %745 = vmatprep.subr.mxu0 0.0
  %746 = vmatpush1.msra.mxu0 0.0
  %747 = vmatprep.subr.mxu0 0.0
  %748 = vmatpush1.msra.mxu0 0.0
  %749 = vmatprep.subr.mxu0 0.0
  %750 = vmatpush1.msra.mxu0 0.0
  %751 = vmatprep.mubr.f32.mxu0 0.0
  %752 = vmatmul.mubr.f32.gmra.mrb[0].mxu0 %v548
  %v753 = vpop.f32.mrb[0].mxu0
  %v754 = vadd.f32 0.0, %v753
  %v755 = vpop.f32.mrb[0].mxu0
  %v756 = vadd.f32 0.0, %v755
  %757 = vdwg.mxu0
  %v762 = vcombine.low %v683, %v685
  %v763 = vcombine.low %v754, %v756
  %v765 = vunpack.c.l.s4 1966171168
  %v766 = vunpack.c.0.s8 %v765
  %v767 = vlaneseq
  %v768 = vshrl.u32 %v767, 7
  %v769 = vsub.s32 %v766, %v768
  %v770 = vrot.slane %v762, %v769
  %v772 = vunpack.c.l.s4 1966171168
  %v773 = vunpack.c.0.s8 %v772
  %v774 = vlaneseq
  %v775 = vshrl.u32 %v774, 7
  %v776 = vsub.s32 %v773, %v775
  %v777 = vrot.slane %v763, %v776
  %v778 = vcombine.low %v770, %v777
  %v780 = vunpack.c.l.s4 1966171168
  %v781 = vunpack.c.0.s8 %v780
  %v782 = vlaneseq
  %v783 = vshrl.u32 %v782, 7
  %v784 = vsub.s32 %v781, %v783
  %v785 = vrot.slane %v778, %v784
  %v787 = vadd.f32 %v551, %v785
  %v788 = vxor.u32 %v787, 2147483648
  %v789 = vmul.f32 %v788, 1.442695
  %v790 = vpow.pop %v789
  %v791 = vadd.f32 %v790, 1.0
  %v792 = vrcp.pop %v791
  %v793 = vmul.f32 1.0, %v792
  %v795 = vrot.slane %v787, 1
  %v797 = vxor.u32 %v795, 2147483648
  %v798 = vmul.f32 %v797, 1.442695
  %v799 = vpow.pop %v798
  %v800 = vadd.f32 %v799, 1.0
  %v801 = vrcp.pop %v800
  %v802 = vmul.f32 1.0, %v801
  %v803 = vrot.slane %v787, 2
  %v805 = vtanh.pop %v803
  %v806 = vrot.slane %v787, 3
  %v808 = vxor.u32 %v806, 2147483648
  %v809 = vmul.f32 %v808, 1.442695
  %v810 = vpow.pop %v809
  %v811 = vadd.f32 %v810, 1.0
  %v812 = vrcp.pop %v811
  %v813 = vmul.f32 1.0, %v812
  %v814 = vmul.f32 %v802, %v546
  %v815 = vmul.f32 %v793, %v805
  %v816 = vadd.f32 %v814, %v815
  %v817 = vtanh.pop %v816
  %v818 = vmul.f32 %v813, %v817
  %819 = vst [vmem:[%s2 + $0x2] sm:$0x1] %v818
  %s820 = scalar_lea.vmem %s0, 3
  %v821 = vld [vmem:[%s820] ss:$8 sm:$0xf]
  %v822 = vld [vmem:[%s1] sm:$0xff]
  %v823 = vld [vmem:[%s1 + $0x8] sm:$0xff]
  %v824 = vld [vmem:[%s1 + $0x10] sm:$0xff]
  %v825 = vld [vmem:[%s1 + $0x18] sm:$0xff]
  %v826 = vld [vmem:[%s1 + $0x20] sm:$0xff]
  %v827 = vld [vmem:[%s1 + $0x28] sm:$0xff]
  %v828 = vld [vmem:[%s1 + $0x30] sm:$0xff]
  %v829 = vld [vmem:[%s1 + $0x38] sm:$0xff]
  %v830 = vld [vmem:[%s1 + $0x40] sm:$0xff]
  %v831 = vld [vmem:[%s1 + $0x48] sm:$0xff]
  %v832 = vld [vmem:[%s1 + $0x50] sm:$0xff]
  %v833 = vld [vmem:[%s1 + $0x58] sm:$0xff]
  %v834 = vld [vmem:[%s1 + $0x60] sm:$0xff]
  %v835 = vld [vmem:[%s1 + $0x68] sm:$0xff]
  %v836 = vld [vmem:[%s1 + $0x70] sm:$0xff]
  %v837 = vld [vmem:[%s1 + $0x78] sm:$0xff]
  %v838 = vld [vmem:[%s1 + $0x80] sm:$0xff]
  %v839 = vld [vmem:[%s1 + $0x88] sm:$0xff]
  %v840 = vld [vmem:[%s1 + $0x90] sm:$0xff]
  %v841 = vld [vmem:[%s1 + $0x98] sm:$0xff]
  %v842 = vld [vmem:[%s1 + $0xa0] sm:$0xff]
  %v843 = vld [vmem:[%s1 + $0xa8] sm:$0xff]
  %v844 = vld [vmem:[%s1 + $0xb0] sm:$0xff]
  %v845 = vld [vmem:[%s1 + $0xb8] sm:$0xff]
  %v846 = vld [vmem:[%s1 + $0xc0] sm:$0xff]
  %v847 = vld [vmem:[%s1 + $0xc8] sm:$0xff]
  %v848 = vld [vmem:[%s1 + $0xd0] sm:$0xff]
  %v849 = vld [vmem:[%s1 + $0xd8] sm:$0xff]
  %v850 = vld [vmem:[%s1 + $0xe0] sm:$0xff]
  %v851 = vld [vmem:[%s1 + $0xe8] sm:$0xff]
  %v852 = vld [vmem:[%s1 + $0xf0] sm:$0xff]
  %v853 = vld [vmem:[%s1 + $0xf8] sm:$0xff]
  %v854 = vld [vmem:[%s1 + $0x100] sm:$0xff]
  %v855 = vld [vmem:[%s1 + $0x108] sm:$0xff]
  %v856 = vld [vmem:[%s1 + $0x110] sm:$0xff]
  %v857 = vld [vmem:[%s1 + $0x118] sm:$0xff]
  %v858 = vld [vmem:[%s1 + $0x120] sm:$0xff]
  %v859 = vld [vmem:[%s1 + $0x128] sm:$0xff]
  %v860 = vld [vmem:[%s1 + $0x130] sm:$0xff]
  %v861 = vld [vmem:[%s1 + $0x138] sm:$0xff]
  %v862 = vld [vmem:[%s1 + $0x140] sm:$0xff]
  %v863 = vld [vmem:[%s1 + $0x148] sm:$0xff]
  %v864 = vld [vmem:[%s1 + $0x150] sm:$0xff]
  %v865 = vld [vmem:[%s1 + $0x158] sm:$0xff]
  %v866 = vld [vmem:[%s1 + $0x160] sm:$0xff]
  %v867 = vld [vmem:[%s1 + $0x168] sm:$0xff]
  %v868 = vld [vmem:[%s1 + $0x170] sm:$0xff]
  %v869 = vld [vmem:[%s1 + $0x178] sm:$0xff]
  %v870 = vld [vmem:[%s1 + $0x180] sm:$0xff]
  %v871 = vld [vmem:[%s1 + $0x188] sm:$0xff]
  %v872 = vld [vmem:[%s1 + $0x190] sm:$0xff]
  %v873 = vld [vmem:[%s1 + $0x198] sm:$0xff]
  %v874 = vld [vmem:[%s1 + $0x1a0] sm:$0xff]
  %v875 = vld [vmem:[%s1 + $0x1a8] sm:$0xff]
  %v876 = vld [vmem:[%s1 + $0x1b0] sm:$0xff]
  %v877 = vld [vmem:[%s1 + $0x1b8] sm:$0xff]
  %v878 = vld [vmem:[%s1 + $0x1c0] sm:$0xff]
  %v879 = vld [vmem:[%s1 + $0x1c8] sm:$0xff]
  %v880 = vld [vmem:[%s1 + $0x1d0] sm:$0xff]
  %v881 = vld [vmem:[%s1 + $0x1d8] sm:$0xff]
  %v882 = vld [vmem:[%s1 + $0x1e0] sm:$0xff]
  %v883 = vld [vmem:[%s1 + $0x1e8] sm:$0xff]
  %v884 = vld [vmem:[%s1 + $0x1f0] sm:$0xff]
  %v885 = vld [vmem:[%s1 + $0x1f8] sm:$0xff]
  %886 = vmatprep.subr.mxu0 %v823
  %887 = vmatpush1.msra.mxu0 %v822
  %888 = vmatprep.subr.mxu0 %v827
  %889 = vmatpush1.msra.mxu0 %v826
  %890 = vmatprep.subr.mxu0 %v831
  %891 = vmatpush1.msra.mxu0 %v830
  %892 = vmatprep.subr.mxu0 %v835
  %893 = vmatpush1.msra.mxu0 %v834
  %894 = vmatprep.subr.mxu0 %v839
  %895 = vmatpush1.msra.mxu0 %v838
  %896 = vmatprep.subr.mxu0 %v843
  %897 = vmatpush1.msra.mxu0 %v842
  %898 = vmatprep.subr.mxu0 %v847
  %899 = vmatpush1.msra.mxu0 %v846
  %900 = vmatprep.subr.mxu0 %v851
  %901 = vmatpush1.msra.mxu0 %v850
  %902 = vmatprep.subr.mxu0 %v855
  %903 = vmatpush1.msra.mxu0 %v854
  %904 = vmatprep.subr.mxu0 %v859
  %905 = vmatpush1.msra.mxu0 %v858
  %906 = vmatprep.subr.mxu0 %v863
  %907 = vmatpush1.msra.mxu0 %v862
  %908 = vmatprep.subr.mxu0 %v867
  %909 = vmatpush1.msra.mxu0 %v866
  %910 = vmatprep.subr.mxu0 %v871
  %911 = vmatpush1.msra.mxu0 %v870
  %912 = vmatprep.subr.mxu0 %v875
  %913 = vmatpush1.msra.mxu0 %v874
  %914 = vmatprep.subr.mxu0 %v879
  %915 = vmatpush1.msra.mxu0 %v878
  %916 = vmatprep.subr.mxu0 %v883
  %917 = vmatpush1.msra.mxu0 %v882
  %918 = vmatprep.subr.mxu0 0.0
  %919 = vmatpush1.msra.mxu0 0.0
  %920 = vmatprep.subr.mxu0 0.0
  %921 = vmatpush1.msra.mxu0 0.0
  %922 = vmatprep.subr.mxu0 0.0
  %923 = vmatpush1.msra.mxu0 0.0
  %924 = vmatprep.subr.mxu0 0.0
  %925 = vmatpush1.msra.mxu0 0.0
  %926 = vmatprep.subr.mxu0 0.0
  %927 = vmatpush1.msra.mxu0 0.0
  %928 = vmatprep.subr.mxu0 0.0
  %929 = vmatpush1.msra.mxu0 0.0
  %930 = vmatprep.subr.mxu0 0.0
  %931 = vmatpush1.msra.mxu0 0.0
  %932 = vmatprep.subr.mxu0 0.0
  %933 = vmatpush1.msra.mxu0 0.0
  %934 = vmatprep.subr.mxu0 0.0
  %935 = vmatpush1.msra.mxu0 0.0
  %936 = vmatprep.subr.mxu0 0.0
  %937 = vmatpush1.msra.mxu0 0.0
  %938 = vmatprep.subr.mxu0 0.0
  %939 = vmatpush1.msra.mxu0 0.0
  %940 = vmatprep.subr.mxu0 0.0
  %941 = vmatpush1.msra.mxu0 0.0
  %942 = vmatprep.subr.mxu0 0.0
  %943 = vmatpush1.msra.mxu0 0.0
  %944 = vmatprep.subr.mxu0 0.0
  %945 = vmatpush1.msra.mxu0 0.0
  %946 = vmatprep.subr.mxu0 0.0
  %947 = vmatpush1.msra.mxu0 0.0
  %948 = vmatprep.subr.mxu0 0.0
  %949 = vmatpush1.msra.mxu0 0.0
  %950 = vmatprep.mubr.f32.mxu0 0.0
  %951 = vmatmul.mubr.f32.gmra.mrb[0].mxu0 %v818
  %v952 = vpop.f32.mrb[0].mxu0
  %v953 = vadd.f32 0.0, %v952
  %v954 = vpop.f32.mrb[0].mxu0
  %v955 = vadd.f32 0.0, %v954
  %956 = vdwg.mxu0
  %957 = vmatprep.subr.mxu0 %v825
  %958 = vmatpush1.msra.mxu0 %v824
  %959 = vmatprep.subr.mxu0 %v829
  %960 = vmatpush1.msra.mxu0 %v828
  %961 = vmatprep.subr.mxu0 %v833
  %962 = vmatpush1.msra.mxu0 %v832
  %963 = vmatprep.subr.mxu0 %v837
  %964 = vmatpush1.msra.mxu0 %v836
  %965 = vmatprep.subr.mxu0 %v841
  %966 = vmatpush1.msra.mxu0 %v840
  %967 = vmatprep.subr.mxu0 %v845
  %968 = vmatpush1.msra.mxu0 %v844
  %969 = vmatprep.subr.mxu0 %v849
  %970 = vmatpush1.msra.mxu0 %v848
  %971 = vmatprep.subr.mxu0 %v853
  %972 = vmatpush1.msra.mxu0 %v852
  %973 = vmatprep.subr.mxu0 %v857
  %974 = vmatpush1.msra.mxu0 %v856
  %975 = vmatprep.subr.mxu0 %v861
  %976 = vmatpush1.msra.mxu0 %v860
  %977 = vmatprep.subr.mxu0 %v865
  %978 = vmatpush1.msra.mxu0 %v864
  %979 = vmatprep.subr.mxu0 %v869
  %980 = vmatpush1.msra.mxu0 %v868
  %981 = vmatprep.subr.mxu0 %v873
  %982 = vmatpush1.msra.mxu0 %v872
  %983 = vmatprep.subr.mxu0 %v877
  %984 = vmatpush1.msra.mxu0 %v876
  %985 = vmatprep.subr.mxu0 %v881
  %986 = vmatpush1.msra.mxu0 %v880
  %987 = vmatprep.subr.mxu0 %v885
  %988 = vmatpush1.msra.mxu0 %v884
  %989 = vmatprep.subr.mxu0 0.0
  %990 = vmatpush1.msra.mxu0 0.0
  %991 = vmatprep.subr.mxu0 0.0
  %992 = vmatpush1.msra.mxu0 0.0
  %993 = vmatprep.subr.mxu0 0.0
  %994 = vmatpush1.msra.mxu0 0.0
  %995 = vmatprep.subr.mxu0 0.0
  %996 = vmatpush1.msra.mxu0 0.0
  %997 = vmatprep.subr.mxu0 0.0
  %998 = vmatpush1.msra.mxu0 0.0
  %999 = vmatprep.subr.mxu0 0.0
  %1000 = vmatpush1.msra.mxu0 0.0
  %1001 = vmatprep.subr.mxu0 0.0
  %1002 = vmatpush1.msra.mxu0 0.0
  %1003 = vmatprep.subr.mxu0 0.0
  %1004 = vmatpush1.msra.mxu0 0.0
  %1005 = vmatprep.subr.mxu0 0.0
  %1006 = vmatpush1.msra.mxu0 0.0
  %1007 = vmatprep.subr.mxu0 0.0
  %1008 = vmatpush1.msra.mxu0 0.0
  %1009 = vmatprep.subr.mxu0 0.0
  %1010 = vmatpush1.msra.mxu0 0.0
  %1011 = vmatprep.subr.mxu0 0.0
  %1012 = vmatpush1.msra.mxu0 0.0
  %1013 = vmatprep.subr.mxu0 0.0
  %1014 = vmatpush1.msra.mxu0 0.0
  %1015 = vmatprep.subr.mxu0 0.0
  %1016 = vmatpush1.msra.mxu0 0.0
  %1017 = vmatprep.subr.mxu0 0.0
  %1018 = vmatpush1.msra.mxu0 0.0
  %1019 = vmatprep.subr.mxu0 0.0
  %1020 = vmatpush1.msra.mxu0 0.0
  %1021 = vmatprep.mubr.f32.mxu0 0.0
  %1022 = vmatmul.mubr.f32.gmra.mrb[0].mxu0 %v818
  %v1023 = vpop.f32.mrb[0].mxu0
  %v1024 = vadd.f32 0.0, %v1023
  %v1025 = vpop.f32.mrb[0].mxu0
  %v1026 = vadd.f32 0.0, %v1025
  %1027 = vdwg.mxu0
  %v1032 = vcombine.low %v953, %v955
  %v1033 = vcombine.low %v1024, %v1026
  %v1035 = vunpack.c.l.s4 1966171168
  %v1036 = vunpack.c.0.s8 %v1035
  %v1037 = vlaneseq
  %v1038 = vshrl.u32 %v1037, 7
  %v1039 = vsub.s32 %v1036, %v1038
  %v1040 = vrot.slane %v1032, %v1039
  %v1042 = vunpack.c.l.s4 1966171168
  %v1043 = vunpack.c.0.s8 %v1042
  %v1044 = vlaneseq
  %v1045 = vshrl.u32 %v1044, 7
  %v1046 = vsub.s32 %v1043, %v1045
  %v1047 = vrot.slane %v1033, %v1046
  %v1048 = vcombine.low %v1040, %v1047
  %v1050 = vunpack.c.l.s4 1966171168
  %v1051 = vunpack.c.0.s8 %v1050
  %v1052 = vlaneseq
  %v1053 = vshrl.u32 %v1052, 7
  %v1054 = vsub.s32 %v1051, %v1053
  %v1055 = vrot.slane %v1048, %v1054
  %v1057 = vadd.f32 %v821, %v1055
  %v1058 = vxor.u32 %v1057, 2147483648
  %v1059 = vmul.f32 %v1058, 1.442695
  %v1060 = vpow.pop %v1059
  %v1061 = vadd.f32 %v1060, 1.0
  %v1062 = vrcp.pop %v1061
  %v1063 = vmul.f32 1.0, %v1062
  %v1065 = vrot.slane %v1057, 1
  %v1067 = vxor.u32 %v1065, 2147483648
  %v1068 = vmul.f32 %v1067, 1.442695
  %v1069 = vpow.pop %v1068
  %v1070 = vadd.f32 %v1069, 1.0
  %v1071 = vrcp.pop %v1070
  %v1072 = vmul.f32 1.0, %v1071
  %v1073 = vrot.slane %v1057, 2
  %v1075 = vtanh.pop %v1073
  %v1076 = vrot.slane %v1057, 3
  %v1078 = vxor.u32 %v1076, 2147483648
  %v1079 = vmul.f32 %v1078, 1.442695
  %v1080 = vpow.pop %v1079
  %v1081 = vadd.f32 %v1080, 1.0
  %v1082 = vrcp.pop %v1081
  %v1083 = vmul.f32 1.0, %v1082
  %v1084 = vmul.f32 %v1072, %v816
  %v1085 = vmul.f32 %v1063, %v1075
  %v1086 = vadd.f32 %v1084, %v1085
  %v1087 = vtanh.pop %v1086
  %v1088 = vmul.f32 %v1083, %v1087
  %1089 = vst [vmem:[%s2 + $0x3] sm:$0x1] %v1088
  %s1090 = scalar_lea.vmem %s0, 4
  %v1091 = vld [vmem:[%s1090] ss:$8 sm:$0xf]
  %v1092 = vld [vmem:[%s1] sm:$0xff]
  %v1093 = vld [vmem:[%s1 + $0x8] sm:$0xff]
  %v1094 = vld [vmem:[%s1 + $0x10] sm:$0xff]
  %v1095 = vld [vmem:[%s1 + $0x18] sm:$0xff]
  %v1096 = vld [vmem:[%s1 + $0x20] sm:$0xff]
  %v1097 = vld [vmem:[%s1 + $0x28] sm:$0xff]
  %v1098 = vld [vmem:[%s1 + $0x30] sm:$0xff]
  %v1099 = vld [vmem:[%s1 + $0x38] sm:$0xff]
  %v1100 = vld [vmem:[%s1 + $0x40] sm:$0xff]
  %v1101 = vld [vmem:[%s1 + $0x48] sm:$0xff]
  %v1102 = vld [vmem:[%s1 + $0x50] sm:$0xff]
  %v1103 = vld [vmem:[%s1 + $0x58] sm:$0xff]
  %v1104 = vld [vmem:[%s1 + $0x60] sm:$0xff]
  %v1105 = vld [vmem:[%s1 + $0x68] sm:$0xff]
  %v1106 = vld [vmem:[%s1 + $0x70] sm:$0xff]
  %v1107 = vld [vmem:[%s1 + $0x78] sm:$0xff]
  %v1108 = vld [vmem:[%s1 + $0x80] sm:$0xff]
  %v1109 = vld [vmem:[%s1 + $0x88] sm:$0xff]
  %v1110 = vld [vmem:[%s1 + $0x90] sm:$0xff]
  %v1111 = vld [vmem:[%s1 + $0x98] sm:$0xff]
  %v1112 = vld [vmem:[%s1 + $0xa0] sm:$0xff]
  %v1113 = vld [vmem:[%s1 + $0xa8] sm:$0xff]
  %v1114 = vld [vmem:[%s1 + $0xb0] sm:$0xff]
  %v1115 = vld [vmem:[%s1 + $0xb8] sm:$0xff]
  %v1116 = vld [vmem:[%s1 + $0xc0] sm:$0xff]
  %v1117 = vld [vmem:[%s1 + $0xc8] sm:$0xff]
  %v1118 = vld [vmem:[%s1 + $0xd0] sm:$0xff]
  %v1119 = vld [vmem:[%s1 + $0xd8] sm:$0xff]
  %v1120 = vld [vmem:[%s1 + $0xe0] sm:$0xff]
  %v1121 = vld [vmem:[%s1 + $0xe8] sm:$0xff]
  %v1122 = vld [vmem:[%s1 + $0xf0] sm:$0xff]
  %v1123 = vld [vmem:[%s1 + $0xf8] sm:$0xff]
  %v1124 = vld [vmem:[%s1 + $0x100] sm:$0xff]
  %v1125 = vld [vmem:[%s1 + $0x108] sm:$0xff]
  %v1126 = vld [vmem:[%s1 + $0x110] sm:$0xff]
  %v1127 = vld [vmem:[%s1 + $0x118] sm:$0xff]
  %v1128 = vld [vmem:[%s1 + $0x120] sm:$0xff]
  %v1129 = vld [vmem:[%s1 + $0x128] sm:$0xff]
  %v1130 = vld [vmem:[%s1 + $0x130] sm:$0xff]
  %v1131 = vld [vmem:[%s1 + $0x138] sm:$0xff]
  %v1132 = vld [vmem:[%s1 + $0x140] sm:$0xff]
  %v1133 = vld [vmem:[%s1 + $0x148] sm:$0xff]
  %v1134 = vld [vmem:[%s1 + $0x150] sm:$0xff]
  %v1135 = vld [vmem:[%s1 + $0x158] sm:$0xff]
  %v1136 = vld [vmem:[%s1 + $0x160] sm:$0xff]
  %v1137 = vld [vmem:[%s1 + $0x168] sm:$0xff]
  %v1138 = vld [vmem:[%s1 + $0x170] sm:$0xff]
  %v1139 = vld [vmem:[%s1 + $0x178] sm:$0xff]
  %v1140 = vld [vmem:[%s1 + $0x180] sm:$0xff]
  %v1141 = vld [vmem:[%s1 + $0x188] sm:$0xff]
  %v1142 = vld [vmem:[%s1 + $0x190] sm:$0xff]
  %v1143 = vld [vmem:[%s1 + $0x198] sm:$0xff]
  %v1144 = vld [vmem:[%s1 + $0x1a0] sm:$0xff]
  %v1145 = vld [vmem:[%s1 + $0x1a8] sm:$0xff]
  %v1146 = vld [vmem:[%s1 + $0x1b0] sm:$0xff]
  %v1147 = vld [vmem:[%s1 + $0x1b8] sm:$0xff]
  %v1148 = vld [vmem:[%s1 + $0x1c0] sm:$0xff]
  %v1149 = vld [vmem:[%s1 + $0x1c8] sm:$0xff]
  %v1150 = vld [vmem:[%s1 + $0x1d0] sm:$0xff]
  %v1151 = vld [vmem:[%s1 + $0x1d8] sm:$0xff]
  %v1152 = vld [vmem:[%s1 + $0x1e0] sm:$0xff]
  %v1153 = vld [vmem:[%s1 + $0x1e8] sm:$0xff]
  %v1154 = vld [vmem:[%s1 + $0x1f0] sm:$0xff]
  %v1155 = vld [vmem:[%s1 + $0x1f8] sm:$0xff]
  %1156 = vmatprep.subr.mxu0 %v1093
  %1157 = vmatpush1.msra.mxu0 %v1092
  %1158 = vmatprep.subr.mxu0 %v1097
  %1159 = vmatpush1.msra.mxu0 %v1096
  %1160 = vmatprep.subr.mxu0 %v1101
  %1161 = vmatpush1.msra.mxu0 %v1100
  %1162 = vmatprep.subr.mxu0 %v1105
  %1163 = vmatpush1.msra.mxu0 %v1104
  %1164 = vmatprep.subr.mxu0 %v1109
  %1165 = vmatpush1.msra.mxu0 %v1108
  %1166 = vmatprep.subr.mxu0 %v1113
  %1167 = vmatpush1.msra.mxu0 %v1112
  %1168 = vmatprep.subr.mxu0 %v1117
  %1169 = vmatpush1.msra.mxu0 %v1116
  %1170 = vmatprep.subr.mxu0 %v1121
  %1171 = vmatpush1.msra.mxu0 %v1120
  %1172 = vmatprep.subr.mxu0 %v1125
  %1173 = vmatpush1.msra.mxu0 %v1124
  %1174 = vmatprep.subr.mxu0 %v1129
  %1175 = vmatpush1.msra.mxu0 %v1128
  %1176 = vmatprep.subr.mxu0 %v1133
  %1177 = vmatpush1.msra.mxu0 %v1132
  %1178 = vmatprep.subr.mxu0 %v1137
  %1179 = vmatpush1.msra.mxu0 %v1136
  %1180 = vmatprep.subr.mxu0 %v1141
  %1181 = vmatpush1.msra.mxu0 %v1140
  %1182 = vmatprep.subr.mxu0 %v1145
  %1183 = vmatpush1.msra.mxu0 %v1144
  %1184 = vmatprep.subr.mxu0 %v1149
  %1185 = vmatpush1.msra.mxu0 %v1148
  %1186 = vmatprep.subr.mxu0 %v1153
  %1187 = vmatpush1.msra.mxu0 %v1152
  %1188 = vmatprep.subr.mxu0 0.0
  %1189 = vmatpush1.msra.mxu0 0.0
  %1190 = vmatprep.subr.mxu0 0.0
  %1191 = vmatpush1.msra.mxu0 0.0
  %1192 = vmatprep.subr.mxu0 0.0
  %1193 = vmatpush1.msra.mxu0 0.0
  %1194 = vmatprep.subr.mxu0 0.0
  %1195 = vmatpush1.msra.mxu0 0.0
  %1196 = vmatprep.subr.mxu0 0.0
  %1197 = vmatpush1.msra.mxu0 0.0
  %1198 = vmatprep.subr.mxu0 0.0
  %1199 = vmatpush1.msra.mxu0 0.0
  %1200 = vmatprep.subr.mxu0 0.0
  %1201 = vmatpush1.msra.mxu0 0.0
  %1202 = vmatprep.subr.mxu0 0.0
  %1203 = vmatpush1.msra.mxu0 0.0
  %1204 = vmatprep.subr.mxu0 0.0
  %1205 = vmatpush1.msra.mxu0 0.0
  %1206 = vmatprep.subr.mxu0 0.0
  %1207 = vmatpush1.msra.mxu0 0.0
  %1208 = vmatprep.subr.mxu0 0.0
  %1209 = vmatpush1.msra.mxu0 0.0
  %1210 = vmatprep.subr.mxu0 0.0
  %1211 = vmatpush1.msra.mxu0 0.0
  %1212 = vmatprep.subr.mxu0 0.0
  %1213 = vmatpush1.msra.mxu0 0.0
  %1214 = vmatprep.subr.mxu0 0.0
  %1215 = vmatpush1.msra.mxu0 0.0
  %1216 = vmatprep.subr.mxu0 0.0
  %1217 = vmatpush1.msra.mxu0 0.0
  %1218 = vmatprep.subr.mxu0 0.0
  %1219 = vmatpush1.msra.mxu0 0.0
  %1220 = vmatprep.mubr.f32.mxu0 0.0
  %1221 = vmatmul.mubr.f32.gmra.mrb[0].mxu0 %v1088
  %v1222 = vpop.f32.mrb[0].mxu0
  %v1223 = vadd.f32 0.0, %v1222
  %v1224 = vpop.f32.mrb[0].mxu0
  %v1225 = vadd.f32 0.0, %v1224
  %1226 = vdwg.mxu0
  %1227 = vmatprep.subr.mxu0 %v1095
  %1228 = vmatpush1.msra.mxu0 %v1094
  %1229 = vmatprep.subr.mxu0 %v1099
  %1230 = vmatpush1.msra.mxu0 %v1098
  %1231 = vmatprep.subr.mxu0 %v1103
  %1232 = vmatpush1.msra.mxu0 %v1102
  %1233 = vmatprep.subr.mxu0 %v1107
  %1234 = vmatpush1.msra.mxu0 %v1106
  %1235 = vmatprep.subr.mxu0 %v1111
  %1236 = vmatpush1.msra.mxu0 %v1110
  %1237 = vmatprep.subr.mxu0 %v1115
  %1238 = vmatpush1.msra.mxu0 %v1114
  %1239 = vmatprep.subr.mxu0 %v1119
  %1240 = vmatpush1.msra.mxu0 %v1118
  %1241 = vmatprep.subr.mxu0 %v1123
  %1242 = vmatpush1.msra.mxu0 %v1122
  %1243 = vmatprep.subr.mxu0 %v1127
  %1244 = vmatpush1.msra.mxu0 %v1126
  %1245 = vmatprep.subr.mxu0 %v1131
  %1246 = vmatpush1.msra.mxu0 %v1130
  %1247 = vmatprep.subr.mxu0 %v1135
  %1248 = vmatpush1.msra.mxu0 %v1134
  %1249 = vmatprep.subr.mxu0 %v1139
  %1250 = vmatpush1.msra.mxu0 %v1138
  %1251 = vmatprep.subr.mxu0 %v1143
  %1252 = vmatpush1.msra.mxu0 %v1142
  %1253 = vmatprep.subr.mxu0 %v1147
  %1254 = vmatpush1.msra.mxu0 %v1146
  %1255 = vmatprep.subr.mxu0 %v1151
  %1256 = vmatpush1.msra.mxu0 %v1150
  %1257 = vmatprep.subr.mxu0 %v1155
  %1258 = vmatpush1.msra.mxu0 %v1154
  %1259 = vmatprep.subr.mxu0 0.0
  %1260 = vmatpush1.msra.mxu0 0.0
  %1261 = vmatprep.subr.mxu0 0.0
  %1262 = vmatpush1.msra.mxu0 0.0
  %1263 = vmatprep.subr.mxu0 0.0
  %1264 = vmatpush1.msra.mxu0 0.0
  %1265 = vmatprep.subr.mxu0 0.0
  %1266 = vmatpush1.msra.mxu0 0.0
  %1267 = vmatprep.subr.mxu0 0.0
  %1268 = vmatpush1.msra.mxu0 0.0
  %1269 = vmatprep.subr.mxu0 0.0
  %1270 = vmatpush1.msra.mxu0 0.0
  %1271 = vmatprep.subr.mxu0 0.0
  %1272 = vmatpush1.msra.mxu0 0.0
  %1273 = vmatprep.subr.mxu0 0.0
  %1274 = vmatpush1.msra.mxu0 0.0
  %1275 = vmatprep.subr.mxu0 0.0
  %1276 = vmatpush1.msra.mxu0 0.0
  %1277 = vmatprep.subr.mxu0 0.0
  %1278 = vmatpush1.msra.mxu0 0.0
  %1279 = vmatprep.subr.mxu0 0.0
  %1280 = vmatpush1.msra.mxu0 0.0
  %1281 = vmatprep.subr.mxu0 0.0
  %1282 = vmatpush1.msra.mxu0 0.0
  %1283 = vmatprep.subr.mxu0 0.0
  %1284 = vmatpush1.msra.mxu0 0.0
  %1285 = vmatprep.subr.mxu0 0.0
  %1286 = vmatpush1.msra.mxu0 0.0
  %1287 = vmatprep.subr.mxu0 0.0
  %1288 = vmatpush1.msra.mxu0 0.0
  %1289 = vmatprep.subr.mxu0 0.0
  %1290 = vmatpush1.msra.mxu0 0.0
  %1291 = vmatprep.mubr.f32.mxu0 0.0
  %1292 = vmatmul.mubr.f32.gmra.mrb[0].mxu0 %v1088
  %v1293 = vpop.f32.mrb[0].mxu0
  %v1294 = vadd.f32 0.0, %v1293
  %v1295 = vpop.f32.mrb[0].mxu0
  %v1296 = vadd.f32 0.0, %v1295
  %1297 = vdwg.mxu0
  %v1302 = vcombine.low %v1223, %v1225
  %v1303 = vcombine.low %v1294, %v1296
  %v1305 = vunpack.c.l.s4 1966171168
  %v1306 = vunpack.c.0.s8 %v1305
  %v1307 = vlaneseq
  %v1308 = vshrl.u32 %v1307, 7
  %v1309 = vsub.s32 %v1306, %v1308
  %v1310 = vrot.slane %v1302, %v1309
  %v1312 = vunpack.c.l.s4 1966171168
  %v1313 = vunpack.c.0.s8 %v1312
  %v1314 = vlaneseq
  %v1315 = vshrl.u32 %v1314, 7
  %v1316 = vsub.s32 %v1313, %v1315
  %v1317 = vrot.slane %v1303, %v1316
  %v1318 = vcombine.low %v1310, %v1317
  %v1320 = vunpack.c.l.s4 1966171168
  %v1321 = vunpack.c.0.s8 %v1320
  %v1322 = vlaneseq
  %v1323 = vshrl.u32 %v1322, 7
  %v1324 = vsub.s32 %v1321, %v1323
  %v1325 = vrot.slane %v1318, %v1324
  %v1327 = vadd.f32 %v1091, %v1325
  %v1328 = vxor.u32 %v1327, 2147483648
  %v1329 = vmul.f32 %v1328, 1.442695
  %v1330 = vpow.pop %v1329
  %v1331 = vadd.f32 %v1330, 1.0
  %v1332 = vrcp.pop %v1331
  %v1333 = vmul.f32 1.0, %v1332
  %v1335 = vrot.slane %v1327, 1
  %v1337 = vxor.u32 %v1335, 2147483648
  %v1338 = vmul.f32 %v1337, 1.442695
  %v1339 = vpow.pop %v1338
  %v1340 = vadd.f32 %v1339, 1.0
  %v1341 = vrcp.pop %v1340
  %v1342 = vmul.f32 1.0, %v1341
  %v1343 = vrot.slane %v1327, 2
  %v1345 = vtanh.pop %v1343
  %v1346 = vrot.slane %v1327, 3
  %v1348 = vxor.u32 %v1346, 2147483648
  %v1349 = vmul.f32 %v1348, 1.442695
  %v1350 = vpow.pop %v1349
  %v1351 = vadd.f32 %v1350, 1.0
  %v1352 = vrcp.pop %v1351
  %v1353 = vmul.f32 1.0, %v1352
  %v1354 = vmul.f32 %v1342, %v1086
  %v1355 = vmul.f32 %v1333, %v1345
  %v1356 = vadd.f32 %v1354, %v1355
  %v1357 = vtanh.pop %v1356
  %v1358 = vmul.f32 %v1353, %v1357
  %1359 = vst [vmem:[%s2 + $0x4] sm:$0x1] %v1358
  %s1360 = scalar_lea.vmem %s0, 5
  %v1361 = vld [vmem:[%s1360] ss:$8 sm:$0xf]
  %v1362 = vld [vmem:[%s1] sm:$0xff]
  %v1363 = vld [vmem:[%s1 + $0x8] sm:$0xff]
  %v1364 = vld [vmem:[%s1 + $0x10] sm:$0xff]
  %v1365 = vld [vmem:[%s1 + $0x18] sm:$0xff]
  %v1366 = vld [vmem:[%s1 + $0x20] sm:$0xff]
  %v1367 = vld [vmem:[%s1 + $0x28] sm:$0xff]
  %v1368 = vld [vmem:[%s1 + $0x30] sm:$0xff]
  %v1369 = vld [vmem:[%s1 + $0x38] sm:$0xff]
  %v1370 = vld [vmem:[%s1 + $0x40] sm:$0xff]
  %v1371 = vld [vmem:[%s1 + $0x48] sm:$0xff]
  %v1372 = vld [vmem:[%s1 + $0x50] sm:$0xff]
  %v1373 = vld [vmem:[%s1 + $0x58] sm:$0xff]
  %v1374 = vld [vmem:[%s1 + $0x60] sm:$0xff]
  %v1375 = vld [vmem:[%s1 + $0x68] sm:$0xff]
  %v1376 = vld [vmem:[%s1 + $0x70] sm:$0xff]
  %v1377 = vld [vmem:[%s1 + $0x78] sm:$0xff]
  %v1378 = vld [vmem:[%s1 + $0x80] sm:$0xff]
  %v1379 = vld [vmem:[%s1 + $0x88] sm:$0xff]
  %v1380 = vld [vmem:[%s1 + $0x90] sm:$0xff]
  %v1381 = vld [vmem:[%s1 + $0x98] sm:$0xff]
  %v1382 = vld [vmem:[%s1 + $0xa0] sm:$0xff]
  %v1383 = vld [vmem:[%s1 + $0xa8] sm:$0xff]
  %v1384 = vld [vmem:[%s1 + $0xb0] sm:$0xff]
  %v1385 = vld [vmem:[%s1 + $0xb8] sm:$0xff]
  %v1386 = vld [vmem:[%s1 + $0xc0] sm:$0xff]
  %v1387 = vld [vmem:[%s1 + $0xc8] sm:$0xff]
  %v1388 = vld [vmem:[%s1 + $0xd0] sm:$0xff]
  %v1389 = vld [vmem:[%s1 + $0xd8] sm:$0xff]
  %v1390 = vld [vmem:[%s1 + $0xe0] sm:$0xff]
  %v1391 = vld [vmem:[%s1 + $0xe8] sm:$0xff]
  %v1392 = vld [vmem:[%s1 + $0xf0] sm:$0xff]
  %v1393 = vld [vmem:[%s1 + $0xf8] sm:$0xff]
  %v1394 = vld [vmem:[%s1 + $0x100] sm:$0xff]
  %v1395 = vld [vmem:[%s1 + $0x108] sm:$0xff]
  %v1396 = vld [vmem:[%s1 + $0x110] sm:$0xff]
  %v1397 = vld [vmem:[%s1 + $0x118] sm:$0xff]
  %v1398 = vld [vmem:[%s1 + $0x120] sm:$0xff]
  %v1399 = vld [vmem:[%s1 + $0x128] sm:$0xff]
  %v1400 = vld [vmem:[%s1 + $0x130] sm:$0xff]
  %v1401 = vld [vmem:[%s1 + $0x138] sm:$0xff]
  %v1402 = vld [vmem:[%s1 + $0x140] sm:$0xff]
  %v1403 = vld [vmem:[%s1 + $0x148] sm:$0xff]
  %v1404 = vld [vmem:[%s1 + $0x150] sm:$0xff]
  %v1405 = vld [vmem:[%s1 + $0x158] sm:$0xff]
  %v1406 = vld [vmem:[%s1 + $0x160] sm:$0xff]
  %v1407 = vld [vmem:[%s1 + $0x168] sm:$0xff]
  %v1408 = vld [vmem:[%s1 + $0x170] sm:$0xff]
  %v1409 = vld [vmem:[%s1 + $0x178] sm:$0xff]
  %v1410 = vld [vmem:[%s1 + $0x180] sm:$0xff]
  %v1411 = vld [vmem:[%s1 + $0x188] sm:$0xff]
  %v1412 = vld [vmem:[%s1 + $0x190] sm:$0xff]
  %v1413 = vld [vmem:[%s1 + $0x198] sm:$0xff]
  %v1414 = vld [vmem:[%s1 + $0x1a0] sm:$0xff]
  %v1415 = vld [vmem:[%s1 + $0x1a8] sm:$0xff]
  %v1416 = vld [vmem:[%s1 + $0x1b0] sm:$0xff]
  %v1417 = vld [vmem:[%s1 + $0x1b8] sm:$0xff]
  %v1418 = vld [vmem:[%s1 + $0x1c0] sm:$0xff]
  %v1419 = vld [vmem:[%s1 + $0x1c8] sm:$0xff]
  %v1420 = vld [vmem:[%s1 + $0x1d0] sm:$0xff]
  %v1421 = vld [vmem:[%s1 + $0x1d8] sm:$0xff]
  %v1422 = vld [vmem:[%s1 + $0x1e0] sm:$0xff]
  %v1423 = vld [vmem:[%s1 + $0x1e8] sm:$0xff]
  %v1424 = vld [vmem:[%s1 + $0x1f0] sm:$0xff]
  %v1425 = vld [vmem:[%s1 + $0x1f8] sm:$0xff]
  %1426 = vmatprep.subr.mxu0 %v1363
  %1427 = vmatpush1.msra.mxu0 %v1362
  %1428 = vmatprep.subr.mxu0 %v1367
  %1429 = vmatpush1.msra.mxu0 %v1366
  %1430 = vmatprep.subr.mxu0 %v1371
  %1431 = vmatpush1.msra.mxu0 %v1370
  %1432 = vmatprep.subr.mxu0 %v1375
  %1433 = vmatpush1.msra.mxu0 %v1374
  %1434 = vmatprep.subr.mxu0 %v1379
  %1435 = vmatpush1.msra.mxu0 %v1378
  %1436 = vmatprep.subr.mxu0 %v1383
  %1437 = vmatpush1.msra.mxu0 %v1382
  %1438 = vmatprep.subr.mxu0 %v1387
  %1439 = vmatpush1.msra.mxu0 %v1386
  %1440 = vmatprep.subr.mxu0 %v1391
  %1441 = vmatpush1.msra.mxu0 %v1390
  %1442 = vmatprep.subr.mxu0 %v1395
  %1443 = vmatpush1.msra.mxu0 %v1394
  %1444 = vmatprep.subr.mxu0 %v1399
  %1445 = vmatpush1.msra.mxu0 %v1398
  %1446 = vmatprep.subr.mxu0 %v1403
  %1447 = vmatpush1.msra.mxu0 %v1402
  %1448 = vmatprep.subr.mxu0 %v1407
  %1449 = vmatpush1.msra.mxu0 %v1406
  %1450 = vmatprep.subr.mxu0 %v1411
  %1451 = vmatpush1.msra.mxu0 %v1410
  %1452 = vmatprep.subr.mxu0 %v1415
  %1453 = vmatpush1.msra.mxu0 %v1414
  %1454 = vmatprep.subr.mxu0 %v1419
  %1455 = vmatpush1.msra.mxu0 %v1418
  %1456 = vmatprep.subr.mxu0 %v1423
  %1457 = vmatpush1.msra.mxu0 %v1422
  %1458 = vmatprep.subr.mxu0 0.0
  %1459 = vmatpush1.msra.mxu0 0.0
  %1460 = vmatprep.subr.mxu0 0.0
  %1461 = vmatpush1.msra.mxu0 0.0
  %1462 = vmatprep.subr.mxu0 0.0
  %1463 = vmatpush1.msra.mxu0 0.0
  %1464 = vmatprep.subr.mxu0 0.0
  %1465 = vmatpush1.msra.mxu0 0.0
  %1466 = vmatprep.subr.mxu0 0.0
  %1467 = vmatpush1.msra.mxu0 0.0
  %1468 = vmatprep.subr.mxu0 0.0
  %1469 = vmatpush1.msra.mxu0 0.0
  %1470 = vmatprep.subr.mxu0 0.0
  %1471 = vmatpush1.msra.mxu0 0.0
  %1472 = vmatprep.subr.mxu0 0.0
  %1473 = vmatpush1.msra.mxu0 0.0
  %1474 = vmatprep.subr.mxu0 0.0
  %1475 = vmatpush1.msra.mxu0 0.0
  %1476 = vmatprep.subr.mxu0 0.0
  %1477 = vmatpush1.msra.mxu0 0.0
  %1478 = vmatprep.subr.mxu0 0.0
  %1479 = vmatpush1.msra.mxu0 0.0
  %1480 = vmatprep.subr.mxu0 0.0
  %1481 = vmatpush1.msra.mxu0 0.0
  %1482 = vmatprep.subr.mxu0 0.0
  %1483 = vmatpush1.msra.mxu0 0.0
  %1484 = vmatprep.subr.mxu0 0.0
  %1485 = vmatpush1.msra.mxu0 0.0
  %1486 = vmatprep.subr.mxu0 0.0
  %1487 = vmatpush1.msra.mxu0 0.0
  %1488 = vmatprep.subr.mxu0 0.0
  %1489 = vmatpush1.msra.mxu0 0.0
  %1490 = vmatprep.mubr.f32.mxu0 0.0
  %1491 = vmatmul.mubr.f32.gmra.mrb[0].mxu0 %v1358
  %v1492 = vpop.f32.mrb[0].mxu0
  %v1493 = vadd.f32 0.0, %v1492
  %v1494 = vpop.f32.mrb[0].mxu0
  %v1495 = vadd.f32 0.0, %v1494
  %1496 = vdwg.mxu0
  %1497 = vmatprep.subr.mxu0 %v1365
  %1498 = vmatpush1.msra.mxu0 %v1364
  %1499 = vmatprep.subr.mxu0 %v1369
  %1500 = vmatpush1.msra.mxu0 %v1368
  %1501 = vmatprep.subr.mxu0 %v1373
  %1502 = vmatpush1.msra.mxu0 %v1372
  %1503 = vmatprep.subr.mxu0 %v1377
  %1504 = vmatpush1.msra.mxu0 %v1376
  %1505 = vmatprep.subr.mxu0 %v1381
  %1506 = vmatpush1.msra.mxu0 %v1380
  %1507 = vmatprep.subr.mxu0 %v1385
  %1508 = vmatpush1.msra.mxu0 %v1384
  %1509 = vmatprep.subr.mxu0 %v1389
  %1510 = vmatpush1.msra.mxu0 %v1388
  %1511 = vmatprep.subr.mxu0 %v1393
  %1512 = vmatpush1.msra.mxu0 %v1392
  %1513 = vmatprep.subr.mxu0 %v1397
  %1514 = vmatpush1.msra.mxu0 %v1396
  %1515 = vmatprep.subr.mxu0 %v1401
  %1516 = vmatpush1.msra.mxu0 %v1400
  %1517 = vmatprep.subr.mxu0 %v1405
  %1518 = vmatpush1.msra.mxu0 %v1404
  %1519 = vmatprep.subr.mxu0 %v1409
  %1520 = vmatpush1.msra.mxu0 %v1408
  %1521 = vmatprep.subr.mxu0 %v1413
  %1522 = vmatpush1.msra.mxu0 %v1412
  %1523 = vmatprep.subr.mxu0 %v1417
  %1524 = vmatpush1.msra.mxu0 %v1416
  %1525 = vmatprep.subr.mxu0 %v1421
  %1526 = vmatpush1.msra.mxu0 %v1420
  %1527 = vmatprep.subr.mxu0 %v1425
  %1528 = vmatpush1.msra.mxu0 %v1424
  %1529 = vmatprep.subr.mxu0 0.0
  %1530 = vmatpush1.msra.mxu0 0.0
  %1531 = vmatprep.subr.mxu0 0.0
  %1532 = vmatpush1.msra.mxu0 0.0
  %1533 = vmatprep.subr.mxu0 0.0
  %1534 = vmatpush1.msra.mxu0 0.0
  %1535 = vmatprep.subr.mxu0 0.0
  %1536 = vmatpush1.msra.mxu0 0.0
  %1537 = vmatprep.subr.mxu0 0.0
  %1538 = vmatpush1.msra.mxu0 0.0
  %1539 = vmatprep.subr.mxu0 0.0
  %1540 = vmatpush1.msra.mxu0 0.0
  %1541 = vmatprep.subr.mxu0 0.0
  %1542 = vmatpush1.msra.mxu0 0.0
  %1543 = vmatprep.subr.mxu0 0.0
  %1544 = vmatpush1.msra.mxu0 0.0
  %1545 = vmatprep.subr.mxu0 0.0
  %1546 = vmatpush1.msra.mxu0 0.0
  %1547 = vmatprep.subr.mxu0 0.0
  %1548 = vmatpush1.msra.mxu0 0.0
  %1549 = vmatprep.subr.mxu0 0.0
  %1550 = vmatpush1.msra.mxu0 0.0
  %1551 = vmatprep.subr.mxu0 0.0
  %1552 = vmatpush1.msra.mxu0 0.0
  %1553 = vmatprep.subr.mxu0 0.0
  %1554 = vmatpush1.msra.mxu0 0.0
  %1555 = vmatprep.subr.mxu0 0.0
  %1556 = vmatpush1.msra.mxu0 0.0
  %1557 = vmatprep.subr.mxu0 0.0
  %1558 = vmatpush1.msra.mxu0 0.0
  %1559 = vmatprep.subr.mxu0 0.0
  %1560 = vmatpush1.msra.mxu0 0.0
  %1561 = vmatprep.mubr.f32.mxu0 0.0
  %1562 = vmatmul.mubr.f32.gmra.mrb[0].mxu0 %v1358
  %v1563 = vpop.f32.mrb[0].mxu0
  %v1564 = vadd.f32 0.0, %v1563
  %v1565 = vpop.f32.mrb[0].mxu0
  %v1566 = vadd.f32 0.0, %v1565
  %1567 = vdwg.mxu0
  %v1572 = vcombine.low %v1493, %v1495
  %v1573 = vcombine.low %v1564, %v1566
  %v1575 = vunpack.c.l.s4 1966171168
  %v1576 = vunpack.c.0.s8 %v1575
  %v1577 = vlaneseq
  %v1578 = vshrl.u32 %v1577, 7
  %v1579 = vsub.s32 %v1576, %v1578
  %v1580 = vrot.slane %v1572, %v1579
  %v1582 = vunpack.c.l.s4 1966171168
  %v1583 = vunpack.c.0.s8 %v1582
  %v1584 = vlaneseq
  %v1585 = vshrl.u32 %v1584, 7
  %v1586 = vsub.s32 %v1583, %v1585
  %v1587 = vrot.slane %v1573, %v1586
  %v1588 = vcombine.low %v1580, %v1587
  %v1590 = vunpack.c.l.s4 1966171168
  %v1591 = vunpack.c.0.s8 %v1590
  %v1592 = vlaneseq
  %v1593 = vshrl.u32 %v1592, 7
  %v1594 = vsub.s32 %v1591, %v1593
  %v1595 = vrot.slane %v1588, %v1594
  %v1597 = vadd.f32 %v1361, %v1595
  %v1598 = vxor.u32 %v1597, 2147483648
  %v1599 = vmul.f32 %v1598, 1.442695
  %v1600 = vpow.pop %v1599
  %v1601 = vadd.f32 %v1600, 1.0
  %v1602 = vrcp.pop %v1601
  %v1603 = vmul.f32 1.0, %v1602
  %v1605 = vrot.slane %v1597, 1
  %v1607 = vxor.u32 %v1605, 2147483648
  %v1608 = vmul.f32 %v1607, 1.442695
  %v1609 = vpow.pop %v1608
  %v1610 = vadd.f32 %v1609, 1.0
  %v1611 = vrcp.pop %v1610
  %v1612 = vmul.f32 1.0, %v1611
  %v1613 = vrot.slane %v1597, 2
  %v1615 = vtanh.pop %v1613
  %v1616 = vrot.slane %v1597, 3
  %v1618 = vxor.u32 %v1616, 2147483648
  %v1619 = vmul.f32 %v1618, 1.442695
  %v1620 = vpow.pop %v1619
  %v1621 = vadd.f32 %v1620, 1.0
  %v1622 = vrcp.pop %v1621
  %v1623 = vmul.f32 1.0, %v1622
  %v1624 = vmul.f32 %v1612, %v1356
  %v1625 = vmul.f32 %v1603, %v1615
  %v1626 = vadd.f32 %v1624, %v1625
  %v1627 = vtanh.pop %v1626
  %v1628 = vmul.f32 %v1623, %v1627
  %1629 = vst [vmem:[%s2 + $0x5] sm:$0x1] %v1628
  %s1630 = scalar_lea.vmem %s0, 6
  %v1631 = vld [vmem:[%s1630] ss:$8 sm:$0xf]
  %v1632 = vld [vmem:[%s1] sm:$0xff]
  %v1633 = vld [vmem:[%s1 + $0x8] sm:$0xff]
  %v1634 = vld [vmem:[%s1 + $0x10] sm:$0xff]
  %v1635 = vld [vmem:[%s1 + $0x18] sm:$0xff]
  %v1636 = vld [vmem:[%s1 + $0x20] sm:$0xff]
  %v1637 = vld [vmem:[%s1 + $0x28] sm:$0xff]
  %v1638 = vld [vmem:[%s1 + $0x30] sm:$0xff]
  %v1639 = vld [vmem:[%s1 + $0x38] sm:$0xff]
  %v1640 = vld [vmem:[%s1 + $0x40] sm:$0xff]
  %v1641 = vld [vmem:[%s1 + $0x48] sm:$0xff]
  %v1642 = vld [vmem:[%s1 + $0x50] sm:$0xff]
  %v1643 = vld [vmem:[%s1 + $0x58] sm:$0xff]
  %v1644 = vld [vmem:[%s1 + $0x60] sm:$0xff]
  %v1645 = vld [vmem:[%s1 + $0x68] sm:$0xff]
  %v1646 = vld [vmem:[%s1 + $0x70] sm:$0xff]
  %v1647 = vld [vmem:[%s1 + $0x78] sm:$0xff]
  %v1648 = vld [vmem:[%s1 + $0x80] sm:$0xff]
  %v1649 = vld [vmem:[%s1 + $0x88] sm:$0xff]
  %v1650 = vld [vmem:[%s1 + $0x90] sm:$0xff]
  %v1651 = vld [vmem:[%s1 + $0x98] sm:$0xff]
  %v1652 = vld [vmem:[%s1 + $0xa0] sm:$0xff]
  %v1653 = vld [vmem:[%s1 + $0xa8] sm:$0xff]
  %v1654 = vld [vmem:[%s1 + $0xb0] sm:$0xff]
  %v1655 = vld [vmem:[%s1 + $0xb8] sm:$0xff]
  %v1656 = vld [vmem:[%s1 + $0xc0] sm:$0xff]
  %v1657 = vld [vmem:[%s1 + $0xc8] sm:$0xff]
  %v1658 = vld [vmem:[%s1 + $0xd0] sm:$0xff]
  %v1659 = vld [vmem:[%s1 + $0xd8] sm:$0xff]
  %v1660 = vld [vmem:[%s1 + $0xe0] sm:$0xff]
  %v1661 = vld [vmem:[%s1 + $0xe8] sm:$0xff]
  %v1662 = vld [vmem:[%s1 + $0xf0] sm:$0xff]
  %v1663 = vld [vmem:[%s1 + $0xf8] sm:$0xff]
  %v1664 = vld [vmem:[%s1 + $0x100] sm:$0xff]
  %v1665 = vld [vmem:[%s1 + $0x108] sm:$0xff]
  %v1666 = vld [vmem:[%s1 + $0x110] sm:$0xff]
  %v1667 = vld [vmem:[%s1 + $0x118] sm:$0xff]
  %v1668 = vld [vmem:[%s1 + $0x120] sm:$0xff]
  %v1669 = vld [vmem:[%s1 + $0x128] sm:$0xff]
  %v1670 = vld [vmem:[%s1 + $0x130] sm:$0xff]
  %v1671 = vld [vmem:[%s1 + $0x138] sm:$0xff]
  %v1672 = vld [vmem:[%s1 + $0x140] sm:$0xff]
  %v1673 = vld [vmem:[%s1 + $0x148] sm:$0xff]
  %v1674 = vld [vmem:[%s1 + $0x150] sm:$0xff]
  %v1675 = vld [vmem:[%s1 + $0x158] sm:$0xff]
  %v1676 = vld [vmem:[%s1 + $0x160] sm:$0xff]
  %v1677 = vld [vmem:[%s1 + $0x168] sm:$0xff]
  %v1678 = vld [vmem:[%s1 + $0x170] sm:$0xff]
  %v1679 = vld [vmem:[%s1 + $0x178] sm:$0xff]
  %v1680 = vld [vmem:[%s1 + $0x180] sm:$0xff]
  %v1681 = vld [vmem:[%s1 + $0x188] sm:$0xff]
  %v1682 = vld [vmem:[%s1 + $0x190] sm:$0xff]
  %v1683 = vld [vmem:[%s1 + $0x198] sm:$0xff]
  %v1684 = vld [vmem:[%s1 + $0x1a0] sm:$0xff]
  %v1685 = vld [vmem:[%s1 + $0x1a8] sm:$0xff]
  %v1686 = vld [vmem:[%s1 + $0x1b0] sm:$0xff]
  %v1687 = vld [vmem:[%s1 + $0x1b8] sm:$0xff]
  %v1688 = vld [vmem:[%s1 + $0x1c0] sm:$0xff]
  %v1689 = vld [vmem:[%s1 + $0x1c8] sm:$0xff]
  %v1690 = vld [vmem:[%s1 + $0x1d0] sm:$0xff]
  %v1691 = vld [vmem:[%s1 + $0x1d8] sm:$0xff]
  %v1692 = vld [vmem:[%s1 + $0x1e0] sm:$0xff]
  %v1693 = vld [vmem:[%s1 + $0x1e8] sm:$0xff]
  %v1694 = vld [vmem:[%s1 + $0x1f0] sm:$0xff]
  %v1695 = vld [vmem:[%s1 + $0x1f8] sm:$0xff]
  %1696 = vmatprep.subr.mxu0 %v1633
  %1697 = vmatpush1.msra.mxu0 %v1632
  %1698 = vmatprep.subr.mxu0 %v1637
  %1699 = vmatpush1.msra.mxu0 %v1636
  %1700 = vmatprep.subr.mxu0 %v1641
  %1701 = vmatpush1.msra.mxu0 %v1640
  %1702 = vmatprep.subr.mxu0 %v1645
  %1703 = vmatpush1.msra.mxu0 %v1644
  %1704 = vmatprep.subr.mxu0 %v1649
  %1705 = vmatpush1.msra.mxu0 %v1648
  %1706 = vmatprep.subr.mxu0 %v1653
  %1707 = vmatpush1.msra.mxu0 %v1652
  %1708 = vmatprep.subr.mxu0 %v1657
  %1709 = vmatpush1.msra.mxu0 %v1656
  %1710 = vmatprep.subr.mxu0 %v1661
  %1711 = vmatpush1.msra.mxu0 %v1660
  %1712 = vmatprep.subr.mxu0 %v1665
  %1713 = vmatpush1.msra.mxu0 %v1664
  %1714 = vmatprep.subr.mxu0 %v1669
  %1715 = vmatpush1.msra.mxu0 %v1668
  %1716 = vmatprep.subr.mxu0 %v1673
  %1717 = vmatpush1.msra.mxu0 %v1672
  %1718 = vmatprep.subr.mxu0 %v1677
  %1719 = vmatpush1.msra.mxu0 %v1676
  %1720 = vmatprep.subr.mxu0 %v1681
  %1721 = vmatpush1.msra.mxu0 %v1680
  %1722 = vmatprep.subr.mxu0 %v1685
  %1723 = vmatpush1.msra.mxu0 %v1684
  %1724 = vmatprep.subr.mxu0 %v1689
  %1725 = vmatpush1.msra.mxu0 %v1688
  %1726 = vmatprep.subr.mxu0 %v1693
  %1727 = vmatpush1.msra.mxu0 %v1692
  %1728 = vmatprep.subr.mxu0 0.0
  %1729 = vmatpush1.msra.mxu0 0.0
  %1730 = vmatprep.subr.mxu0 0.0
  %1731 = vmatpush1.msra.mxu0 0.0
  %1732 = vmatprep.subr.mxu0 0.0
  %1733 = vmatpush1.msra.mxu0 0.0
  %1734 = vmatprep.subr.mxu0 0.0
  %1735 = vmatpush1.msra.mxu0 0.0
  %1736 = vmatprep.subr.mxu0 0.0
  %1737 = vmatpush1.msra.mxu0 0.0
  %1738 = vmatprep.subr.mxu0 0.0
  %1739 = vmatpush1.msra.mxu0 0.0
  %1740 = vmatprep.subr.mxu0 0.0
  %1741 = vmatpush1.msra.mxu0 0.0
  %1742 = vmatprep.subr.mxu0 0.0
  %1743 = vmatpush1.msra.mxu0 0.0
  %1744 = vmatprep.subr.mxu0 0.0
  %1745 = vmatpush1.msra.mxu0 0.0
  %1746 = vmatprep.subr.mxu0 0.0
  %1747 = vmatpush1.msra.mxu0 0.0
  %1748 = vmatprep.subr.mxu0 0.0
  %1749 = vmatpush1.msra.mxu0 0.0
  %1750 = vmatprep.subr.mxu0 0.0
  %1751 = vmatpush1.msra.mxu0 0.0
  %1752 = vmatprep.subr.mxu0 0.0
  %1753 = vmatpush1.msra.mxu0 0.0
  %1754 = vmatprep.subr.mxu0 0.0
  %1755 = vmatpush1.msra.mxu0 0.0
  %1756 = vmatprep.subr.mxu0 0.0
  %1757 = vmatpush1.msra.mxu0 0.0
  %1758 = vmatprep.subr.mxu0 0.0
  %1759 = vmatpush1.msra.mxu0 0.0
  %1760 = vmatprep.mubr.f32.mxu0 0.0
  %1761 = vmatmul.mubr.f32.gmra.mrb[0].mxu0 %v1628
  %v1762 = vpop.f32.mrb[0].mxu0
  %v1763 = vadd.f32 0.0, %v1762
  %v1764 = vpop.f32.mrb[0].mxu0
  %v1765 = vadd.f32 0.0, %v1764
  %1766 = vdwg.mxu0
  %1767 = vmatprep.subr.mxu0 %v1635
  %1768 = vmatpush1.msra.mxu0 %v1634
  %1769 = vmatprep.subr.mxu0 %v1639
  %1770 = vmatpush1.msra.mxu0 %v1638
  %1771 = vmatprep.subr.mxu0 %v1643
  %1772 = vmatpush1.msra.mxu0 %v1642
  %1773 = vmatprep.subr.mxu0 %v1647
  %1774 = vmatpush1.msra.mxu0 %v1646
  %1775 = vmatprep.subr.mxu0 %v1651
  %1776 = vmatpush1.msra.mxu0 %v1650
  %1777 = vmatprep.subr.mxu0 %v1655
  %1778 = vmatpush1.msra.mxu0 %v1654
  %1779 = vmatprep.subr.mxu0 %v1659
  %1780 = vmatpush1.msra.mxu0 %v1658
  %1781 = vmatprep.subr.mxu0 %v1663
  %1782 = vmatpush1.msra.mxu0 %v1662
  %1783 = vmatprep.subr.mxu0 %v1667
  %1784 = vmatpush1.msra.mxu0 %v1666
  %1785 = vmatprep.subr.mxu0 %v1671
  %1786 = vmatpush1.msra.mxu0 %v1670
  %1787 = vmatprep.subr.mxu0 %v1675
  %1788 = vmatpush1.msra.mxu0 %v1674
  %1789 = vmatprep.subr.mxu0 %v1679
  %1790 = vmatpush1.msra.mxu0 %v1678
  %1791 = vmatprep.subr.mxu0 %v1683
  %1792 = vmatpush1.msra.mxu0 %v1682
  %1793 = vmatprep.subr.mxu0 %v1687
  %1794 = vmatpush1.msra.mxu0 %v1686
  %1795 = vmatprep.subr.mxu0 %v1691
  %1796 = vmatpush1.msra.mxu0 %v1690
  %1797 = vmatprep.subr.mxu0 %v1695
  %1798 = vmatpush1.msra.mxu0 %v1694
  %1799 = vmatprep.subr.mxu0 0.0
  %1800 = vmatpush1.msra.mxu0 0.0
  %1801 = vmatprep.subr.mxu0 0.0
  %1802 = vmatpush1.msra.mxu0 0.0
  %1803 = vmatprep.subr.mxu0 0.0
  %1804 = vmatpush1.msra.mxu0 0.0
  %1805 = vmatprep.subr.mxu0 0.0
  %1806 = vmatpush1.msra.mxu0 0.0
  %1807 = vmatprep.subr.mxu0 0.0
  %1808 = vmatpush1.msra.mxu0 0.0
  %1809 = vmatprep.subr.mxu0 0.0
  %1810 = vmatpush1.msra.mxu0 0.0
  %1811 = vmatprep.subr.mxu0 0.0
  %1812 = vmatpush1.msra.mxu0 0.0
  %1813 = vmatprep.subr.mxu0 0.0
  %1814 = vmatpush1.msra.mxu0 0.0
  %1815 = vmatprep.subr.mxu0 0.0
  %1816 = vmatpush1.msra.mxu0 0.0
  %1817 = vmatprep.subr.mxu0 0.0
  %1818 = vmatpush1.msra.mxu0 0.0
  %1819 = vmatprep.subr.mxu0 0.0
  %1820 = vmatpush1.msra.mxu0 0.0
  %1821 = vmatprep.subr.mxu0 0.0
  %1822 = vmatpush1.msra.mxu0 0.0
  %1823 = vmatprep.subr.mxu0 0.0
  %1824 = vmatpush1.msra.mxu0 0.0
  %1825 = vmatprep.subr.mxu0 0.0
  %1826 = vmatpush1.msra.mxu0 0.0
  %1827 = vmatprep.subr.mxu0 0.0
  %1828 = vmatpush1.msra.mxu0 0.0
  %1829 = vmatprep.subr.mxu0 0.0
  %1830 = vmatpush1.msra.mxu0 0.0
  %1831 = vmatprep.mubr.f32.mxu0 0.0
  %1832 = vmatmul.mubr.f32.gmra.mrb[0].mxu0 %v1628
  %v1833 = vpop.f32.mrb[0].mxu0
  %v1834 = vadd.f32 0.0, %v1833
  %v1835 = vpop.f32.mrb[0].mxu0
  %v1836 = vadd.f32 0.0, %v1835
  %1837 = vdwg.mxu0
  %v1842 = vcombine.low %v1763, %v1765
  %v1843 = vcombine.low %v1834, %v1836
  %v1845 = vunpack.c.l.s4 1966171168
  %v1846 = vunpack.c.0.s8 %v1845
  %v1847 = vlaneseq
  %v1848 = vshrl.u32 %v1847, 7
  %v1849 = vsub.s32 %v1846, %v1848
  %v1850 = vrot.slane %v1842, %v1849
  %v1852 = vunpack.c.l.s4 1966171168
  %v1853 = vunpack.c.0.s8 %v1852
  %v1854 = vlaneseq
  %v1855 = vshrl.u32 %v1854, 7
  %v1856 = vsub.s32 %v1853, %v1855
  %v1857 = vrot.slane %v1843, %v1856
  %v1858 = vcombine.low %v1850, %v1857
  %v1860 = vunpack.c.l.s4 1966171168
  %v1861 = vunpack.c.0.s8 %v1860
  %v1862 = vlaneseq
  %v1863 = vshrl.u32 %v1862, 7
  %v1864 = vsub.s32 %v1861, %v1863
  %v1865 = vrot.slane %v1858, %v1864
  %v1867 = vadd.f32 %v1631, %v1865
  %v1868 = vxor.u32 %v1867, 2147483648
  %v1869 = vmul.f32 %v1868, 1.442695
  %v1870 = vpow.pop %v1869
  %v1871 = vadd.f32 %v1870, 1.0
  %v1872 = vrcp.pop %v1871
  %v1873 = vmul.f32 1.0, %v1872
  %v1875 = vrot.slane %v1867, 1
  %v1877 = vxor.u32 %v1875, 2147483648
  %v1878 = vmul.f32 %v1877, 1.442695
  %v1879 = vpow.pop %v1878
  %v1880 = vadd.f32 %v1879, 1.0
  %v1881 = vrcp.pop %v1880
  %v1882 = vmul.f32 1.0, %v1881
  %v1883 = vrot.slane %v1867, 2
  %v1885 = vtanh.pop %v1883
  %v1886 = vrot.slane %v1867, 3
  %v1888 = vxor.u32 %v1886, 2147483648
  %v1889 = vmul.f32 %v1888, 1.442695
  %v1890 = vpow.pop %v1889
  %v1891 = vadd.f32 %v1890, 1.0
  %v1892 = vrcp.pop %v1891
  %v1893 = vmul.f32 1.0, %v1892
  %v1894 = vmul.f32 %v1882, %v1626
  %v1895 = vmul.f32 %v1873, %v1885
  %v1896 = vadd.f32 %v1894, %v1895
  %v1897 = vtanh.pop %v1896
  %v1898 = vmul.f32 %v1893, %v1897
  %1899 = vst [vmem:[%s2 + $0x6] sm:$0x1] %v1898
  %s1900 = scalar_lea.vmem %s0, 7
  %v1901 = vld [vmem:[%s1900] ss:$8 sm:$0xf]
  %v1902 = vld [vmem:[%s1] sm:$0xff]
  %v1903 = vld [vmem:[%s1 + $0x8] sm:$0xff]
  %v1904 = vld [vmem:[%s1 + $0x10] sm:$0xff]
  %v1905 = vld [vmem:[%s1 + $0x18] sm:$0xff]
  %v1906 = vld [vmem:[%s1 + $0x20] sm:$0xff]
  %v1907 = vld [vmem:[%s1 + $0x28] sm:$0xff]
  %v1908 = vld [vmem:[%s1 + $0x30] sm:$0xff]
  %v1909 = vld [vmem:[%s1 + $0x38] sm:$0xff]
  %v1910 = vld [vmem:[%s1 + $0x40] sm:$0xff]
  %v1911 = vld [vmem:[%s1 + $0x48] sm:$0xff]
  %v1912 = vld [vmem:[%s1 + $0x50] sm:$0xff]
  %v1913 = vld [vmem:[%s1 + $0x58] sm:$0xff]
  %v1914 = vld [vmem:[%s1 + $0x60] sm:$0xff]
  %v1915 = vld [vmem:[%s1 + $0x68] sm:$0xff]
  %v1916 = vld [vmem:[%s1 + $0x70] sm:$0xff]
  %v1917 = vld [vmem:[%s1 + $0x78] sm:$0xff]
  %v1918 = vld [vmem:[%s1 + $0x80] sm:$0xff]
  %v1919 = vld [vmem:[%s1 + $0x88] sm:$0xff]
  %v1920 = vld [vmem:[%s1 + $0x90] sm:$0xff]
  %v1921 = vld [vmem:[%s1 + $0x98] sm:$0xff]
  %v1922 = vld [vmem:[%s1 + $0xa0] sm:$0xff]
  %v1923 = vld [vmem:[%s1 + $0xa8] sm:$0xff]
  %v1924 = vld [vmem:[%s1 + $0xb0] sm:$0xff]
  %v1925 = vld [vmem:[%s1 + $0xb8] sm:$0xff]
  %v1926 = vld [vmem:[%s1 + $0xc0] sm:$0xff]
  %v1927 = vld [vmem:[%s1 + $0xc8] sm:$0xff]
  %v1928 = vld [vmem:[%s1 + $0xd0] sm:$0xff]
  %v1929 = vld [vmem:[%s1 + $0xd8] sm:$0xff]
  %v1930 = vld [vmem:[%s1 + $0xe0] sm:$0xff]
  %v1931 = vld [vmem:[%s1 + $0xe8] sm:$0xff]
  %v1932 = vld [vmem:[%s1 + $0xf0] sm:$0xff]
  %v1933 = vld [vmem:[%s1 + $0xf8] sm:$0xff]
  %v1934 = vld [vmem:[%s1 + $0x100] sm:$0xff]
  %v1935 = vld [vmem:[%s1 + $0x108] sm:$0xff]
  %v1936 = vld [vmem:[%s1 + $0x110] sm:$0xff]
  %v1937 = vld [vmem:[%s1 + $0x118] sm:$0xff]
  %v1938 = vld [vmem:[%s1 + $0x120] sm:$0xff]
  %v1939 = vld [vmem:[%s1 + $0x128] sm:$0xff]
  %v1940 = vld [vmem:[%s1 + $0x130] sm:$0xff]
  %v1941 = vld [vmem:[%s1 + $0x138] sm:$0xff]
  %v1942 = vld [vmem:[%s1 + $0x140] sm:$0xff]
  %v1943 = vld [vmem:[%s1 + $0x148] sm:$0xff]
  %v1944 = vld [vmem:[%s1 + $0x150] sm:$0xff]
  %v1945 = vld [vmem:[%s1 + $0x158] sm:$0xff]
  %v1946 = vld [vmem:[%s1 + $0x160] sm:$0xff]
  %v1947 = vld [vmem:[%s1 + $0x168] sm:$0xff]
  %v1948 = vld [vmem:[%s1 + $0x170] sm:$0xff]
  %v1949 = vld [vmem:[%s1 + $0x178] sm:$0xff]
  %v1950 = vld [vmem:[%s1 + $0x180] sm:$0xff]
  %v1951 = vld [vmem:[%s1 + $0x188] sm:$0xff]
  %v1952 = vld [vmem:[%s1 + $0x190] sm:$0xff]
  %v1953 = vld [vmem:[%s1 + $0x198] sm:$0xff]
  %v1954 = vld [vmem:[%s1 + $0x1a0] sm:$0xff]
  %v1955 = vld [vmem:[%s1 + $0x1a8] sm:$0xff]
  %v1956 = vld [vmem:[%s1 + $0x1b0] sm:$0xff]
  %v1957 = vld [vmem:[%s1 + $0x1b8] sm:$0xff]
  %v1958 = vld [vmem:[%s1 + $0x1c0] sm:$0xff]
  %v1959 = vld [vmem:[%s1 + $0x1c8] sm:$0xff]
  %v1960 = vld [vmem:[%s1 + $0x1d0] sm:$0xff]
  %v1961 = vld [vmem:[%s1 + $0x1d8] sm:$0xff]
  %v1962 = vld [vmem:[%s1 + $0x1e0] sm:$0xff]
  %v1963 = vld [vmem:[%s1 + $0x1e8] sm:$0xff]
  %v1964 = vld [vmem:[%s1 + $0x1f0] sm:$0xff]
  %v1965 = vld [vmem:[%s1 + $0x1f8] sm:$0xff]
  %1966 = vmatprep.subr.mxu0 %v1903
  %1967 = vmatpush1.msra.mxu0 %v1902
  %1968 = vmatprep.subr.mxu0 %v1907
  %1969 = vmatpush1.msra.mxu0 %v1906
  %1970 = vmatprep.subr.mxu0 %v1911
  %1971 = vmatpush1.msra.mxu0 %v1910
  %1972 = vmatprep.subr.mxu0 %v1915
  %1973 = vmatpush1.msra.mxu0 %v1914
  %1974 = vmatprep.subr.mxu0 %v1919
  %1975 = vmatpush1.msra.mxu0 %v1918
  %1976 = vmatprep.subr.mxu0 %v1923
  %1977 = vmatpush1.msra.mxu0 %v1922
  %1978 = vmatprep.subr.mxu0 %v1927
  %1979 = vmatpush1.msra.mxu0 %v1926
  %1980 = vmatprep.subr.mxu0 %v1931
  %1981 = vmatpush1.msra.mxu0 %v1930
  %1982 = vmatprep.subr.mxu0 %v1935
  %1983 = vmatpush1.msra.mxu0 %v1934
  %1984 = vmatprep.subr.mxu0 %v1939
  %1985 = vmatpush1.msra.mxu0 %v1938
  %1986 = vmatprep.subr.mxu0 %v1943
  %1987 = vmatpush1.msra.mxu0 %v1942
  %1988 = vmatprep.subr.mxu0 %v1947
  %1989 = vmatpush1.msra.mxu0 %v1946
  %1990 = vmatprep.subr.mxu0 %v1951
  %1991 = vmatpush1.msra.mxu0 %v1950
  %1992 = vmatprep.subr.mxu0 %v1955
  %1993 = vmatpush1.msra.mxu0 %v1954
  %1994 = vmatprep.subr.mxu0 %v1959
  %1995 = vmatpush1.msra.mxu0 %v1958
  %1996 = vmatprep.subr.mxu0 %v1963
  %1997 = vmatpush1.msra.mxu0 %v1962
  %1998 = vmatprep.subr.mxu0 0.0
  %1999 = vmatpush1.msra.mxu0 0.0
  %2000 = vmatprep.subr.mxu0 0.0
  %2001 = vmatpush1.msra.mxu0 0.0
  %2002 = vmatprep.subr.mxu0 0.0
  %2003 = vmatpush1.msra.mxu0 0.0
  %2004 = vmatprep.subr.mxu0 0.0
  %2005 = vmatpush1.msra.mxu0 0.0
  %2006 = vmatprep.subr.mxu0 0.0
  %2007 = vmatpush1.msra.mxu0 0.0
  %2008 = vmatprep.subr.mxu0 0.0
  %2009 = vmatpush1.msra.mxu0 0.0
  %2010 = vmatprep.subr.mxu0 0.0
  %2011 = vmatpush1.msra.mxu0 0.0
  %2012 = vmatprep.subr.mxu0 0.0
  %2013 = vmatpush1.msra.mxu0 0.0
  %2014 = vmatprep.subr.mxu0 0.0
  %2015 = vmatpush1.msra.mxu0 0.0
  %2016 = vmatprep.subr.mxu0 0.0
  %2017 = vmatpush1.msra.mxu0 0.0
  %2018 = vmatprep.subr.mxu0 0.0
  %2019 = vmatpush1.msra.mxu0 0.0
  %2020 = vmatprep.subr.mxu0 0.0
  %2021 = vmatpush1.msra.mxu0 0.0
  %2022 = vmatprep.subr.mxu0 0.0
  %2023 = vmatpush1.msra.mxu0 0.0
  %2024 = vmatprep.subr.mxu0 0.0
  %2025 = vmatpush1.msra.mxu0 0.0
  %2026 = vmatprep.subr.mxu0 0.0
  %2027 = vmatpush1.msra.mxu0 0.0
  %2028 = vmatprep.subr.mxu0 0.0
  %2029 = vmatpush1.msra.mxu0 0.0
  %2030 = vmatprep.mubr.f32.mxu0 0.0
  %2031 = vmatmul.mubr.f32.gmra.mrb[0].mxu0 %v1898
  %v2032 = vpop.f32.mrb[0].mxu0
  %v2033 = vadd.f32 0.0, %v2032
  %v2034 = vpop.f32.mrb[0].mxu0
  %v2035 = vadd.f32 0.0, %v2034
  %2036 = vdwg.mxu0
  %2037 = vmatprep.subr.mxu0 %v1905
  %2038 = vmatpush1.msra.mxu0 %v1904
  %2039 = vmatprep.subr.mxu0 %v1909
  %2040 = vmatpush1.msra.mxu0 %v1908
  %2041 = vmatprep.subr.mxu0 %v1913
  %2042 = vmatpush1.msra.mxu0 %v1912
  %2043 = vmatprep.subr.mxu0 %v1917
  %2044 = vmatpush1.msra.mxu0 %v1916
  %2045 = vmatprep.subr.mxu0 %v1921
  %2046 = vmatpush1.msra.mxu0 %v1920
  %2047 = vmatprep.subr.mxu0 %v1925
  %2048 = vmatpush1.msra.mxu0 %v1924
  %2049 = vmatprep.subr.mxu0 %v1929
  %2050 = vmatpush1.msra.mxu0 %v1928
  %2051 = vmatprep.subr.mxu0 %v1933
  %2052 = vmatpush1.msra.mxu0 %v1932
  %2053 = vmatprep.subr.mxu0 %v1937
  %2054 = vmatpush1.msra.mxu0 %v1936
  %2055 = vmatprep.subr.mxu0 %v1941
  %2056 = vmatpush1.msra.mxu0 %v1940
  %2057 = vmatprep.subr.mxu0 %v1945
  %2058 = vmatpush1.msra.mxu0 %v1944
  %2059 = vmatprep.subr.mxu0 %v1949
  %2060 = vmatpush1.msra.mxu0 %v1948
  %2061 = vmatprep.subr.mxu0 %v1953
  %2062 = vmatpush1.msra.mxu0 %v1952
  %2063 = vmatprep.subr.mxu0 %v1957
  %2064 = vmatpush1.msra.mxu0 %v1956
  %2065 = vmatprep.subr.mxu0 %v1961
  %2066 = vmatpush1.msra.mxu0 %v1960
  %2067 = vmatprep.subr.mxu0 %v1965
  %2068 = vmatpush1.msra.mxu0 %v1964
  %2069 = vmatprep.subr.mxu0 0.0
  %2070 = vmatpush1.msra.mxu0 0.0
  %2071 = vmatprep.subr.mxu0 0.0
  %2072 = vmatpush1.msra.mxu0 0.0
  %2073 = vmatprep.subr.mxu0 0.0
  %2074 = vmatpush1.msra.mxu0 0.0
  %2075 = vmatprep.subr.mxu0 0.0
  %2076 = vmatpush1.msra.mxu0 0.0
  %2077 = vmatprep.subr.mxu0 0.0
  %2078 = vmatpush1.msra.mxu0 0.0
  %2079 = vmatprep.subr.mxu0 0.0
  %2080 = vmatpush1.msra.mxu0 0.0
  %2081 = vmatprep.subr.mxu0 0.0
  %2082 = vmatpush1.msra.mxu0 0.0
  %2083 = vmatprep.subr.mxu0 0.0
  %2084 = vmatpush1.msra.mxu0 0.0
  %2085 = vmatprep.subr.mxu0 0.0
  %2086 = vmatpush1.msra.mxu0 0.0
  %2087 = vmatprep.subr.mxu0 0.0
  %2088 = vmatpush1.msra.mxu0 0.0
  %2089 = vmatprep.subr.mxu0 0.0
  %2090 = vmatpush1.msra.mxu0 0.0
  %2091 = vmatprep.subr.mxu0 0.0
  %2092 = vmatpush1.msra.mxu0 0.0
  %2093 = vmatprep.subr.mxu0 0.0
  %2094 = vmatpush1.msra.mxu0 0.0
  %2095 = vmatprep.subr.mxu0 0.0
  %2096 = vmatpush1.msra.mxu0 0.0
  %2097 = vmatprep.subr.mxu0 0.0
  %2098 = vmatpush1.msra.mxu0 0.0
  %2099 = vmatprep.subr.mxu0 0.0
  %2100 = vmatpush1.msra.mxu0 0.0
  %2101 = vmatprep.mubr.f32.mxu0 0.0
  %2102 = vmatmul.mubr.f32.gmra.mrb[0].mxu0 %v1898
  %v2103 = vpop.f32.mrb[0].mxu0
  %v2104 = vadd.f32 0.0, %v2103
  %v2105 = vpop.f32.mrb[0].mxu0
  %v2106 = vadd.f32 0.0, %v2105
  %2107 = vdwg.mxu0
  %v2112 = vcombine.low %v2033, %v2035
  %v2113 = vcombine.low %v2104, %v2106
  %v2115 = vunpack.c.l.s4 1966171168
  %v2116 = vunpack.c.0.s8 %v2115
  %v2117 = vlaneseq
  %v2118 = vshrl.u32 %v2117, 7
  %v2119 = vsub.s32 %v2116, %v2118
  %v2120 = vrot.slane %v2112, %v2119
  %v2122 = vunpack.c.l.s4 1966171168
  %v2123 = vunpack.c.0.s8 %v2122
  %v2124 = vlaneseq
  %v2125 = vshrl.u32 %v2124, 7
  %v2126 = vsub.s32 %v2123, %v2125
  %v2127 = vrot.slane %v2113, %v2126
  %v2128 = vcombine.low %v2120, %v2127
  %v2130 = vunpack.c.l.s4 1966171168
  %v2131 = vunpack.c.0.s8 %v2130
  %v2132 = vlaneseq
  %v2133 = vshrl.u32 %v2132, 7
  %v2134 = vsub.s32 %v2131, %v2133
  %v2135 = vrot.slane %v2128, %v2134
  %v2137 = vadd.f32 %v1901, %v2135
  %v2138 = vxor.u32 %v2137, 2147483648
  %v2139 = vmul.f32 %v2138, 1.442695
  %v2140 = vpow.pop %v2139
  %v2141 = vadd.f32 %v2140, 1.0
  %v2142 = vrcp.pop %v2141
  %v2143 = vmul.f32 1.0, %v2142
  %v2145 = vrot.slane %v2137, 1
  %v2147 = vxor.u32 %v2145, 2147483648
  %v2148 = vmul.f32 %v2147, 1.442695
  %v2149 = vpow.pop %v2148
  %v2150 = vadd.f32 %v2149, 1.0
  %v2151 = vrcp.pop %v2150
  %v2152 = vmul.f32 1.0, %v2151
  %v2153 = vrot.slane %v2137, 2
  %v2155 = vtanh.pop %v2153
  %v2156 = vrot.slane %v2137, 3
  %v2158 = vxor.u32 %v2156, 2147483648
  %v2159 = vmul.f32 %v2158, 1.442695
  %v2160 = vpow.pop %v2159
  %v2161 = vadd.f32 %v2160, 1.0
  %v2162 = vrcp.pop %v2161
  %v2163 = vmul.f32 1.0, %v2162
  %v2164 = vmul.f32 %v2152, %v1896
  %v2165 = vmul.f32 %v2143, %v2155
  %v2166 = vadd.f32 %v2164, %v2165
  %v2167 = vtanh.pop %v2166
  %v2168 = vmul.f32 %v2163, %v2167
  %2169 = vst [vmem:[%s2 + $0x7] sm:$0x1] %v2168
  %s2170 = scalar_lea.vmem %s0, 40
  %v2171 = vld [vmem:[%s2170] ss:$8 sm:$0xf]
  %v2172 = vld [vmem:[%s1] sm:$0xff]
  %v2173 = vld [vmem:[%s1 + $0x8] sm:$0xff]
  %v2174 = vld [vmem:[%s1 + $0x10] sm:$0xff]
  %v2175 = vld [vmem:[%s1 + $0x18] sm:$0xff]
  %v2176 = vld [vmem:[%s1 + $0x20] sm:$0xff]
  %v2177 = vld [vmem:[%s1 + $0x28] sm:$0xff]
  %v2178 = vld [vmem:[%s1 + $0x30] sm:$0xff]
  %v2179 = vld [vmem:[%s1 + $0x38] sm:$0xff]
  %v2180 = vld [vmem:[%s1 + $0x40] sm:$0xff]
  %v2181 = vld [vmem:[%s1 + $0x48] sm:$0xff]
  %v2182 = vld [vmem:[%s1 + $0x50] sm:$0xff]
  %v2183 = vld [vmem:[%s1 + $0x58] sm:$0xff]
  %v2184 = vld [vmem:[%s1 + $0x60] sm:$0xff]
  %v2185 = vld [vmem:[%s1 + $0x68] sm:$0xff]
  %v2186 = vld [vmem:[%s1 + $0x70] sm:$0xff]
  %v2187 = vld [vmem:[%s1 + $0x78] sm:$0xff]
  %v2188 = vld [vmem:[%s1 + $0x80] sm:$0xff]
  %v2189 = vld [vmem:[%s1 + $0x88] sm:$0xff]
  %v2190 = vld [vmem:[%s1 + $0x90] sm:$0xff]
  %v2191 = vld [vmem:[%s1 + $0x98] sm:$0xff]
  %v2192 = vld [vmem:[%s1 + $0xa0] sm:$0xff]
  %v2193 = vld [vmem:[%s1 + $0xa8] sm:$0xff]
  %v2194 = vld [vmem:[%s1 + $0xb0] sm:$0xff]
  %v2195 = vld [vmem:[%s1 + $0xb8] sm:$0xff]
  %v2196 = vld [vmem:[%s1 + $0xc0] sm:$0xff]
  %v2197 = vld [vmem:[%s1 + $0xc8] sm:$0xff]
  %v2198 = vld [vmem:[%s1 + $0xd0] sm:$0xff]
  %v2199 = vld [vmem:[%s1 + $0xd8] sm:$0xff]
  %v2200 = vld [vmem:[%s1 + $0xe0] sm:$0xff]
  %v2201 = vld [vmem:[%s1 + $0xe8] sm:$0xff]
  %v2202 = vld [vmem:[%s1 + $0xf0] sm:$0xff]
  %v2203 = vld [vmem:[%s1 + $0xf8] sm:$0xff]
  %v2204 = vld [vmem:[%s1 + $0x100] sm:$0xff]
  %v2205 = vld [vmem:[%s1 + $0x108] sm:$0xff]
  %v2206 = vld [vmem:[%s1 + $0x110] sm:$0xff]
  %v2207 = vld [vmem:[%s1 + $0x118] sm:$0xff]
  %v2208 = vld [vmem:[%s1 + $0x120] sm:$0xff]
  %v2209 = vld [vmem:[%s1 + $0x128] sm:$0xff]
  %v2210 = vld [vmem:[%s1 + $0x130] sm:$0xff]
  %v2211 = vld [vmem:[%s1 + $0x138] sm:$0xff]
  %v2212 = vld [vmem:[%s1 + $0x140] sm:$0xff]
  %v2213 = vld [vmem:[%s1 + $0x148] sm:$0xff]
  %v2214 = vld [vmem:[%s1 + $0x150] sm:$0xff]
  %v2215 = vld [vmem:[%s1 + $0x158] sm:$0xff]
  %v2216 = vld [vmem:[%s1 + $0x160] sm:$0xff]
  %v2217 = vld [vmem:[%s1 + $0x168] sm:$0xff]
  %v2218 = vld [vmem:[%s1 + $0x170] sm:$0xff]
  %v2219 = vld [vmem:[%s1 + $0x178] sm:$0xff]
  %v2220 = vld [vmem:[%s1 + $0x180] sm:$0xff]
  %v2221 = vld [vmem:[%s1 + $0x188] sm:$0xff]
  %v2222 = vld [vmem:[%s1 + $0x190] sm:$0xff]
  %v2223 = vld [vmem:[%s1 + $0x198] sm:$0xff]
  %v2224 = vld [vmem:[%s1 + $0x1a0] sm:$0xff]
  %v2225 = vld [vmem:[%s1 + $0x1a8] sm:$0xff]
  %v2226 = vld [vmem:[%s1 + $0x1b0] sm:$0xff]
  %v2227 = vld [vmem:[%s1 + $0x1b8] sm:$0xff]
  %v2228 = vld [vmem:[%s1 + $0x1c0] sm:$0xff]
  %v2229 = vld [vmem:[%s1 + $0x1c8] sm:$0xff]
  %v2230 = vld [vmem:[%s1 + $0x1d0] sm:$0xff]
  %v2231 = vld [vmem:[%s1 + $0x1d8] sm:$0xff]
  %v2232 = vld [vmem:[%s1 + $0x1e0] sm:$0xff]
  %v2233 = vld [vmem:[%s1 + $0x1e8] sm:$0xff]
  %v2234 = vld [vmem:[%s1 + $0x1f0] sm:$0xff]
  %v2235 = vld [vmem:[%s1 + $0x1f8] sm:$0xff]
  %2236 = vmatprep.subr.mxu0 %v2173
  %2237 = vmatpush1.msra.mxu0 %v2172
  %2238 = vmatprep.subr.mxu0 %v2177
  %2239 = vmatpush1.msra.mxu0 %v2176
  %2240 = vmatprep.subr.mxu0 %v2181
  %2241 = vmatpush1.msra.mxu0 %v2180
  %2242 = vmatprep.subr.mxu0 %v2185
  %2243 = vmatpush1.msra.mxu0 %v2184
  %2244 = vmatprep.subr.mxu0 %v2189
  %2245 = vmatpush1.msra.mxu0 %v2188
  %2246 = vmatprep.subr.mxu0 %v2193
  %2247 = vmatpush1.msra.mxu0 %v2192
  %2248 = vmatprep.subr.mxu0 %v2197
  %2249 = vmatpush1.msra.mxu0 %v2196
  %2250 = vmatprep.subr.mxu0 %v2201
  %2251 = vmatpush1.msra.mxu0 %v2200
  %2252 = vmatprep.subr.mxu0 %v2205
  %2253 = vmatpush1.msra.mxu0 %v2204
  %2254 = vmatprep.subr.mxu0 %v2209
  %2255 = vmatpush1.msra.mxu0 %v2208
  %2256 = vmatprep.subr.mxu0 %v2213
  %2257 = vmatpush1.msra.mxu0 %v2212
  %2258 = vmatprep.subr.mxu0 %v2217
  %2259 = vmatpush1.msra.mxu0 %v2216
  %2260 = vmatprep.subr.mxu0 %v2221
  %2261 = vmatpush1.msra.mxu0 %v2220
  %2262 = vmatprep.subr.mxu0 %v2225
  %2263 = vmatpush1.msra.mxu0 %v2224
  %2264 = vmatprep.subr.mxu0 %v2229
  %2265 = vmatpush1.msra.mxu0 %v2228
  %2266 = vmatprep.subr.mxu0 %v2233
  %2267 = vmatpush1.msra.mxu0 %v2232
  %2268 = vmatprep.subr.mxu0 0.0
  %2269 = vmatpush1.msra.mxu0 0.0
  %2270 = vmatprep.subr.mxu0 0.0
  %2271 = vmatpush1.msra.mxu0 0.0
  %2272 = vmatprep.subr.mxu0 0.0
  %2273 = vmatpush1.msra.mxu0 0.0
  %2274 = vmatprep.subr.mxu0 0.0
  %2275 = vmatpush1.msra.mxu0 0.0
  %2276 = vmatprep.subr.mxu0 0.0
  %2277 = vmatpush1.msra.mxu0 0.0
  %2278 = vmatprep.subr.mxu0 0.0
  %2279 = vmatpush1.msra.mxu0 0.0
  %2280 = vmatprep.subr.mxu0 0.0
  %2281 = vmatpush1.msra.mxu0 0.0
  %2282 = vmatprep.subr.mxu0 0.0
  %2283 = vmatpush1.msra.mxu0 0.0
  %2284 = vmatprep.subr.mxu0 0.0
  %2285 = vmatpush1.msra.mxu0 0.0
  %2286 = vmatprep.subr.mxu0 0.0
  %2287 = vmatpush1.msra.mxu0 0.0
  %2288 = vmatprep.subr.mxu0 0.0
  %2289 = vmatpush1.msra.mxu0 0.0
  %2290 = vmatprep.subr.mxu0 0.0
  %2291 = vmatpush1.msra.mxu0 0.0
  %2292 = vmatprep.subr.mxu0 0.0
  %2293 = vmatpush1.msra.mxu0 0.0
  %2294 = vmatprep.subr.mxu0 0.0
  %2295 = vmatpush1.msra.mxu0 0.0
  %2296 = vmatprep.subr.mxu0 0.0
  %2297 = vmatpush1.msra.mxu0 0.0
  %2298 = vmatprep.subr.mxu0 0.0
  %2299 = vmatpush1.msra.mxu0 0.0
  %2300 = vmatprep.mubr.f32.mxu0 0.0
  %2301 = vmatmul.mubr.f32.gmra.mrb[0].mxu0 %v2168
  %v2302 = vpop.f32.mrb[0].mxu0
  %v2303 = vadd.f32 0.0, %v2302
  %v2304 = vpop.f32.mrb[0].mxu0
  %v2305 = vadd.f32 0.0, %v2304
  %2306 = vdwg.mxu0
  %2307 = vmatprep.subr.mxu0 %v2175
  %2308 = vmatpush1.msra.mxu0 %v2174
  %2309 = vmatprep.subr.mxu0 %v2179
  %2310 = vmatpush1.msra.mxu0 %v2178
  %2311 = vmatprep.subr.mxu0 %v2183
  %2312 = vmatpush1.msra.mxu0 %v2182
  %2313 = vmatprep.subr.mxu0 %v2187
  %2314 = vmatpush1.msra.mxu0 %v2186
  %2315 = vmatprep.subr.mxu0 %v2191
  %2316 = vmatpush1.msra.mxu0 %v2190
  %2317 = vmatprep.subr.mxu0 %v2195
  %2318 = vmatpush1.msra.mxu0 %v2194
  %2319 = vmatprep.subr.mxu0 %v2199
  %2320 = vmatpush1.msra.mxu0 %v2198
  %2321 = vmatprep.subr.mxu0 %v2203
  %2322 = vmatpush1.msra.mxu0 %v2202
  %2323 = vmatprep.subr.mxu0 %v2207
  %2324 = vmatpush1.msra.mxu0 %v2206
  %2325 = vmatprep.subr.mxu0 %v2211
  %2326 = vmatpush1.msra.mxu0 %v2210
  %2327 = vmatprep.subr.mxu0 %v2215
  %2328 = vmatpush1.msra.mxu0 %v2214
  %2329 = vmatprep.subr.mxu0 %v2219
  %2330 = vmatpush1.msra.mxu0 %v2218
  %2331 = vmatprep.subr.mxu0 %v2223
  %2332 = vmatpush1.msra.mxu0 %v2222
  %2333 = vmatprep.subr.mxu0 %v2227
  %2334 = vmatpush1.msra.mxu0 %v2226
  %2335 = vmatprep.subr.mxu0 %v2231
  %2336 = vmatpush1.msra.mxu0 %v2230
  %2337 = vmatprep.subr.mxu0 %v2235
  %2338 = vmatpush1.msra.mxu0 %v2234
  %2339 = vmatprep.subr.mxu0 0.0
  %2340 = vmatpush1.msra.mxu0 0.0
  %2341 = vmatprep.subr.mxu0 0.0
  %2342 = vmatpush1.msra.mxu0 0.0
  %2343 = vmatprep.subr.mxu0 0.0
  %2344 = vmatpush1.msra.mxu0 0.0
  %2345 = vmatprep.subr.mxu0 0.0
  %2346 = vmatpush1.msra.mxu0 0.0
  %2347 = vmatprep.subr.mxu0 0.0
  %2348 = vmatpush1.msra.mxu0 0.0
  %2349 = vmatprep.subr.mxu0 0.0
  %2350 = vmatpush1.msra.mxu0 0.0
  %2351 = vmatprep.subr.mxu0 0.0
  %2352 = vmatpush1.msra.mxu0 0.0
  %2353 = vmatprep.subr.mxu0 0.0
  %2354 = vmatpush1.msra.mxu0 0.0
  %2355 = vmatprep.subr.mxu0 0.0
  %2356 = vmatpush1.msra.mxu0 0.0
  %2357 = vmatprep.subr.mxu0 0.0
  %2358 = vmatpush1.msra.mxu0 0.0
  %2359 = vmatprep.subr.mxu0 0.0
  %2360 = vmatpush1.msra.mxu0 0.0
  %2361 = vmatprep.subr.mxu0 0.0
  %2362 = vmatpush1.msra.mxu0 0.0
  %2363 = vmatprep.subr.mxu0 0.0
  %2364 = vmatpush1.msra.mxu0 0.0
  %2365 = vmatprep.subr.mxu0 0.0
  %2366 = vmatpush1.msra.mxu0 0.0
  %2367 = vmatprep.subr.mxu0 0.0
  %2368 = vmatpush1.msra.mxu0 0.0
  %2369 = vmatprep.subr.mxu0 0.0
  %2370 = vmatpush1.msra.mxu0 0.0
  %2371 = vmatprep.mubr.f32.mxu0 0.0
  %2372 = vmatmul.mubr.f32.gmra.mrb[0].mxu0 %v2168
  %v2373 = vpop.f32.mrb[0].mxu0
  %v2374 = vadd.f32 0.0, %v2373
  %v2375 = vpop.f32.mrb[0].mxu0
  %v2376 = vadd.f32 0.0, %v2375
  %2377 = vdwg.mxu0
  %v2382 = vcombine.low %v2303, %v2305
  %v2383 = vcombine.low %v2374, %v2376
  %v2385 = vunpack.c.l.s4 1966171168
  %v2386 = vunpack.c.0.s8 %v2385
  %v2387 = vlaneseq
  %v2388 = vshrl.u32 %v2387, 7
  %v2389 = vsub.s32 %v2386, %v2388
  %v2390 = vrot.slane %v2382, %v2389
  %v2392 = vunpack.c.l.s4 1966171168
  %v2393 = vunpack.c.0.s8 %v2392
  %v2394 = vlaneseq
  %v2395 = vshrl.u32 %v2394, 7
  %v2396 = vsub.s32 %v2393, %v2395
  %v2397 = vrot.slane %v2383, %v2396
  %v2398 = vcombine.low %v2390, %v2397
  %v2400 = vunpack.c.l.s4 1966171168
  %v2401 = vunpack.c.0.s8 %v2400
  %v2402 = vlaneseq
  %v2403 = vshrl.u32 %v2402, 7
  %v2404 = vsub.s32 %v2401, %v2403
  %v2405 = vrot.slane %v2398, %v2404
  %v2407 = vadd.f32 %v2171, %v2405
  %v2408 = vxor.u32 %v2407, 2147483648
  %v2409 = vmul.f32 %v2408, 1.442695
  %v2410 = vpow.pop %v2409
  %v2411 = vadd.f32 %v2410, 1.0
  %v2412 = vrcp.pop %v2411
  %v2413 = vmul.f32 1.0, %v2412
  %v2415 = vrot.slane %v2407, 1
  %v2417 = vxor.u32 %v2415, 2147483648
  %v2418 = vmul.f32 %v2417, 1.442695
  %v2419 = vpow.pop %v2418
  %v2420 = vadd.f32 %v2419, 1.0
  %v2421 = vrcp.pop %v2420
  %v2422 = vmul.f32 1.0, %v2421
  %v2423 = vrot.slane %v2407, 2
  %v2425 = vtanh.pop %v2423
  %v2426 = vrot.slane %v2407, 3
  %v2428 = vxor.u32 %v2426, 2147483648
  %v2429 = vmul.f32 %v2428, 1.442695
  %v2430 = vpow.pop %v2429
  %v2431 = vadd.f32 %v2430, 1.0
  %v2432 = vrcp.pop %v2431
  %v2433 = vmul.f32 1.0, %v2432
  %v2434 = vmul.f32 %v2422, %v2166
  %v2435 = vmul.f32 %v2413, %v2425
  %v2436 = vadd.f32 %v2434, %v2435
  %v2437 = vtanh.pop %v2436
  %v2438 = vmul.f32 %v2433, %v2437
  %2439 = vst [vmem:[%s2 + $0x8] sm:$0x1] %v2438
  %s2440 = scalar_lea.vmem %s0, 41
  %v2441 = vld [vmem:[%s2440] ss:$8 sm:$0xf]
  %v2442 = vld [vmem:[%s1] sm:$0xff]
  %v2443 = vld [vmem:[%s1 + $0x8] sm:$0xff]
  %v2444 = vld [vmem:[%s1 + $0x10] sm:$0xff]
  %v2445 = vld [vmem:[%s1 + $0x18] sm:$0xff]
  %v2446 = vld [vmem:[%s1 + $0x20] sm:$0xff]
  %v2447 = vld [vmem:[%s1 + $0x28] sm:$0xff]
  %v2448 = vld [vmem:[%s1 + $0x30] sm:$0xff]
  %v2449 = vld [vmem:[%s1 + $0x38] sm:$0xff]
  %v2450 = vld [vmem:[%s1 + $0x40] sm:$0xff]
  %v2451 = vld [vmem:[%s1 + $0x48] sm:$0xff]
  %v2452 = vld [vmem:[%s1 + $0x50] sm:$0xff]
  %v2453 = vld [vmem:[%s1 + $0x58] sm:$0xff]
  %v2454 = vld [vmem:[%s1 + $0x60] sm:$0xff]
  %v2455 = vld [vmem:[%s1 + $0x68] sm:$0xff]
  %v2456 = vld [vmem:[%s1 + $0x70] sm:$0xff]
  %v2457 = vld [vmem:[%s1 + $0x78] sm:$0xff]
  %v2458 = vld [vmem:[%s1 + $0x80] sm:$0xff]
  %v2459 = vld [vmem:[%s1 + $0x88] sm:$0xff]
  %v2460 = vld [vmem:[%s1 + $0x90] sm:$0xff]
  %v2461 = vld [vmem:[%s1 + $0x98] sm:$0xff]
  %v2462 = vld [vmem:[%s1 + $0xa0] sm:$0xff]
  %v2463 = vld [vmem:[%s1 + $0xa8] sm:$0xff]
  %v2464 = vld [vmem:[%s1 + $0xb0] sm:$0xff]
  %v2465 = vld [vmem:[%s1 + $0xb8] sm:$0xff]
  %v2466 = vld [vmem:[%s1 + $0xc0] sm:$0xff]
  %v2467 = vld [vmem:[%s1 + $0xc8] sm:$0xff]
  %v2468 = vld [vmem:[%s1 + $0xd0] sm:$0xff]
  %v2469 = vld [vmem:[%s1 + $0xd8] sm:$0xff]
  %v2470 = vld [vmem:[%s1 + $0xe0] sm:$0xff]
  %v2471 = vld [vmem:[%s1 + $0xe8] sm:$0xff]
  %v2472 = vld [vmem:[%s1 + $0xf0] sm:$0xff]
  %v2473 = vld [vmem:[%s1 + $0xf8] sm:$0xff]
  %v2474 = vld [vmem:[%s1 + $0x100] sm:$0xff]
  %v2475 = vld [vmem:[%s1 + $0x108] sm:$0xff]
  %v2476 = vld [vmem:[%s1 + $0x110] sm:$0xff]
  %v2477 = vld [vmem:[%s1 + $0x118] sm:$0xff]
  %v2478 = vld [vmem:[%s1 + $0x120] sm:$0xff]
  %v2479 = vld [vmem:[%s1 + $0x128] sm:$0xff]
  %v2480 = vld [vmem:[%s1 + $0x130] sm:$0xff]
  %v2481 = vld [vmem:[%s1 + $0x138] sm:$0xff]
  %v2482 = vld [vmem:[%s1 + $0x140] sm:$0xff]
  %v2483 = vld [vmem:[%s1 + $0x148] sm:$0xff]
  %v2484 = vld [vmem:[%s1 + $0x150] sm:$0xff]
  %v2485 = vld [vmem:[%s1 + $0x158] sm:$0xff]
  %v2486 = vld [vmem:[%s1 + $0x160] sm:$0xff]
  %v2487 = vld [vmem:[%s1 + $0x168] sm:$0xff]
  %v2488 = vld [vmem:[%s1 + $0x170] sm:$0xff]
  %v2489 = vld [vmem:[%s1 + $0x178] sm:$0xff]
  %v2490 = vld [vmem:[%s1 + $0x180] sm:$0xff]
  %v2491 = vld [vmem:[%s1 + $0x188] sm:$0xff]
  %v2492 = vld [vmem:[%s1 + $0x190] sm:$0xff]
  %v2493 = vld [vmem:[%s1 + $0x198] sm:$0xff]
  %v2494 = vld [vmem:[%s1 + $0x1a0] sm:$0xff]
  %v2495 = vld [vmem:[%s1 + $0x1a8] sm:$0xff]
  %v2496 = vld [vmem:[%s1 + $0x1b0] sm:$0xff]
  %v2497 = vld [vmem:[%s1 + $0x1b8] sm:$0xff]
  %v2498 = vld [vmem:[%s1 + $0x1c0] sm:$0xff]
  %v2499 = vld [vmem:[%s1 + $0x1c8] sm:$0xff]
  %v2500 = vld [vmem:[%s1 + $0x1d0] sm:$0xff]
  %v2501 = vld [vmem:[%s1 + $0x1d8] sm:$0xff]
  %v2502 = vld [vmem:[%s1 + $0x1e0] sm:$0xff]
  %v2503 = vld [vmem:[%s1 + $0x1e8] sm:$0xff]
  %v2504 = vld [vmem:[%s1 + $0x1f0] sm:$0xff]
  %v2505 = vld [vmem:[%s1 + $0x1f8] sm:$0xff]
  %2506 = vmatprep.subr.mxu0 %v2443
  %2507 = vmatpush1.msra.mxu0 %v2442
  %2508 = vmatprep.subr.mxu0 %v2447
  %2509 = vmatpush1.msra.mxu0 %v2446
  %2510 = vmatprep.subr.mxu0 %v2451
  %2511 = vmatpush1.msra.mxu0 %v2450
  %2512 = vmatprep.subr.mxu0 %v2455
  %2513 = vmatpush1.msra.mxu0 %v2454
  %2514 = vmatprep.subr.mxu0 %v2459
  %2515 = vmatpush1.msra.mxu0 %v2458
  %2516 = vmatprep.subr.mxu0 %v2463
  %2517 = vmatpush1.msra.mxu0 %v2462
  %2518 = vmatprep.subr.mxu0 %v2467
  %2519 = vmatpush1.msra.mxu0 %v2466
  %2520 = vmatprep.subr.mxu0 %v2471
  %2521 = vmatpush1.msra.mxu0 %v2470
  %2522 = vmatprep.subr.mxu0 %v2475
  %2523 = vmatpush1.msra.mxu0 %v2474
  %2524 = vmatprep.subr.mxu0 %v2479
  %2525 = vmatpush1.msra.mxu0 %v2478
  %2526 = vmatprep.subr.mxu0 %v2483
  %2527 = vmatpush1.msra.mxu0 %v2482
  %2528 = vmatprep.subr.mxu0 %v2487
  %2529 = vmatpush1.msra.mxu0 %v2486
  %2530 = vmatprep.subr.mxu0 %v2491
  %2531 = vmatpush1.msra.mxu0 %v2490
  %2532 = vmatprep.subr.mxu0 %v2495
  %2533 = vmatpush1.msra.mxu0 %v2494
  %2534 = vmatprep.subr.mxu0 %v2499
  %2535 = vmatpush1.msra.mxu0 %v2498
  %2536 = vmatprep.subr.mxu0 %v2503
  %2537 = vmatpush1.msra.mxu0 %v2502
  %2538 = vmatprep.subr.mxu0 0.0
  %2539 = vmatpush1.msra.mxu0 0.0
  %2540 = vmatprep.subr.mxu0 0.0
  %2541 = vmatpush1.msra.mxu0 0.0
  %2542 = vmatprep.subr.mxu0 0.0
  %2543 = vmatpush1.msra.mxu0 0.0
  %2544 = vmatprep.subr.mxu0 0.0
  %2545 = vmatpush1.msra.mxu0 0.0
  %2546 = vmatprep.subr.mxu0 0.0
  %2547 = vmatpush1.msra.mxu0 0.0
  %2548 = vmatprep.subr.mxu0 0.0
  %2549 = vmatpush1.msra.mxu0 0.0
  %2550 = vmatprep.subr.mxu0 0.0
  %2551 = vmatpush1.msra.mxu0 0.0
  %2552 = vmatprep.subr.mxu0 0.0
  %2553 = vmatpush1.msra.mxu0 0.0
  %2554 = vmatprep.subr.mxu0 0.0
  %2555 = vmatpush1.msra.mxu0 0.0
  %2556 = vmatprep.subr.mxu0 0.0
  %2557 = vmatpush1.msra.mxu0 0.0
  %2558 = vmatprep.subr.mxu0 0.0
  %2559 = vmatpush1.msra.mxu0 0.0
  %2560 = vmatprep.subr.mxu0 0.0
  %2561 = vmatpush1.msra.mxu0 0.0
  %2562 = vmatprep.subr.mxu0 0.0
  %2563 = vmatpush1.msra.mxu0 0.0
  %2564 = vmatprep.subr.mxu0 0.0
  %2565 = vmatpush1.msra.mxu0 0.0
  %2566 = vmatprep.subr.mxu0 0.0
  %2567 = vmatpush1.msra.mxu0 0.0
  %2568 = vmatprep.subr.mxu0 0.0
  %2569 = vmatpush1.msra.mxu0 0.0
  %2570 = vmatprep.mubr.f32.mxu0 0.0
  %2571 = vmatmul.mubr.f32.gmra.mrb[0].mxu0 %v2438
  %v2572 = vpop.f32.mrb[0].mxu0
  %v2573 = vadd.f32 0.0, %v2572
  %v2574 = vpop.f32.mrb[0].mxu0
  %v2575 = vadd.f32 0.0, %v2574
  %2576 = vdwg.mxu0
  %2577 = vmatprep.subr.mxu0 %v2445
  %2578 = vmatpush1.msra.mxu0 %v2444
  %2579 = vmatprep.subr.mxu0 %v2449
  %2580 = vmatpush1.msra.mxu0 %v2448
  %2581 = vmatprep.subr.mxu0 %v2453
  %2582 = vmatpush1.msra.mxu0 %v2452
  %2583 = vmatprep.subr.mxu0 %v2457
  %2584 = vmatpush1.msra.mxu0 %v2456
  %2585 = vmatprep.subr.mxu0 %v2461
  %2586 = vmatpush1.msra.mxu0 %v2460
  %2587 = vmatprep.subr.mxu0 %v2465
  %2588 = vmatpush1.msra.mxu0 %v2464
  %2589 = vmatprep.subr.mxu0 %v2469
  %2590 = vmatpush1.msra.mxu0 %v2468
  %2591 = vmatprep.subr.mxu0 %v2473
  %2592 = vmatpush1.msra.mxu0 %v2472
  %2593 = vmatprep.subr.mxu0 %v2477
  %2594 = vmatpush1.msra.mxu0 %v2476
  %2595 = vmatprep.subr.mxu0 %v2481
  %2596 = vmatpush1.msra.mxu0 %v2480
  %2597 = vmatprep.subr.mxu0 %v2485
  %2598 = vmatpush1.msra.mxu0 %v2484
  %2599 = vmatprep.subr.mxu0 %v2489
  %2600 = vmatpush1.msra.mxu0 %v2488
  %2601 = vmatprep.subr.mxu0 %v2493
  %2602 = vmatpush1.msra.mxu0 %v2492
  %2603 = vmatprep.subr.mxu0 %v2497
  %2604 = vmatpush1.msra.mxu0 %v2496
  %2605 = vmatprep.subr.mxu0 %v2501
  %2606 = vmatpush1.msra.mxu0 %v2500
  %2607 = vmatprep.subr.mxu0 %v2505
  %2608 = vmatpush1.msra.mxu0 %v2504
  %2609 = vmatprep.subr.mxu0 0.0
  %2610 = vmatpush1.msra.mxu0 0.0
  %2611 = vmatprep.subr.mxu0 0.0
  %2612 = vmatpush1.msra.mxu0 0.0
  %2613 = vmatprep.subr.mxu0 0.0
  %2614 = vmatpush1.msra.mxu0 0.0
  %2615 = vmatprep.subr.mxu0 0.0
  %2616 = vmatpush1.msra.mxu0 0.0
  %2617 = vmatprep.subr.mxu0 0.0
  %2618 = vmatpush1.msra.mxu0 0.0
  %2619 = vmatprep.subr.mxu0 0.0
  %2620 = vmatpush1.msra.mxu0 0.0
  %2621 = vmatprep.subr.mxu0 0.0
  %2622 = vmatpush1.msra.mxu0 0.0
  %2623 = vmatprep.subr.mxu0 0.0
  %2624 = vmatpush1.msra.mxu0 0.0
  %2625 = vmatprep.subr.mxu0 0.0
  %2626 = vmatpush1.msra.mxu0 0.0
  %2627 = vmatprep.subr.mxu0 0.0
  %2628 = vmatpush1.msra.mxu0 0.0
  %2629 = vmatprep.subr.mxu0 0.0
  %2630 = vmatpush1.msra.mxu0 0.0
  %2631 = vmatprep.subr.mxu0 0.0
  %2632 = vmatpush1.msra.mxu0 0.0
  %2633 = vmatprep.subr.mxu0 0.0
  %2634 = vmatpush1.msra.mxu0 0.0
  %2635 = vmatprep.subr.mxu0 0.0
  %2636 = vmatpush1.msra.mxu0 0.0
  %2637 = vmatprep.subr.mxu0 0.0
  %2638 = vmatpush1.msra.mxu0 0.0
  %2639 = vmatprep.subr.mxu0 0.0
  %2640 = vmatpush1.msra.mxu0 0.0
  %2641 = vmatprep.mubr.f32.mxu0 0.0
  %2642 = vmatmul.mubr.f32.gmra.mrb[0].mxu0 %v2438
  %v2643 = vpop.f32.mrb[0].mxu0
  %v2644 = vadd.f32 0.0, %v2643
  %v2645 = vpop.f32.mrb[0].mxu0
  %v2646 = vadd.f32 0.0, %v2645
  %2647 = vdwg.mxu0
  %v2652 = vcombine.low %v2573, %v2575
  %v2653 = vcombine.low %v2644, %v2646
  %v2655 = vunpack.c.l.s4 1966171168
  %v2656 = vunpack.c.0.s8 %v2655
  %v2657 = vlaneseq
  %v2658 = vshrl.u32 %v2657, 7
  %v2659 = vsub.s32 %v2656, %v2658
  %v2660 = vrot.slane %v2652, %v2659
  %v2662 = vunpack.c.l.s4 1966171168
  %v2663 = vunpack.c.0.s8 %v2662
  %v2664 = vlaneseq
  %v2665 = vshrl.u32 %v2664, 7
  %v2666 = vsub.s32 %v2663, %v2665
  %v2667 = vrot.slane %v2653, %v2666
  %v2668 = vcombine.low %v2660, %v2667
  %v2670 = vunpack.c.l.s4 1966171168
  %v2671 = vunpack.c.0.s8 %v2670
  %v2672 = vlaneseq
  %v2673 = vshrl.u32 %v2672, 7
  %v2674 = vsub.s32 %v2671, %v2673
  %v2675 = vrot.slane %v2668, %v2674
  %v2677 = vadd.f32 %v2441, %v2675
  %v2678 = vxor.u32 %v2677, 2147483648
  %v2679 = vmul.f32 %v2678, 1.442695
  %v2680 = vpow.pop %v2679
  %v2681 = vadd.f32 %v2680, 1.0
  %v2682 = vrcp.pop %v2681
  %v2683 = vmul.f32 1.0, %v2682
  %v2685 = vrot.slane %v2677, 1
  %v2687 = vxor.u32 %v2685, 2147483648
  %v2688 = vmul.f32 %v2687, 1.442695
  %v2689 = vpow.pop %v2688
  %v2690 = vadd.f32 %v2689, 1.0
  %v2691 = vrcp.pop %v2690
  %v2692 = vmul.f32 1.0, %v2691
  %v2693 = vrot.slane %v2677, 2
  %v2695 = vtanh.pop %v2693
  %v2696 = vrot.slane %v2677, 3
  %v2698 = vxor.u32 %v2696, 2147483648
  %v2699 = vmul.f32 %v2698, 1.442695
  %v2700 = vpow.pop %v2699
  %v2701 = vadd.f32 %v2700, 1.0
  %v2702 = vrcp.pop %v2701
  %v2703 = vmul.f32 1.0, %v2702
  %v2704 = vmul.f32 %v2692, %v2436
  %v2705 = vmul.f32 %v2683, %v2695
  %v2706 = vadd.f32 %v2704, %v2705
  %v2707 = vtanh.pop %v2706
  %v2708 = vmul.f32 %v2703, %v2707
  %2709 = vst [vmem:[%s2 + $0x9] sm:$0x1] %v2708
  %s2710 = scalar_lea.vmem %s0, 42
  %v2711 = vld [vmem:[%s2710] ss:$8 sm:$0xf]
  %v2712 = vld [vmem:[%s1] sm:$0xff]
  %v2713 = vld [vmem:[%s1 + $0x8] sm:$0xff]
  %v2714 = vld [vmem:[%s1 + $0x10] sm:$0xff]
  %v2715 = vld [vmem:[%s1 + $0x18] sm:$0xff]
  %v2716 = vld [vmem:[%s1 + $0x20] sm:$0xff]
  %v2717 = vld [vmem:[%s1 + $0x28] sm:$0xff]
  %v2718 = vld [vmem:[%s1 + $0x30] sm:$0xff]
  %v2719 = vld [vmem:[%s1 + $0x38] sm:$0xff]
  %v2720 = vld [vmem:[%s1 + $0x40] sm:$0xff]
  %v2721 = vld [vmem:[%s1 + $0x48] sm:$0xff]
  %v2722 = vld [vmem:[%s1 + $0x50] sm:$0xff]
  %v2723 = vld [vmem:[%s1 + $0x58] sm:$0xff]
  %v2724 = vld [vmem:[%s1 + $0x60] sm:$0xff]
  %v2725 = vld [vmem:[%s1 + $0x68] sm:$0xff]
  %v2726 = vld [vmem:[%s1 + $0x70] sm:$0xff]
  %v2727 = vld [vmem:[%s1 + $0x78] sm:$0xff]
  %v2728 = vld [vmem:[%s1 + $0x80] sm:$0xff]
  %v2729 = vld [vmem:[%s1 + $0x88] sm:$0xff]
  %v2730 = vld [vmem:[%s1 + $0x90] sm:$0xff]
  %v2731 = vld [vmem:[%s1 + $0x98] sm:$0xff]
  %v2732 = vld [vmem:[%s1 + $0xa0] sm:$0xff]
  %v2733 = vld [vmem:[%s1 + $0xa8] sm:$0xff]
  %v2734 = vld [vmem:[%s1 + $0xb0] sm:$0xff]
  %v2735 = vld [vmem:[%s1 + $0xb8] sm:$0xff]
  %v2736 = vld [vmem:[%s1 + $0xc0] sm:$0xff]
  %v2737 = vld [vmem:[%s1 + $0xc8] sm:$0xff]
  %v2738 = vld [vmem:[%s1 + $0xd0] sm:$0xff]
  %v2739 = vld [vmem:[%s1 + $0xd8] sm:$0xff]
  %v2740 = vld [vmem:[%s1 + $0xe0] sm:$0xff]
  %v2741 = vld [vmem:[%s1 + $0xe8] sm:$0xff]
  %v2742 = vld [vmem:[%s1 + $0xf0] sm:$0xff]
  %v2743 = vld [vmem:[%s1 + $0xf8] sm:$0xff]
  %v2744 = vld [vmem:[%s1 + $0x100] sm:$0xff]
  %v2745 = vld [vmem:[%s1 + $0x108] sm:$0xff]
  %v2746 = vld [vmem:[%s1 + $0x110] sm:$0xff]
  %v2747 = vld [vmem:[%s1 + $0x118] sm:$0xff]
  %v2748 = vld [vmem:[%s1 + $0x120] sm:$0xff]
  %v2749 = vld [vmem:[%s1 + $0x128] sm:$0xff]
  %v2750 = vld [vmem:[%s1 + $0x130] sm:$0xff]
  %v2751 = vld [vmem:[%s1 + $0x138] sm:$0xff]
  %v2752 = vld [vmem:[%s1 + $0x140] sm:$0xff]
  %v2753 = vld [vmem:[%s1 + $0x148] sm:$0xff]
  %v2754 = vld [vmem:[%s1 + $0x150] sm:$0xff]
  %v2755 = vld [vmem:[%s1 + $0x158] sm:$0xff]
  %v2756 = vld [vmem:[%s1 + $0x160] sm:$0xff]
  %v2757 = vld [vmem:[%s1 + $0x168] sm:$0xff]
  %v2758 = vld [vmem:[%s1 + $0x170] sm:$0xff]
  %v2759 = vld [vmem:[%s1 + $0x178] sm:$0xff]
  %v2760 = vld [vmem:[%s1 + $0x180] sm:$0xff]
  %v2761 = vld [vmem:[%s1 + $0x188] sm:$0xff]
  %v2762 = vld [vmem:[%s1 + $0x190] sm:$0xff]
  %v2763 = vld [vmem:[%s1 + $0x198] sm:$0xff]
  %v2764 = vld [vmem:[%s1 + $0x1a0] sm:$0xff]
  %v2765 = vld [vmem:[%s1 + $0x1a8] sm:$0xff]
  %v2766 = vld [vmem:[%s1 + $0x1b0] sm:$0xff]
  %v2767 = vld [vmem:[%s1 + $0x1b8] sm:$0xff]
  %v2768 = vld [vmem:[%s1 + $0x1c0] sm:$0xff]
  %v2769 = vld [vmem:[%s1 + $0x1c8] sm:$0xff]
  %v2770 = vld [vmem:[%s1 + $0x1d0] sm:$0xff]
  %v2771 = vld [vmem:[%s1 + $0x1d8] sm:$0xff]
  %v2772 = vld [vmem:[%s1 + $0x1e0] sm:$0xff]
  %v2773 = vld [vmem:[%s1 + $0x1e8] sm:$0xff]
  %v2774 = vld [vmem:[%s1 + $0x1f0] sm:$0xff]
  %v2775 = vld [vmem:[%s1 + $0x1f8] sm:$0xff]
  %2776 = vmatprep.subr.mxu0 %v2713
  %2777 = vmatpush1.msra.mxu0 %v2712
  %2778 = vmatprep.subr.mxu0 %v2717
  %2779 = vmatpush1.msra.mxu0 %v2716
  %2780 = vmatprep.subr.mxu0 %v2721
  %2781 = vmatpush1.msra.mxu0 %v2720
  %2782 = vmatprep.subr.mxu0 %v2725
  %2783 = vmatpush1.msra.mxu0 %v2724
  %2784 = vmatprep.subr.mxu0 %v2729
  %2785 = vmatpush1.msra.mxu0 %v2728
  %2786 = vmatprep.subr.mxu0 %v2733
  %2787 = vmatpush1.msra.mxu0 %v2732
  %2788 = vmatprep.subr.mxu0 %v2737
  %2789 = vmatpush1.msra.mxu0 %v2736
  %2790 = vmatprep.subr.mxu0 %v2741
  %2791 = vmatpush1.msra.mxu0 %v2740
  %2792 = vmatprep.subr.mxu0 %v2745
  %2793 = vmatpush1.msra.mxu0 %v2744
  %2794 = vmatprep.subr.mxu0 %v2749
  %2795 = vmatpush1.msra.mxu0 %v2748
  %2796 = vmatprep.subr.mxu0 %v2753
  %2797 = vmatpush1.msra.mxu0 %v2752
  %2798 = vmatprep.subr.mxu0 %v2757
  %2799 = vmatpush1.msra.mxu0 %v2756
  %2800 = vmatprep.subr.mxu0 %v2761
  %2801 = vmatpush1.msra.mxu0 %v2760
  %2802 = vmatprep.subr.mxu0 %v2765
  %2803 = vmatpush1.msra.mxu0 %v2764
  %2804 = vmatprep.subr.mxu0 %v2769
  %2805 = vmatpush1.msra.mxu0 %v2768
  %2806 = vmatprep.subr.mxu0 %v2773
  %2807 = vmatpush1.msra.mxu0 %v2772
  %2808 = vmatprep.subr.mxu0 0.0
  %2809 = vmatpush1.msra.mxu0 0.0
  %2810 = vmatprep.subr.mxu0 0.0
  %2811 = vmatpush1.msra.mxu0 0.0
  %2812 = vmatprep.subr.mxu0 0.0
  %2813 = vmatpush1.msra.mxu0 0.0
  %2814 = vmatprep.subr.mxu0 0.0
  %2815 = vmatpush1.msra.mxu0 0.0
  %2816 = vmatprep.subr.mxu0 0.0
  %2817 = vmatpush1.msra.mxu0 0.0
  %2818 = vmatprep.subr.mxu0 0.0
  %2819 = vmatpush1.msra.mxu0 0.0
  %2820 = vmatprep.subr.mxu0 0.0
  %2821 = vmatpush1.msra.mxu0 0.0
  %2822 = vmatprep.subr.mxu0 0.0
  %2823 = vmatpush1.msra.mxu0 0.0
  %2824 = vmatprep.subr.mxu0 0.0
  %2825 = vmatpush1.msra.mxu0 0.0
  %2826 = vmatprep.subr.mxu0 0.0
  %2827 = vmatpush1.msra.mxu0 0.0
  %2828 = vmatprep.subr.mxu0 0.0
  %2829 = vmatpush1.msra.mxu0 0.0
  %2830 = vmatprep.subr.mxu0 0.0
  %2831 = vmatpush1.msra.mxu0 0.0
  %2832 = vmatprep.subr.mxu0 0.0
  %2833 = vmatpush1.msra.mxu0 0.0
  %2834 = vmatprep.subr.mxu0 0.0
  %2835 = vmatpush1.msra.mxu0 0.0
  %2836 = vmatprep.subr.mxu0 0.0
  %2837 = vmatpush1.msra.mxu0 0.0
  %2838 = vmatprep.subr.mxu0 0.0
  %2839 = vmatpush1.msra.mxu0 0.0
  %2840 = vmatprep.mubr.f32.mxu0 0.0
  %2841 = vmatmul.mubr.f32.gmra.mrb[0].mxu0 %v2708
  %v2842 = vpop.f32.mrb[0].mxu0
  %v2843 = vadd.f32 0.0, %v2842
  %v2844 = vpop.f32.mrb[0].mxu0
  %v2845 = vadd.f32 0.0, %v2844
  %2846 = vdwg.mxu0
  %2847 = vmatprep.subr.mxu0 %v2715
  %2848 = vmatpush1.msra.mxu0 %v2714
  %2849 = vmatprep.subr.mxu0 %v2719
  %2850 = vmatpush1.msra.mxu0 %v2718
  %2851 = vmatprep.subr.mxu0 %v2723
  %2852 = vmatpush1.msra.mxu0 %v2722
  %2853 = vmatprep.subr.mxu0 %v2727
  %2854 = vmatpush1.msra.mxu0 %v2726
  %2855 = vmatprep.subr.mxu0 %v2731
  %2856 = vmatpush1.msra.mxu0 %v2730
  %2857 = vmatprep.subr.mxu0 %v2735
  %2858 = vmatpush1.msra.mxu0 %v2734
  %2859 = vmatprep.subr.mxu0 %v2739
  %2860 = vmatpush1.msra.mxu0 %v2738
  %2861 = vmatprep.subr.mxu0 %v2743
  %2862 = vmatpush1.msra.mxu0 %v2742
  %2863 = vmatprep.subr.mxu0 %v2747
  %2864 = vmatpush1.msra.mxu0 %v2746
  %2865 = vmatprep.subr.mxu0 %v2751
  %2866 = vmatpush1.msra.mxu0 %v2750
  %2867 = vmatprep.subr.mxu0 %v2755
  %2868 = vmatpush1.msra.mxu0 %v2754
  %2869 = vmatprep.subr.mxu0 %v2759
  %2870 = vmatpush1.msra.mxu0 %v2758
  %2871 = vmatprep.subr.mxu0 %v2763
  %2872 = vmatpush1.msra.mxu0 %v2762
  %2873 = vmatprep.subr.mxu0 %v2767
  %2874 = vmatpush1.msra.mxu0 %v2766
  %2875 = vmatprep.subr.mxu0 %v2771
  %2876 = vmatpush1.msra.mxu0 %v2770
  %2877 = vmatprep.subr.mxu0 %v2775
  %2878 = vmatpush1.msra.mxu0 %v2774
  %2879 = vmatprep.subr.mxu0 0.0
  %2880 = vmatpush1.msra.mxu0 0.0
  %2881 = vmatprep.subr.mxu0 0.0
  %2882 = vmatpush1.msra.mxu0 0.0
  %2883 = vmatprep.subr.mxu0 0.0
  %2884 = vmatpush1.msra.mxu0 0.0
  %2885 = vmatprep.subr.mxu0 0.0
  %2886 = vmatpush1.msra.mxu0 0.0
  %2887 = vmatprep.subr.mxu0 0.0
  %2888 = vmatpush1.msra.mxu0 0.0
  %2889 = vmatprep.subr.mxu0 0.0
  %2890 = vmatpush1.msra.mxu0 0.0
  %2891 = vmatprep.subr.mxu0 0.0
  %2892 = vmatpush1.msra.mxu0 0.0
  %2893 = vmatprep.subr.mxu0 0.0
  %2894 = vmatpush1.msra.mxu0 0.0
  %2895 = vmatprep.subr.mxu0 0.0
  %2896 = vmatpush1.msra.mxu0 0.0
  %2897 = vmatprep.subr.mxu0 0.0
  %2898 = vmatpush1.msra.mxu0 0.0
  %2899 = vmatprep.subr.mxu0 0.0
  %2900 = vmatpush1.msra.mxu0 0.0
  %2901 = vmatprep.subr.mxu0 0.0
  %2902 = vmatpush1.msra.mxu0 0.0
  %2903 = vmatprep.subr.mxu0 0.0
  %2904 = vmatpush1.msra.mxu0 0.0
  %2905 = vmatprep.subr.mxu0 0.0
  %2906 = vmatpush1.msra.mxu0 0.0
  %2907 = vmatprep.subr.mxu0 0.0
  %2908 = vmatpush1.msra.mxu0 0.0
  %2909 = vmatprep.subr.mxu0 0.0
  %2910 = vmatpush1.msra.mxu0 0.0
  %2911 = vmatprep.mubr.f32.mxu0 0.0
  %2912 = vmatmul.mubr.f32.gmra.mrb[0].mxu0 %v2708
  %v2913 = vpop.f32.mrb[0].mxu0
  %v2914 = vadd.f32 0.0, %v2913
  %v2915 = vpop.f32.mrb[0].mxu0
  %v2916 = vadd.f32 0.0, %v2915
  %2917 = vdwg.mxu0
  %v2922 = vcombine.low %v2843, %v2845
  %v2923 = vcombine.low %v2914, %v2916
  %v2925 = vunpack.c.l.s4 1966171168
  %v2926 = vunpack.c.0.s8 %v2925
  %v2927 = vlaneseq
  %v2928 = vshrl.u32 %v2927, 7
  %v2929 = vsub.s32 %v2926, %v2928
  %v2930 = vrot.slane %v2922, %v2929
  %v2932 = vunpack.c.l.s4 1966171168
  %v2933 = vunpack.c.0.s8 %v2932
  %v2934 = vlaneseq
  %v2935 = vshrl.u32 %v2934, 7
  %v2936 = vsub.s32 %v2933, %v2935
  %v2937 = vrot.slane %v2923, %v2936
  %v2938 = vcombine.low %v2930, %v2937
  %v2940 = vunpack.c.l.s4 1966171168
  %v2941 = vunpack.c.0.s8 %v2940
  %v2942 = vlaneseq
  %v2943 = vshrl.u32 %v2942, 7
  %v2944 = vsub.s32 %v2941, %v2943
  %v2945 = vrot.slane %v2938, %v2944
  %v2947 = vadd.f32 %v2711, %v2945
  %v2948 = vxor.u32 %v2947, 2147483648
  %v2949 = vmul.f32 %v2948, 1.442695
  %v2950 = vpow.pop %v2949
  %v2951 = vadd.f32 %v2950, 1.0
  %v2952 = vrcp.pop %v2951
  %v2953 = vmul.f32 1.0, %v2952
  %v2955 = vrot.slane %v2947, 1
  %v2957 = vxor.u32 %v2955, 2147483648
  %v2958 = vmul.f32 %v2957, 1.442695
  %v2959 = vpow.pop %v2958
  %v2960 = vadd.f32 %v2959, 1.0
  %v2961 = vrcp.pop %v2960
  %v2962 = vmul.f32 1.0, %v2961
  %v2963 = vrot.slane %v2947, 2
  %v2965 = vtanh.pop %v2963
  %v2966 = vrot.slane %v2947, 3
  %v2968 = vxor.u32 %v2966, 2147483648
  %v2969 = vmul.f32 %v2968, 1.442695
  %v2970 = vpow.pop %v2969
  %v2971 = vadd.f32 %v2970, 1.0
  %v2972 = vrcp.pop %v2971
  %v2973 = vmul.f32 1.0, %v2972
  %v2974 = vmul.f32 %v2962, %v2706
  %v2975 = vmul.f32 %v2953, %v2965
  %v2976 = vadd.f32 %v2974, %v2975
  %v2977 = vtanh.pop %v2976
  %v2978 = vmul.f32 %v2973, %v2977
  %2979 = vst [vmem:[%s2 + $0xa] sm:$0x1] %v2978
  %s2980 = scalar_lea.vmem %s0, 43
  %v2981 = vld [vmem:[%s2980] ss:$8 sm:$0xf]
  %v2982 = vld [vmem:[%s1] sm:$0xff]
  %v2983 = vld [vmem:[%s1 + $0x8] sm:$0xff]
  %v2984 = vld [vmem:[%s1 + $0x10] sm:$0xff]
  %v2985 = vld [vmem:[%s1 + $0x18] sm:$0xff]
  %v2986 = vld [vmem:[%s1 + $0x20] sm:$0xff]
  %v2987 = vld [vmem:[%s1 + $0x28] sm:$0xff]
  %v2988 = vld [vmem:[%s1 + $0x30] sm:$0xff]
  %v2989 = vld [vmem:[%s1 + $0x38] sm:$0xff]
  %v2990 = vld [vmem:[%s1 + $0x40] sm:$0xff]
  %v2991 = vld [vmem:[%s1 + $0x48] sm:$0xff]
  %v2992 = vld [vmem:[%s1 + $0x50] sm:$0xff]
  %v2993 = vld [vmem:[%s1 + $0x58] sm:$0xff]
  %v2994 = vld [vmem:[%s1 + $0x60] sm:$0xff]
  %v2995 = vld [vmem:[%s1 + $0x68] sm:$0xff]
  %v2996 = vld [vmem:[%s1 + $0x70] sm:$0xff]
  %v2997 = vld [vmem:[%s1 + $0x78] sm:$0xff]
  %v2998 = vld [vmem:[%s1 + $0x80] sm:$0xff]
  %v2999 = vld [vmem:[%s1 + $0x88] sm:$0xff]
  %v3000 = vld [vmem:[%s1 + $0x90] sm:$0xff]
  %v3001 = vld [vmem:[%s1 + $0x98] sm:$0xff]
  %v3002 = vld [vmem:[%s1 + $0xa0] sm:$0xff]
  %v3003 = vld [vmem:[%s1 + $0xa8] sm:$0xff]
  %v3004 = vld [vmem:[%s1 + $0xb0] sm:$0xff]
  %v3005 = vld [vmem:[%s1 + $0xb8] sm:$0xff]
  %v3006 = vld [vmem:[%s1 + $0xc0] sm:$0xff]
  %v3007 = vld [vmem:[%s1 + $0xc8] sm:$0xff]
  %v3008 = vld [vmem:[%s1 + $0xd0] sm:$0xff]
  %v3009 = vld [vmem:[%s1 + $0xd8] sm:$0xff]
  %v3010 = vld [vmem:[%s1 + $0xe0] sm:$0xff]
  %v3011 = vld [vmem:[%s1 + $0xe8] sm:$0xff]
  %v3012 = vld [vmem:[%s1 + $0xf0] sm:$0xff]
  %v3013 = vld [vmem:[%s1 + $0xf8] sm:$0xff]
  %v3014 = vld [vmem:[%s1 + $0x100] sm:$0xff]
  %v3015 = vld [vmem:[%s1 + $0x108] sm:$0xff]
  %v3016 = vld [vmem:[%s1 + $0x110] sm:$0xff]
  %v3017 = vld [vmem:[%s1 + $0x118] sm:$0xff]
  %v3018 = vld [vmem:[%s1 + $0x120] sm:$0xff]
  %v3019 = vld [vmem:[%s1 + $0x128] sm:$0xff]
  %v3020 = vld [vmem:[%s1 + $0x130] sm:$0xff]
  %v3021 = vld [vmem:[%s1 + $0x138] sm:$0xff]
  %v3022 = vld [vmem:[%s1 + $0x140] sm:$0xff]
  %v3023 = vld [vmem:[%s1 + $0x148] sm:$0xff]
  %v3024 = vld [vmem:[%s1 + $0x150] sm:$0xff]
  %v3025 = vld [vmem:[%s1 + $0x158] sm:$0xff]
  %v3026 = vld [vmem:[%s1 + $0x160] sm:$0xff]
  %v3027 = vld [vmem:[%s1 + $0x168] sm:$0xff]
  %v3028 = vld [vmem:[%s1 + $0x170] sm:$0xff]
  %v3029 = vld [vmem:[%s1 + $0x178] sm:$0xff]
  %v3030 = vld [vmem:[%s1 + $0x180] sm:$0xff]
  %v3031 = vld [vmem:[%s1 + $0x188] sm:$0xff]
  %v3032 = vld [vmem:[%s1 + $0x190] sm:$0xff]
  %v3033 = vld [vmem:[%s1 + $0x198] sm:$0xff]
  %v3034 = vld [vmem:[%s1 + $0x1a0] sm:$0xff]
  %v3035 = vld [vmem:[%s1 + $0x1a8] sm:$0xff]
  %v3036 = vld [vmem:[%s1 + $0x1b0] sm:$0xff]
  %v3037 = vld [vmem:[%s1 + $0x1b8] sm:$0xff]
  %v3038 = vld [vmem:[%s1 + $0x1c0] sm:$0xff]
  %v3039 = vld [vmem:[%s1 + $0x1c8] sm:$0xff]
  %v3040 = vld [vmem:[%s1 + $0x1d0] sm:$0xff]
  %v3041 = vld [vmem:[%s1 + $0x1d8] sm:$0xff]
  %v3042 = vld [vmem:[%s1 + $0x1e0] sm:$0xff]
  %v3043 = vld [vmem:[%s1 + $0x1e8] sm:$0xff]
  %v3044 = vld [vmem:[%s1 + $0x1f0] sm:$0xff]
  %v3045 = vld [vmem:[%s1 + $0x1f8] sm:$0xff]
  %3046 = vmatprep.subr.mxu0 %v2983
  %3047 = vmatpush1.msra.mxu0 %v2982
  %3048 = vmatprep.subr.mxu0 %v2987
  %3049 = vmatpush1.msra.mxu0 %v2986
  %3050 = vmatprep.subr.mxu0 %v2991
  %3051 = vmatpush1.msra.mxu0 %v2990
  %3052 = vmatprep.subr.mxu0 %v2995
  %3053 = vmatpush1.msra.mxu0 %v2994
  %3054 = vmatprep.subr.mxu0 %v2999
  %3055 = vmatpush1.msra.mxu0 %v2998
  %3056 = vmatprep.subr.mxu0 %v3003
  %3057 = vmatpush1.msra.mxu0 %v3002
  %3058 = vmatprep.subr.mxu0 %v3007
  %3059 = vmatpush1.msra.mxu0 %v3006
  %3060 = vmatprep.subr.mxu0 %v3011
  %3061 = vmatpush1.msra.mxu0 %v3010
  %3062 = vmatprep.subr.mxu0 %v3015
  %3063 = vmatpush1.msra.mxu0 %v3014
  %3064 = vmatprep.subr.mxu0 %v3019
  %3065 = vmatpush1.msra.mxu0 %v3018
  %3066 = vmatprep.subr.mxu0 %v3023
  %3067 = vmatpush1.msra.mxu0 %v3022
  %3068 = vmatprep.subr.mxu0 %v3027
  %3069 = vmatpush1.msra.mxu0 %v3026
  %3070 = vmatprep.subr.mxu0 %v3031
  %3071 = vmatpush1.msra.mxu0 %v3030
  %3072 = vmatprep.subr.mxu0 %v3035
  %3073 = vmatpush1.msra.mxu0 %v3034
  %3074 = vmatprep.subr.mxu0 %v3039
  %3075 = vmatpush1.msra.mxu0 %v3038
  %3076 = vmatprep.subr.mxu0 %v3043
  %3077 = vmatpush1.msra.mxu0 %v3042
  %3078 = vmatprep.subr.mxu0 0.0
  %3079 = vmatpush1.msra.mxu0 0.0
  %3080 = vmatprep.subr.mxu0 0.0
  %3081 = vmatpush1.msra.mxu0 0.0
  %3082 = vmatprep.subr.mxu0 0.0
  %3083 = vmatpush1.msra.mxu0 0.0
  %3084 = vmatprep.subr.mxu0 0.0
  %3085 = vmatpush1.msra.mxu0 0.0
  %3086 = vmatprep.subr.mxu0 0.0
  %3087 = vmatpush1.msra.mxu0 0.0
  %3088 = vmatprep.subr.mxu0 0.0
  %3089 = vmatpush1.msra.mxu0 0.0
  %3090 = vmatprep.subr.mxu0 0.0
  %3091 = vmatpush1.msra.mxu0 0.0
  %3092 = vmatprep.subr.mxu0 0.0
  %3093 = vmatpush1.msra.mxu0 0.0
  %3094 = vmatprep.subr.mxu0 0.0
  %3095 = vmatpush1.msra.mxu0 0.0
  %3096 = vmatprep.subr.mxu0 0.0
  %3097 = vmatpush1.msra.mxu0 0.0
  %3098 = vmatprep.subr.mxu0 0.0
  %3099 = vmatpush1.msra.mxu0 0.0
  %3100 = vmatprep.subr.mxu0 0.0
  %3101 = vmatpush1.msra.mxu0 0.0
  %3102 = vmatprep.subr.mxu0 0.0
  %3103 = vmatpush1.msra.mxu0 0.0
  %3104 = vmatprep.subr.mxu0 0.0
  %3105 = vmatpush1.msra.mxu0 0.0
  %3106 = vmatprep.subr.mxu0 0.0
  %3107 = vmatpush1.msra.mxu0 0.0
  %3108 = vmatprep.subr.mxu0 0.0
  %3109 = vmatpush1.msra.mxu0 0.0
  %3110 = vmatprep.mubr.f32.mxu0 0.0
  %3111 = vmatmul.mubr.f32.gmra.mrb[0].mxu0 %v2978
  %v3112 = vpop.f32.mrb[0].mxu0
  %v3113 = vadd.f32 0.0, %v3112
  %v3114 = vpop.f32.mrb[0].mxu0
  %v3115 = vadd.f32 0.0, %v3114
  %3116 = vdwg.mxu0
  %3117 = vmatprep.subr.mxu0 %v2985
  %3118 = vmatpush1.msra.mxu0 %v2984
  %3119 = vmatprep.subr.mxu0 %v2989
  %3120 = vmatpush1.msra.mxu0 %v2988
  %3121 = vmatprep.subr.mxu0 %v2993
  %3122 = vmatpush1.msra.mxu0 %v2992
  %3123 = vmatprep.subr.mxu0 %v2997
  %3124 = vmatpush1.msra.mxu0 %v2996
  %3125 = vmatprep.subr.mxu0 %v3001
  %3126 = vmatpush1.msra.mxu0 %v3000
  %3127 = vmatprep.subr.mxu0 %v3005
  %3128 = vmatpush1.msra.mxu0 %v3004
  %3129 = vmatprep.subr.mxu0 %v3009
  %3130 = vmatpush1.msra.mxu0 %v3008
  %3131 = vmatprep.subr.mxu0 %v3013
  %3132 = vmatpush1.msra.mxu0 %v3012
  %3133 = vmatprep.subr.mxu0 %v3017
  %3134 = vmatpush1.msra.mxu0 %v3016
  %3135 = vmatprep.subr.mxu0 %v3021
  %3136 = vmatpush1.msra.mxu0 %v3020
  %3137 = vmatprep.subr.mxu0 %v3025
  %3138 = vmatpush1.msra.mxu0 %v3024
  %3139 = vmatprep.subr.mxu0 %v3029
  %3140 = vmatpush1.msra.mxu0 %v3028
  %3141 = vmatprep.subr.mxu0 %v3033
  %3142 = vmatpush1.msra.mxu0 %v3032
  %3143 = vmatprep.subr.mxu0 %v3037
  %3144 = vmatpush1.msra.mxu0 %v3036
  %3145 = vmatprep.subr.mxu0 %v3041
  %3146 = vmatpush1.msra.mxu0 %v3040
  %3147 = vmatprep.subr.mxu0 %v3045
  %3148 = vmatpush1.msra.mxu0 %v3044
  %3149 = vmatprep.subr.mxu0 0.0
  %3150 = vmatpush1.msra.mxu0 0.0
  %3151 = vmatprep.subr.mxu0 0.0
  %3152 = vmatpush1.msra.mxu0 0.0
  %3153 = vmatprep.subr.mxu0 0.0
  %3154 = vmatpush1.msra.mxu0 0.0
  %3155 = vmatprep.subr.mxu0 0.0
  %3156 = vmatpush1.msra.mxu0 0.0
  %3157 = vmatprep.subr.mxu0 0.0
  %3158 = vmatpush1.msra.mxu0 0.0
  %3159 = vmatprep.subr.mxu0 0.0
  %3160 = vmatpush1.msra.mxu0 0.0
  %3161 = vmatprep.subr.mxu0 0.0
  %3162 = vmatpush1.msra.mxu0 0.0
  %3163 = vmatprep.subr.mxu0 0.0
  %3164 = vmatpush1.msra.mxu0 0.0
  %3165 = vmatprep.subr.mxu0 0.0
  %3166 = vmatpush1.msra.mxu0 0.0
  %3167 = vmatprep.subr.mxu0 0.0
  %3168 = vmatpush1.msra.mxu0 0.0
  %3169 = vmatprep.subr.mxu0 0.0
  %3170 = vmatpush1.msra.mxu0 0.0
  %3171 = vmatprep.subr.mxu0 0.0
  %3172 = vmatpush1.msra.mxu0 0.0
  %3173 = vmatprep.subr.mxu0 0.0
  %3174 = vmatpush1.msra.mxu0 0.0
  %3175 = vmatprep.subr.mxu0 0.0
  %3176 = vmatpush1.msra.mxu0 0.0
  %3177 = vmatprep.subr.mxu0 0.0
  %3178 = vmatpush1.msra.mxu0 0.0
  %3179 = vmatprep.subr.mxu0 0.0
  %3180 = vmatpush1.msra.mxu0 0.0
  %3181 = vmatprep.mubr.f32.mxu0 0.0
  %3182 = vmatmul.mubr.f32.gmra.mrb[0].mxu0 %v2978
  %v3183 = vpop.f32.mrb[0].mxu0
  %v3184 = vadd.f32 0.0, %v3183
  %v3185 = vpop.f32.mrb[0].mxu0
  %v3186 = vadd.f32 0.0, %v3185
  %3187 = vdwg.mxu0
  %v3192 = vcombine.low %v3113, %v3115
  %v3193 = vcombine.low %v3184, %v3186
  %v3195 = vunpack.c.l.s4 1966171168
  %v3196 = vunpack.c.0.s8 %v3195
  %v3197 = vlaneseq
  %v3198 = vshrl.u32 %v3197, 7
  %v3199 = vsub.s32 %v3196, %v3198
  %v3200 = vrot.slane %v3192, %v3199
  %v3202 = vunpack.c.l.s4 1966171168
  %v3203 = vunpack.c.0.s8 %v3202
  %v3204 = vlaneseq
  %v3205 = vshrl.u32 %v3204, 7
  %v3206 = vsub.s32 %v3203, %v3205
  %v3207 = vrot.slane %v3193, %v3206
  %v3208 = vcombine.low %v3200, %v3207
  %v3210 = vunpack.c.l.s4 1966171168
  %v3211 = vunpack.c.0.s8 %v3210
  %v3212 = vlaneseq
  %v3213 = vshrl.u32 %v3212, 7
  %v3214 = vsub.s32 %v3211, %v3213
  %v3215 = vrot.slane %v3208, %v3214
  %v3217 = vadd.f32 %v2981, %v3215
  %v3218 = vxor.u32 %v3217, 2147483648
  %v3219 = vmul.f32 %v3218, 1.442695
  %v3220 = vpow.pop %v3219
  %v3221 = vadd.f32 %v3220, 1.0
  %v3222 = vrcp.pop %v3221
  %v3223 = vmul.f32 1.0, %v3222
  %v3225 = vrot.slane %v3217, 1
  %v3227 = vxor.u32 %v3225, 2147483648
  %v3228 = vmul.f32 %v3227, 1.442695
  %v3229 = vpow.pop %v3228
  %v3230 = vadd.f32 %v3229, 1.0
  %v3231 = vrcp.pop %v3230
  %v3232 = vmul.f32 1.0, %v3231
  %v3233 = vrot.slane %v3217, 2
  %v3235 = vtanh.pop %v3233
  %v3236 = vrot.slane %v3217, 3
  %v3238 = vxor.u32 %v3236, 2147483648
  %v3239 = vmul.f32 %v3238, 1.442695
  %v3240 = vpow.pop %v3239
  %v3241 = vadd.f32 %v3240, 1.0
  %v3242 = vrcp.pop %v3241
  %v3243 = vmul.f32 1.0, %v3242
  %v3244 = vmul.f32 %v3232, %v2976
  %v3245 = vmul.f32 %v3223, %v3235
  %v3246 = vadd.f32 %v3244, %v3245
  %v3247 = vtanh.pop %v3246
  %v3248 = vmul.f32 %v3243, %v3247
  %3249 = vst [vmem:[%s2 + $0xb] sm:$0x1] %v3248
  %s3250 = scalar_lea.vmem %s0, 44
  %v3251 = vld [vmem:[%s3250] ss:$8 sm:$0xf]
  %v3252 = vld [vmem:[%s1] sm:$0xff]
  %v3253 = vld [vmem:[%s1 + $0x8] sm:$0xff]
  %v3254 = vld [vmem:[%s1 + $0x10] sm:$0xff]
  %v3255 = vld [vmem:[%s1 + $0x18] sm:$0xff]
  %v3256 = vld [vmem:[%s1 + $0x20] sm:$0xff]
  %v3257 = vld [vmem:[%s1 + $0x28] sm:$0xff]
  %v3258 = vld [vmem:[%s1 + $0x30] sm:$0xff]
  %v3259 = vld [vmem:[%s1 + $0x38] sm:$0xff]
  %v3260 = vld [vmem:[%s1 + $0x40] sm:$0xff]
  %v3261 = vld [vmem:[%s1 + $0x48] sm:$0xff]
  %v3262 = vld [vmem:[%s1 + $0x50] sm:$0xff]
  %v3263 = vld [vmem:[%s1 + $0x58] sm:$0xff]
  %v3264 = vld [vmem:[%s1 + $0x60] sm:$0xff]
  %v3265 = vld [vmem:[%s1 + $0x68] sm:$0xff]
  %v3266 = vld [vmem:[%s1 + $0x70] sm:$0xff]
  %v3267 = vld [vmem:[%s1 + $0x78] sm:$0xff]
  %v3268 = vld [vmem:[%s1 + $0x80] sm:$0xff]
  %v3269 = vld [vmem:[%s1 + $0x88] sm:$0xff]
  %v3270 = vld [vmem:[%s1 + $0x90] sm:$0xff]
  %v3271 = vld [vmem:[%s1 + $0x98] sm:$0xff]
  %v3272 = vld [vmem:[%s1 + $0xa0] sm:$0xff]
  %v3273 = vld [vmem:[%s1 + $0xa8] sm:$0xff]
  %v3274 = vld [vmem:[%s1 + $0xb0] sm:$0xff]
  %v3275 = vld [vmem:[%s1 + $0xb8] sm:$0xff]
  %v3276 = vld [vmem:[%s1 + $0xc0] sm:$0xff]
  %v3277 = vld [vmem:[%s1 + $0xc8] sm:$0xff]
  %v3278 = vld [vmem:[%s1 + $0xd0] sm:$0xff]
  %v3279 = vld [vmem:[%s1 + $0xd8] sm:$0xff]
  %v3280 = vld [vmem:[%s1 + $0xe0] sm:$0xff]
  %v3281 = vld [vmem:[%s1 + $0xe8] sm:$0xff]
  %v3282 = vld [vmem:[%s1 + $0xf0] sm:$0xff]
  %v3283 = vld [vmem:[%s1 + $0xf8] sm:$0xff]
  %v3284 = vld [vmem:[%s1 + $0x100] sm:$0xff]
  %v3285 = vld [vmem:[%s1 + $0x108] sm:$0xff]
  %v3286 = vld [vmem:[%s1 + $0x110] sm:$0xff]
  %v3287 = vld [vmem:[%s1 + $0x118] sm:$0xff]
  %v3288 = vld [vmem:[%s1 + $0x120] sm:$0xff]
  %v3289 = vld [vmem:[%s1 + $0x128] sm:$0xff]
  %v3290 = vld [vmem:[%s1 + $0x130] sm:$0xff]
  %v3291 = vld [vmem:[%s1 + $0x138] sm:$0xff]
  %v3292 = vld [vmem:[%s1 + $0x140] sm:$0xff]
  %v3293 = vld [vmem:[%s1 + $0x148] sm:$0xff]
  %v3294 = vld [vmem:[%s1 + $0x150] sm:$0xff]
  %v3295 = vld [vmem:[%s1 + $0x158] sm:$0xff]
  %v3296 = vld [vmem:[%s1 + $0x160] sm:$0xff]
  %v3297 = vld [vmem:[%s1 + $0x168] sm:$0xff]
  %v3298 = vld [vmem:[%s1 + $0x170] sm:$0xff]
  %v3299 = vld [vmem:[%s1 + $0x178] sm:$0xff]
  %v3300 = vld [vmem:[%s1 + $0x180] sm:$0xff]
  %v3301 = vld [vmem:[%s1 + $0x188] sm:$0xff]
  %v3302 = vld [vmem:[%s1 + $0x190] sm:$0xff]
  %v3303 = vld [vmem:[%s1 + $0x198] sm:$0xff]
  %v3304 = vld [vmem:[%s1 + $0x1a0] sm:$0xff]
  %v3305 = vld [vmem:[%s1 + $0x1a8] sm:$0xff]
  %v3306 = vld [vmem:[%s1 + $0x1b0] sm:$0xff]
  %v3307 = vld [vmem:[%s1 + $0x1b8] sm:$0xff]
  %v3308 = vld [vmem:[%s1 + $0x1c0] sm:$0xff]
  %v3309 = vld [vmem:[%s1 + $0x1c8] sm:$0xff]
  %v3310 = vld [vmem:[%s1 + $0x1d0] sm:$0xff]
  %v3311 = vld [vmem:[%s1 + $0x1d8] sm:$0xff]
  %v3312 = vld [vmem:[%s1 + $0x1e0] sm:$0xff]
  %v3313 = vld [vmem:[%s1 + $0x1e8] sm:$0xff]
  %v3314 = vld [vmem:[%s1 + $0x1f0] sm:$0xff]
  %v3315 = vld [vmem:[%s1 + $0x1f8] sm:$0xff]
  %3316 = vmatprep.subr.mxu0 %v3253
  %3317 = vmatpush1.msra.mxu0 %v3252
  %3318 = vmatprep.subr.mxu0 %v3257
  %3319 = vmatpush1.msra.mxu0 %v3256
  %3320 = vmatprep.subr.mxu0 %v3261
  %3321 = vmatpush1.msra.mxu0 %v3260
  %3322 = vmatprep.subr.mxu0 %v3265
  %3323 = vmatpush1.msra.mxu0 %v3264
  %3324 = vmatprep.subr.mxu0 %v3269
  %3325 = vmatpush1.msra.mxu0 %v3268
  %3326 = vmatprep.subr.mxu0 %v3273
  %3327 = vmatpush1.msra.mxu0 %v3272
  %3328 = vmatprep.subr.mxu0 %v3277
  %3329 = vmatpush1.msra.mxu0 %v3276
  %3330 = vmatprep.subr.mxu0 %v3281
  %3331 = vmatpush1.msra.mxu0 %v3280
  %3332 = vmatprep.subr.mxu0 %v3285
  %3333 = vmatpush1.msra.mxu0 %v3284
  %3334 = vmatprep.subr.mxu0 %v3289
  %3335 = vmatpush1.msra.mxu0 %v3288
  %3336 = vmatprep.subr.mxu0 %v3293
  %3337 = vmatpush1.msra.mxu0 %v3292
  %3338 = vmatprep.subr.mxu0 %v3297
  %3339 = vmatpush1.msra.mxu0 %v3296
  %3340 = vmatprep.subr.mxu0 %v3301
  %3341 = vmatpush1.msra.mxu0 %v3300
  %3342 = vmatprep.subr.mxu0 %v3305
  %3343 = vmatpush1.msra.mxu0 %v3304
  %3344 = vmatprep.subr.mxu0 %v3309
  %3345 = vmatpush1.msra.mxu0 %v3308
  %3346 = vmatprep.subr.mxu0 %v3313
  %3347 = vmatpush1.msra.mxu0 %v3312
  %3348 = vmatprep.subr.mxu0 0.0
  %3349 = vmatpush1.msra.mxu0 0.0
  %3350 = vmatprep.subr.mxu0 0.0
  %3351 = vmatpush1.msra.mxu0 0.0
  %3352 = vmatprep.subr.mxu0 0.0
  %3353 = vmatpush1.msra.mxu0 0.0
  %3354 = vmatprep.subr.mxu0 0.0
  %3355 = vmatpush1.msra.mxu0 0.0
  %3356 = vmatprep.subr.mxu0 0.0
  %3357 = vmatpush1.msra.mxu0 0.0
  %3358 = vmatprep.subr.mxu0 0.0
  %3359 = vmatpush1.msra.mxu0 0.0
  %3360 = vmatprep.subr.mxu0 0.0
  %3361 = vmatpush1.msra.mxu0 0.0
  %3362 = vmatprep.subr.mxu0 0.0
  %3363 = vmatpush1.msra.mxu0 0.0
  %3364 = vmatprep.subr.mxu0 0.0
  %3365 = vmatpush1.msra.mxu0 0.0
  %3366 = vmatprep.subr.mxu0 0.0
  %3367 = vmatpush1.msra.mxu0 0.0
  %3368 = vmatprep.subr.mxu0 0.0
  %3369 = vmatpush1.msra.mxu0 0.0
  %3370 = vmatprep.subr.mxu0 0.0
  %3371 = vmatpush1.msra.mxu0 0.0
  %3372 = vmatprep.subr.mxu0 0.0
  %3373 = vmatpush1.msra.mxu0 0.0
  %3374 = vmatprep.subr.mxu0 0.0
  %3375 = vmatpush1.msra.mxu0 0.0
  %3376 = vmatprep.subr.mxu0 0.0
  %3377 = vmatpush1.msra.mxu0 0.0
  %3378 = vmatprep.subr.mxu0 0.0
  %3379 = vmatpush1.msra.mxu0 0.0
  %3380 = vmatprep.mubr.f32.mxu0 0.0
  %3381 = vmatmul.mubr.f32.gmra.mrb[0].mxu0 %v3248
  %v3382 = vpop.f32.mrb[0].mxu0
  %v3383 = vadd.f32 0.0, %v3382
  %v3384 = vpop.f32.mrb[0].mxu0
  %v3385 = vadd.f32 0.0, %v3384
  %3386 = vdwg.mxu0
  %3387 = vmatprep.subr.mxu0 %v3255
  %3388 = vmatpush1.msra.mxu0 %v3254
  %3389 = vmatprep.subr.mxu0 %v3259
  %3390 = vmatpush1.msra.mxu0 %v3258
  %3391 = vmatprep.subr.mxu0 %v3263
  %3392 = vmatpush1.msra.mxu0 %v3262
  %3393 = vmatprep.subr.mxu0 %v3267
  %3394 = vmatpush1.msra.mxu0 %v3266
  %3395 = vmatprep.subr.mxu0 %v3271
  %3396 = vmatpush1.msra.mxu0 %v3270
  %3397 = vmatprep.subr.mxu0 %v3275
  %3398 = vmatpush1.msra.mxu0 %v3274
  %3399 = vmatprep.subr.mxu0 %v3279
  %3400 = vmatpush1.msra.mxu0 %v3278
  %3401 = vmatprep.subr.mxu0 %v3283
  %3402 = vmatpush1.msra.mxu0 %v3282
  %3403 = vmatprep.subr.mxu0 %v3287
  %3404 = vmatpush1.msra.mxu0 %v3286
  %3405 = vmatprep.subr.mxu0 %v3291
  %3406 = vmatpush1.msra.mxu0 %v3290
  %3407 = vmatprep.subr.mxu0 %v3295
  %3408 = vmatpush1.msra.mxu0 %v3294
  %3409 = vmatprep.subr.mxu0 %v3299
  %3410 = vmatpush1.msra.mxu0 %v3298
  %3411 = vmatprep.subr.mxu0 %v3303
  %3412 = vmatpush1.msra.mxu0 %v3302
  %3413 = vmatprep.subr.mxu0 %v3307
  %3414 = vmatpush1.msra.mxu0 %v3306
  %3415 = vmatprep.subr.mxu0 %v3311
  %3416 = vmatpush1.msra.mxu0 %v3310
  %3417 = vmatprep.subr.mxu0 %v3315
  %3418 = vmatpush1.msra.mxu0 %v3314
  %3419 = vmatprep.subr.mxu0 0.0
  %3420 = vmatpush1.msra.mxu0 0.0
  %3421 = vmatprep.subr.mxu0 0.0
  %3422 = vmatpush1.msra.mxu0 0.0
  %3423 = vmatprep.subr.mxu0 0.0
  %3424 = vmatpush1.msra.mxu0 0.0
  %3425 = vmatprep.subr.mxu0 0.0
  %3426 = vmatpush1.msra.mxu0 0.0
  %3427 = vmatprep.subr.mxu0 0.0
  %3428 = vmatpush1.msra.mxu0 0.0
  %3429 = vmatprep.subr.mxu0 0.0
  %3430 = vmatpush1.msra.mxu0 0.0
  %3431 = vmatprep.subr.mxu0 0.0
  %3432 = vmatpush1.msra.mxu0 0.0
  %3433 = vmatprep.subr.mxu0 0.0
  %3434 = vmatpush1.msra.mxu0 0.0
  %3435 = vmatprep.subr.mxu0 0.0
  %3436 = vmatpush1.msra.mxu0 0.0
  %3437 = vmatprep.subr.mxu0 0.0
  %3438 = vmatpush1.msra.mxu0 0.0
  %3439 = vmatprep.subr.mxu0 0.0
  %3440 = vmatpush1.msra.mxu0 0.0
  %3441 = vmatprep.subr.mxu0 0.0
  %3442 = vmatpush1.msra.mxu0 0.0
  %3443 = vmatprep.subr.mxu0 0.0
  %3444 = vmatpush1.msra.mxu0 0.0
  %3445 = vmatprep.subr.mxu0 0.0
  %3446 = vmatpush1.msra.mxu0 0.0
  %3447 = vmatprep.subr.mxu0 0.0
  %3448 = vmatpush1.msra.mxu0 0.0
  %3449 = vmatprep.subr.mxu0 0.0
  %3450 = vmatpush1.msra.mxu0 0.0
  %3451 = vmatprep.mubr.f32.mxu0 0.0
  %3452 = vmatmul.mubr.f32.gmra.mrb[0].mxu0 %v3248
  %v3453 = vpop.f32.mrb[0].mxu0
  %v3454 = vadd.f32 0.0, %v3453
  %v3455 = vpop.f32.mrb[0].mxu0
  %v3456 = vadd.f32 0.0, %v3455
  %3457 = vdwg.mxu0
  %v3462 = vcombine.low %v3383, %v3385
  %v3463 = vcombine.low %v3454, %v3456
  %v3465 = vunpack.c.l.s4 1966171168
  %v3466 = vunpack.c.0.s8 %v3465
  %v3467 = vlaneseq
  %v3468 = vshrl.u32 %v3467, 7
  %v3469 = vsub.s32 %v3466, %v3468
  %v3470 = vrot.slane %v3462, %v3469
  %v3472 = vunpack.c.l.s4 1966171168
  %v3473 = vunpack.c.0.s8 %v3472
  %v3474 = vlaneseq
  %v3475 = vshrl.u32 %v3474, 7
  %v3476 = vsub.s32 %v3473, %v3475
  %v3477 = vrot.slane %v3463, %v3476
  %v3478 = vcombine.low %v3470, %v3477
  %v3480 = vunpack.c.l.s4 1966171168
  %v3481 = vunpack.c.0.s8 %v3480
  %v3482 = vlaneseq
  %v3483 = vshrl.u32 %v3482, 7
  %v3484 = vsub.s32 %v3481, %v3483
  %v3485 = vrot.slane %v3478, %v3484
  %v3487 = vadd.f32 %v3251, %v3485
  %v3488 = vxor.u32 %v3487, 2147483648
  %v3489 = vmul.f32 %v3488, 1.442695
  %v3490 = vpow.pop %v3489
  %v3491 = vadd.f32 %v3490, 1.0
  %v3492 = vrcp.pop %v3491
  %v3493 = vmul.f32 1.0, %v3492
  %v3495 = vrot.slane %v3487, 1
  %v3497 = vxor.u32 %v3495, 2147483648
  %v3498 = vmul.f32 %v3497, 1.442695
  %v3499 = vpow.pop %v3498
  %v3500 = vadd.f32 %v3499, 1.0
  %v3501 = vrcp.pop %v3500
  %v3502 = vmul.f32 1.0, %v3501
  %v3503 = vrot.slane %v3487, 2
  %v3505 = vtanh.pop %v3503
  %v3506 = vrot.slane %v3487, 3
  %v3508 = vxor.u32 %v3506, 2147483648
  %v3509 = vmul.f32 %v3508, 1.442695
  %v3510 = vpow.pop %v3509
  %v3511 = vadd.f32 %v3510, 1.0
  %v3512 = vrcp.pop %v3511
  %v3513 = vmul.f32 1.0, %v3512
  %v3514 = vmul.f32 %v3502, %v3246
  %v3515 = vmul.f32 %v3493, %v3505
  %v3516 = vadd.f32 %v3514, %v3515
  %v3517 = vtanh.pop %v3516
  %v3518 = vmul.f32 %v3513, %v3517
  %3519 = vst [vmem:[%s2 + $0xc] sm:$0x1] %v3518
  %s3520 = scalar_lea.vmem %s0, 45
  %v3521 = vld [vmem:[%s3520] ss:$8 sm:$0xf]
  %v3522 = vld [vmem:[%s1] sm:$0xff]
  %v3523 = vld [vmem:[%s1 + $0x8] sm:$0xff]
  %v3524 = vld [vmem:[%s1 + $0x10] sm:$0xff]
  %v3525 = vld [vmem:[%s1 + $0x18] sm:$0xff]
  %v3526 = vld [vmem:[%s1 + $0x20] sm:$0xff]
  %v3527 = vld [vmem:[%s1 + $0x28] sm:$0xff]
  %v3528 = vld [vmem:[%s1 + $0x30] sm:$0xff]
  %v3529 = vld [vmem:[%s1 + $0x38] sm:$0xff]
  %v3530 = vld [vmem:[%s1 + $0x40] sm:$0xff]
  %v3531 = vld [vmem:[%s1 + $0x48] sm:$0xff]
  %v3532 = vld [vmem:[%s1 + $0x50] sm:$0xff]
  %v3533 = vld [vmem:[%s1 + $0x58] sm:$0xff]
  %v3534 = vld [vmem:[%s1 + $0x60] sm:$0xff]
  %v3535 = vld [vmem:[%s1 + $0x68] sm:$0xff]
  %v3536 = vld [vmem:[%s1 + $0x70] sm:$0xff]
  %v3537 = vld [vmem:[%s1 + $0x78] sm:$0xff]
  %v3538 = vld [vmem:[%s1 + $0x80] sm:$0xff]
  %v3539 = vld [vmem:[%s1 + $0x88] sm:$0xff]
  %v3540 = vld [vmem:[%s1 + $0x90] sm:$0xff]
  %v3541 = vld [vmem:[%s1 + $0x98] sm:$0xff]
  %v3542 = vld [vmem:[%s1 + $0xa0] sm:$0xff]
  %v3543 = vld [vmem:[%s1 + $0xa8] sm:$0xff]
  %v3544 = vld [vmem:[%s1 + $0xb0] sm:$0xff]
  %v3545 = vld [vmem:[%s1 + $0xb8] sm:$0xff]
  %v3546 = vld [vmem:[%s1 + $0xc0] sm:$0xff]
  %v3547 = vld [vmem:[%s1 + $0xc8] sm:$0xff]
  %v3548 = vld [vmem:[%s1 + $0xd0] sm:$0xff]
  %v3549 = vld [vmem:[%s1 + $0xd8] sm:$0xff]
  %v3550 = vld [vmem:[%s1 + $0xe0] sm:$0xff]
  %v3551 = vld [vmem:[%s1 + $0xe8] sm:$0xff]
  %v3552 = vld [vmem:[%s1 + $0xf0] sm:$0xff]
  %v3553 = vld [vmem:[%s1 + $0xf8] sm:$0xff]
  %v3554 = vld [vmem:[%s1 + $0x100] sm:$0xff]
  %v3555 = vld [vmem:[%s1 + $0x108] sm:$0xff]
  %v3556 = vld [vmem:[%s1 + $0x110] sm:$0xff]
  %v3557 = vld [vmem:[%s1 + $0x118] sm:$0xff]
  %v3558 = vld [vmem:[%s1 + $0x120] sm:$0xff]
  %v3559 = vld [vmem:[%s1 + $0x128] sm:$0xff]
  %v3560 = vld [vmem:[%s1 + $0x130] sm:$0xff]
  %v3561 = vld [vmem:[%s1 + $0x138] sm:$0xff]
  %v3562 = vld [vmem:[%s1 + $0x140] sm:$0xff]
  %v3563 = vld [vmem:[%s1 + $0x148] sm:$0xff]
  %v3564 = vld [vmem:[%s1 + $0x150] sm:$0xff]
  %v3565 = vld [vmem:[%s1 + $0x158] sm:$0xff]
  %v3566 = vld [vmem:[%s1 + $0x160] sm:$0xff]
  %v3567 = vld [vmem:[%s1 + $0x168] sm:$0xff]
  %v3568 = vld [vmem:[%s1 + $0x170] sm:$0xff]
  %v3569 = vld [vmem:[%s1 + $0x178] sm:$0xff]
  %v3570 = vld [vmem:[%s1 + $0x180] sm:$0xff]
  %v3571 = vld [vmem:[%s1 + $0x188] sm:$0xff]
  %v3572 = vld [vmem:[%s1 + $0x190] sm:$0xff]
  %v3573 = vld [vmem:[%s1 + $0x198] sm:$0xff]
  %v3574 = vld [vmem:[%s1 + $0x1a0] sm:$0xff]
  %v3575 = vld [vmem:[%s1 + $0x1a8] sm:$0xff]
  %v3576 = vld [vmem:[%s1 + $0x1b0] sm:$0xff]
  %v3577 = vld [vmem:[%s1 + $0x1b8] sm:$0xff]
  %v3578 = vld [vmem:[%s1 + $0x1c0] sm:$0xff]
  %v3579 = vld [vmem:[%s1 + $0x1c8] sm:$0xff]
  %v3580 = vld [vmem:[%s1 + $0x1d0] sm:$0xff]
  %v3581 = vld [vmem:[%s1 + $0x1d8] sm:$0xff]
  %v3582 = vld [vmem:[%s1 + $0x1e0] sm:$0xff]
  %v3583 = vld [vmem:[%s1 + $0x1e8] sm:$0xff]
  %v3584 = vld [vmem:[%s1 + $0x1f0] sm:$0xff]
  %v3585 = vld [vmem:[%s1 + $0x1f8] sm:$0xff]
  %3586 = vmatprep.subr.mxu0 %v3523
  %3587 = vmatpush1.msra.mxu0 %v3522
  %3588 = vmatprep.subr.mxu0 %v3527
  %3589 = vmatpush1.msra.mxu0 %v3526
  %3590 = vmatprep.subr.mxu0 %v3531
  %3591 = vmatpush1.msra.mxu0 %v3530
  %3592 = vmatprep.subr.mxu0 %v3535
  %3593 = vmatpush1.msra.mxu0 %v3534
  %3594 = vmatprep.subr.mxu0 %v3539
  %3595 = vmatpush1.msra.mxu0 %v3538
  %3596 = vmatprep.subr.mxu0 %v3543
  %3597 = vmatpush1.msra.mxu0 %v3542
  %3598 = vmatprep.subr.mxu0 %v3547
  %3599 = vmatpush1.msra.mxu0 %v3546
  %3600 = vmatprep.subr.mxu0 %v3551
  %3601 = vmatpush1.msra.mxu0 %v3550
  %3602 = vmatprep.subr.mxu0 %v3555
  %3603 = vmatpush1.msra.mxu0 %v3554
  %3604 = vmatprep.subr.mxu0 %v3559
  %3605 = vmatpush1.msra.mxu0 %v3558
  %3606 = vmatprep.subr.mxu0 %v3563
  %3607 = vmatpush1.msra.mxu0 %v3562
  %3608 = vmatprep.subr.mxu0 %v3567
  %3609 = vmatpush1.msra.mxu0 %v3566
  %3610 = vmatprep.subr.mxu0 %v3571
  %3611 = vmatpush1.msra.mxu0 %v3570
  %3612 = vmatprep.subr.mxu0 %v3575
  %3613 = vmatpush1.msra.mxu0 %v3574
  %3614 = vmatprep.subr.mxu0 %v3579
  %3615 = vmatpush1.msra.mxu0 %v3578
  %3616 = vmatprep.subr.mxu0 %v3583
  %3617 = vmatpush1.msra.mxu0 %v3582
  %3618 = vmatprep.subr.mxu0 0.0
  %3619 = vmatpush1.msra.mxu0 0.0
  %3620 = vmatprep.subr.mxu0 0.0
  %3621 = vmatpush1.msra.mxu0 0.0
  %3622 = vmatprep.subr.mxu0 0.0
  %3623 = vmatpush1.msra.mxu0 0.0
  %3624 = vmatprep.subr.mxu0 0.0
  %3625 = vmatpush1.msra.mxu0 0.0
  %3626 = vmatprep.subr.mxu0 0.0
  %3627 = vmatpush1.msra.mxu0 0.0
  %3628 = vmatprep.subr.mxu0 0.0
  %3629 = vmatpush1.msra.mxu0 0.0
  %3630 = vmatprep.subr.mxu0 0.0
  %3631 = vmatpush1.msra.mxu0 0.0
  %3632 = vmatprep.subr.mxu0 0.0
  %3633 = vmatpush1.msra.mxu0 0.0
  %3634 = vmatprep.subr.mxu0 0.0
  %3635 = vmatpush1.msra.mxu0 0.0
  %3636 = vmatprep.subr.mxu0 0.0
  %3637 = vmatpush1.msra.mxu0 0.0
  %3638 = vmatprep.subr.mxu0 0.0
  %3639 = vmatpush1.msra.mxu0 0.0
  %3640 = vmatprep.subr.mxu0 0.0
  %3641 = vmatpush1.msra.mxu0 0.0
  %3642 = vmatprep.subr.mxu0 0.0
  %3643 = vmatpush1.msra.mxu0 0.0
  %3644 = vmatprep.subr.mxu0 0.0
  %3645 = vmatpush1.msra.mxu0 0.0
  %3646 = vmatprep.subr.mxu0 0.0
  %3647 = vmatpush1.msra.mxu0 0.0
  %3648 = vmatprep.subr.mxu0 0.0
  %3649 = vmatpush1.msra.mxu0 0.0
  %3650 = vmatprep.mubr.f32.mxu0 0.0
  %3651 = vmatmul.mubr.f32.gmra.mrb[0].mxu0 %v3518
  %v3652 = vpop.f32.mrb[0].mxu0
  %v3653 = vadd.f32 0.0, %v3652
  %v3654 = vpop.f32.mrb[0].mxu0
  %v3655 = vadd.f32 0.0, %v3654
  %3656 = vdwg.mxu0
  %3657 = vmatprep.subr.mxu0 %v3525
  %3658 = vmatpush1.msra.mxu0 %v3524
  %3659 = vmatprep.subr.mxu0 %v3529
  %3660 = vmatpush1.msra.mxu0 %v3528
  %3661 = vmatprep.subr.mxu0 %v3533
  %3662 = vmatpush1.msra.mxu0 %v3532
  %3663 = vmatprep.subr.mxu0 %v3537
  %3664 = vmatpush1.msra.mxu0 %v3536
  %3665 = vmatprep.subr.mxu0 %v3541
  %3666 = vmatpush1.msra.mxu0 %v3540
  %3667 = vmatprep.subr.mxu0 %v3545
  %3668 = vmatpush1.msra.mxu0 %v3544
  %3669 = vmatprep.subr.mxu0 %v3549
  %3670 = vmatpush1.msra.mxu0 %v3548
  %3671 = vmatprep.subr.mxu0 %v3553
  %3672 = vmatpush1.msra.mxu0 %v3552
  %3673 = vmatprep.subr.mxu0 %v3557
  %3674 = vmatpush1.msra.mxu0 %v3556
  %3675 = vmatprep.subr.mxu0 %v3561
  %3676 = vmatpush1.msra.mxu0 %v3560
  %3677 = vmatprep.subr.mxu0 %v3565
  %3678 = vmatpush1.msra.mxu0 %v3564
  %3679 = vmatprep.subr.mxu0 %v3569
  %3680 = vmatpush1.msra.mxu0 %v3568
  %3681 = vmatprep.subr.mxu0 %v3573
  %3682 = vmatpush1.msra.mxu0 %v3572
  %3683 = vmatprep.subr.mxu0 %v3577
  %3684 = vmatpush1.msra.mxu0 %v3576
  %3685 = vmatprep.subr.mxu0 %v3581
  %3686 = vmatpush1.msra.mxu0 %v3580
  %3687 = vmatprep.subr.mxu0 %v3585
  %3688 = vmatpush1.msra.mxu0 %v3584
  %3689 = vmatprep.subr.mxu0 0.0
  %3690 = vmatpush1.msra.mxu0 0.0
  %3691 = vmatprep.subr.mxu0 0.0
  %3692 = vmatpush1.msra.mxu0 0.0
  %3693 = vmatprep.subr.mxu0 0.0
  %3694 = vmatpush1.msra.mxu0 0.0
  %3695 = vmatprep.subr.mxu0 0.0
  %3696 = vmatpush1.msra.mxu0 0.0
  %3697 = vmatprep.subr.mxu0 0.0
  %3698 = vmatpush1.msra.mxu0 0.0
  %3699 = vmatprep.subr.mxu0 0.0
  %3700 = vmatpush1.msra.mxu0 0.0
  %3701 = vmatprep.subr.mxu0 0.0
  %3702 = vmatpush1.msra.mxu0 0.0
  %3703 = vmatprep.subr.mxu0 0.0
  %3704 = vmatpush1.msra.mxu0 0.0
  %3705 = vmatprep.subr.mxu0 0.0
  %3706 = vmatpush1.msra.mxu0 0.0
  %3707 = vmatprep.subr.mxu0 0.0
  %3708 = vmatpush1.msra.mxu0 0.0
  %3709 = vmatprep.subr.mxu0 0.0
  %3710 = vmatpush1.msra.mxu0 0.0
  %3711 = vmatprep.subr.mxu0 0.0
  %3712 = vmatpush1.msra.mxu0 0.0
  %3713 = vmatprep.subr.mxu0 0.0
  %3714 = vmatpush1.msra.mxu0 0.0
  %3715 = vmatprep.subr.mxu0 0.0
  %3716 = vmatpush1.msra.mxu0 0.0
  %3717 = vmatprep.subr.mxu0 0.0
  %3718 = vmatpush1.msra.mxu0 0.0
  %3719 = vmatprep.subr.mxu0 0.0
  %3720 = vmatpush1.msra.mxu0 0.0
  %3721 = vmatprep.mubr.f32.mxu0 0.0
  %3722 = vmatmul.mubr.f32.gmra.mrb[0].mxu0 %v3518
  %v3723 = vpop.f32.mrb[0].mxu0
  %v3724 = vadd.f32 0.0, %v3723
  %v3725 = vpop.f32.mrb[0].mxu0
  %v3726 = vadd.f32 0.0, %v3725
  %3727 = vdwg.mxu0
  %v3732 = vcombine.low %v3653, %v3655
  %v3733 = vcombine.low %v3724, %v3726
  %v3735 = vunpack.c.l.s4 1966171168
  %v3736 = vunpack.c.0.s8 %v3735
  %v3737 = vlaneseq
  %v3738 = vshrl.u32 %v3737, 7
  %v3739 = vsub.s32 %v3736, %v3738
  %v3740 = vrot.slane %v3732, %v3739
  %v3742 = vunpack.c.l.s4 1966171168
  %v3743 = vunpack.c.0.s8 %v3742
  %v3744 = vlaneseq
  %v3745 = vshrl.u32 %v3744, 7
  %v3746 = vsub.s32 %v3743, %v3745
  %v3747 = vrot.slane %v3733, %v3746
  %v3748 = vcombine.low %v3740, %v3747
  %v3750 = vunpack.c.l.s4 1966171168
  %v3751 = vunpack.c.0.s8 %v3750
  %v3752 = vlaneseq
  %v3753 = vshrl.u32 %v3752, 7
  %v3754 = vsub.s32 %v3751, %v3753
  %v3755 = vrot.slane %v3748, %v3754
  %v3757 = vadd.f32 %v3521, %v3755
  %v3758 = vxor.u32 %v3757, 2147483648
  %v3759 = vmul.f32 %v3758, 1.442695
  %v3760 = vpow.pop %v3759
  %v3761 = vadd.f32 %v3760, 1.0
  %v3762 = vrcp.pop %v3761
  %v3763 = vmul.f32 1.0, %v3762
  %v3765 = vrot.slane %v3757, 1
  %v3767 = vxor.u32 %v3765, 2147483648
  %v3768 = vmul.f32 %v3767, 1.442695
  %v3769 = vpow.pop %v3768
  %v3770 = vadd.f32 %v3769, 1.0
  %v3771 = vrcp.pop %v3770
  %v3772 = vmul.f32 1.0, %v3771
  %v3773 = vrot.slane %v3757, 2
  %v3775 = vtanh.pop %v3773
  %v3776 = vrot.slane %v3757, 3
  %v3778 = vxor.u32 %v3776, 2147483648
  %v3779 = vmul.f32 %v3778, 1.442695
  %v3780 = vpow.pop %v3779
  %v3781 = vadd.f32 %v3780, 1.0
  %v3782 = vrcp.pop %v3781
  %v3783 = vmul.f32 1.0, %v3782
  %v3784 = vmul.f32 %v3772, %v3516
  %v3785 = vmul.f32 %v3763, %v3775
  %v3786 = vadd.f32 %v3784, %v3785
  %v3787 = vtanh.pop %v3786
  %v3788 = vmul.f32 %v3783, %v3787
  %3789 = vst [vmem:[%s2 + $0xd] sm:$0x1] %v3788
  %s3790 = scalar_lea.vmem %s0, 46
  %v3791 = vld [vmem:[%s3790] ss:$8 sm:$0xf]
  %v3792 = vld [vmem:[%s1] sm:$0xff]
  %v3793 = vld [vmem:[%s1 + $0x8] sm:$0xff]
  %v3794 = vld [vmem:[%s1 + $0x10] sm:$0xff]
  %v3795 = vld [vmem:[%s1 + $0x18] sm:$0xff]
  %v3796 = vld [vmem:[%s1 + $0x20] sm:$0xff]
  %v3797 = vld [vmem:[%s1 + $0x28] sm:$0xff]
  %v3798 = vld [vmem:[%s1 + $0x30] sm:$0xff]
  %v3799 = vld [vmem:[%s1 + $0x38] sm:$0xff]
  %v3800 = vld [vmem:[%s1 + $0x40] sm:$0xff]
  %v3801 = vld [vmem:[%s1 + $0x48] sm:$0xff]
  %v3802 = vld [vmem:[%s1 + $0x50] sm:$0xff]
  %v3803 = vld [vmem:[%s1 + $0x58] sm:$0xff]
  %v3804 = vld [vmem:[%s1 + $0x60] sm:$0xff]
  %v3805 = vld [vmem:[%s1 + $0x68] sm:$0xff]
  %v3806 = vld [vmem:[%s1 + $0x70] sm:$0xff]
  %v3807 = vld [vmem:[%s1 + $0x78] sm:$0xff]
  %v3808 = vld [vmem:[%s1 + $0x80] sm:$0xff]
  %v3809 = vld [vmem:[%s1 + $0x88] sm:$0xff]
  %v3810 = vld [vmem:[%s1 + $0x90] sm:$0xff]
  %v3811 = vld [vmem:[%s1 + $0x98] sm:$0xff]
  %v3812 = vld [vmem:[%s1 + $0xa0] sm:$0xff]
  %v3813 = vld [vmem:[%s1 + $0xa8] sm:$0xff]
  %v3814 = vld [vmem:[%s1 + $0xb0] sm:$0xff]
  %v3815 = vld [vmem:[%s1 + $0xb8] sm:$0xff]
  %v3816 = vld [vmem:[%s1 + $0xc0] sm:$0xff]
  %v3817 = vld [vmem:[%s1 + $0xc8] sm:$0xff]
  %v3818 = vld [vmem:[%s1 + $0xd0] sm:$0xff]
  %v3819 = vld [vmem:[%s1 + $0xd8] sm:$0xff]
  %v3820 = vld [vmem:[%s1 + $0xe0] sm:$0xff]
  %v3821 = vld [vmem:[%s1 + $0xe8] sm:$0xff]
  %v3822 = vld [vmem:[%s1 + $0xf0] sm:$0xff]
  %v3823 = vld [vmem:[%s1 + $0xf8] sm:$0xff]
  %v3824 = vld [vmem:[%s1 + $0x100] sm:$0xff]
  %v3825 = vld [vmem:[%s1 + $0x108] sm:$0xff]
  %v3826 = vld [vmem:[%s1 + $0x110] sm:$0xff]
  %v3827 = vld [vmem:[%s1 + $0x118] sm:$0xff]
  %v3828 = vld [vmem:[%s1 + $0x120] sm:$0xff]
  %v3829 = vld [vmem:[%s1 + $0x128] sm:$0xff]
  %v3830 = vld [vmem:[%s1 + $0x130] sm:$0xff]
  %v3831 = vld [vmem:[%s1 + $0x138] sm:$0xff]
  %v3832 = vld [vmem:[%s1 + $0x140] sm:$0xff]
  %v3833 = vld [vmem:[%s1 + $0x148] sm:$0xff]
  %v3834 = vld [vmem:[%s1 + $0x150] sm:$0xff]
  %v3835 = vld [vmem:[%s1 + $0x158] sm:$0xff]
  %v3836 = vld [vmem:[%s1 + $0x160] sm:$0xff]
  %v3837 = vld [vmem:[%s1 + $0x168] sm:$0xff]
  %v3838 = vld [vmem:[%s1 + $0x170] sm:$0xff]
  %v3839 = vld [vmem:[%s1 + $0x178] sm:$0xff]
  %v3840 = vld [vmem:[%s1 + $0x180] sm:$0xff]
  %v3841 = vld [vmem:[%s1 + $0x188] sm:$0xff]
  %v3842 = vld [vmem:[%s1 + $0x190] sm:$0xff]
  %v3843 = vld [vmem:[%s1 + $0x198] sm:$0xff]
  %v3844 = vld [vmem:[%s1 + $0x1a0] sm:$0xff]
  %v3845 = vld [vmem:[%s1 + $0x1a8] sm:$0xff]
  %v3846 = vld [vmem:[%s1 + $0x1b0] sm:$0xff]
  %v3847 = vld [vmem:[%s1 + $0x1b8] sm:$0xff]
  %v3848 = vld [vmem:[%s1 + $0x1c0] sm:$0xff]
  %v3849 = vld [vmem:[%s1 + $0x1c8] sm:$0xff]
  %v3850 = vld [vmem:[%s1 + $0x1d0] sm:$0xff]
  %v3851 = vld [vmem:[%s1 + $0x1d8] sm:$0xff]
  %v3852 = vld [vmem:[%s1 + $0x1e0] sm:$0xff]
  %v3853 = vld [vmem:[%s1 + $0x1e8] sm:$0xff]
  %v3854 = vld [vmem:[%s1 + $0x1f0] sm:$0xff]
  %v3855 = vld [vmem:[%s1 + $0x1f8] sm:$0xff]
  %3856 = vmatprep.subr.mxu0 %v3793
  %3857 = vmatpush1.msra.mxu0 %v3792
  %3858 = vmatprep.subr.mxu0 %v3797
  %3859 = vmatpush1.msra.mxu0 %v3796
  %3860 = vmatprep.subr.mxu0 %v3801
  %3861 = vmatpush1.msra.mxu0 %v3800
  %3862 = vmatprep.subr.mxu0 %v3805
  %3863 = vmatpush1.msra.mxu0 %v3804
  %3864 = vmatprep.subr.mxu0 %v3809
  %3865 = vmatpush1.msra.mxu0 %v3808
  %3866 = vmatprep.subr.mxu0 %v3813
  %3867 = vmatpush1.msra.mxu0 %v3812
  %3868 = vmatprep.subr.mxu0 %v3817
  %3869 = vmatpush1.msra.mxu0 %v3816
  %3870 = vmatprep.subr.mxu0 %v3821
  %3871 = vmatpush1.msra.mxu0 %v3820
  %3872 = vmatprep.subr.mxu0 %v3825
  %3873 = vmatpush1.msra.mxu0 %v3824
  %3874 = vmatprep.subr.mxu0 %v3829
  %3875 = vmatpush1.msra.mxu0 %v3828
  %3876 = vmatprep.subr.mxu0 %v3833
  %3877 = vmatpush1.msra.mxu0 %v3832
  %3878 = vmatprep.subr.mxu0 %v3837
  %3879 = vmatpush1.msra.mxu0 %v3836
  %3880 = vmatprep.subr.mxu0 %v3841
  %3881 = vmatpush1.msra.mxu0 %v3840
  %3882 = vmatprep.subr.mxu0 %v3845
  %3883 = vmatpush1.msra.mxu0 %v3844
  %3884 = vmatprep.subr.mxu0 %v3849
  %3885 = vmatpush1.msra.mxu0 %v3848
  %3886 = vmatprep.subr.mxu0 %v3853
  %3887 = vmatpush1.msra.mxu0 %v3852
  %3888 = vmatprep.subr.mxu0 0.0
  %3889 = vmatpush1.msra.mxu0 0.0
  %3890 = vmatprep.subr.mxu0 0.0
  %3891 = vmatpush1.msra.mxu0 0.0
  %3892 = vmatprep.subr.mxu0 0.0
  %3893 = vmatpush1.msra.mxu0 0.0
  %3894 = vmatprep.subr.mxu0 0.0
  %3895 = vmatpush1.msra.mxu0 0.0
  %3896 = vmatprep.subr.mxu0 0.0
  %3897 = vmatpush1.msra.mxu0 0.0
  %3898 = vmatprep.subr.mxu0 0.0
  %3899 = vmatpush1.msra.mxu0 0.0
  %3900 = vmatprep.subr.mxu0 0.0
  %3901 = vmatpush1.msra.mxu0 0.0
  %3902 = vmatprep.subr.mxu0 0.0
  %3903 = vmatpush1.msra.mxu0 0.0
  %3904 = vmatprep.subr.mxu0 0.0
  %3905 = vmatpush1.msra.mxu0 0.0
  %3906 = vmatprep.subr.mxu0 0.0
  %3907 = vmatpush1.msra.mxu0 0.0
  %3908 = vmatprep.subr.mxu0 0.0
  %3909 = vmatpush1.msra.mxu0 0.0
  %3910 = vmatprep.subr.mxu0 0.0
  %3911 = vmatpush1.msra.mxu0 0.0
  %3912 = vmatprep.subr.mxu0 0.0
  %3913 = vmatpush1.msra.mxu0 0.0
  %3914 = vmatprep.subr.mxu0 0.0
  %3915 = vmatpush1.msra.mxu0 0.0
  %3916 = vmatprep.subr.mxu0 0.0
  %3917 = vmatpush1.msra.mxu0 0.0
  %3918 = vmatprep.subr.mxu0 0.0
  %3919 = vmatpush1.msra.mxu0 0.0
  %3920 = vmatprep.mubr.f32.mxu0 0.0
  %3921 = vmatmul.mubr.f32.gmra.mrb[0].mxu0 %v3788
  %v3922 = vpop.f32.mrb[0].mxu0
  %v3923 = vadd.f32 0.0, %v3922
  %v3924 = vpop.f32.mrb[0].mxu0
  %v3925 = vadd.f32 0.0, %v3924
  %3926 = vdwg.mxu0
  %3927 = vmatprep.subr.mxu0 %v3795
  %3928 = vmatpush1.msra.mxu0 %v3794
  %3929 = vmatprep.subr.mxu0 %v3799
  %3930 = vmatpush1.msra.mxu0 %v3798
  %3931 = vmatprep.subr.mxu0 %v3803
  %3932 = vmatpush1.msra.mxu0 %v3802
  %3933 = vmatprep.subr.mxu0 %v3807
  %3934 = vmatpush1.msra.mxu0 %v3806
  %3935 = vmatprep.subr.mxu0 %v3811
  %3936 = vmatpush1.msra.mxu0 %v3810
  %3937 = vmatprep.subr.mxu0 %v3815
  %3938 = vmatpush1.msra.mxu0 %v3814
  %3939 = vmatprep.subr.mxu0 %v3819
  %3940 = vmatpush1.msra.mxu0 %v3818
  %3941 = vmatprep.subr.mxu0 %v3823
  %3942 = vmatpush1.msra.mxu0 %v3822
  %3943 = vmatprep.subr.mxu0 %v3827
  %3944 = vmatpush1.msra.mxu0 %v3826
  %3945 = vmatprep.subr.mxu0 %v3831
  %3946 = vmatpush1.msra.mxu0 %v3830
  %3947 = vmatprep.subr.mxu0 %v3835
  %3948 = vmatpush1.msra.mxu0 %v3834
  %3949 = vmatprep.subr.mxu0 %v3839
  %3950 = vmatpush1.msra.mxu0 %v3838
  %3951 = vmatprep.subr.mxu0 %v3843
  %3952 = vmatpush1.msra.mxu0 %v3842
  %3953 = vmatprep.subr.mxu0 %v3847
  %3954 = vmatpush1.msra.mxu0 %v3846
  %3955 = vmatprep.subr.mxu0 %v3851
  %3956 = vmatpush1.msra.mxu0 %v3850
  %3957 = vmatprep.subr.mxu0 %v3855
  %3958 = vmatpush1.msra.mxu0 %v3854
  %3959 = vmatprep.subr.mxu0 0.0
  %3960 = vmatpush1.msra.mxu0 0.0
  %3961 = vmatprep.subr.mxu0 0.0
  %3962 = vmatpush1.msra.mxu0 0.0
  %3963 = vmatprep.subr.mxu0 0.0
  %3964 = vmatpush1.msra.mxu0 0.0
  %3965 = vmatprep.subr.mxu0 0.0
  %3966 = vmatpush1.msra.mxu0 0.0
  %3967 = vmatprep.subr.mxu0 0.0
  %3968 = vmatpush1.msra.mxu0 0.0
  %3969 = vmatprep.subr.mxu0 0.0
  %3970 = vmatpush1.msra.mxu0 0.0
  %3971 = vmatprep.subr.mxu0 0.0
  %3972 = vmatpush1.msra.mxu0 0.0
  %3973 = vmatprep.subr.mxu0 0.0
  %3974 = vmatpush1.msra.mxu0 0.0
  %3975 = vmatprep.subr.mxu0 0.0
  %3976 = vmatpush1.msra.mxu0 0.0
  %3977 = vmatprep.subr.mxu0 0.0
  %3978 = vmatpush1.msra.mxu0 0.0
  %3979 = vmatprep.subr.mxu0 0.0
  %3980 = vmatpush1.msra.mxu0 0.0
  %3981 = vmatprep.subr.mxu0 0.0
  %3982 = vmatpush1.msra.mxu0 0.0
  %3983 = vmatprep.subr.mxu0 0.0
  %3984 = vmatpush1.msra.mxu0 0.0
  %3985 = vmatprep.subr.mxu0 0.0
  %3986 = vmatpush1.msra.mxu0 0.0
  %3987 = vmatprep.subr.mxu0 0.0
  %3988 = vmatpush1.msra.mxu0 0.0
  %3989 = vmatprep.subr.mxu0 0.0
  %3990 = vmatpush1.msra.mxu0 0.0
  %3991 = vmatprep.mubr.f32.mxu0 0.0
  %3992 = vmatmul.mubr.f32.gmra.mrb[0].mxu0 %v3788
  %v3993 = vpop.f32.mrb[0].mxu0
  %v3994 = vadd.f32 0.0, %v3993
  %v3995 = vpop.f32.mrb[0].mxu0
  %v3996 = vadd.f32 0.0, %v3995
  %3997 = vdwg.mxu0
  %v4002 = vcombine.low %v3923, %v3925
  %v4003 = vcombine.low %v3994, %v3996
  %v4005 = vunpack.c.l.s4 1966171168
  %v4006 = vunpack.c.0.s8 %v4005
  %v4007 = vlaneseq
  %v4008 = vshrl.u32 %v4007, 7
  %v4009 = vsub.s32 %v4006, %v4008
  %v4010 = vrot.slane %v4002, %v4009
  %v4012 = vunpack.c.l.s4 1966171168
  %v4013 = vunpack.c.0.s8 %v4012
  %v4014 = vlaneseq
  %v4015 = vshrl.u32 %v4014, 7
  %v4016 = vsub.s32 %v4013, %v4015
  %v4017 = vrot.slane %v4003, %v4016
  %v4018 = vcombine.low %v4010, %v4017
  %v4020 = vunpack.c.l.s4 1966171168
  %v4021 = vunpack.c.0.s8 %v4020
  %v4022 = vlaneseq
  %v4023 = vshrl.u32 %v4022, 7
  %v4024 = vsub.s32 %v4021, %v4023
  %v4025 = vrot.slane %v4018, %v4024
  %v4027 = vadd.f32 %v3791, %v4025
  %v4028 = vxor.u32 %v4027, 2147483648
  %v4029 = vmul.f32 %v4028, 1.442695
  %v4030 = vpow.pop %v4029
  %v4031 = vadd.f32 %v4030, 1.0
  %v4032 = vrcp.pop %v4031
  %v4033 = vmul.f32 1.0, %v4032
  %v4035 = vrot.slane %v4027, 1
  %v4037 = vxor.u32 %v4035, 2147483648
  %v4038 = vmul.f32 %v4037, 1.442695
  %v4039 = vpow.pop %v4038
  %v4040 = vadd.f32 %v4039, 1.0
  %v4041 = vrcp.pop %v4040
  %v4042 = vmul.f32 1.0, %v4041
  %v4043 = vrot.slane %v4027, 2
  %v4045 = vtanh.pop %v4043
  %v4046 = vrot.slane %v4027, 3
  %v4048 = vxor.u32 %v4046, 2147483648
  %v4049 = vmul.f32 %v4048, 1.442695
  %v4050 = vpow.pop %v4049
  %v4051 = vadd.f32 %v4050, 1.0
  %v4052 = vrcp.pop %v4051
  %v4053 = vmul.f32 1.0, %v4052
  %v4054 = vmul.f32 %v4042, %v3786
  %v4055 = vmul.f32 %v4033, %v4045
  %v4056 = vadd.f32 %v4054, %v4055
  %v4057 = vtanh.pop %v4056
  %v4058 = vmul.f32 %v4053, %v4057
  %4059 = vst [vmem:[%s2 + $0xe] sm:$0x1] %v4058
  %s4060 = scalar_lea.vmem %s0, 47
  %v4061 = vld [vmem:[%s4060] ss:$8 sm:$0xf]
  %v4062 = vld [vmem:[%s1] sm:$0xff]
  %v4063 = vld [vmem:[%s1 + $0x8] sm:$0xff]
  %v4064 = vld [vmem:[%s1 + $0x10] sm:$0xff]
  %v4065 = vld [vmem:[%s1 + $0x18] sm:$0xff]
  %v4066 = vld [vmem:[%s1 + $0x20] sm:$0xff]
  %v4067 = vld [vmem:[%s1 + $0x28] sm:$0xff]
  %v4068 = vld [vmem:[%s1 + $0x30] sm:$0xff]
  %v4069 = vld [vmem:[%s1 + $0x38] sm:$0xff]
  %v4070 = vld [vmem:[%s1 + $0x40] sm:$0xff]
  %v4071 = vld [vmem:[%s1 + $0x48] sm:$0xff]
  %v4072 = vld [vmem:[%s1 + $0x50] sm:$0xff]
  %v4073 = vld [vmem:[%s1 + $0x58] sm:$0xff]
  %v4074 = vld [vmem:[%s1 + $0x60] sm:$0xff]
  %v4075 = vld [vmem:[%s1 + $0x68] sm:$0xff]
  %v4076 = vld [vmem:[%s1 + $0x70] sm:$0xff]
  %v4077 = vld [vmem:[%s1 + $0x78] sm:$0xff]
  %v4078 = vld [vmem:[%s1 + $0x80] sm:$0xff]
  %v4079 = vld [vmem:[%s1 + $0x88] sm:$0xff]
  %v4080 = vld [vmem:[%s1 + $0x90] sm:$0xff]
  %v4081 = vld [vmem:[%s1 + $0x98] sm:$0xff]
  %v4082 = vld [vmem:[%s1 + $0xa0] sm:$0xff]
  %v4083 = vld [vmem:[%s1 + $0xa8] sm:$0xff]
  %v4084 = vld [vmem:[%s1 + $0xb0] sm:$0xff]
  %v4085 = vld [vmem:[%s1 + $0xb8] sm:$0xff]
  %v4086 = vld [vmem:[%s1 + $0xc0] sm:$0xff]
  %v4087 = vld [vmem:[%s1 + $0xc8] sm:$0xff]
  %v4088 = vld [vmem:[%s1 + $0xd0] sm:$0xff]
  %v4089 = vld [vmem:[%s1 + $0xd8] sm:$0xff]
  %v4090 = vld [vmem:[%s1 + $0xe0] sm:$0xff]
  %v4091 = vld [vmem:[%s1 + $0xe8] sm:$0xff]
  %v4092 = vld [vmem:[%s1 + $0xf0] sm:$0xff]
  %v4093 = vld [vmem:[%s1 + $0xf8] sm:$0xff]
  %v4094 = vld [vmem:[%s1 + $0x100] sm:$0xff]
  %v4095 = vld [vmem:[%s1 + $0x108] sm:$0xff]
  %v4096 = vld [vmem:[%s1 + $0x110] sm:$0xff]
  %v4097 = vld [vmem:[%s1 + $0x118] sm:$0xff]
  %v4098 = vld [vmem:[%s1 + $0x120] sm:$0xff]
  %v4099 = vld [vmem:[%s1 + $0x128] sm:$0xff]
  %v4100 = vld [vmem:[%s1 + $0x130] sm:$0xff]
  %v4101 = vld [vmem:[%s1 + $0x138] sm:$0xff]
  %v4102 = vld [vmem:[%s1 + $0x140] sm:$0xff]
  %v4103 = vld [vmem:[%s1 + $0x148] sm:$0xff]
  %v4104 = vld [vmem:[%s1 + $0x150] sm:$0xff]
  %v4105 = vld [vmem:[%s1 + $0x158] sm:$0xff]
  %v4106 = vld [vmem:[%s1 + $0x160] sm:$0xff]
  %v4107 = vld [vmem:[%s1 + $0x168] sm:$0xff]
  %v4108 = vld [vmem:[%s1 + $0x170] sm:$0xff]
  %v4109 = vld [vmem:[%s1 + $0x178] sm:$0xff]
  %v4110 = vld [vmem:[%s1 + $0x180] sm:$0xff]
  %v4111 = vld [vmem:[%s1 + $0x188] sm:$0xff]
  %v4112 = vld [vmem:[%s1 + $0x190] sm:$0xff]
  %v4113 = vld [vmem:[%s1 + $0x198] sm:$0xff]
  %v4114 = vld [vmem:[%s1 + $0x1a0] sm:$0xff]
  %v4115 = vld [vmem:[%s1 + $0x1a8] sm:$0xff]
  %v4116 = vld [vmem:[%s1 + $0x1b0] sm:$0xff]
  %v4117 = vld [vmem:[%s1 + $0x1b8] sm:$0xff]
  %v4118 = vld [vmem:[%s1 + $0x1c0] sm:$0xff]
  %v4119 = vld [vmem:[%s1 + $0x1c8] sm:$0xff]
  %v4120 = vld [vmem:[%s1 + $0x1d0] sm:$0xff]
  %v4121 = vld [vmem:[%s1 + $0x1d8] sm:$0xff]
  %v4122 = vld [vmem:[%s1 + $0x1e0] sm:$0xff]
  %v4123 = vld [vmem:[%s1 + $0x1e8] sm:$0xff]
  %v4124 = vld [vmem:[%s1 + $0x1f0] sm:$0xff]
  %v4125 = vld [vmem:[%s1 + $0x1f8] sm:$0xff]
  %4126 = vmatprep.subr.mxu0 %v4063
  %4127 = vmatpush1.msra.mxu0 %v4062
  %4128 = vmatprep.subr.mxu0 %v4067
  %4129 = vmatpush1.msra.mxu0 %v4066
  %4130 = vmatprep.subr.mxu0 %v4071
  %4131 = vmatpush1.msra.mxu0 %v4070
  %4132 = vmatprep.subr.mxu0 %v4075
  %4133 = vmatpush1.msra.mxu0 %v4074
  %4134 = vmatprep.subr.mxu0 %v4079
  %4135 = vmatpush1.msra.mxu0 %v4078
  %4136 = vmatprep.subr.mxu0 %v4083
  %4137 = vmatpush1.msra.mxu0 %v4082
  %4138 = vmatprep.subr.mxu0 %v4087
  %4139 = vmatpush1.msra.mxu0 %v4086
  %4140 = vmatprep.subr.mxu0 %v4091
  %4141 = vmatpush1.msra.mxu0 %v4090
  %4142 = vmatprep.subr.mxu0 %v4095
  %4143 = vmatpush1.msra.mxu0 %v4094
  %4144 = vmatprep.subr.mxu0 %v4099
  %4145 = vmatpush1.msra.mxu0 %v4098
  %4146 = vmatprep.subr.mxu0 %v4103
  %4147 = vmatpush1.msra.mxu0 %v4102
  %4148 = vmatprep.subr.mxu0 %v4107
  %4149 = vmatpush1.msra.mxu0 %v4106
  %4150 = vmatprep.subr.mxu0 %v4111
  %4151 = vmatpush1.msra.mxu0 %v4110
  %4152 = vmatprep.subr.mxu0 %v4115
  %4153 = vmatpush1.msra.mxu0 %v4114
  %4154 = vmatprep.subr.mxu0 %v4119
  %4155 = vmatpush1.msra.mxu0 %v4118
  %4156 = vmatprep.subr.mxu0 %v4123
  %4157 = vmatpush1.msra.mxu0 %v4122
  %4158 = vmatprep.subr.mxu0 0.0
  %4159 = vmatpush1.msra.mxu0 0.0
  %4160 = vmatprep.subr.mxu0 0.0
  %4161 = vmatpush1.msra.mxu0 0.0
  %4162 = vmatprep.subr.mxu0 0.0
  %4163 = vmatpush1.msra.mxu0 0.0
  %4164 = vmatprep.subr.mxu0 0.0
  %4165 = vmatpush1.msra.mxu0 0.0
  %4166 = vmatprep.subr.mxu0 0.0
  %4167 = vmatpush1.msra.mxu0 0.0
  %4168 = vmatprep.subr.mxu0 0.0
  %4169 = vmatpush1.msra.mxu0 0.0
  %4170 = vmatprep.subr.mxu0 0.0
  %4171 = vmatpush1.msra.mxu0 0.0
  %4172 = vmatprep.subr.mxu0 0.0
  %4173 = vmatpush1.msra.mxu0 0.0
  %4174 = vmatprep.subr.mxu0 0.0
  %4175 = vmatpush1.msra.mxu0 0.0
  %4176 = vmatprep.subr.mxu0 0.0
  %4177 = vmatpush1.msra.mxu0 0.0
  %4178 = vmatprep.subr.mxu0 0.0
  %4179 = vmatpush1.msra.mxu0 0.0
  %4180 = vmatprep.subr.mxu0 0.0
  %4181 = vmatpush1.msra.mxu0 0.0
  %4182 = vmatprep.subr.mxu0 0.0
  %4183 = vmatpush1.msra.mxu0 0.0
  %4184 = vmatprep.subr.mxu0 0.0
  %4185 = vmatpush1.msra.mxu0 0.0
  %4186 = vmatprep.subr.mxu0 0.0
  %4187 = vmatpush1.msra.mxu0 0.0
  %4188 = vmatprep.subr.mxu0 0.0
  %4189 = vmatpush1.msra.mxu0 0.0
  %4190 = vmatprep.mubr.f32.mxu0 0.0
  %4191 = vmatmul.mubr.f32.gmra.mrb[0].mxu0 %v4058
  %v4192 = vpop.f32.mrb[0].mxu0
  %v4193 = vadd.f32 0.0, %v4192
  %v4194 = vpop.f32.mrb[0].mxu0
  %v4195 = vadd.f32 0.0, %v4194
  %4196 = vdwg.mxu0
  %4197 = vmatprep.subr.mxu0 %v4065
  %4198 = vmatpush1.msra.mxu0 %v4064
  %4199 = vmatprep.subr.mxu0 %v4069
  %4200 = vmatpush1.msra.mxu0 %v4068
  %4201 = vmatprep.subr.mxu0 %v4073
  %4202 = vmatpush1.msra.mxu0 %v4072
  %4203 = vmatprep.subr.mxu0 %v4077
  %4204 = vmatpush1.msra.mxu0 %v4076
  %4205 = vmatprep.subr.mxu0 %v4081
  %4206 = vmatpush1.msra.mxu0 %v4080
  %4207 = vmatprep.subr.mxu0 %v4085
  %4208 = vmatpush1.msra.mxu0 %v4084
  %4209 = vmatprep.subr.mxu0 %v4089
  %4210 = vmatpush1.msra.mxu0 %v4088
  %4211 = vmatprep.subr.mxu0 %v4093
  %4212 = vmatpush1.msra.mxu0 %v4092
  %4213 = vmatprep.subr.mxu0 %v4097
  %4214 = vmatpush1.msra.mxu0 %v4096
  %4215 = vmatprep.subr.mxu0 %v4101
  %4216 = vmatpush1.msra.mxu0 %v4100
  %4217 = vmatprep.subr.mxu0 %v4105
  %4218 = vmatpush1.msra.mxu0 %v4104
  %4219 = vmatprep.subr.mxu0 %v4109
  %4220 = vmatpush1.msra.mxu0 %v4108
  %4221 = vmatprep.subr.mxu0 %v4113
  %4222 = vmatpush1.msra.mxu0 %v4112
  %4223 = vmatprep.subr.mxu0 %v4117
  %4224 = vmatpush1.msra.mxu0 %v4116
  %4225 = vmatprep.subr.mxu0 %v4121
  %4226 = vmatpush1.msra.mxu0 %v4120
  %4227 = vmatprep.subr.mxu0 %v4125
  %4228 = vmatpush1.msra.mxu0 %v4124
  %4229 = vmatprep.subr.mxu0 0.0
  %4230 = vmatpush1.msra.mxu0 0.0
  %4231 = vmatprep.subr.mxu0 0.0
  %4232 = vmatpush1.msra.mxu0 0.0
  %4233 = vmatprep.subr.mxu0 0.0
  %4234 = vmatpush1.msra.mxu0 0.0
  %4235 = vmatprep.subr.mxu0 0.0
  %4236 = vmatpush1.msra.mxu0 0.0
  %4237 = vmatprep.subr.mxu0 0.0
  %4238 = vmatpush1.msra.mxu0 0.0
  %4239 = vmatprep.subr.mxu0 0.0
  %4240 = vmatpush1.msra.mxu0 0.0
  %4241 = vmatprep.subr.mxu0 0.0
  %4242 = vmatpush1.msra.mxu0 0.0
  %4243 = vmatprep.subr.mxu0 0.0
  %4244 = vmatpush1.msra.mxu0 0.0
  %4245 = vmatprep.subr.mxu0 0.0
  %4246 = vmatpush1.msra.mxu0 0.0
  %4247 = vmatprep.subr.mxu0 0.0
  %4248 = vmatpush1.msra.mxu0 0.0
  %4249 = vmatprep.subr.mxu0 0.0
  %4250 = vmatpush1.msra.mxu0 0.0
  %4251 = vmatprep.subr.mxu0 0.0
  %4252 = vmatpush1.msra.mxu0 0.0
  %4253 = vmatprep.subr.mxu0 0.0
  %4254 = vmatpush1.msra.mxu0 0.0
  %4255 = vmatprep.subr.mxu0 0.0
  %4256 = vmatpush1.msra.mxu0 0.0
  %4257 = vmatprep.subr.mxu0 0.0
  %4258 = vmatpush1.msra.mxu0 0.0
  %4259 = vmatprep.subr.mxu0 0.0
  %4260 = vmatpush1.msra.mxu0 0.0
  %4261 = vmatprep.mubr.f32.mxu0 0.0
  %4262 = vmatmul.mubr.f32.gmra.mrb[0].mxu0 %v4058
  %v4263 = vpop.f32.mrb[0].mxu0
  %v4264 = vadd.f32 0.0, %v4263
  %v4265 = vpop.f32.mrb[0].mxu0
  %v4266 = vadd.f32 0.0, %v4265
  %4267 = vdwg.mxu0
  %v4272 = vcombine.low %v4193, %v4195
  %v4273 = vcombine.low %v4264, %v4266
  %v4275 = vunpack.c.l.s4 1966171168
  %v4276 = vunpack.c.0.s8 %v4275
  %v4277 = vlaneseq
  %v4278 = vshrl.u32 %v4277, 7
  %v4279 = vsub.s32 %v4276, %v4278
  %v4280 = vrot.slane %v4272, %v4279
  %v4282 = vunpack.c.l.s4 1966171168
  %v4283 = vunpack.c.0.s8 %v4282
  %v4284 = vlaneseq
  %v4285 = vshrl.u32 %v4284, 7
  %v4286 = vsub.s32 %v4283, %v4285
  %v4287 = vrot.slane %v4273, %v4286
  %v4288 = vcombine.low %v4280, %v4287
  %v4290 = vunpack.c.l.s4 1966171168
  %v4291 = vunpack.c.0.s8 %v4290
  %v4292 = vlaneseq
  %v4293 = vshrl.u32 %v4292, 7
  %v4294 = vsub.s32 %v4291, %v4293
  %v4295 = vrot.slane %v4288, %v4294
  %v4297 = vadd.f32 %v4061, %v4295
  %v4298 = vxor.u32 %v4297, 2147483648
  %v4299 = vmul.f32 %v4298, 1.442695
  %v4300 = vpow.pop %v4299
  %v4301 = vadd.f32 %v4300, 1.0
  %v4302 = vrcp.pop %v4301
  %v4303 = vmul.f32 1.0, %v4302
  %v4305 = vrot.slane %v4297, 1
  %v4307 = vxor.u32 %v4305, 2147483648
  %v4308 = vmul.f32 %v4307, 1.442695
  %v4309 = vpow.pop %v4308
  %v4310 = vadd.f32 %v4309, 1.0
  %v4311 = vrcp.pop %v4310
  %v4312 = vmul.f32 1.0, %v4311
  %v4313 = vrot.slane %v4297, 2
  %v4315 = vtanh.pop %v4313
  %v4316 = vrot.slane %v4297, 3
  %v4318 = vxor.u32 %v4316, 2147483648
  %v4319 = vmul.f32 %v4318, 1.442695
  %v4320 = vpow.pop %v4319
  %v4321 = vadd.f32 %v4320, 1.0
  %v4322 = vrcp.pop %v4321
  %v4323 = vmul.f32 1.0, %v4322
  %v4324 = vmul.f32 %v4312, %v4056
  %v4325 = vmul.f32 %v4303, %v4315
  %v4326 = vadd.f32 %v4324, %v4325
  %v4327 = vtanh.pop %v4326
  %v4328 = vmul.f32 %v4323, %v4327
  %4329 = vst [vmem:[%s2 + $0xf] sm:$0x1] %v4328
  // Predicated region
  $region10: #{rntn_forward.3} parent=0 // pred_check
    _
  $region11: #{rntn_forward.3} parent=0 // pred_check_branch
    %4331 = sbr.rel (0) target = $region13
  $region12: #{rntn_forward.3} parent=0 // pred_region
    _
  $region13: #{rntn_forward.3} parent=0 // pred_fallthru
    _
  // Predicated region
  $region14: #{rntn_forward.3} parent=0 // pred_check
    _
  $region15: #{rntn_forward.3} parent=0 // pred_check_branch
    %4333 = sbr.rel (0) target = $region17
  $region16: #{rntn_forward.3} parent=0 // pred_region
    _
  $region17: #{rntn_forward.3} parent=0 // pred_fallthru
    _

</llo_original>
